<compile_context>
chip_gen: v5e
topology: v5e:2x2
jax: 0.10.0
libtpu: 0.0.40
codegen_flags: <defaults>
</compile_context>

<pallas_src>
import functools

import jax
import jax.numpy as jnp
from jax.experimental import pallas as pl
from jax.experimental.pallas import tpu as pltpu

BN_EPS = 1e-5
VMEM = pl.BlockSpec(memory_space=pltpu.MemorySpace.VMEM)


# ----------------------------- in-kernel building blocks ------------------------------


def _mm(a, w):
    """(R, Cin) @ (Cin, Cout); Cin == 1 degenerates to a broadcast multiply (VPU, not MXU)."""
    if w.shape[0] == 1:
        return a * w
    return jnp.dot(a, w, preferred_element_type=jnp.float32)


def _batchnorm(y, gamma, beta):
    """BatchNorm with per-forward batch statistics (training mode, biased variance)."""
    mean = jnp.mean(y, axis=0, keepdims=True)
    var = jnp.mean(jnp.square(y - mean), axis=0, keepdims=True)
    return (y - mean) * jax.lax.rsqrt(var + BN_EPS) * gamma + beta


def _enc_block(x4, wk, pk, N, H, W, Cin, Cout):
    """Conv2d(3x3, circular pad 1) + bias + ReLU + AvgPool([2,1]) + BatchNorm.

    x4: (N, H, W, Cin) NHWC value.  wk: (9, Cin, Cout) per-tap weights.  pk: (3, Cout)
    packed [bias; gamma; beta].  Returns (N*(H//2)*W, Cout), rows in (n, h, w) order.
    """
    R = N * H * W
    # Circular taps via tensor doubling + static slices (all sublane concats are 8-aligned,
    # W == 8 == sublane tile so the 4D->2D reshapes below are layout-preserving).
    xx = jnp.concatenate([x4, x4], axis=1)        # (N, 2H, W, Cin)
    xx = jnp.concatenate([xx, xx], axis=2)        # (N, 2H, 2W, Cin)
    y = None
    for i in range(3):
        hs = (i - 1) % H
        for j in range(3):
            ws = (j - 1) % W
            tap = xx[:, hs:hs + H, ws:ws + W, :].reshape(R, Cin)
            t = _mm(tap, wk[i * 3 + j])
            y = t if y is None else y + t
    y = jnp.maximum(y + pk[0:1, :], 0.0)
    # AvgPool2d([2,1]) over H: consecutive 16-row groups = (even h line, odd h line).
    y3 = y.reshape(N * (H // 2), 2 * W, Cout)
    pooled = 0.5 * (y3[:, :W, :] + y3[:, W:, :])
    p2 = pooled.reshape(N * (H // 2) * W, Cout)
    return _batchnorm(p2, pk[1:2, :], pk[2:3, :])


def _dec_block(x4, wk, N, Hin, W, Cin, Cout):
    """ConvTranspose2d(kernel [4,3], stride [2,1], padding 1), polyphase form (no bias).

    x4: (N, Hin, W, Cin).  wk: (12, Cin, Cout), spatially flipped, tap index = kh*3 + kw.
    Returns (N * 2*Hin * W, Cout), rows in (n, h_out, w) order.
    """
    R = N * Hin * W
    zrow = jnp.zeros((N, 1, W, Cin), jnp.float32)
    x_m1 = jnp.concatenate([zrow, x4[:, :Hin - 1]], axis=1)   # x[h-1] (zero at top)
    x_p1 = jnp.concatenate([x4[:, 1:], zrow], axis=1)         # x[h+1] (zero at bottom)
    zblk = jnp.zeros_like(x4)

    def w_taps(a):
        left = jnp.concatenate([zblk, a], axis=2)             # zero pad on the left in W
        right = jnp.concatenate([a, zblk], axis=2)            # zero pad on the right in W
        return (left[:, :, W - 1:2 * W - 1, :],               # reads w-1
                a,                                            # reads w
                right[:, :, 1:W + 1, :])                      # reads w+1

    taps_m1 = w_taps(x_m1)
    taps_00 = w_taps(x4)                                      # shared by even & odd rows
    taps_p1 = w_taps(x_p1)

    def contrib(taps, kh):
        s = _mm(taps[0].reshape(R, Cin), wk[kh * 3 + 0])
        for kw in range(1, 3):
            s = s + _mm(taps[kw].reshape(R, Cin), wk[kh * 3 + kw])
        return s

    y_even = contrib(taps_m1, 0) + contrib(taps_00, 2)        # output rows 2t
    y_odd = contrib(taps_00, 1) + contrib(taps_p1, 3)         # output rows 2t+1
    ye3 = y_even.reshape(N * Hin, W, Cout)
    yo3 = y_odd.reshape(N * Hin, W, Cout)
    return jnp.concatenate([ye3, yo3], axis=1).reshape(N * Hin * 2 * W, Cout)


# --------------------------------- fused kernels --------------------------------------


def _encoder_kernel(x_ref, we0_ref, pe0_ref, we1_ref, pe1_ref,
                    w1_ref, b1_ref, w2_ref, b2_ref, w3_ref, b3_ref,
                    wr_ref, br_ref, eps_ref,
                    mu_ref, logvar_ref, rec_ref,
                    *, N, H, W, hidden, lat):
    C1, C2 = hidden
    # --- encoder conv blocks (all activations stay in VMEM) ---
    h0 = _enc_block(x_ref[...], we0_ref[...], pe0_ref[...], N, H, W, 1, C1)
    h0 = h0.reshape(N, H // 2, W, C1)
    h1 = _enc_block(h0, we1_ref[...], pe1_ref[...], N, H // 2, W, C1, C2)   # (N*P, C2)
    P = (H // 4) * W                                   # spatial positions per sample

    # --- flatten (torch NCHW .view(N,-1)) folded into the first MLP layer ---
    # Build gall[c*P + p, n] = h1[n*P + p, c] with per-sample one-hot lane masks, then do
    # the whole first layer as ONE (200, C2*P) @ (C2*P, N) matmul (K = C2*P = 256).
    lane = jax.lax.broadcasted_iota(jnp.int32, (1, N), 1)
    masks = [(lane == n).astype(jnp.float32) for n in range(N)]
    g_parts = []
    for c in range(C2):
        gc = h1[0:P, c:c + 1] * masks[0]
        for n in range(1, N):
            gc = gc + h1[n * P:(n + 1) * P, c:c + 1] * masks[n]
        g_parts.append(gc)
    gall = jnp.concatenate(g_parts, axis=0)            # (C2*P, N), rows in (c, p) order

    # --- fused mu/logsigma MLP heads (transposed orientation: batch on lanes) ---
    z1 = jnp.dot(w1_ref[...], gall, preferred_element_type=jnp.float32)
    a1 = jnp.maximum(z1 + b1_ref[...], 0.0)
    a2 = jnp.maximum(jnp.dot(w2_ref[...], a1, preferred_element_type=jnp.float32)
                     + b2_ref[...], 0.0)
    z3 = jnp.dot(w3_ref[...], a2, preferred_element_type=jnp.float32) + b3_ref[...]
    muT = z3[0:lat, :]
    logvarT = z3[lat:2 * lat, :]

    # --- reparameterization sample (training-mode _latent_sample) + recon Linear ---
    latentT = muT + jnp.exp(0.5 * logvarT) * eps_ref[...]
    recT = jnp.dot(wr_ref[...], latentT, preferred_element_type=jnp.float32) + br_ref[...]

    mu_ref[...] = muT
    logvar_ref[...] = logvarT
    rec_ref[...] = recT


def _decoder_kernel(x_ref, wd0_ref, pd0_ref, wd1_ref, bd1_ref, o_ref, *, N, H0, W, hidden):
    C0, C1 = hidden
    x4 = x_ref[...].reshape(N, H0, W, C0)
    # block 0: ConvTranspose -> ReLU -> BatchNorm
    y = _dec_block(x4, wd0_ref[...], N, H0, W, C0, C1)
    y = jnp.maximum(y + pd0_ref[0:1, :], 0.0)
    y = _batchnorm(y, pd0_ref[1:2, :], pd0_ref[2:3, :])
    # block 1 (final): ConvTranspose + bias only
    y4 = y.reshape(N, 2 * H0, W, C1)
    out = _dec_block(y4, wd1_ref[...], N, 2 * H0, W, C1, 1) + bd1_ref[...]
    o_ref[...] = out


# ------------------------- parameter folding (plain JAX, one-time) --------------------


def _prepare(params):
    cfg = params["cfg"]
    kh, kw = cfg["kernel_size"]
    ops = {}

    # encoder convs: torch (Cout, Cin, 3, 3) -> (9, Cin, Cout); pack [bias; gamma; beta]
    enc = []
    for (w, b, g, bt) in params["enc_conv"]:
        cout, cin = w.shape[0], w.shape[1]
        wk = jnp.transpose(w, (2, 3, 1, 0)).reshape(kh * kw, cin, cout)
        enc.append((wk, jnp.stack([b, g, bt], axis=0)))
    ops["enc"] = enc

    # fuse mu / logsigma heads: concat layer-1 outputs, block-diagonal layers 2/3
    (w1m, b1m, w2m, b2m, w3m, b3m) = params["mlp_mu"]
    (w1g, b1g, w2g, b2g, w3g, b3g) = params["mlp_logsigma"]

    def blkdiag(a, b):
        za = jnp.zeros((a.shape[0], b.shape[1]), jnp.float32)
        zb = jnp.zeros((b.shape[0], a.shape[1]), jnp.float32)
        return jnp.concatenate([jnp.concatenate([a, za], axis=1),
                                jnp.concatenate([zb, b], axis=1)], axis=0)

    w1cat = jnp.concatenate([w1m, w1g], axis=1)                       # (C2*P, 200)
    ops["w1"] = jnp.transpose(w1cat)                                  # (200, C2*P)
    ops["b1"] = jnp.concatenate([b1m, b1g]).reshape(-1, 1)
    ops["w2"] = blkdiag(w2m, w2g).T                                   # (100, 200)
    ops["b2"] = jnp.concatenate([b2m, b2g]).reshape(-1, 1)
    ops["w3"] = blkdiag(w3m, w3g).T                                   # (2*lat, 100)
    ops["b3"] = jnp.concatenate([b3m, b3g]).reshape(-1, 1)

    wr, br = params["recon"]
    ops["wr"] = wr.T                                                  # (C0*H0*W, lat)
    ops["br"] = br.reshape(-1, 1)

    # decoder transposed convs: torch (Cin, Cout, 4, 3) -> flip both spatial dims -> (12, Cin, Cout)
    dec = []
    for (w, b, g, bt, final) in params["dec_conv"]:
        cin, cout = w.shape[0], w.shape[1]
        wk = jnp.transpose(jnp.flip(w, axis=(2, 3)), (2, 3, 0, 1)).reshape((kh + 1) * kw, cin, cout)
        dec.append((wk, b.reshape(1, -1) if final else jnp.stack([b, g, bt], axis=0)))
    ops["dec"] = dec
    return ops


# ------------------------------------ forward -----------------------------------------


def varae_forward(params, x_nchw, eps):
    cfg = params["cfg"]
    H, W = cfg["input_size"]
    hidden = cfg["hidden_channels"]
    lat = cfg["latent_dimension"]
    pool = cfg["pooling_size"]
    N = x_nchw.shape[0]
    C0 = hidden[0]
    H0 = H // (pool ** len(hidden))
    ops = _prepare(params)

    x4 = jnp.transpose(x_nchw, (0, 2, 3, 1)).astype(jnp.float32)      # NCHW -> NHWC
    epsT = jnp.transpose(eps).astype(jnp.float32)                     # (lat, N)

    enc_kernel = functools.partial(_encoder_kernel, N=N, H=H, W=W,
                                   hidden=(hidden[0], hidden[1]), lat=lat)
    muT, logvarT, recT = pl.pallas_call(
        enc_kernel,
        out_shape=(jax.ShapeDtypeStruct((lat, N), jnp.float32),
                   jax.ShapeDtypeStruct((lat, N), jnp.float32),
                   jax.ShapeDtypeStruct((C0 * H0 * W, N), jnp.float32)),
        in_specs=[VMEM] * 14,
        out_specs=(VMEM, VMEM, VMEM),
    )(x4, ops["enc"][0][0], ops["enc"][0][1], ops["enc"][1][0], ops["enc"][1][1],
      ops["w1"], ops["b1"], ops["w2"], ops["b2"], ops["w3"], ops["b3"],
      ops["wr"], ops["br"], epsT)

    mu = jnp.transpose(muT)
    logvar = jnp.transpose(logvarT)

    # tiny XLA glue (~1 KiB): reorder the recon features (torch .view(N,C0,H0,W)) into NHWC rows
    rec2d = jnp.transpose(recT).reshape(N, C0, H0, W)
    rec2d = jnp.transpose(rec2d, (0, 2, 3, 1)).reshape(N * H0 * W, C0)

    dec_kernel = functools.partial(_decoder_kernel, N=N, H0=H0, W=W,
                                   hidden=(hidden[0], hidden[1]))
    y = pl.pallas_call(
        dec_kernel,
        out_shape=jax.ShapeDtypeStruct((N * H * W, 1), jnp.float32),
        in_specs=[VMEM] * 5,
        out_specs=VMEM,
    )(rec2d, ops["dec"][0][0], ops["dec"][0][1], ops["dec"][1][0], ops["dec"][1][1])

    x_recon = jnp.transpose(y.reshape(N, H, W, 1), (0, 3, 1, 2))      # NHWC -> NCHW
    return x_recon, mu, logvar


# ------------------------ deterministic parameter construction ------------------------


def init_params(key):
    cfg = dict(latent_dimension=16, hidden_channels=[4, 8], input_channels=1,
               input_size=(16, 8), padding=1, kernel_size=(3, 3), pooling_size=2)
    hidden = cfg["hidden_channels"]
    H, W = cfg["input_size"]
    kh, kw = cfg["kernel_size"]
    pool = cfg["pooling_size"]
    lat = cfg["latent_dimension"]
    Cin = cfg["input_channels"]

    keys = iter(jax.random.split(key, 64))

    def nrm(shape, scale=0.1):
        return scale * jax.random.normal(next(keys), shape, jnp.float32)

    # Encoder conv blocks: Conv2d -> ReLU -> AvgPool([2,1]) -> BatchNorm2d
    enc_conv = []
    chans = [Cin] + hidden
    for i in range(len(hidden)):
        enc_conv.append((nrm((chans[i + 1], chans[i], kh, kw)),       # torch (Cout,Cin,KH,KW)
                         nrm((chans[i + 1],)),
                         jnp.ones((chans[i + 1],), jnp.float32),      # BN gamma
                         jnp.zeros((chans[i + 1],), jnp.float32)))    # BN beta

    feat = hidden[-1] * (H * W // (pool ** len(hidden)))

    def mlp():
        dims = [feat, 100, 50, lat]
        p = []
        for i in range(3):
            p.append(nrm((dims[i], dims[i + 1])))                     # stored as (in, out)
            p.append(nrm((dims[i + 1],)))
        return tuple(p)

    mlp_mu = mlp()
    mlp_logsigma = mlp()

    recon_out = (H * W // (pool ** len(hidden))) * hidden[0]
    recon = (nrm((lat, recon_out)), nrm((recon_out,)))

    # Decoder ConvTranspose blocks; torch weight layout (Cin, Cout, KH+1, KW)
    dec_conv = []
    dchans = hidden + [cfg["input_channels"]]
    for i in range(len(hidden)):
        final = (i == len(hidden) - 1)
        dec_conv.append((nrm((dchans[i], dchans[i + 1], kh + 1, kw)),
                         nrm((dchans[i + 1],)),
                         jnp.ones((dchans[i + 1],), jnp.float32),
                         jnp.zeros((dchans[i + 1],), jnp.float32),
                         final))

    return dict(cfg=cfg, enc_conv=enc_conv, mlp_mu=mlp_mu,
                mlp_logsigma=mlp_logsigma, recon=recon, dec_conv=dec_conv)


if __name__ == "__main__":
    key = jax.random.PRNGKey(0)
    pkey, xkey, ekey = jax.random.split(key, 3)
    params = init_params(pkey)

    # x mirrors the module's expected input: NCHW, single channel, spatial (16, 8)
    x = jax.random.normal(xkey, (2, 1, 16, 8), jnp.float32)
    eps = jax.random.normal(ekey, (2, params["cfg"]["latent_dimension"]), jnp.float32)

    fwd = jax.jit(lambda x_, e_: varae_forward(params, x_, e_))
    x_recon, mu, logvar = fwd(x, eps)
    jax.block_until_ready((x_recon, mu, logvar))

    assert x_recon.shape == x.shape, x_recon.shape
    assert mu.shape == (2, 16) and logvar.shape == (2, 16)
    print("KERNEL_OK")
</pallas_src>

<mosaic_0001>
module attributes {stable_mosaic.version = 11 : i64} {
  func.func @_encoder_kernel(%arg0: memref<2x16x8x1xf32, #tpu.memory_space<vmem>>, %arg1: memref<9x1x4xf32, #tpu.memory_space<vmem>>, %arg2: memref<3x4xf32, #tpu.memory_space<vmem>>, %arg3: memref<9x4x8xf32, #tpu.memory_space<vmem>>, %arg4: memref<3x8xf32, #tpu.memory_space<vmem>>, %arg5: memref<200x256xf32, #tpu.memory_space<vmem>>, %arg6: memref<200x1xf32, #tpu.memory_space<vmem>>, %arg7: memref<100x200xf32, #tpu.memory_space<vmem>>, %arg8: memref<100x1xf32, #tpu.memory_space<vmem>>, %arg9: memref<32x100xf32, #tpu.memory_space<vmem>>, %arg10: memref<32x1xf32, #tpu.memory_space<vmem>>, %arg11: memref<128x16xf32, #tpu.memory_space<vmem>>, %arg12: memref<128x1xf32, #tpu.memory_space<vmem>>, %arg13: memref<16x2xf32, #tpu.memory_space<vmem>>, %arg14: memref<16x2xf32, #tpu.memory_space<vmem>>, %arg15: memref<16x2xf32, #tpu.memory_space<vmem>>, %arg16: memref<128x2xf32, #tpu.memory_space<vmem>>) attributes {dimension_semantics = [], scalar_prefetch = 0 : i64, scratch_operands = 0 : i64, tpu.core_type = #tpu.core_type<tc>} {
    %c0 = arith.constant 0 : index
    %c0_0 = arith.constant 0 : index
    %c0_1 = arith.constant 0 : index
    %c0_2 = arith.constant 0 : index
    %0 = vector.load %arg0[%c0, %c0_0, %c0_1, %c0_2] : memref<2x16x8x1xf32, #tpu.memory_space<vmem>>, vector<2x16x8x1xf32>
    %c0_3 = arith.constant 0 : index
    %c0_4 = arith.constant 0 : index
    %c0_5 = arith.constant 0 : index
    %1 = vector.load %arg1[%c0_3, %c0_4, %c0_5] : memref<9x1x4xf32, #tpu.memory_space<vmem>>, vector<9x1x4xf32>
    %c0_6 = arith.constant 0 : index
    %c0_7 = arith.constant 0 : index
    %2 = vector.load %arg2[%c0_6, %c0_7] : memref<3x4xf32, #tpu.memory_space<vmem>>, vector<3x4xf32>
    %3 = tpu.concatenate %0, %0 in 1 : vector<2x16x8x1xf32>, vector<2x16x8x1xf32> -> vector<2x32x8x1xf32>
    %4 = tpu.concatenate %3, %3 in 2 : vector<2x32x8x1xf32>, vector<2x32x8x1xf32> -> vector<2x32x16x1xf32>
    %5 = vector.extract_strided_slice %4 {offsets = [0, 15, 7, 0], sizes = [2, 16, 8, 1], strides = [1, 1, 1, 1]} : vector<2x32x16x1xf32> to vector<2x16x8x1xf32>
    %6 = vector.shape_cast %5 : vector<2x16x8x1xf32> to vector<256x1xf32>
    %7 = vector.extract_strided_slice %1 {offsets = [0, 0, 0], sizes = [1, 1, 4], strides = [1, 1, 1]} : vector<9x1x4xf32> to vector<1x1x4xf32>
    %8 = vector.shape_cast %7 : vector<1x1x4xf32> to vector<1x4xf32>
    %9 = vector.broadcast %6 : vector<256x1xf32> to vector<256x4xf32>
    %10 = vector.broadcast %8 : vector<1x4xf32> to vector<256x4xf32>
    %11 = arith.mulf %9, %10 : vector<256x4xf32>
    %12 = vector.extract_strided_slice %4 {offsets = [0, 15, 0, 0], sizes = [2, 16, 8, 1], strides = [1, 1, 1, 1]} : vector<2x32x16x1xf32> to vector<2x16x8x1xf32>
    %13 = vector.shape_cast %12 : vector<2x16x8x1xf32> to vector<256x1xf32>
    %14 = vector.extract_strided_slice %1 {offsets = [1, 0, 0], sizes = [1, 1, 4], strides = [1, 1, 1]} : vector<9x1x4xf32> to vector<1x1x4xf32>
    %15 = vector.shape_cast %14 : vector<1x1x4xf32> to vector<1x4xf32>
    %16 = vector.broadcast %13 : vector<256x1xf32> to vector<256x4xf32>
    %17 = vector.broadcast %15 : vector<1x4xf32> to vector<256x4xf32>
    %18 = arith.mulf %16, %17 : vector<256x4xf32>
    %19 = arith.addf %11, %18 : vector<256x4xf32>
    %20 = vector.extract_strided_slice %4 {offsets = [0, 15, 1, 0], sizes = [2, 16, 8, 1], strides = [1, 1, 1, 1]} : vector<2x32x16x1xf32> to vector<2x16x8x1xf32>
    %21 = vector.shape_cast %20 : vector<2x16x8x1xf32> to vector<256x1xf32>
    %22 = vector.extract_strided_slice %1 {offsets = [2, 0, 0], sizes = [1, 1, 4], strides = [1, 1, 1]} : vector<9x1x4xf32> to vector<1x1x4xf32>
    %23 = vector.shape_cast %22 : vector<1x1x4xf32> to vector<1x4xf32>
    %24 = vector.broadcast %21 : vector<256x1xf32> to vector<256x4xf32>
    %25 = vector.broadcast %23 : vector<1x4xf32> to vector<256x4xf32>
    %26 = arith.mulf %24, %25 : vector<256x4xf32>
    %27 = arith.addf %19, %26 : vector<256x4xf32>
    %28 = vector.extract_strided_slice %4 {offsets = [0, 0, 7, 0], sizes = [2, 16, 8, 1], strides = [1, 1, 1, 1]} : vector<2x32x16x1xf32> to vector<2x16x8x1xf32>
    %29 = vector.shape_cast %28 : vector<2x16x8x1xf32> to vector<256x1xf32>
    %30 = vector.extract_strided_slice %1 {offsets = [3, 0, 0], sizes = [1, 1, 4], strides = [1, 1, 1]} : vector<9x1x4xf32> to vector<1x1x4xf32>
    %31 = vector.shape_cast %30 : vector<1x1x4xf32> to vector<1x4xf32>
    %32 = vector.broadcast %29 : vector<256x1xf32> to vector<256x4xf32>
    %33 = vector.broadcast %31 : vector<1x4xf32> to vector<256x4xf32>
    %34 = arith.mulf %32, %33 : vector<256x4xf32>
    %35 = arith.addf %27, %34 : vector<256x4xf32>
    %36 = vector.extract_strided_slice %4 {offsets = [0, 0, 0, 0], sizes = [2, 16, 8, 1], strides = [1, 1, 1, 1]} : vector<2x32x16x1xf32> to vector<2x16x8x1xf32>
    %37 = vector.shape_cast %36 : vector<2x16x8x1xf32> to vector<256x1xf32>
    %38 = vector.extract_strided_slice %1 {offsets = [4, 0, 0], sizes = [1, 1, 4], strides = [1, 1, 1]} : vector<9x1x4xf32> to vector<1x1x4xf32>
    %39 = vector.shape_cast %38 : vector<1x1x4xf32> to vector<1x4xf32>
    %40 = vector.broadcast %37 : vector<256x1xf32> to vector<256x4xf32>
    %41 = vector.broadcast %39 : vector<1x4xf32> to vector<256x4xf32>
    %42 = arith.mulf %40, %41 : vector<256x4xf32>
    %43 = arith.addf %35, %42 : vector<256x4xf32>
    %44 = vector.extract_strided_slice %4 {offsets = [0, 0, 1, 0], sizes = [2, 16, 8, 1], strides = [1, 1, 1, 1]} : vector<2x32x16x1xf32> to vector<2x16x8x1xf32>
    %45 = vector.shape_cast %44 : vector<2x16x8x1xf32> to vector<256x1xf32>
    %46 = vector.extract_strided_slice %1 {offsets = [5, 0, 0], sizes = [1, 1, 4], strides = [1, 1, 1]} : vector<9x1x4xf32> to vector<1x1x4xf32>
    %47 = vector.shape_cast %46 : vector<1x1x4xf32> to vector<1x4xf32>
    %48 = vector.broadcast %45 : vector<256x1xf32> to vector<256x4xf32>
    %49 = vector.broadcast %47 : vector<1x4xf32> to vector<256x4xf32>
    %50 = arith.mulf %48, %49 : vector<256x4xf32>
    %51 = arith.addf %43, %50 : vector<256x4xf32>
    %52 = vector.extract_strided_slice %4 {offsets = [0, 1, 7, 0], sizes = [2, 16, 8, 1], strides = [1, 1, 1, 1]} : vector<2x32x16x1xf32> to vector<2x16x8x1xf32>
    %53 = vector.shape_cast %52 : vector<2x16x8x1xf32> to vector<256x1xf32>
    %54 = vector.extract_strided_slice %1 {offsets = [6, 0, 0], sizes = [1, 1, 4], strides = [1, 1, 1]} : vector<9x1x4xf32> to vector<1x1x4xf32>
    %55 = vector.shape_cast %54 : vector<1x1x4xf32> to vector<1x4xf32>
    %56 = vector.broadcast %53 : vector<256x1xf32> to vector<256x4xf32>
    %57 = vector.broadcast %55 : vector<1x4xf32> to vector<256x4xf32>
    %58 = arith.mulf %56, %57 : vector<256x4xf32>
    %59 = arith.addf %51, %58 : vector<256x4xf32>
    %60 = vector.extract_strided_slice %4 {offsets = [0, 1, 0, 0], sizes = [2, 16, 8, 1], strides = [1, 1, 1, 1]} : vector<2x32x16x1xf32> to vector<2x16x8x1xf32>
    %61 = vector.shape_cast %60 : vector<2x16x8x1xf32> to vector<256x1xf32>
    %62 = vector.extract_strided_slice %1 {offsets = [7, 0, 0], sizes = [1, 1, 4], strides = [1, 1, 1]} : vector<9x1x4xf32> to vector<1x1x4xf32>
    %63 = vector.shape_cast %62 : vector<1x1x4xf32> to vector<1x4xf32>
    %64 = vector.broadcast %61 : vector<256x1xf32> to vector<256x4xf32>
    %65 = vector.broadcast %63 : vector<1x4xf32> to vector<256x4xf32>
    %66 = arith.mulf %64, %65 : vector<256x4xf32>
    %67 = arith.addf %59, %66 : vector<256x4xf32>
    %68 = vector.extract_strided_slice %4 {offsets = [0, 1, 1, 0], sizes = [2, 16, 8, 1], strides = [1, 1, 1, 1]} : vector<2x32x16x1xf32> to vector<2x16x8x1xf32>
    %69 = vector.shape_cast %68 : vector<2x16x8x1xf32> to vector<256x1xf32>
    %70 = vector.extract_strided_slice %1 {offsets = [8, 0, 0], sizes = [1, 1, 4], strides = [1, 1, 1]} : vector<9x1x4xf32> to vector<1x1x4xf32>
    %71 = vector.shape_cast %70 : vector<1x1x4xf32> to vector<1x4xf32>
    %72 = vector.broadcast %69 : vector<256x1xf32> to vector<256x4xf32>
    %73 = vector.broadcast %71 : vector<1x4xf32> to vector<256x4xf32>
    %74 = arith.mulf %72, %73 : vector<256x4xf32>
    %75 = arith.addf %67, %74 : vector<256x4xf32>
    %76 = vector.extract_strided_slice %2 {offsets = [0, 0], sizes = [1, 4], strides = [1, 1]} : vector<3x4xf32> to vector<1x4xf32>
    %77 = vector.broadcast %76 : vector<1x4xf32> to vector<256x4xf32>
    %78 = arith.addf %75, %77 : vector<256x4xf32>
    %cst = arith.constant 0.000000e+00 : f32
    %79 = vector.broadcast %cst : f32 to vector<256x4xf32>
    %80 = arith.maximumf %78, %79 : vector<256x4xf32>
    %81 = vector.shape_cast %80 : vector<256x4xf32> to vector<16x16x4xf32>
    %82 = vector.extract_strided_slice %81 {offsets = [0, 0, 0], sizes = [16, 8, 4], strides = [1, 1, 1]} : vector<16x16x4xf32> to vector<16x8x4xf32>
    %83 = vector.extract_strided_slice %81 {offsets = [0, 8, 0], sizes = [16, 8, 4], strides = [1, 1, 1]} : vector<16x16x4xf32> to vector<16x8x4xf32>
    %84 = arith.addf %82, %83 : vector<16x8x4xf32>
    %cst_8 = arith.constant 5.000000e-01 : f32
    %85 = vector.broadcast %cst_8 : f32 to vector<16x8x4xf32>
    %86 = arith.mulf %85, %84 : vector<16x8x4xf32>
    %87 = vector.shape_cast %86 : vector<16x8x4xf32> to vector<128x4xf32>
    %88 = vector.extract_strided_slice %2 {offsets = [1, 0], sizes = [1, 4], strides = [1, 1]} : vector<3x4xf32> to vector<1x4xf32>
    %89 = vector.extract_strided_slice %2 {offsets = [2, 0], sizes = [1, 4], strides = [1, 1]} : vector<3x4xf32> to vector<1x4xf32>
    %cst_9 = arith.constant dense<0.000000e+00> : vector<4xf32>
    %90 = vector.multi_reduction <add>, %87, %cst_9 [0] : vector<128x4xf32> to vector<4xf32>
    %91 = vector.shape_cast %90 : vector<4xf32> to vector<1x4xf32>
    %cst_10 = arith.constant 1.280000e+02 : f32
    %92 = vector.broadcast %cst_10 : f32 to vector<1x4xf32>
    %93 = arith.divf %91, %92 : vector<1x4xf32>
    %94 = vector.broadcast %93 : vector<1x4xf32> to vector<128x4xf32>
    %95 = arith.subf %87, %94 : vector<128x4xf32>
    %96 = arith.mulf %95, %95 : vector<128x4xf32>
    %cst_11 = arith.constant dense<0.000000e+00> : vector<4xf32>
    %97 = vector.multi_reduction <add>, %96, %cst_11 [0] : vector<128x4xf32> to vector<4xf32>
    %98 = vector.shape_cast %97 : vector<4xf32> to vector<1x4xf32>
    %cst_12 = arith.constant 1.280000e+02 : f32
    %99 = vector.broadcast %cst_12 : f32 to vector<1x4xf32>
    %100 = arith.divf %98, %99 : vector<1x4xf32>
    %101 = vector.broadcast %93 : vector<1x4xf32> to vector<128x4xf32>
    %102 = arith.subf %87, %101 : vector<128x4xf32>
    %cst_13 = arith.constant 9.99999974E-6 : f32
    %103 = vector.broadcast %cst_13 : f32 to vector<1x4xf32>
    %104 = arith.addf %100, %103 : vector<1x4xf32>
    %105 = math.rsqrt %104 : vector<1x4xf32>
    %106 = vector.broadcast %105 : vector<1x4xf32> to vector<128x4xf32>
    %107 = arith.mulf %102, %106 : vector<128x4xf32>
    %108 = vector.broadcast %88 : vector<1x4xf32> to vector<128x4xf32>
    %109 = arith.mulf %107, %108 : vector<128x4xf32>
    %110 = vector.broadcast %89 : vector<1x4xf32> to vector<128x4xf32>
    %111 = arith.addf %109, %110 : vector<128x4xf32>
    %112 = vector.shape_cast %111 : vector<128x4xf32> to vector<2x8x8x4xf32>
    %c0_14 = arith.constant 0 : index
    %c0_15 = arith.constant 0 : index
    %c0_16 = arith.constant 0 : index
    %113 = vector.load %arg3[%c0_14, %c0_15, %c0_16] : memref<9x4x8xf32, #tpu.memory_space<vmem>>, vector<9x4x8xf32>
    %c0_17 = arith.constant 0 : index
    %c0_18 = arith.constant 0 : index
    %114 = vector.load %arg4[%c0_17, %c0_18] : memref<3x8xf32, #tpu.memory_space<vmem>>, vector<3x8xf32>
    %115 = tpu.concatenate %112, %112 in 1 : vector<2x8x8x4xf32>, vector<2x8x8x4xf32> -> vector<2x16x8x4xf32>
    %116 = tpu.concatenate %115, %115 in 2 : vector<2x16x8x4xf32>, vector<2x16x8x4xf32> -> vector<2x16x16x4xf32>
    %117 = vector.extract_strided_slice %116 {offsets = [0, 7, 7, 0], sizes = [2, 8, 8, 4], strides = [1, 1, 1, 1]} : vector<2x16x16x4xf32> to vector<2x8x8x4xf32>
    %118 = vector.shape_cast %117 : vector<2x8x8x4xf32> to vector<128x4xf32>
    %119 = vector.extract_strided_slice %113 {offsets = [0, 0, 0], sizes = [1, 4, 8], strides = [1, 1, 1]} : vector<9x4x8xf32> to vector<1x4x8xf32>
    %120 = vector.shape_cast %119 : vector<1x4x8xf32> to vector<4x8xf32>
    %cst_19 = arith.constant dense<0.000000e+00> : vector<128x8xf32>
    %121 = tpu.matmul %118, %120, %cst_19 {dimension_numbers = #tpu.dot_dimension_numbers<[1], [0], [0], [1], [0, 0, 1, 1], [], []>} : vector<128x4xf32>, vector<4x8xf32>, vector<128x8xf32> -> vector<128x8xf32>
    %122 = vector.extract_strided_slice %116 {offsets = [0, 7, 0, 0], sizes = [2, 8, 8, 4], strides = [1, 1, 1, 1]} : vector<2x16x16x4xf32> to vector<2x8x8x4xf32>
    %123 = vector.shape_cast %122 : vector<2x8x8x4xf32> to vector<128x4xf32>
    %124 = vector.extract_strided_slice %113 {offsets = [1, 0, 0], sizes = [1, 4, 8], strides = [1, 1, 1]} : vector<9x4x8xf32> to vector<1x4x8xf32>
    %125 = vector.shape_cast %124 : vector<1x4x8xf32> to vector<4x8xf32>
    %cst_20 = arith.constant dense<0.000000e+00> : vector<128x8xf32>
    %126 = tpu.matmul %123, %125, %cst_20 {dimension_numbers = #tpu.dot_dimension_numbers<[1], [0], [0], [1], [0, 0, 1, 1], [], []>} : vector<128x4xf32>, vector<4x8xf32>, vector<128x8xf32> -> vector<128x8xf32>
    %127 = arith.addf %121, %126 : vector<128x8xf32>
    %128 = vector.extract_strided_slice %116 {offsets = [0, 7, 1, 0], sizes = [2, 8, 8, 4], strides = [1, 1, 1, 1]} : vector<2x16x16x4xf32> to vector<2x8x8x4xf32>
    %129 = vector.shape_cast %128 : vector<2x8x8x4xf32> to vector<128x4xf32>
    %130 = vector.extract_strided_slice %113 {offsets = [2, 0, 0], sizes = [1, 4, 8], strides = [1, 1, 1]} : vector<9x4x8xf32> to vector<1x4x8xf32>
    %131 = vector.shape_cast %130 : vector<1x4x8xf32> to vector<4x8xf32>
    %cst_21 = arith.constant dense<0.000000e+00> : vector<128x8xf32>
    %132 = tpu.matmul %129, %131, %cst_21 {dimension_numbers = #tpu.dot_dimension_numbers<[1], [0], [0], [1], [0, 0, 1, 1], [], []>} : vector<128x4xf32>, vector<4x8xf32>, vector<128x8xf32> -> vector<128x8xf32>
    %133 = arith.addf %127, %132 : vector<128x8xf32>
    %134 = vector.extract_strided_slice %116 {offsets = [0, 0, 7, 0], sizes = [2, 8, 8, 4], strides = [1, 1, 1, 1]} : vector<2x16x16x4xf32> to vector<2x8x8x4xf32>
    %135 = vector.shape_cast %134 : vector<2x8x8x4xf32> to vector<128x4xf32>
    %136 = vector.extract_strided_slice %113 {offsets = [3, 0, 0], sizes = [1, 4, 8], strides = [1, 1, 1]} : vector<9x4x8xf32> to vector<1x4x8xf32>
    %137 = vector.shape_cast %136 : vector<1x4x8xf32> to vector<4x8xf32>
    %cst_22 = arith.constant dense<0.000000e+00> : vector<128x8xf32>
    %138 = tpu.matmul %135, %137, %cst_22 {dimension_numbers = #tpu.dot_dimension_numbers<[1], [0], [0], [1], [0, 0, 1, 1], [], []>} : vector<128x4xf32>, vector<4x8xf32>, vector<128x8xf32> -> vector<128x8xf32>
    %139 = arith.addf %133, %138 : vector<128x8xf32>
    %140 = vector.extract_strided_slice %116 {offsets = [0, 0, 0, 0], sizes = [2, 8, 8, 4], strides = [1, 1, 1, 1]} : vector<2x16x16x4xf32> to vector<2x8x8x4xf32>
    %141 = vector.shape_cast %140 : vector<2x8x8x4xf32> to vector<128x4xf32>
    %142 = vector.extract_strided_slice %113 {offsets = [4, 0, 0], sizes = [1, 4, 8], strides = [1, 1, 1]} : vector<9x4x8xf32> to vector<1x4x8xf32>
    %143 = vector.shape_cast %142 : vector<1x4x8xf32> to vector<4x8xf32>
    %cst_23 = arith.constant dense<0.000000e+00> : vector<128x8xf32>
    %144 = tpu.matmul %141, %143, %cst_23 {dimension_numbers = #tpu.dot_dimension_numbers<[1], [0], [0], [1], [0, 0, 1, 1], [], []>} : vector<128x4xf32>, vector<4x8xf32>, vector<128x8xf32> -> vector<128x8xf32>
    %145 = arith.addf %139, %144 : vector<128x8xf32>
    %146 = vector.extract_strided_slice %116 {offsets = [0, 0, 1, 0], sizes = [2, 8, 8, 4], strides = [1, 1, 1, 1]} : vector<2x16x16x4xf32> to vector<2x8x8x4xf32>
    %147 = vector.shape_cast %146 : vector<2x8x8x4xf32> to vector<128x4xf32>
    %148 = vector.extract_strided_slice %113 {offsets = [5, 0, 0], sizes = [1, 4, 8], strides = [1, 1, 1]} : vector<9x4x8xf32> to vector<1x4x8xf32>
    %149 = vector.shape_cast %148 : vector<1x4x8xf32> to vector<4x8xf32>
    %cst_24 = arith.constant dense<0.000000e+00> : vector<128x8xf32>
    %150 = tpu.matmul %147, %149, %cst_24 {dimension_numbers = #tpu.dot_dimension_numbers<[1], [0], [0], [1], [0, 0, 1, 1], [], []>} : vector<128x4xf32>, vector<4x8xf32>, vector<128x8xf32> -> vector<128x8xf32>
    %151 = arith.addf %145, %150 : vector<128x8xf32>
    %152 = vector.extract_strided_slice %116 {offsets = [0, 1, 7, 0], sizes = [2, 8, 8, 4], strides = [1, 1, 1, 1]} : vector<2x16x16x4xf32> to vector<2x8x8x4xf32>
    %153 = vector.shape_cast %152 : vector<2x8x8x4xf32> to vector<128x4xf32>
    %154 = vector.extract_strided_slice %113 {offsets = [6, 0, 0], sizes = [1, 4, 8], strides = [1, 1, 1]} : vector<9x4x8xf32> to vector<1x4x8xf32>
    %155 = vector.shape_cast %154 : vector<1x4x8xf32> to vector<4x8xf32>
    %cst_25 = arith.constant dense<0.000000e+00> : vector<128x8xf32>
    %156 = tpu.matmul %153, %155, %cst_25 {dimension_numbers = #tpu.dot_dimension_numbers<[1], [0], [0], [1], [0, 0, 1, 1], [], []>} : vector<128x4xf32>, vector<4x8xf32>, vector<128x8xf32> -> vector<128x8xf32>
    %157 = arith.addf %151, %156 : vector<128x8xf32>
    %158 = vector.extract_strided_slice %116 {offsets = [0, 1, 0, 0], sizes = [2, 8, 8, 4], strides = [1, 1, 1, 1]} : vector<2x16x16x4xf32> to vector<2x8x8x4xf32>
    %159 = vector.shape_cast %158 : vector<2x8x8x4xf32> to vector<128x4xf32>
    %160 = vector.extract_strided_slice %113 {offsets = [7, 0, 0], sizes = [1, 4, 8], strides = [1, 1, 1]} : vector<9x4x8xf32> to vector<1x4x8xf32>
    %161 = vector.shape_cast %160 : vector<1x4x8xf32> to vector<4x8xf32>
    %cst_26 = arith.constant dense<0.000000e+00> : vector<128x8xf32>
    %162 = tpu.matmul %159, %161, %cst_26 {dimension_numbers = #tpu.dot_dimension_numbers<[1], [0], [0], [1], [0, 0, 1, 1], [], []>} : vector<128x4xf32>, vector<4x8xf32>, vector<128x8xf32> -> vector<128x8xf32>
    %163 = arith.addf %157, %162 : vector<128x8xf32>
    %164 = vector.extract_strided_slice %116 {offsets = [0, 1, 1, 0], sizes = [2, 8, 8, 4], strides = [1, 1, 1, 1]} : vector<2x16x16x4xf32> to vector<2x8x8x4xf32>
    %165 = vector.shape_cast %164 : vector<2x8x8x4xf32> to vector<128x4xf32>
    %166 = vector.extract_strided_slice %113 {offsets = [8, 0, 0], sizes = [1, 4, 8], strides = [1, 1, 1]} : vector<9x4x8xf32> to vector<1x4x8xf32>
    %167 = vector.shape_cast %166 : vector<1x4x8xf32> to vector<4x8xf32>
    %cst_27 = arith.constant dense<0.000000e+00> : vector<128x8xf32>
    %168 = tpu.matmul %165, %167, %cst_27 {dimension_numbers = #tpu.dot_dimension_numbers<[1], [0], [0], [1], [0, 0, 1, 1], [], []>} : vector<128x4xf32>, vector<4x8xf32>, vector<128x8xf32> -> vector<128x8xf32>
    %169 = arith.addf %163, %168 : vector<128x8xf32>
    %170 = vector.extract_strided_slice %114 {offsets = [0, 0], sizes = [1, 8], strides = [1, 1]} : vector<3x8xf32> to vector<1x8xf32>
    %171 = vector.broadcast %170 : vector<1x8xf32> to vector<128x8xf32>
    %172 = arith.addf %169, %171 : vector<128x8xf32>
    %cst_28 = arith.constant 0.000000e+00 : f32
    %173 = vector.broadcast %cst_28 : f32 to vector<128x8xf32>
    %174 = arith.maximumf %172, %173 : vector<128x8xf32>
    %175 = vector.shape_cast %174 : vector<128x8xf32> to vector<8x16x8xf32>
    %176 = vector.extract_strided_slice %175 {offsets = [0, 0, 0], sizes = [8, 8, 8], strides = [1, 1, 1]} : vector<8x16x8xf32> to vector<8x8x8xf32>
    %177 = vector.extract_strided_slice %175 {offsets = [0, 8, 0], sizes = [8, 8, 8], strides = [1, 1, 1]} : vector<8x16x8xf32> to vector<8x8x8xf32>
    %178 = arith.addf %176, %177 : vector<8x8x8xf32>
    %cst_29 = arith.constant 5.000000e-01 : f32
    %179 = vector.broadcast %cst_29 : f32 to vector<8x8x8xf32>
    %180 = arith.mulf %179, %178 : vector<8x8x8xf32>
    %181 = vector.shape_cast %180 : vector<8x8x8xf32> to vector<64x8xf32>
    %182 = vector.extract_strided_slice %114 {offsets = [1, 0], sizes = [1, 8], strides = [1, 1]} : vector<3x8xf32> to vector<1x8xf32>
    %183 = vector.extract_strided_slice %114 {offsets = [2, 0], sizes = [1, 8], strides = [1, 1]} : vector<3x8xf32> to vector<1x8xf32>
    %cst_30 = arith.constant dense<0.000000e+00> : vector<8xf32>
    %184 = vector.multi_reduction <add>, %181, %cst_30 [0] : vector<64x8xf32> to vector<8xf32>
    %185 = vector.shape_cast %184 : vector<8xf32> to vector<1x8xf32>
    %cst_31 = arith.constant 6.400000e+01 : f32
    %186 = vector.broadcast %cst_31 : f32 to vector<1x8xf32>
    %187 = arith.divf %185, %186 : vector<1x8xf32>
    %188 = vector.broadcast %187 : vector<1x8xf32> to vector<64x8xf32>
    %189 = arith.subf %181, %188 : vector<64x8xf32>
    %190 = arith.mulf %189, %189 : vector<64x8xf32>
    %cst_32 = arith.constant dense<0.000000e+00> : vector<8xf32>
    %191 = vector.multi_reduction <add>, %190, %cst_32 [0] : vector<64x8xf32> to vector<8xf32>
    %192 = vector.shape_cast %191 : vector<8xf32> to vector<1x8xf32>
    %cst_33 = arith.constant 6.400000e+01 : f32
    %193 = vector.broadcast %cst_33 : f32 to vector<1x8xf32>
    %194 = arith.divf %192, %193 : vector<1x8xf32>
    %195 = vector.broadcast %187 : vector<1x8xf32> to vector<64x8xf32>
    %196 = arith.subf %181, %195 : vector<64x8xf32>
    %cst_34 = arith.constant 9.99999974E-6 : f32
    %197 = vector.broadcast %cst_34 : f32 to vector<1x8xf32>
    %198 = arith.addf %194, %197 : vector<1x8xf32>
    %199 = math.rsqrt %198 : vector<1x8xf32>
    %200 = vector.broadcast %199 : vector<1x8xf32> to vector<64x8xf32>
    %201 = arith.mulf %196, %200 : vector<64x8xf32>
    %202 = vector.broadcast %182 : vector<1x8xf32> to vector<64x8xf32>
    %203 = arith.mulf %201, %202 : vector<64x8xf32>
    %204 = vector.broadcast %183 : vector<1x8xf32> to vector<64x8xf32>
    %205 = arith.addf %203, %204 : vector<64x8xf32>
    %206 = tpu.iota {dimensions = array<i32: 1>} : vector<1x2xi32>
    %c0_i32 = arith.constant 0 : i32
    %207 = vector.broadcast %c0_i32 : i32 to vector<1x2xi32>
    %208 = arith.cmpi eq, %206, %207 : vector<1x2xi32>
    %209 = arith.extui %208 : vector<1x2xi1> to vector<1x2xi32>
    %210 = arith.sitofp %209 : vector<1x2xi32> to vector<1x2xf32>
    %c1_i32 = arith.constant 1 : i32
    %211 = vector.broadcast %c1_i32 : i32 to vector<1x2xi32>
    %212 = arith.cmpi eq, %206, %211 : vector<1x2xi32>
    %213 = arith.extui %212 : vector<1x2xi1> to vector<1x2xi32>
    %214 = arith.sitofp %213 : vector<1x2xi32> to vector<1x2xf32>
    %215 = vector.extract_strided_slice %205 {offsets = [0, 0], sizes = [32, 1], strides = [1, 1]} : vector<64x8xf32> to vector<32x1xf32>
    %216 = vector.broadcast %215 : vector<32x1xf32> to vector<32x2xf32>
    %217 = vector.broadcast %210 : vector<1x2xf32> to vector<32x2xf32>
    %218 = arith.mulf %216, %217 : vector<32x2xf32>
    %219 = vector.extract_strided_slice %205 {offsets = [32, 0], sizes = [32, 1], strides = [1, 1]} : vector<64x8xf32> to vector<32x1xf32>
    %220 = vector.broadcast %219 : vector<32x1xf32> to vector<32x2xf32>
    %221 = vector.broadcast %214 : vector<1x2xf32> to vector<32x2xf32>
    %222 = arith.mulf %220, %221 : vector<32x2xf32>
    %223 = arith.addf %218, %222 : vector<32x2xf32>
    %224 = vector.extract_strided_slice %205 {offsets = [0, 1], sizes = [32, 1], strides = [1, 1]} : vector<64x8xf32> to vector<32x1xf32>
    %225 = vector.broadcast %224 : vector<32x1xf32> to vector<32x2xf32>
    %226 = vector.broadcast %210 : vector<1x2xf32> to vector<32x2xf32>
    %227 = arith.mulf %225, %226 : vector<32x2xf32>
    %228 = vector.extract_strided_slice %205 {offsets = [32, 1], sizes = [32, 1], strides = [1, 1]} : vector<64x8xf32> to vector<32x1xf32>
    %229 = vector.broadcast %228 : vector<32x1xf32> to vector<32x2xf32>
    %230 = vector.broadcast %214 : vector<1x2xf32> to vector<32x2xf32>
    %231 = arith.mulf %229, %230 : vector<32x2xf32>
    %232 = arith.addf %227, %231 : vector<32x2xf32>
    %233 = vector.extract_strided_slice %205 {offsets = [0, 2], sizes = [32, 1], strides = [1, 1]} : vector<64x8xf32> to vector<32x1xf32>
    %234 = vector.broadcast %233 : vector<32x1xf32> to vector<32x2xf32>
    %235 = vector.broadcast %210 : vector<1x2xf32> to vector<32x2xf32>
    %236 = arith.mulf %234, %235 : vector<32x2xf32>
    %237 = vector.extract_strided_slice %205 {offsets = [32, 2], sizes = [32, 1], strides = [1, 1]} : vector<64x8xf32> to vector<32x1xf32>
    %238 = vector.broadcast %237 : vector<32x1xf32> to vector<32x2xf32>
    %239 = vector.broadcast %214 : vector<1x2xf32> to vector<32x2xf32>
    %240 = arith.mulf %238, %239 : vector<32x2xf32>
    %241 = arith.addf %236, %240 : vector<32x2xf32>
    %242 = vector.extract_strided_slice %205 {offsets = [0, 3], sizes = [32, 1], strides = [1, 1]} : vector<64x8xf32> to vector<32x1xf32>
    %243 = vector.broadcast %242 : vector<32x1xf32> to vector<32x2xf32>
    %244 = vector.broadcast %210 : vector<1x2xf32> to vector<32x2xf32>
    %245 = arith.mulf %243, %244 : vector<32x2xf32>
    %246 = vector.extract_strided_slice %205 {offsets = [32, 3], sizes = [32, 1], strides = [1, 1]} : vector<64x8xf32> to vector<32x1xf32>
    %247 = vector.broadcast %246 : vector<32x1xf32> to vector<32x2xf32>
    %248 = vector.broadcast %214 : vector<1x2xf32> to vector<32x2xf32>
    %249 = arith.mulf %247, %248 : vector<32x2xf32>
    %250 = arith.addf %245, %249 : vector<32x2xf32>
    %251 = vector.extract_strided_slice %205 {offsets = [0, 4], sizes = [32, 1], strides = [1, 1]} : vector<64x8xf32> to vector<32x1xf32>
    %252 = vector.broadcast %251 : vector<32x1xf32> to vector<32x2xf32>
    %253 = vector.broadcast %210 : vector<1x2xf32> to vector<32x2xf32>
    %254 = arith.mulf %252, %253 : vector<32x2xf32>
    %255 = vector.extract_strided_slice %205 {offsets = [32, 4], sizes = [32, 1], strides = [1, 1]} : vector<64x8xf32> to vector<32x1xf32>
    %256 = vector.broadcast %255 : vector<32x1xf32> to vector<32x2xf32>
    %257 = vector.broadcast %214 : vector<1x2xf32> to vector<32x2xf32>
    %258 = arith.mulf %256, %257 : vector<32x2xf32>
    %259 = arith.addf %254, %258 : vector<32x2xf32>
    %260 = vector.extract_strided_slice %205 {offsets = [0, 5], sizes = [32, 1], strides = [1, 1]} : vector<64x8xf32> to vector<32x1xf32>
    %261 = vector.broadcast %260 : vector<32x1xf32> to vector<32x2xf32>
    %262 = vector.broadcast %210 : vector<1x2xf32> to vector<32x2xf32>
    %263 = arith.mulf %261, %262 : vector<32x2xf32>
    %264 = vector.extract_strided_slice %205 {offsets = [32, 5], sizes = [32, 1], strides = [1, 1]} : vector<64x8xf32> to vector<32x1xf32>
    %265 = vector.broadcast %264 : vector<32x1xf32> to vector<32x2xf32>
    %266 = vector.broadcast %214 : vector<1x2xf32> to vector<32x2xf32>
    %267 = arith.mulf %265, %266 : vector<32x2xf32>
    %268 = arith.addf %263, %267 : vector<32x2xf32>
    %269 = vector.extract_strided_slice %205 {offsets = [0, 6], sizes = [32, 1], strides = [1, 1]} : vector<64x8xf32> to vector<32x1xf32>
    %270 = vector.broadcast %269 : vector<32x1xf32> to vector<32x2xf32>
    %271 = vector.broadcast %210 : vector<1x2xf32> to vector<32x2xf32>
    %272 = arith.mulf %270, %271 : vector<32x2xf32>
    %273 = vector.extract_strided_slice %205 {offsets = [32, 6], sizes = [32, 1], strides = [1, 1]} : vector<64x8xf32> to vector<32x1xf32>
    %274 = vector.broadcast %273 : vector<32x1xf32> to vector<32x2xf32>
    %275 = vector.broadcast %214 : vector<1x2xf32> to vector<32x2xf32>
    %276 = arith.mulf %274, %275 : vector<32x2xf32>
    %277 = arith.addf %272, %276 : vector<32x2xf32>
    %278 = vector.extract_strided_slice %205 {offsets = [0, 7], sizes = [32, 1], strides = [1, 1]} : vector<64x8xf32> to vector<32x1xf32>
    %279 = vector.broadcast %278 : vector<32x1xf32> to vector<32x2xf32>
    %280 = vector.broadcast %210 : vector<1x2xf32> to vector<32x2xf32>
    %281 = arith.mulf %279, %280 : vector<32x2xf32>
    %282 = vector.extract_strided_slice %205 {offsets = [32, 7], sizes = [32, 1], strides = [1, 1]} : vector<64x8xf32> to vector<32x1xf32>
    %283 = vector.broadcast %282 : vector<32x1xf32> to vector<32x2xf32>
    %284 = vector.broadcast %214 : vector<1x2xf32> to vector<32x2xf32>
    %285 = arith.mulf %283, %284 : vector<32x2xf32>
    %286 = arith.addf %281, %285 : vector<32x2xf32>
    %287 = tpu.concatenate %223, %232, %241, %250, %259, %268, %277, %286 in 0 : vector<32x2xf32>, vector<32x2xf32>, vector<32x2xf32>, vector<32x2xf32>, vector<32x2xf32>, vector<32x2xf32>, vector<32x2xf32>, vector<32x2xf32> -> vector<256x2xf32>
    %c0_35 = arith.constant 0 : index
    %c0_36 = arith.constant 0 : index
    %288 = vector.load %arg5[%c0_35, %c0_36] : memref<200x256xf32, #tpu.memory_space<vmem>>, vector<200x256xf32>
    %cst_37 = arith.constant dense<0.000000e+00> : vector<200x2xf32>
    %289 = tpu.matmul %288, %287, %cst_37 {dimension_numbers = #tpu.dot_dimension_numbers<[1], [0], [0], [1], [0, 0, 1, 1], [], []>} : vector<200x256xf32>, vector<256x2xf32>, vector<200x2xf32> -> vector<200x2xf32>
    %c0_38 = arith.constant 0 : index
    %c0_39 = arith.constant 0 : index
    %290 = vector.load %arg6[%c0_38, %c0_39] : memref<200x1xf32, #tpu.memory_space<vmem>>, vector<200x1xf32>
    %291 = vector.broadcast %290 : vector<200x1xf32> to vector<200x2xf32>
    %292 = arith.addf %289, %291 : vector<200x2xf32>
    %cst_40 = arith.constant 0.000000e+00 : f32
    %293 = vector.broadcast %cst_40 : f32 to vector<200x2xf32>
    %294 = arith.maximumf %292, %293 : vector<200x2xf32>
    %c0_41 = arith.constant 0 : index
    %c0_42 = arith.constant 0 : index
    %295 = vector.load %arg7[%c0_41, %c0_42] : memref<100x200xf32, #tpu.memory_space<vmem>>, vector<100x200xf32>
    %cst_43 = arith.constant dense<0.000000e+00> : vector<100x2xf32>
    %296 = tpu.matmul %295, %294, %cst_43 {dimension_numbers = #tpu.dot_dimension_numbers<[1], [0], [0], [1], [0, 0, 1, 1], [], []>} : vector<100x200xf32>, vector<200x2xf32>, vector<100x2xf32> -> vector<100x2xf32>
    %c0_44 = arith.constant 0 : index
    %c0_45 = arith.constant 0 : index
    %297 = vector.load %arg8[%c0_44, %c0_45] : memref<100x1xf32, #tpu.memory_space<vmem>>, vector<100x1xf32>
    %298 = vector.broadcast %297 : vector<100x1xf32> to vector<100x2xf32>
    %299 = arith.addf %296, %298 : vector<100x2xf32>
    %cst_46 = arith.constant 0.000000e+00 : f32
    %300 = vector.broadcast %cst_46 : f32 to vector<100x2xf32>
    %301 = arith.maximumf %299, %300 : vector<100x2xf32>
    %c0_47 = arith.constant 0 : index
    %c0_48 = arith.constant 0 : index
    %302 = vector.load %arg9[%c0_47, %c0_48] : memref<32x100xf32, #tpu.memory_space<vmem>>, vector<32x100xf32>
    %cst_49 = arith.constant dense<0.000000e+00> : vector<32x2xf32>
    %303 = tpu.matmul %302, %301, %cst_49 {dimension_numbers = #tpu.dot_dimension_numbers<[1], [0], [0], [1], [0, 0, 1, 1], [], []>} : vector<32x100xf32>, vector<100x2xf32>, vector<32x2xf32> -> vector<32x2xf32>
    %c0_50 = arith.constant 0 : index
    %c0_51 = arith.constant 0 : index
    %304 = vector.load %arg10[%c0_50, %c0_51] : memref<32x1xf32, #tpu.memory_space<vmem>>, vector<32x1xf32>
    %305 = vector.broadcast %304 : vector<32x1xf32> to vector<32x2xf32>
    %306 = arith.addf %303, %305 : vector<32x2xf32>
    %307 = vector.extract_strided_slice %306 {offsets = [0, 0], sizes = [16, 2], strides = [1, 1]} : vector<32x2xf32> to vector<16x2xf32>
    %308 = vector.extract_strided_slice %306 {offsets = [16, 0], sizes = [16, 2], strides = [1, 1]} : vector<32x2xf32> to vector<16x2xf32>
    %cst_52 = arith.constant 5.000000e-01 : f32
    %309 = vector.broadcast %cst_52 : f32 to vector<16x2xf32>
    %310 = arith.mulf %309, %308 : vector<16x2xf32>
    %311 = math.exp %310 : vector<16x2xf32>
    %c0_53 = arith.constant 0 : index
    %c0_54 = arith.constant 0 : index
    %312 = vector.load %arg13[%c0_53, %c0_54] : memref<16x2xf32, #tpu.memory_space<vmem>>, vector<16x2xf32>
    %313 = arith.mulf %311, %312 : vector<16x2xf32>
    %314 = arith.addf %307, %313 : vector<16x2xf32>
    %c0_55 = arith.constant 0 : index
    %c0_56 = arith.constant 0 : index
    %315 = vector.load %arg11[%c0_55, %c0_56] : memref<128x16xf32, #tpu.memory_space<vmem>>, vector<128x16xf32>
    %cst_57 = arith.constant dense<0.000000e+00> : vector<128x2xf32>
    %316 = tpu.matmul %315, %314, %cst_57 {dimension_numbers = #tpu.dot_dimension_numbers<[1], [0], [0], [1], [0, 0, 1, 1], [], []>} : vector<128x16xf32>, vector<16x2xf32>, vector<128x2xf32> -> vector<128x2xf32>
    %c0_58 = arith.constant 0 : index
    %c0_59 = arith.constant 0 : index
    %317 = vector.load %arg12[%c0_58, %c0_59] : memref<128x1xf32, #tpu.memory_space<vmem>>, vector<128x1xf32>
    %318 = vector.broadcast %317 : vector<128x1xf32> to vector<128x2xf32>
    %319 = arith.addf %316, %318 : vector<128x2xf32>
    %c0_60 = arith.constant 0 : index
    %c0_61 = arith.constant 0 : index
    %320 = vector.load %arg14[%c0_60, %c0_61] : memref<16x2xf32, #tpu.memory_space<vmem>>, vector<16x2xf32>
    tpu.vector_store %arg14[%c0_60, %c0_61], %307 {strides = array<i32>} : memref<16x2xf32, #tpu.memory_space<vmem>>, vector<16x2xf32>,
    %c0_62 = arith.constant 0 : index
    %c0_63 = arith.constant 0 : index
    %321 = vector.load %arg15[%c0_62, %c0_63] : memref<16x2xf32, #tpu.memory_space<vmem>>, vector<16x2xf32>
    tpu.vector_store %arg15[%c0_62, %c0_63], %308 {strides = array<i32>} : memref<16x2xf32, #tpu.memory_space<vmem>>, vector<16x2xf32>,
    %c0_64 = arith.constant 0 : index
    %c0_65 = arith.constant 0 : index
    %322 = vector.load %arg16[%c0_64, %c0_65] : memref<128x2xf32, #tpu.memory_space<vmem>>, vector<128x2xf32>
    tpu.vector_store %arg16[%c0_64, %c0_65], %319 {strides = array<i32>} : memref<128x2xf32, #tpu.memory_space<vmem>>, vector<128x2xf32>,
    return
  }
}

module attributes {stable_mosaic.version = 11 : i64} {
  func.func @_decoder_kernel(%arg0: memref<64x4xf32, #tpu.memory_space<vmem>>, %arg1: memref<12x4x8xf32, #tpu.memory_space<vmem>>, %arg2: memref<3x8xf32, #tpu.memory_space<vmem>>, %arg3: memref<12x8x1xf32, #tpu.memory_space<vmem>>, %arg4: memref<1x1xf32, #tpu.memory_space<vmem>>, %arg5: memref<256x1xf32, #tpu.memory_space<vmem>>) attributes {dimension_semantics = [], scalar_prefetch = 0 : i64, scratch_operands = 0 : i64, tpu.core_type = #tpu.core_type<tc>} {
    %c0 = arith.constant 0 : index
    %c0_0 = arith.constant 0 : index
    %0 = vector.load %arg0[%c0, %c0_0] : memref<64x4xf32, #tpu.memory_space<vmem>>, vector<64x4xf32>
    %1 = vector.shape_cast %0 : vector<64x4xf32> to vector<2x4x8x4xf32>
    %c0_1 = arith.constant 0 : index
    %c0_2 = arith.constant 0 : index
    %c0_3 = arith.constant 0 : index
    %2 = vector.load %arg1[%c0_1, %c0_2, %c0_3] : memref<12x4x8xf32, #tpu.memory_space<vmem>>, vector<12x4x8xf32>
    %cst = arith.constant 0.000000e+00 : f32
    %3 = vector.broadcast %cst : f32 to vector<2x1x8x4xf32>
    %4 = vector.extract_strided_slice %1 {offsets = [0, 0, 0, 0], sizes = [2, 3, 8, 4], strides = [1, 1, 1, 1]} : vector<2x4x8x4xf32> to vector<2x3x8x4xf32>
    %5 = tpu.concatenate %3, %4 in 1 : vector<2x1x8x4xf32>, vector<2x3x8x4xf32> -> vector<2x4x8x4xf32>
    %6 = vector.extract_strided_slice %1 {offsets = [0, 1, 0, 0], sizes = [2, 3, 8, 4], strides = [1, 1, 1, 1]} : vector<2x4x8x4xf32> to vector<2x3x8x4xf32>
    %7 = tpu.concatenate %6, %3 in 1 : vector<2x3x8x4xf32>, vector<2x1x8x4xf32> -> vector<2x4x8x4xf32>
    %cst_4 = arith.constant 0.000000e+00 : f32
    %8 = vector.broadcast %cst_4 : f32 to vector<2x4x8x4xf32>
    %9 = tpu.concatenate %8, %5 in 2 : vector<2x4x8x4xf32>, vector<2x4x8x4xf32> -> vector<2x4x16x4xf32>
    %10 = tpu.concatenate %5, %8 in 2 : vector<2x4x8x4xf32>, vector<2x4x8x4xf32> -> vector<2x4x16x4xf32>
    %11 = vector.extract_strided_slice %9 {offsets = [0, 0, 7, 0], sizes = [2, 4, 8, 4], strides = [1, 1, 1, 1]} : vector<2x4x16x4xf32> to vector<2x4x8x4xf32>
    %12 = vector.extract_strided_slice %10 {offsets = [0, 0, 1, 0], sizes = [2, 4, 8, 4], strides = [1, 1, 1, 1]} : vector<2x4x16x4xf32> to vector<2x4x8x4xf32>
    %13 = tpu.concatenate %8, %1 in 2 : vector<2x4x8x4xf32>, vector<2x4x8x4xf32> -> vector<2x4x16x4xf32>
    %14 = tpu.concatenate %1, %8 in 2 : vector<2x4x8x4xf32>, vector<2x4x8x4xf32> -> vector<2x4x16x4xf32>
    %15 = vector.extract_strided_slice %13 {offsets = [0, 0, 7, 0], sizes = [2, 4, 8, 4], strides = [1, 1, 1, 1]} : vector<2x4x16x4xf32> to vector<2x4x8x4xf32>
    %16 = vector.extract_strided_slice %14 {offsets = [0, 0, 1, 0], sizes = [2, 4, 8, 4], strides = [1, 1, 1, 1]} : vector<2x4x16x4xf32> to vector<2x4x8x4xf32>
    %17 = tpu.concatenate %8, %7 in 2 : vector<2x4x8x4xf32>, vector<2x4x8x4xf32> -> vector<2x4x16x4xf32>
    %18 = tpu.concatenate %7, %8 in 2 : vector<2x4x8x4xf32>, vector<2x4x8x4xf32> -> vector<2x4x16x4xf32>
    %19 = vector.extract_strided_slice %17 {offsets = [0, 0, 7, 0], sizes = [2, 4, 8, 4], strides = [1, 1, 1, 1]} : vector<2x4x16x4xf32> to vector<2x4x8x4xf32>
    %20 = vector.extract_strided_slice %18 {offsets = [0, 0, 1, 0], sizes = [2, 4, 8, 4], strides = [1, 1, 1, 1]} : vector<2x4x16x4xf32> to vector<2x4x8x4xf32>
    %21 = vector.shape_cast %11 : vector<2x4x8x4xf32> to vector<64x4xf32>
    %22 = vector.extract_strided_slice %2 {offsets = [0, 0, 0], sizes = [1, 4, 8], strides = [1, 1, 1]} : vector<12x4x8xf32> to vector<1x4x8xf32>
    %23 = vector.shape_cast %22 : vector<1x4x8xf32> to vector<4x8xf32>
    %cst_5 = arith.constant dense<0.000000e+00> : vector<64x8xf32>
    %24 = tpu.matmul %21, %23, %cst_5 {dimension_numbers = #tpu.dot_dimension_numbers<[1], [0], [0], [1], [0, 0, 1, 1], [], []>} : vector<64x4xf32>, vector<4x8xf32>, vector<64x8xf32> -> vector<64x8xf32>
    %25 = vector.shape_cast %5 : vector<2x4x8x4xf32> to vector<64x4xf32>
    %26 = vector.extract_strided_slice %2 {offsets = [1, 0, 0], sizes = [1, 4, 8], strides = [1, 1, 1]} : vector<12x4x8xf32> to vector<1x4x8xf32>
    %27 = vector.shape_cast %26 : vector<1x4x8xf32> to vector<4x8xf32>
    %cst_6 = arith.constant dense<0.000000e+00> : vector<64x8xf32>
    %28 = tpu.matmul %25, %27, %cst_6 {dimension_numbers = #tpu.dot_dimension_numbers<[1], [0], [0], [1], [0, 0, 1, 1], [], []>} : vector<64x4xf32>, vector<4x8xf32>, vector<64x8xf32> -> vector<64x8xf32>
    %29 = arith.addf %24, %28 : vector<64x8xf32>
    %30 = vector.shape_cast %12 : vector<2x4x8x4xf32> to vector<64x4xf32>
    %31 = vector.extract_strided_slice %2 {offsets = [2, 0, 0], sizes = [1, 4, 8], strides = [1, 1, 1]} : vector<12x4x8xf32> to vector<1x4x8xf32>
    %32 = vector.shape_cast %31 : vector<1x4x8xf32> to vector<4x8xf32>
    %cst_7 = arith.constant dense<0.000000e+00> : vector<64x8xf32>
    %33 = tpu.matmul %30, %32, %cst_7 {dimension_numbers = #tpu.dot_dimension_numbers<[1], [0], [0], [1], [0, 0, 1, 1], [], []>} : vector<64x4xf32>, vector<4x8xf32>, vector<64x8xf32> -> vector<64x8xf32>
    %34 = arith.addf %29, %33 : vector<64x8xf32>
    %35 = vector.shape_cast %15 : vector<2x4x8x4xf32> to vector<64x4xf32>
    %36 = vector.extract_strided_slice %2 {offsets = [6, 0, 0], sizes = [1, 4, 8], strides = [1, 1, 1]} : vector<12x4x8xf32> to vector<1x4x8xf32>
    %37 = vector.shape_cast %36 : vector<1x4x8xf32> to vector<4x8xf32>
    %cst_8 = arith.constant dense<0.000000e+00> : vector<64x8xf32>
    %38 = tpu.matmul %35, %37, %cst_8 {dimension_numbers = #tpu.dot_dimension_numbers<[1], [0], [0], [1], [0, 0, 1, 1], [], []>} : vector<64x4xf32>, vector<4x8xf32>, vector<64x8xf32> -> vector<64x8xf32>
    %39 = vector.shape_cast %1 : vector<2x4x8x4xf32> to vector<64x4xf32>
    %40 = vector.extract_strided_slice %2 {offsets = [7, 0, 0], sizes = [1, 4, 8], strides = [1, 1, 1]} : vector<12x4x8xf32> to vector<1x4x8xf32>
    %41 = vector.shape_cast %40 : vector<1x4x8xf32> to vector<4x8xf32>
    %cst_9 = arith.constant dense<0.000000e+00> : vector<64x8xf32>
    %42 = tpu.matmul %39, %41, %cst_9 {dimension_numbers = #tpu.dot_dimension_numbers<[1], [0], [0], [1], [0, 0, 1, 1], [], []>} : vector<64x4xf32>, vector<4x8xf32>, vector<64x8xf32> -> vector<64x8xf32>
    %43 = arith.addf %38, %42 : vector<64x8xf32>
    %44 = vector.shape_cast %16 : vector<2x4x8x4xf32> to vector<64x4xf32>
    %45 = vector.extract_strided_slice %2 {offsets = [8, 0, 0], sizes = [1, 4, 8], strides = [1, 1, 1]} : vector<12x4x8xf32> to vector<1x4x8xf32>
    %46 = vector.shape_cast %45 : vector<1x4x8xf32> to vector<4x8xf32>
    %cst_10 = arith.constant dense<0.000000e+00> : vector<64x8xf32>
    %47 = tpu.matmul %44, %46, %cst_10 {dimension_numbers = #tpu.dot_dimension_numbers<[1], [0], [0], [1], [0, 0, 1, 1], [], []>} : vector<64x4xf32>, vector<4x8xf32>, vector<64x8xf32> -> vector<64x8xf32>
    %48 = arith.addf %43, %47 : vector<64x8xf32>
    %49 = arith.addf %34, %48 : vector<64x8xf32>
    %50 = vector.shape_cast %15 : vector<2x4x8x4xf32> to vector<64x4xf32>
    %51 = vector.extract_strided_slice %2 {offsets = [3, 0, 0], sizes = [1, 4, 8], strides = [1, 1, 1]} : vector<12x4x8xf32> to vector<1x4x8xf32>
    %52 = vector.shape_cast %51 : vector<1x4x8xf32> to vector<4x8xf32>
    %cst_11 = arith.constant dense<0.000000e+00> : vector<64x8xf32>
    %53 = tpu.matmul %50, %52, %cst_11 {dimension_numbers = #tpu.dot_dimension_numbers<[1], [0], [0], [1], [0, 0, 1, 1], [], []>} : vector<64x4xf32>, vector<4x8xf32>, vector<64x8xf32> -> vector<64x8xf32>
    %54 = vector.shape_cast %1 : vector<2x4x8x4xf32> to vector<64x4xf32>
    %55 = vector.extract_strided_slice %2 {offsets = [4, 0, 0], sizes = [1, 4, 8], strides = [1, 1, 1]} : vector<12x4x8xf32> to vector<1x4x8xf32>
    %56 = vector.shape_cast %55 : vector<1x4x8xf32> to vector<4x8xf32>
    %cst_12 = arith.constant dense<0.000000e+00> : vector<64x8xf32>
    %57 = tpu.matmul %54, %56, %cst_12 {dimension_numbers = #tpu.dot_dimension_numbers<[1], [0], [0], [1], [0, 0, 1, 1], [], []>} : vector<64x4xf32>, vector<4x8xf32>, vector<64x8xf32> -> vector<64x8xf32>
    %58 = arith.addf %53, %57 : vector<64x8xf32>
    %59 = vector.shape_cast %16 : vector<2x4x8x4xf32> to vector<64x4xf32>
    %60 = vector.extract_strided_slice %2 {offsets = [5, 0, 0], sizes = [1, 4, 8], strides = [1, 1, 1]} : vector<12x4x8xf32> to vector<1x4x8xf32>
    %61 = vector.shape_cast %60 : vector<1x4x8xf32> to vector<4x8xf32>
    %cst_13 = arith.constant dense<0.000000e+00> : vector<64x8xf32>
    %62 = tpu.matmul %59, %61, %cst_13 {dimension_numbers = #tpu.dot_dimension_numbers<[1], [0], [0], [1], [0, 0, 1, 1], [], []>} : vector<64x4xf32>, vector<4x8xf32>, vector<64x8xf32> -> vector<64x8xf32>
    %63 = arith.addf %58, %62 : vector<64x8xf32>
    %64 = vector.shape_cast %19 : vector<2x4x8x4xf32> to vector<64x4xf32>
    %65 = vector.extract_strided_slice %2 {offsets = [9, 0, 0], sizes = [1, 4, 8], strides = [1, 1, 1]} : vector<12x4x8xf32> to vector<1x4x8xf32>
    %66 = vector.shape_cast %65 : vector<1x4x8xf32> to vector<4x8xf32>
    %cst_14 = arith.constant dense<0.000000e+00> : vector<64x8xf32>
    %67 = tpu.matmul %64, %66, %cst_14 {dimension_numbers = #tpu.dot_dimension_numbers<[1], [0], [0], [1], [0, 0, 1, 1], [], []>} : vector<64x4xf32>, vector<4x8xf32>, vector<64x8xf32> -> vector<64x8xf32>
    %68 = vector.shape_cast %7 : vector<2x4x8x4xf32> to vector<64x4xf32>
    %69 = vector.extract_strided_slice %2 {offsets = [10, 0, 0], sizes = [1, 4, 8], strides = [1, 1, 1]} : vector<12x4x8xf32> to vector<1x4x8xf32>
    %70 = vector.shape_cast %69 : vector<1x4x8xf32> to vector<4x8xf32>
    %cst_15 = arith.constant dense<0.000000e+00> : vector<64x8xf32>
    %71 = tpu.matmul %68, %70, %cst_15 {dimension_numbers = #tpu.dot_dimension_numbers<[1], [0], [0], [1], [0, 0, 1, 1], [], []>} : vector<64x4xf32>, vector<4x8xf32>, vector<64x8xf32> -> vector<64x8xf32>
    %72 = arith.addf %67, %71 : vector<64x8xf32>
    %73 = vector.shape_cast %20 : vector<2x4x8x4xf32> to vector<64x4xf32>
    %74 = vector.extract_strided_slice %2 {offsets = [11, 0, 0], sizes = [1, 4, 8], strides = [1, 1, 1]} : vector<12x4x8xf32> to vector<1x4x8xf32>
    %75 = vector.shape_cast %74 : vector<1x4x8xf32> to vector<4x8xf32>
    %cst_16 = arith.constant dense<0.000000e+00> : vector<64x8xf32>
    %76 = tpu.matmul %73, %75, %cst_16 {dimension_numbers = #tpu.dot_dimension_numbers<[1], [0], [0], [1], [0, 0, 1, 1], [], []>} : vector<64x4xf32>, vector<4x8xf32>, vector<64x8xf32> -> vector<64x8xf32>
    %77 = arith.addf %72, %76 : vector<64x8xf32>
    %78 = arith.addf %63, %77 : vector<64x8xf32>
    %79 = vector.shape_cast %49 : vector<64x8xf32> to vector<8x8x8xf32>
    %80 = vector.shape_cast %78 : vector<64x8xf32> to vector<8x8x8xf32>
    %81 = tpu.concatenate %79, %80 in 1 : vector<8x8x8xf32>, vector<8x8x8xf32> -> vector<8x16x8xf32>
    %82 = vector.shape_cast %81 : vector<8x16x8xf32> to vector<128x8xf32>
    %c0_17 = arith.constant 0 : index
    %c0_18 = arith.constant 0 : index
    %83 = vector.load %arg2[%c0_17, %c0_18] : memref<3x8xf32, #tpu.memory_space<vmem>>, vector<1x8xf32>
    %84 = vector.broadcast %83 : vector<1x8xf32> to vector<128x8xf32>
    %85 = arith.addf %82, %84 : vector<128x8xf32>
    %cst_19 = arith.constant 0.000000e+00 : f32
    %86 = vector.broadcast %cst_19 : f32 to vector<128x8xf32>
    %87 = arith.maximumf %85, %86 : vector<128x8xf32>
    %c1 = arith.constant 1 : index
    %c0_20 = arith.constant 0 : index
    %88 = vector.load %arg2[%c1, %c0_20] : memref<3x8xf32, #tpu.memory_space<vmem>>, vector<1x8xf32>
    %c2 = arith.constant 2 : index
    %c0_21 = arith.constant 0 : index
    %89 = vector.load %arg2[%c2, %c0_21] : memref<3x8xf32, #tpu.memory_space<vmem>>, vector<1x8xf32>
    %cst_22 = arith.constant dense<0.000000e+00> : vector<8xf32>
    %90 = vector.multi_reduction <add>, %87, %cst_22 [0] : vector<128x8xf32> to vector<8xf32>
    %91 = vector.shape_cast %90 : vector<8xf32> to vector<1x8xf32>
    %cst_23 = arith.constant 1.280000e+02 : f32
    %92 = vector.broadcast %cst_23 : f32 to vector<1x8xf32>
    %93 = arith.divf %91, %92 : vector<1x8xf32>
    %94 = vector.broadcast %93 : vector<1x8xf32> to vector<128x8xf32>
    %95 = arith.subf %87, %94 : vector<128x8xf32>
    %96 = arith.mulf %95, %95 : vector<128x8xf32>
    %cst_24 = arith.constant dense<0.000000e+00> : vector<8xf32>
    %97 = vector.multi_reduction <add>, %96, %cst_24 [0] : vector<128x8xf32> to vector<8xf32>
    %98 = vector.shape_cast %97 : vector<8xf32> to vector<1x8xf32>
    %cst_25 = arith.constant 1.280000e+02 : f32
    %99 = vector.broadcast %cst_25 : f32 to vector<1x8xf32>
    %100 = arith.divf %98, %99 : vector<1x8xf32>
    %101 = vector.broadcast %93 : vector<1x8xf32> to vector<128x8xf32>
    %102 = arith.subf %87, %101 : vector<128x8xf32>
    %cst_26 = arith.constant 9.99999974E-6 : f32
    %103 = vector.broadcast %cst_26 : f32 to vector<1x8xf32>
    %104 = arith.addf %100, %103 : vector<1x8xf32>
    %105 = math.rsqrt %104 : vector<1x8xf32>
    %106 = vector.broadcast %105 : vector<1x8xf32> to vector<128x8xf32>
    %107 = arith.mulf %102, %106 : vector<128x8xf32>
    %108 = vector.broadcast %88 : vector<1x8xf32> to vector<128x8xf32>
    %109 = arith.mulf %107, %108 : vector<128x8xf32>
    %110 = vector.broadcast %89 : vector<1x8xf32> to vector<128x8xf32>
    %111 = arith.addf %109, %110 : vector<128x8xf32>
    %112 = vector.shape_cast %111 : vector<128x8xf32> to vector<2x8x8x8xf32>
    %c0_27 = arith.constant 0 : index
    %c0_28 = arith.constant 0 : index
    %c0_29 = arith.constant 0 : index
    %113 = vector.load %arg3[%c0_27, %c0_28, %c0_29] : memref<12x8x1xf32, #tpu.memory_space<vmem>>, vector<12x8x1xf32>
    %cst_30 = arith.constant 0.000000e+00 : f32
    %114 = vector.broadcast %cst_30 : f32 to vector<2x1x8x8xf32>
    %115 = vector.extract_strided_slice %112 {offsets = [0, 0, 0, 0], sizes = [2, 7, 8, 8], strides = [1, 1, 1, 1]} : vector<2x8x8x8xf32> to vector<2x7x8x8xf32>
    %116 = tpu.concatenate %114, %115 in 1 : vector<2x1x8x8xf32>, vector<2x7x8x8xf32> -> vector<2x8x8x8xf32>
    %117 = vector.extract_strided_slice %112 {offsets = [0, 1, 0, 0], sizes = [2, 7, 8, 8], strides = [1, 1, 1, 1]} : vector<2x8x8x8xf32> to vector<2x7x8x8xf32>
    %118 = tpu.concatenate %117, %114 in 1 : vector<2x7x8x8xf32>, vector<2x1x8x8xf32> -> vector<2x8x8x8xf32>
    %cst_31 = arith.constant 0.000000e+00 : f32
    %119 = vector.broadcast %cst_31 : f32 to vector<2x8x8x8xf32>
    %120 = tpu.concatenate %119, %116 in 2 : vector<2x8x8x8xf32>, vector<2x8x8x8xf32> -> vector<2x8x16x8xf32>
    %121 = tpu.concatenate %116, %119 in 2 : vector<2x8x8x8xf32>, vector<2x8x8x8xf32> -> vector<2x8x16x8xf32>
    %122 = vector.extract_strided_slice %120 {offsets = [0, 0, 7, 0], sizes = [2, 8, 8, 8], strides = [1, 1, 1, 1]} : vector<2x8x16x8xf32> to vector<2x8x8x8xf32>
    %123 = vector.extract_strided_slice %121 {offsets = [0, 0, 1, 0], sizes = [2, 8, 8, 8], strides = [1, 1, 1, 1]} : vector<2x8x16x8xf32> to vector<2x8x8x8xf32>
    %124 = tpu.concatenate %119, %112 in 2 : vector<2x8x8x8xf32>, vector<2x8x8x8xf32> -> vector<2x8x16x8xf32>
    %125 = tpu.concatenate %112, %119 in 2 : vector<2x8x8x8xf32>, vector<2x8x8x8xf32> -> vector<2x8x16x8xf32>
    %126 = vector.extract_strided_slice %124 {offsets = [0, 0, 7, 0], sizes = [2, 8, 8, 8], strides = [1, 1, 1, 1]} : vector<2x8x16x8xf32> to vector<2x8x8x8xf32>
    %127 = vector.extract_strided_slice %125 {offsets = [0, 0, 1, 0], sizes = [2, 8, 8, 8], strides = [1, 1, 1, 1]} : vector<2x8x16x8xf32> to vector<2x8x8x8xf32>
    %128 = tpu.concatenate %119, %118 in 2 : vector<2x8x8x8xf32>, vector<2x8x8x8xf32> -> vector<2x8x16x8xf32>
    %129 = tpu.concatenate %118, %119 in 2 : vector<2x8x8x8xf32>, vector<2x8x8x8xf32> -> vector<2x8x16x8xf32>
    %130 = vector.extract_strided_slice %128 {offsets = [0, 0, 7, 0], sizes = [2, 8, 8, 8], strides = [1, 1, 1, 1]} : vector<2x8x16x8xf32> to vector<2x8x8x8xf32>
    %131 = vector.extract_strided_slice %129 {offsets = [0, 0, 1, 0], sizes = [2, 8, 8, 8], strides = [1, 1, 1, 1]} : vector<2x8x16x8xf32> to vector<2x8x8x8xf32>
    %132 = vector.shape_cast %122 : vector<2x8x8x8xf32> to vector<128x8xf32>
    %133 = vector.extract_strided_slice %113 {offsets = [0, 0, 0], sizes = [1, 8, 1], strides = [1, 1, 1]} : vector<12x8x1xf32> to vector<1x8x1xf32>
    %134 = vector.shape_cast %133 : vector<1x8x1xf32> to vector<8x1xf32>
    %cst_32 = arith.constant dense<0.000000e+00> : vector<128x1xf32>
    %135 = tpu.matmul %132, %134, %cst_32 {dimension_numbers = #tpu.dot_dimension_numbers<[1], [0], [0], [1], [0, 0, 1, 1], [], []>} : vector<128x8xf32>, vector<8x1xf32>, vector<128x1xf32> -> vector<128x1xf32>
    %136 = vector.shape_cast %116 : vector<2x8x8x8xf32> to vector<128x8xf32>
    %137 = vector.extract_strided_slice %113 {offsets = [1, 0, 0], sizes = [1, 8, 1], strides = [1, 1, 1]} : vector<12x8x1xf32> to vector<1x8x1xf32>
    %138 = vector.shape_cast %137 : vector<1x8x1xf32> to vector<8x1xf32>
    %cst_33 = arith.constant dense<0.000000e+00> : vector<128x1xf32>
    %139 = tpu.matmul %136, %138, %cst_33 {dimension_numbers = #tpu.dot_dimension_numbers<[1], [0], [0], [1], [0, 0, 1, 1], [], []>} : vector<128x8xf32>, vector<8x1xf32>, vector<128x1xf32> -> vector<128x1xf32>
    %140 = arith.addf %135, %139 : vector<128x1xf32>
    %141 = vector.shape_cast %123 : vector<2x8x8x8xf32> to vector<128x8xf32>
    %142 = vector.extract_strided_slice %113 {offsets = [2, 0, 0], sizes = [1, 8, 1], strides = [1, 1, 1]} : vector<12x8x1xf32> to vector<1x8x1xf32>
    %143 = vector.shape_cast %142 : vector<1x8x1xf32> to vector<8x1xf32>
    %cst_34 = arith.constant dense<0.000000e+00> : vector<128x1xf32>
    %144 = tpu.matmul %141, %143, %cst_34 {dimension_numbers = #tpu.dot_dimension_numbers<[1], [0], [0], [1], [0, 0, 1, 1], [], []>} : vector<128x8xf32>, vector<8x1xf32>, vector<128x1xf32> -> vector<128x1xf32>
    %145 = arith.addf %140, %144 : vector<128x1xf32>
    %146 = vector.shape_cast %126 : vector<2x8x8x8xf32> to vector<128x8xf32>
    %147 = vector.extract_strided_slice %113 {offsets = [6, 0, 0], sizes = [1, 8, 1], strides = [1, 1, 1]} : vector<12x8x1xf32> to vector<1x8x1xf32>
    %148 = vector.shape_cast %147 : vector<1x8x1xf32> to vector<8x1xf32>
    %cst_35 = arith.constant dense<0.000000e+00> : vector<128x1xf32>
    %149 = tpu.matmul %146, %148, %cst_35 {dimension_numbers = #tpu.dot_dimension_numbers<[1], [0], [0], [1], [0, 0, 1, 1], [], []>} : vector<128x8xf32>, vector<8x1xf32>, vector<128x1xf32> -> vector<128x1xf32>
    %150 = vector.shape_cast %112 : vector<2x8x8x8xf32> to vector<128x8xf32>
    %151 = vector.extract_strided_slice %113 {offsets = [7, 0, 0], sizes = [1, 8, 1], strides = [1, 1, 1]} : vector<12x8x1xf32> to vector<1x8x1xf32>
    %152 = vector.shape_cast %151 : vector<1x8x1xf32> to vector<8x1xf32>
    %cst_36 = arith.constant dense<0.000000e+00> : vector<128x1xf32>
    %153 = tpu.matmul %150, %152, %cst_36 {dimension_numbers = #tpu.dot_dimension_numbers<[1], [0], [0], [1], [0, 0, 1, 1], [], []>} : vector<128x8xf32>, vector<8x1xf32>, vector<128x1xf32> -> vector<128x1xf32>
    %154 = arith.addf %149, %153 : vector<128x1xf32>
    %155 = vector.shape_cast %127 : vector<2x8x8x8xf32> to vector<128x8xf32>
    %156 = vector.extract_strided_slice %113 {offsets = [8, 0, 0], sizes = [1, 8, 1], strides = [1, 1, 1]} : vector<12x8x1xf32> to vector<1x8x1xf32>
    %157 = vector.shape_cast %156 : vector<1x8x1xf32> to vector<8x1xf32>
    %cst_37 = arith.constant dense<0.000000e+00> : vector<128x1xf32>
    %158 = tpu.matmul %155, %157, %cst_37 {dimension_numbers = #tpu.dot_dimension_numbers<[1], [0], [0], [1], [0, 0, 1, 1], [], []>} : vector<128x8xf32>, vector<8x1xf32>, vector<128x1xf32> -> vector<128x1xf32>
    %159 = arith.addf %154, %158 : vector<128x1xf32>
    %160 = arith.addf %145, %159 : vector<128x1xf32>
    %161 = vector.shape_cast %126 : vector<2x8x8x8xf32> to vector<128x8xf32>
    %162 = vector.extract_strided_slice %113 {offsets = [3, 0, 0], sizes = [1, 8, 1], strides = [1, 1, 1]} : vector<12x8x1xf32> to vector<1x8x1xf32>
    %163 = vector.shape_cast %162 : vector<1x8x1xf32> to vector<8x1xf32>
    %cst_38 = arith.constant dense<0.000000e+00> : vector<128x1xf32>
    %164 = tpu.matmul %161, %163, %cst_38 {dimension_numbers = #tpu.dot_dimension_numbers<[1], [0], [0], [1], [0, 0, 1, 1], [], []>} : vector<128x8xf32>, vector<8x1xf32>, vector<128x1xf32> -> vector<128x1xf32>
    %165 = vector.shape_cast %112 : vector<2x8x8x8xf32> to vector<128x8xf32>
    %166 = vector.extract_strided_slice %113 {offsets = [4, 0, 0], sizes = [1, 8, 1], strides = [1, 1, 1]} : vector<12x8x1xf32> to vector<1x8x1xf32>
    %167 = vector.shape_cast %166 : vector<1x8x1xf32> to vector<8x1xf32>
    %cst_39 = arith.constant dense<0.000000e+00> : vector<128x1xf32>
    %168 = tpu.matmul %165, %167, %cst_39 {dimension_numbers = #tpu.dot_dimension_numbers<[1], [0], [0], [1], [0, 0, 1, 1], [], []>} : vector<128x8xf32>, vector<8x1xf32>, vector<128x1xf32> -> vector<128x1xf32>
    %169 = arith.addf %164, %168 : vector<128x1xf32>
    %170 = vector.shape_cast %127 : vector<2x8x8x8xf32> to vector<128x8xf32>
    %171 = vector.extract_strided_slice %113 {offsets = [5, 0, 0], sizes = [1, 8, 1], strides = [1, 1, 1]} : vector<12x8x1xf32> to vector<1x8x1xf32>
    %172 = vector.shape_cast %171 : vector<1x8x1xf32> to vector<8x1xf32>
    %cst_40 = arith.constant dense<0.000000e+00> : vector<128x1xf32>
    %173 = tpu.matmul %170, %172, %cst_40 {dimension_numbers = #tpu.dot_dimension_numbers<[1], [0], [0], [1], [0, 0, 1, 1], [], []>} : vector<128x8xf32>, vector<8x1xf32>, vector<128x1xf32> -> vector<128x1xf32>
    %174 = arith.addf %169, %173 : vector<128x1xf32>
    %175 = vector.shape_cast %130 : vector<2x8x8x8xf32> to vector<128x8xf32>
    %176 = vector.extract_strided_slice %113 {offsets = [9, 0, 0], sizes = [1, 8, 1], strides = [1, 1, 1]} : vector<12x8x1xf32> to vector<1x8x1xf32>
    %177 = vector.shape_cast %176 : vector<1x8x1xf32> to vector<8x1xf32>
    %cst_41 = arith.constant dense<0.000000e+00> : vector<128x1xf32>
    %178 = tpu.matmul %175, %177, %cst_41 {dimension_numbers = #tpu.dot_dimension_numbers<[1], [0], [0], [1], [0, 0, 1, 1], [], []>} : vector<128x8xf32>, vector<8x1xf32>, vector<128x1xf32> -> vector<128x1xf32>
    %179 = vector.shape_cast %118 : vector<2x8x8x8xf32> to vector<128x8xf32>
    %180 = vector.extract_strided_slice %113 {offsets = [10, 0, 0], sizes = [1, 8, 1], strides = [1, 1, 1]} : vector<12x8x1xf32> to vector<1x8x1xf32>
    %181 = vector.shape_cast %180 : vector<1x8x1xf32> to vector<8x1xf32>
    %cst_42 = arith.constant dense<0.000000e+00> : vector<128x1xf32>
    %182 = tpu.matmul %179, %181, %cst_42 {dimension_numbers = #tpu.dot_dimension_numbers<[1], [0], [0], [1], [0, 0, 1, 1], [], []>} : vector<128x8xf32>, vector<8x1xf32>, vector<128x1xf32> -> vector<128x1xf32>
    %183 = arith.addf %178, %182 : vector<128x1xf32>
    %184 = vector.shape_cast %131 : vector<2x8x8x8xf32> to vector<128x8xf32>
    %185 = vector.extract_strided_slice %113 {offsets = [11, 0, 0], sizes = [1, 8, 1], strides = [1, 1, 1]} : vector<12x8x1xf32> to vector<1x8x1xf32>
    %186 = vector.shape_cast %185 : vector<1x8x1xf32> to vector<8x1xf32>
    %cst_43 = arith.constant dense<0.000000e+00> : vector<128x1xf32>
    %187 = tpu.matmul %184, %186, %cst_43 {dimension_numbers = #tpu.dot_dimension_numbers<[1], [0], [0], [1], [0, 0, 1, 1], [], []>} : vector<128x8xf32>, vector<8x1xf32>, vector<128x1xf32> -> vector<128x1xf32>
    %188 = arith.addf %183, %187 : vector<128x1xf32>
    %189 = arith.addf %174, %188 : vector<128x1xf32>
    %190 = vector.shape_cast %160 : vector<128x1xf32> to vector<16x8x1xf32>
    %191 = vector.shape_cast %189 : vector<128x1xf32> to vector<16x8x1xf32>
    %192 = tpu.concatenate %190, %191 in 1 : vector<16x8x1xf32>, vector<16x8x1xf32> -> vector<16x16x1xf32>
    %193 = vector.shape_cast %192 : vector<16x16x1xf32> to vector<256x1xf32>
    %c0_44 = arith.constant 0 : index
    %c0_45 = arith.constant 0 : index
    %194 = vector.load %arg4[%c0_44, %c0_45] : memref<1x1xf32, #tpu.memory_space<vmem>>, vector<1x1xf32>
    %195 = vector.broadcast %194 : vector<1x1xf32> to vector<256x1xf32>
    %196 = arith.addf %193, %195 : vector<256x1xf32>
    %c0_46 = arith.constant 0 : index
    %c0_47 = arith.constant 0 : index
    %197 = vector.load %arg5[%c0_46, %c0_47] : memref<256x1xf32, #tpu.memory_space<vmem>>, vector<256x1xf32>
    tpu.vector_store %arg5[%c0_46, %c0_47], %196 {strides = array<i32>} : memref<256x1xf32, #tpu.memory_space<vmem>>, vector<256x1xf32>,
    return
  }
}

</mosaic_0001>

<llo_original>
// kernel: _lambda_.3
$region0: #{_lambda_.3}
  #allocation0 [shape = 'u32[]', space=smem, size = 0x4, offset = 0x4, fixed_abs, tag = 'smem constant byte address 0x4 - core index']
  #allocation1 [shape = 'u32[72,128]{1,0:T(1,128)}', space=vmem, size = 0x9000, scoped, tag = 'internal scratch']
  #allocation2 [shape = 'f32[1,1]{1,0:T(1,128)S(1)}', space=vmem, size = 0x200, scoped, tag = 'scoped memory for _lambda_.3']
  %s0 = inlined_call_operand.vmem [shape: f32[64,4], index: 0, kind: input, shape index: {}]
  %s1 = inlined_call_operand.vmem [shape: f32[12,4,8], index: 1, kind: input, shape index: {}]
  %s2 = inlined_call_operand.vmem [shape: f32[3,8], index: 2, kind: input, shape index: {}]
  %s3 = inlined_call_operand.vmem [shape: f32[12,8,1], index: 3, kind: input, shape index: {}]
  %s4 = inlined_call_operand.<no memory space> [shape: f32[1,1], index: 4, kind: input, shape index: {}]
  %s5 = inlined_call_operand.vmem [shape: f32[256,1], index: 5, kind: output, shape index: {}]
  %s6 = sld [smem:[#allocation0]]
  $region30: #{_lambda_.3} parent=0
    _
  %s8 = ssub.s32 1, %s6
  %s9 = scalar_select 0, %s8, %s6
  %v10 = vstv %s4
  %11 = vst [vmem:[#allocation2] sm:$0x1] %v10
  // Predicated region
  $region2: #{_lambda_.3} parent=0 // pred_check
    _
  $region3: #{_lambda_.3} parent=0 // pred_check_branch
    %13 = sbr.rel (0) target = $region5
  $region4: #{_lambda_.3} parent=0 // pred_region
    _
  $region5: #{_lambda_.3} parent=0 // pred_fallthru
    _
  // Predicated region
  $region6: #{_lambda_.3} parent=0 // pred_check
    _
  $region7: #{_lambda_.3} parent=0 // pred_check_branch
    %15 = sbr.rel (0) target = $region9
  $region8: #{_lambda_.3} parent=0 // pred_region
    _
  $region9: #{_lambda_.3} parent=0 // pred_fallthru
    _
  // Predicated region
  $region10: #{_lambda_.3} parent=0 // pred_check
    _
  $region11: #{_lambda_.3} parent=0 // pred_check_branch
    %17 = sbr.rel (0) target = $region13
  $region12: #{_lambda_.3} parent=0 // pred_region
    _
  $region13: #{_lambda_.3} parent=0 // pred_fallthru
    _
  // Predicated region
  $region14: #{_lambda_.3} parent=0 // pred_check
    _
  $region15: #{_lambda_.3} parent=0 // pred_check_branch
    %19 = sbr.rel (0) target = $region17
  $region16: #{_lambda_.3} parent=0 // pred_region
    _
  $region17: #{_lambda_.3} parent=0 // pred_fallthru
    _
  // Predicated region
  $region18: #{_lambda_.3} parent=0 // pred_check
    _
  $region19: #{_lambda_.3} parent=0 // pred_check_branch
    %21 = sbr.rel (0) target = $region21
  $region20: #{_lambda_.3} parent=0 // pred_region
    _
  $region21: #{_lambda_.3} parent=0 // pred_fallthru
    _
  %v22 = vld [vmem:[%s0] sm:$0xff]
  %v23 = vld [vmem:[%s0 + $0x8] sm:$0xff]
  %v24 = vld [vmem:[%s0 + $0x10] sm:$0xff]
  %v25 = vld [vmem:[%s0 + $0x18] sm:$0xff]
  %v26 = vld [vmem:[%s0 + $0x20] sm:$0xff]
  %v27 = vld [vmem:[%s0 + $0x28] sm:$0xff]
  %v28 = vld [vmem:[%s0 + $0x30] sm:$0xff]
  %v29 = vld [vmem:[%s0 + $0x38] sm:$0xff]
  %v30 = vld [vmem:[%s1] sm:$0xf]
  %v31 = vld [vmem:[%s1 + $0x4] sm:$0xf]
  %v32 = vld [vmem:[%s1 + $0x8] sm:$0xf]
  %v33 = vld [vmem:[%s1 + $0xc] sm:$0xf]
  %v34 = vld [vmem:[%s1 + $0x10] sm:$0xf]
  %v35 = vld [vmem:[%s1 + $0x14] sm:$0xf]
  %v36 = vld [vmem:[%s1 + $0x18] sm:$0xf]
  %v37 = vld [vmem:[%s1 + $0x1c] sm:$0xf]
  %v38 = vld [vmem:[%s1 + $0x20] sm:$0xf]
  %v39 = vld [vmem:[%s1 + $0x24] sm:$0xf]
  %v40 = vld [vmem:[%s1 + $0x28] sm:$0xf]
  %v41 = vld [vmem:[%s1 + $0x2c] sm:$0xf]
  %vm49 = vcmask 1040384
  %v50 = vrot.slane 0.0, 7
  %v51 = vsel %vm49, %v50, %v50
  %v52 = vrot.slane %v22, 7
  %v53 = vsel %vm49, %v50, %v52
  %v54 = vrot.slane %v23, 7
  %v55 = vsel %vm49, %v50, %v54
  %v56 = vrot.slane %v24, 7
  %v57 = vsel %vm49, %v50, %v56
  %v58 = vrot.slane %v26, 7
  %v59 = vsel %vm49, %v50, %v58
  %v60 = vrot.slane %v27, 7
  %v61 = vsel %vm49, %v50, %v60
  %v62 = vrot.slane %v28, 7
  %v63 = vsel %vm49, %v50, %v62
  %vm64 = vcmask 31744
  %v65 = vsel %vm64, 0.0, 0
  %v67 = vsel %vm64, %v22, 0
  %v69 = vsel %vm64, %v23, 0
  %v71 = vsel %vm64, %v24, 0
  %v73 = vsel %vm64, %v26, 0
  %v75 = vsel %vm64, %v27, 0
  %v77 = vsel %vm64, %v28, 0
  %vm79 = vcmask 1043456
  %v81 = vsel %vm79, %v31, 0
  %83 = vmatpush.msra.mxu0 0.0
  %84 = vmatpush.msra.mxu0 0.0
  %85 = vmatpush.msra.mxu0 0.0
  %86 = vmatpush.msra.mxu0 0.0
  %87 = vmatpush.msra.mxu0 0.0
  %88 = vmatpush.msra.mxu0 0.0
  %89 = vmatpush.msra.mxu0 0.0
  %90 = vmatpush.msra.mxu0 0.0
  %91 = vmatpush.msra.mxu0 0.0
  %92 = vmatpush.msra.mxu0 0.0
  %93 = vmatpush.msra.mxu0 0.0
  %94 = vmatpush.msra.mxu0 0.0
  %95 = vmatpush.msra.mxu0 0.0
  %96 = vmatpush.msra.mxu0 0.0
  %97 = vmatpush.msra.mxu0 0.0
  %98 = vmatpush.msra.mxu0 %v81
  %99 = vmatmul.f32.gmra.mxu0 %v65
  %v100 = vpop.f32.mrf.mxu0
  %v101 = vadd.f32 0.0, %v100
  %102 = vmatmul.f32.gmra.mxu0 %v67
  %v103 = vpop.f32.mrf.mxu0
  %v104 = vadd.f32 0.0, %v103
  %105 = vmatmul.f32.gmra.mxu0 %v69
  %v106 = vpop.f32.mrf.mxu0
  %v107 = vadd.f32 0.0, %v106
  %108 = vmatmul.f32.gmra.mxu0 %v71
  %v109 = vpop.f32.mrf.mxu0
  %v110 = vadd.f32 0.0, %v109
  %111 = vmatmul.f32.gmra.mxu0 %v65
  %v112 = vpop.f32.mrf.mxu0
  %v113 = vadd.f32 0.0, %v112
  %114 = vmatmul.f32.gmra.mxu0 %v73
  %v115 = vpop.f32.mrf.mxu0
  %v116 = vadd.f32 0.0, %v115
  %117 = vmatmul.f32.gmra.mxu0 %v75
  %v118 = vpop.f32.mrf.mxu0
  %v119 = vadd.f32 0.0, %v118
  %120 = vmatmul.f32.gmra.mxu0 %v77
  %v121 = vpop.f32.mrf.mxu0
  %v122 = vadd.f32 0.0, %v121
  %123 = vdwg.mxu0
  %v124 = vsel %vm64, %v51, 0
  %v126 = vsel %vm64, %v53, 0
  %v128 = vsel %vm64, %v55, 0
  %v130 = vsel %vm64, %v57, 0
  %v132 = vsel %vm64, %v59, 0
  %v134 = vsel %vm64, %v61, 0
  %v136 = vsel %vm64, %v63, 0
  %v139 = vsel %vm79, %v30, 0
  %141 = vmatpush.msra.mxu0 0.0
  %142 = vmatpush.msra.mxu0 0.0
  %143 = vmatpush.msra.mxu0 0.0
  %144 = vmatpush.msra.mxu0 0.0
  %145 = vmatpush.msra.mxu0 0.0
  %146 = vmatpush.msra.mxu0 0.0
  %147 = vmatpush.msra.mxu0 0.0
  %148 = vmatpush.msra.mxu0 0.0
  %149 = vmatpush.msra.mxu0 0.0
  %150 = vmatpush.msra.mxu0 0.0
  %151 = vmatpush.msra.mxu0 0.0
  %152 = vmatpush.msra.mxu0 0.0
  %153 = vmatpush.msra.mxu0 0.0
  %154 = vmatpush.msra.mxu0 0.0
  %155 = vmatpush.msra.mxu0 0.0
  %156 = vmatpush.msra.mxu0 %v139
  %157 = vmatmul.f32.gmra.mxu0 %v124
  %v158 = vpop.f32.mrf.mxu0
  %v159 = vadd.f32 %v101, %v158
  %160 = vmatmul.f32.gmra.mxu0 %v126
  %v161 = vpop.f32.mrf.mxu0
  %v162 = vadd.f32 %v104, %v161
  %163 = vmatmul.f32.gmra.mxu0 %v128
  %v164 = vpop.f32.mrf.mxu0
  %v165 = vadd.f32 %v107, %v164
  %166 = vmatmul.f32.gmra.mxu0 %v130
  %v167 = vpop.f32.mrf.mxu0
  %v168 = vadd.f32 %v110, %v167
  %169 = vmatmul.f32.gmra.mxu0 %v124
  %v170 = vpop.f32.mrf.mxu0
  %v171 = vadd.f32 %v113, %v170
  %172 = vmatmul.f32.gmra.mxu0 %v132
  %v173 = vpop.f32.mrf.mxu0
  %v174 = vadd.f32 %v116, %v173
  %175 = vmatmul.f32.gmra.mxu0 %v134
  %v176 = vpop.f32.mrf.mxu0
  %v177 = vadd.f32 %v119, %v176
  %178 = vmatmul.f32.gmra.mxu0 %v136
  %v179 = vpop.f32.mrf.mxu0
  %v180 = vadd.f32 %v122, %v179
  %181 = vdwg.mxu0
  %vm182 = vcmask 1046528
  %v183 = vrot.slane 0.0, 1
  %v184 = vsel %vm182, %v183, %v183
  %v185 = vrot.slane %v22, 1
  %v186 = vsel %vm182, %v185, %v183
  %v187 = vrot.slane %v23, 1
  %v188 = vsel %vm182, %v187, %v183
  %v189 = vrot.slane %v24, 1
  %v190 = vsel %vm182, %v189, %v183
  %v191 = vrot.slane %v26, 1
  %v192 = vsel %vm182, %v191, %v183
  %v193 = vrot.slane %v27, 1
  %v194 = vsel %vm182, %v193, %v183
  %v195 = vrot.slane %v28, 1
  %v196 = vsel %vm182, %v195, %v183
  %v197 = vsel %vm64, %v184, 0
  %v199 = vsel %vm64, %v186, 0
  %v201 = vsel %vm64, %v188, 0
  %v203 = vsel %vm64, %v190, 0
  %v205 = vsel %vm64, %v192, 0
  %v207 = vsel %vm64, %v194, 0
  %v209 = vsel %vm64, %v196, 0
  %v212 = vsel %vm79, %v32, 0
  %214 = vmatpush.msra.mxu0 0.0
  %215 = vmatpush.msra.mxu0 0.0
  %216 = vmatpush.msra.mxu0 0.0
  %217 = vmatpush.msra.mxu0 0.0
  %218 = vmatpush.msra.mxu0 0.0
  %219 = vmatpush.msra.mxu0 0.0
  %220 = vmatpush.msra.mxu0 0.0
  %221 = vmatpush.msra.mxu0 0.0
  %222 = vmatpush.msra.mxu0 0.0
  %223 = vmatpush.msra.mxu0 0.0
  %224 = vmatpush.msra.mxu0 0.0
  %225 = vmatpush.msra.mxu0 0.0
  %226 = vmatpush.msra.mxu0 0.0
  %227 = vmatpush.msra.mxu0 0.0
  %228 = vmatpush.msra.mxu0 0.0
  %229 = vmatpush.msra.mxu0 %v212
  %230 = vmatmul.f32.gmra.mxu0 %v197
  %v231 = vpop.f32.mrf.mxu0
  %v232 = vadd.f32 0.0, %v231
  %233 = vmatmul.f32.gmra.mxu0 %v199
  %v234 = vpop.f32.mrf.mxu0
  %v235 = vadd.f32 0.0, %v234
  %236 = vmatmul.f32.gmra.mxu0 %v201
  %v237 = vpop.f32.mrf.mxu0
  %v238 = vadd.f32 0.0, %v237
  %239 = vmatmul.f32.gmra.mxu0 %v203
  %v240 = vpop.f32.mrf.mxu0
  %v241 = vadd.f32 0.0, %v240
  %242 = vmatmul.f32.gmra.mxu0 %v197
  %v243 = vpop.f32.mrf.mxu0
  %v244 = vadd.f32 0.0, %v243
  %245 = vmatmul.f32.gmra.mxu0 %v205
  %v246 = vpop.f32.mrf.mxu0
  %v247 = vadd.f32 0.0, %v246
  %248 = vmatmul.f32.gmra.mxu0 %v207
  %v249 = vpop.f32.mrf.mxu0
  %v250 = vadd.f32 0.0, %v249
  %251 = vmatmul.f32.gmra.mxu0 %v209
  %v252 = vpop.f32.mrf.mxu0
  %v253 = vadd.f32 0.0, %v252
  %254 = vdwg.mxu0
  %v255 = vadd.f32 %v159, %v232
  %v256 = vadd.f32 %v162, %v235
  %v257 = vadd.f32 %v165, %v238
  %v258 = vadd.f32 %v168, %v241
  %v259 = vadd.f32 %v171, %v244
  %v260 = vadd.f32 %v174, %v247
  %v261 = vadd.f32 %v177, %v250
  %v262 = vadd.f32 %v180, %v253
  %v265 = vrot.slane %v25, 7
  %v266 = vsel %vm49, %v50, %v265
  %v267 = vrot.slane %v29, 7
  %v268 = vsel %vm49, %v50, %v267
  %v269 = vsel %vm64, %v25, 0
  %v271 = vsel %vm64, %v29, 0
  %v274 = vsel %vm79, %v37, 0
  %276 = vmatpush.msra.mxu0 0.0
  %277 = vmatpush.msra.mxu0 0.0
  %278 = vmatpush.msra.mxu0 0.0
  %279 = vmatpush.msra.mxu0 0.0
  %280 = vmatpush.msra.mxu0 0.0
  %281 = vmatpush.msra.mxu0 0.0
  %282 = vmatpush.msra.mxu0 0.0
  %283 = vmatpush.msra.mxu0 0.0
  %284 = vmatpush.msra.mxu0 0.0
  %285 = vmatpush.msra.mxu0 0.0
  %286 = vmatpush.msra.mxu0 0.0
  %287 = vmatpush.msra.mxu0 0.0
  %288 = vmatpush.msra.mxu0 0.0
  %289 = vmatpush.msra.mxu0 0.0
  %290 = vmatpush.msra.mxu0 0.0
  %291 = vmatpush.msra.mxu0 %v274
  %292 = vmatmul.f32.gmra.mxu0 %v67
  %v293 = vpop.f32.mrf.mxu0
  %v294 = vadd.f32 0.0, %v293
  %295 = vmatmul.f32.gmra.mxu0 %v69
  %v296 = vpop.f32.mrf.mxu0
  %v297 = vadd.f32 0.0, %v296
  %298 = vmatmul.f32.gmra.mxu0 %v71
  %v299 = vpop.f32.mrf.mxu0
  %v300 = vadd.f32 0.0, %v299
  %301 = vmatmul.f32.gmra.mxu0 %v269
  %v302 = vpop.f32.mrf.mxu0
  %v303 = vadd.f32 0.0, %v302
  %304 = vmatmul.f32.gmra.mxu0 %v73
  %v305 = vpop.f32.mrf.mxu0
  %v306 = vadd.f32 0.0, %v305
  %307 = vmatmul.f32.gmra.mxu0 %v75
  %v308 = vpop.f32.mrf.mxu0
  %v309 = vadd.f32 0.0, %v308
  %310 = vmatmul.f32.gmra.mxu0 %v77
  %v311 = vpop.f32.mrf.mxu0
  %v312 = vadd.f32 0.0, %v311
  %313 = vmatmul.f32.gmra.mxu0 %v271
  %v314 = vpop.f32.mrf.mxu0
  %v315 = vadd.f32 0.0, %v314
  %316 = vdwg.mxu0
  %v317 = vsel %vm64, %v266, 0
  %v319 = vsel %vm64, %v268, 0
  %v322 = vsel %vm79, %v36, 0
  %324 = vmatpush.msra.mxu0 0.0
  %325 = vmatpush.msra.mxu0 0.0
  %326 = vmatpush.msra.mxu0 0.0
  %327 = vmatpush.msra.mxu0 0.0
  %328 = vmatpush.msra.mxu0 0.0
  %329 = vmatpush.msra.mxu0 0.0
  %330 = vmatpush.msra.mxu0 0.0
  %331 = vmatpush.msra.mxu0 0.0
  %332 = vmatpush.msra.mxu0 0.0
  %333 = vmatpush.msra.mxu0 0.0
  %334 = vmatpush.msra.mxu0 0.0
  %335 = vmatpush.msra.mxu0 0.0
  %336 = vmatpush.msra.mxu0 0.0
  %337 = vmatpush.msra.mxu0 0.0
  %338 = vmatpush.msra.mxu0 0.0
  %339 = vmatpush.msra.mxu0 %v322
  %340 = vmatmul.f32.gmra.mxu0 %v126
  %v341 = vpop.f32.mrf.mxu0
  %v342 = vadd.f32 %v294, %v341
  %343 = vmatmul.f32.gmra.mxu0 %v128
  %v344 = vpop.f32.mrf.mxu0
  %v345 = vadd.f32 %v297, %v344
  %346 = vmatmul.f32.gmra.mxu0 %v130
  %v347 = vpop.f32.mrf.mxu0
  %v348 = vadd.f32 %v300, %v347
  %349 = vmatmul.f32.gmra.mxu0 %v317
  %v350 = vpop.f32.mrf.mxu0
  %v351 = vadd.f32 %v303, %v350
  %352 = vmatmul.f32.gmra.mxu0 %v132
  %v353 = vpop.f32.mrf.mxu0
  %v354 = vadd.f32 %v306, %v353
  %355 = vmatmul.f32.gmra.mxu0 %v134
  %v356 = vpop.f32.mrf.mxu0
  %v357 = vadd.f32 %v309, %v356
  %358 = vmatmul.f32.gmra.mxu0 %v136
  %v359 = vpop.f32.mrf.mxu0
  %v360 = vadd.f32 %v312, %v359
  %361 = vmatmul.f32.gmra.mxu0 %v319
  %v362 = vpop.f32.mrf.mxu0
  %v363 = vadd.f32 %v315, %v362
  %364 = vdwg.mxu0
  %v365 = vrot.slane %v25, 1
  %v366 = vsel %vm182, %v365, %v183
  %v367 = vrot.slane %v29, 1
  %v368 = vsel %vm182, %v367, %v183
  %v369 = vsel %vm64, %v366, 0
  %v371 = vsel %vm64, %v368, 0
  %v374 = vsel %vm79, %v38, 0
  %376 = vmatpush.msra.mxu0 0.0
  %377 = vmatpush.msra.mxu0 0.0
  %378 = vmatpush.msra.mxu0 0.0
  %379 = vmatpush.msra.mxu0 0.0
  %380 = vmatpush.msra.mxu0 0.0
  %381 = vmatpush.msra.mxu0 0.0
  %382 = vmatpush.msra.mxu0 0.0
  %383 = vmatpush.msra.mxu0 0.0
  %384 = vmatpush.msra.mxu0 0.0
  %385 = vmatpush.msra.mxu0 0.0
  %386 = vmatpush.msra.mxu0 0.0
  %387 = vmatpush.msra.mxu0 0.0
  %388 = vmatpush.msra.mxu0 0.0
  %389 = vmatpush.msra.mxu0 0.0
  %390 = vmatpush.msra.mxu0 0.0
  %391 = vmatpush.msra.mxu0 %v374
  %392 = vmatmul.f32.gmra.mxu0 %v199
  %v393 = vpop.f32.mrf.mxu0
  %v394 = vadd.f32 0.0, %v393
  %395 = vmatmul.f32.gmra.mxu0 %v201
  %v396 = vpop.f32.mrf.mxu0
  %v397 = vadd.f32 0.0, %v396
  %398 = vmatmul.f32.gmra.mxu0 %v203
  %v399 = vpop.f32.mrf.mxu0
  %v400 = vadd.f32 0.0, %v399
  %401 = vmatmul.f32.gmra.mxu0 %v369
  %v402 = vpop.f32.mrf.mxu0
  %v403 = vadd.f32 0.0, %v402
  %404 = vmatmul.f32.gmra.mxu0 %v205
  %v405 = vpop.f32.mrf.mxu0
  %v406 = vadd.f32 0.0, %v405
  %407 = vmatmul.f32.gmra.mxu0 %v207
  %v408 = vpop.f32.mrf.mxu0
  %v409 = vadd.f32 0.0, %v408
  %410 = vmatmul.f32.gmra.mxu0 %v209
  %v411 = vpop.f32.mrf.mxu0
  %v412 = vadd.f32 0.0, %v411
  %413 = vmatmul.f32.gmra.mxu0 %v371
  %v414 = vpop.f32.mrf.mxu0
  %v415 = vadd.f32 0.0, %v414
  %416 = vdwg.mxu0
  %v417 = vadd.f32 %v342, %v394
  %v418 = vadd.f32 %v345, %v397
  %v419 = vadd.f32 %v348, %v400
  %v420 = vadd.f32 %v351, %v403
  %v421 = vadd.f32 %v354, %v406
  %v422 = vadd.f32 %v357, %v409
  %v423 = vadd.f32 %v360, %v412
  %v424 = vadd.f32 %v363, %v415
  %v425 = vadd.f32 %v255, %v417
  %v426 = vadd.f32 %v256, %v418
  %v427 = vadd.f32 %v257, %v419
  %v428 = vadd.f32 %v258, %v420
  %v429 = vadd.f32 %v259, %v421
  %v430 = vadd.f32 %v260, %v422
  %v431 = vadd.f32 %v261, %v423
  %v432 = vadd.f32 %v262, %v424
  %v434 = vsel %vm79, %v34, 0
  %436 = vmatpush.msra.mxu0 0.0
  %437 = vmatpush.msra.mxu0 0.0
  %438 = vmatpush.msra.mxu0 0.0
  %439 = vmatpush.msra.mxu0 0.0
  %440 = vmatpush.msra.mxu0 0.0
  %441 = vmatpush.msra.mxu0 0.0
  %442 = vmatpush.msra.mxu0 0.0
  %443 = vmatpush.msra.mxu0 0.0
  %444 = vmatpush.msra.mxu0 0.0
  %445 = vmatpush.msra.mxu0 0.0
  %446 = vmatpush.msra.mxu0 0.0
  %447 = vmatpush.msra.mxu0 0.0
  %448 = vmatpush.msra.mxu0 0.0
  %449 = vmatpush.msra.mxu0 0.0
  %450 = vmatpush.msra.mxu0 0.0
  %451 = vmatpush.msra.mxu0 %v434
  %452 = vmatmul.f32.gmra.mxu0 %v67
  %v453 = vpop.f32.mrf.mxu0
  %v454 = vadd.f32 0.0, %v453
  %455 = vmatmul.f32.gmra.mxu0 %v69
  %v456 = vpop.f32.mrf.mxu0
  %v457 = vadd.f32 0.0, %v456
  %458 = vmatmul.f32.gmra.mxu0 %v71
  %v459 = vpop.f32.mrf.mxu0
  %v460 = vadd.f32 0.0, %v459
  %461 = vmatmul.f32.gmra.mxu0 %v269
  %v462 = vpop.f32.mrf.mxu0
  %v463 = vadd.f32 0.0, %v462
  %464 = vmatmul.f32.gmra.mxu0 %v73
  %v465 = vpop.f32.mrf.mxu0
  %v466 = vadd.f32 0.0, %v465
  %467 = vmatmul.f32.gmra.mxu0 %v75
  %v468 = vpop.f32.mrf.mxu0
  %v469 = vadd.f32 0.0, %v468
  %470 = vmatmul.f32.gmra.mxu0 %v77
  %v471 = vpop.f32.mrf.mxu0
  %v472 = vadd.f32 0.0, %v471
  %473 = vmatmul.f32.gmra.mxu0 %v271
  %v474 = vpop.f32.mrf.mxu0
  %v475 = vadd.f32 0.0, %v474
  %476 = vdwg.mxu0
  %v478 = vsel %vm79, %v33, 0
  %480 = vmatpush.msra.mxu0 0.0
  %481 = vmatpush.msra.mxu0 0.0
  %482 = vmatpush.msra.mxu0 0.0
  %483 = vmatpush.msra.mxu0 0.0
  %484 = vmatpush.msra.mxu0 0.0
  %485 = vmatpush.msra.mxu0 0.0
  %486 = vmatpush.msra.mxu0 0.0
  %487 = vmatpush.msra.mxu0 0.0
  %488 = vmatpush.msra.mxu0 0.0
  %489 = vmatpush.msra.mxu0 0.0
  %490 = vmatpush.msra.mxu0 0.0
  %491 = vmatpush.msra.mxu0 0.0
  %492 = vmatpush.msra.mxu0 0.0
  %493 = vmatpush.msra.mxu0 0.0
  %494 = vmatpush.msra.mxu0 0.0
  %495 = vmatpush.msra.mxu0 %v478
  %496 = vmatmul.f32.gmra.mxu0 %v126
  %v497 = vpop.f32.mrf.mxu0
  %v498 = vadd.f32 %v454, %v497
  %499 = vmatmul.f32.gmra.mxu0 %v128
  %v500 = vpop.f32.mrf.mxu0
  %v501 = vadd.f32 %v457, %v500
  %502 = vmatmul.f32.gmra.mxu0 %v130
  %v503 = vpop.f32.mrf.mxu0
  %v504 = vadd.f32 %v460, %v503
  %505 = vmatmul.f32.gmra.mxu0 %v317
  %v506 = vpop.f32.mrf.mxu0
  %v507 = vadd.f32 %v463, %v506
  %508 = vmatmul.f32.gmra.mxu0 %v132
  %v509 = vpop.f32.mrf.mxu0
  %v510 = vadd.f32 %v466, %v509
  %511 = vmatmul.f32.gmra.mxu0 %v134
  %v512 = vpop.f32.mrf.mxu0
  %v513 = vadd.f32 %v469, %v512
  %514 = vmatmul.f32.gmra.mxu0 %v136
  %v515 = vpop.f32.mrf.mxu0
  %v516 = vadd.f32 %v472, %v515
  %517 = vmatmul.f32.gmra.mxu0 %v319
  %v518 = vpop.f32.mrf.mxu0
  %v519 = vadd.f32 %v475, %v518
  %520 = vdwg.mxu0
  %v522 = vsel %vm79, %v35, 0
  %524 = vmatpush.msra.mxu0 0.0
  %525 = vmatpush.msra.mxu0 0.0
  %526 = vmatpush.msra.mxu0 0.0
  %527 = vmatpush.msra.mxu0 0.0
  %528 = vmatpush.msra.mxu0 0.0
  %529 = vmatpush.msra.mxu0 0.0
  %530 = vmatpush.msra.mxu0 0.0
  %531 = vmatpush.msra.mxu0 0.0
  %532 = vmatpush.msra.mxu0 0.0
  %533 = vmatpush.msra.mxu0 0.0
  %534 = vmatpush.msra.mxu0 0.0
  %535 = vmatpush.msra.mxu0 0.0
  %536 = vmatpush.msra.mxu0 0.0
  %537 = vmatpush.msra.mxu0 0.0
  %538 = vmatpush.msra.mxu0 0.0
  %539 = vmatpush.msra.mxu0 %v522
  %540 = vmatmul.f32.gmra.mxu0 %v199
  %v541 = vpop.f32.mrf.mxu0
  %v542 = vadd.f32 0.0, %v541
  %543 = vmatmul.f32.gmra.mxu0 %v201
  %v544 = vpop.f32.mrf.mxu0
  %v545 = vadd.f32 0.0, %v544
  %546 = vmatmul.f32.gmra.mxu0 %v203
  %v547 = vpop.f32.mrf.mxu0
  %v548 = vadd.f32 0.0, %v547
  %549 = vmatmul.f32.gmra.mxu0 %v369
  %v550 = vpop.f32.mrf.mxu0
  %v551 = vadd.f32 0.0, %v550
  %552 = vmatmul.f32.gmra.mxu0 %v205
  %v553 = vpop.f32.mrf.mxu0
  %v554 = vadd.f32 0.0, %v553
  %555 = vmatmul.f32.gmra.mxu0 %v207
  %v556 = vpop.f32.mrf.mxu0
  %v557 = vadd.f32 0.0, %v556
  %558 = vmatmul.f32.gmra.mxu0 %v209
  %v559 = vpop.f32.mrf.mxu0
  %v560 = vadd.f32 0.0, %v559
  %561 = vmatmul.f32.gmra.mxu0 %v371
  %v562 = vpop.f32.mrf.mxu0
  %v563 = vadd.f32 0.0, %v562
  %564 = vdwg.mxu0
  %v565 = vadd.f32 %v498, %v542
  %v566 = vadd.f32 %v501, %v545
  %v567 = vadd.f32 %v504, %v548
  %v568 = vadd.f32 %v507, %v551
  %v569 = vadd.f32 %v510, %v554
  %v570 = vadd.f32 %v513, %v557
  %v571 = vadd.f32 %v516, %v560
  %v572 = vadd.f32 %v519, %v563
  %v574 = vsel %vm79, %v40, 0
  %576 = vmatpush.msra.mxu0 0.0
  %577 = vmatpush.msra.mxu0 0.0
  %578 = vmatpush.msra.mxu0 0.0
  %579 = vmatpush.msra.mxu0 0.0
  %580 = vmatpush.msra.mxu0 0.0
  %581 = vmatpush.msra.mxu0 0.0
  %582 = vmatpush.msra.mxu0 0.0
  %583 = vmatpush.msra.mxu0 0.0
  %584 = vmatpush.msra.mxu0 0.0
  %585 = vmatpush.msra.mxu0 0.0
  %586 = vmatpush.msra.mxu0 0.0
  %587 = vmatpush.msra.mxu0 0.0
  %588 = vmatpush.msra.mxu0 0.0
  %589 = vmatpush.msra.mxu0 0.0
  %590 = vmatpush.msra.mxu0 0.0
  %591 = vmatpush.msra.mxu0 %v574
  %592 = vmatmul.f32.gmra.mxu0 %v69
  %v593 = vpop.f32.mrf.mxu0
  %v594 = vadd.f32 0.0, %v593
  %595 = vmatmul.f32.gmra.mxu0 %v71
  %v596 = vpop.f32.mrf.mxu0
  %v597 = vadd.f32 0.0, %v596
  %598 = vmatmul.f32.gmra.mxu0 %v269
  %v599 = vpop.f32.mrf.mxu0
  %v600 = vadd.f32 0.0, %v599
  %601 = vmatmul.f32.gmra.mxu0 %v65
  %v602 = vpop.f32.mrf.mxu0
  %v603 = vadd.f32 0.0, %v602
  %604 = vmatmul.f32.gmra.mxu0 %v75
  %v605 = vpop.f32.mrf.mxu0
  %v606 = vadd.f32 0.0, %v605
  %607 = vmatmul.f32.gmra.mxu0 %v77
  %v608 = vpop.f32.mrf.mxu0
  %v609 = vadd.f32 0.0, %v608
  %610 = vmatmul.f32.gmra.mxu0 %v271
  %v611 = vpop.f32.mrf.mxu0
  %v612 = vadd.f32 0.0, %v611
  %613 = vmatmul.f32.gmra.mxu0 %v65
  %v614 = vpop.f32.mrf.mxu0
  %v615 = vadd.f32 0.0, %v614
  %616 = vdwg.mxu0
  %v618 = vsel %vm79, %v39, 0
  %620 = vmatpush.msra.mxu0 0.0
  %621 = vmatpush.msra.mxu0 0.0
  %622 = vmatpush.msra.mxu0 0.0
  %623 = vmatpush.msra.mxu0 0.0
  %624 = vmatpush.msra.mxu0 0.0
  %625 = vmatpush.msra.mxu0 0.0
  %626 = vmatpush.msra.mxu0 0.0
  %627 = vmatpush.msra.mxu0 0.0
  %628 = vmatpush.msra.mxu0 0.0
  %629 = vmatpush.msra.mxu0 0.0
  %630 = vmatpush.msra.mxu0 0.0
  %631 = vmatpush.msra.mxu0 0.0
  %632 = vmatpush.msra.mxu0 0.0
  %633 = vmatpush.msra.mxu0 0.0
  %634 = vmatpush.msra.mxu0 0.0
  %635 = vmatpush.msra.mxu0 %v618
  %636 = vmatmul.f32.gmra.mxu0 %v128
  %v637 = vpop.f32.mrf.mxu0
  %v638 = vadd.f32 %v594, %v637
  %639 = vmatmul.f32.gmra.mxu0 %v130
  %v640 = vpop.f32.mrf.mxu0
  %v641 = vadd.f32 %v597, %v640
  %642 = vmatmul.f32.gmra.mxu0 %v317
  %v643 = vpop.f32.mrf.mxu0
  %v644 = vadd.f32 %v600, %v643
  %645 = vmatmul.f32.gmra.mxu0 %v124
  %v646 = vpop.f32.mrf.mxu0
  %v647 = vadd.f32 %v603, %v646
  %648 = vmatmul.f32.gmra.mxu0 %v134
  %v649 = vpop.f32.mrf.mxu0
  %v650 = vadd.f32 %v606, %v649
  %651 = vmatmul.f32.gmra.mxu0 %v136
  %v652 = vpop.f32.mrf.mxu0
  %v653 = vadd.f32 %v609, %v652
  %654 = vmatmul.f32.gmra.mxu0 %v319
  %v655 = vpop.f32.mrf.mxu0
  %v656 = vadd.f32 %v612, %v655
  %657 = vmatmul.f32.gmra.mxu0 %v124
  %v658 = vpop.f32.mrf.mxu0
  %v659 = vadd.f32 %v615, %v658
  %660 = vdwg.mxu0
  %v662 = vsel %vm79, %v41, 0
  %664 = vmatpush.msra.mxu0 0.0
  %665 = vmatpush.msra.mxu0 0.0
  %666 = vmatpush.msra.mxu0 0.0
  %667 = vmatpush.msra.mxu0 0.0
  %668 = vmatpush.msra.mxu0 0.0
  %669 = vmatpush.msra.mxu0 0.0
  %670 = vmatpush.msra.mxu0 0.0
  %671 = vmatpush.msra.mxu0 0.0
  %672 = vmatpush.msra.mxu0 0.0
  %673 = vmatpush.msra.mxu0 0.0
  %674 = vmatpush.msra.mxu0 0.0
  %675 = vmatpush.msra.mxu0 0.0
  %676 = vmatpush.msra.mxu0 0.0
  %677 = vmatpush.msra.mxu0 0.0
  %678 = vmatpush.msra.mxu0 0.0
  %679 = vmatpush.msra.mxu0 %v662
  %680 = vmatmul.f32.gmra.mxu0 %v201
  %v681 = vpop.f32.mrf.mxu0
  %v682 = vadd.f32 0.0, %v681
  %683 = vmatmul.f32.gmra.mxu0 %v203
  %v684 = vpop.f32.mrf.mxu0
  %v685 = vadd.f32 0.0, %v684
  %686 = vmatmul.f32.gmra.mxu0 %v369
  %v687 = vpop.f32.mrf.mxu0
  %v688 = vadd.f32 0.0, %v687
  %689 = vmatmul.f32.gmra.mxu0 %v197
  %v690 = vpop.f32.mrf.mxu0
  %v691 = vadd.f32 0.0, %v690
  %692 = vmatmul.f32.gmra.mxu0 %v207
  %v693 = vpop.f32.mrf.mxu0
  %v694 = vadd.f32 0.0, %v693
  %695 = vmatmul.f32.gmra.mxu0 %v209
  %v696 = vpop.f32.mrf.mxu0
  %v697 = vadd.f32 0.0, %v696
  %698 = vmatmul.f32.gmra.mxu0 %v371
  %v699 = vpop.f32.mrf.mxu0
  %v700 = vadd.f32 0.0, %v699
  %701 = vmatmul.f32.gmra.mxu0 %v197
  %v702 = vpop.f32.mrf.mxu0
  %v703 = vadd.f32 0.0, %v702
  %704 = vdwg.mxu0
  %v705 = vadd.f32 %v638, %v682
  %v706 = vadd.f32 %v641, %v685
  %v707 = vadd.f32 %v644, %v688
  %v708 = vadd.f32 %v647, %v691
  %v709 = vadd.f32 %v650, %v694
  %v710 = vadd.f32 %v653, %v697
  %v711 = vadd.f32 %v656, %v700
  %v712 = vadd.f32 %v659, %v703
  %v713 = vadd.f32 %v565, %v705
  %v714 = vadd.f32 %v566, %v706
  %v715 = vadd.f32 %v567, %v707
  %v716 = vadd.f32 %v568, %v708
  %v717 = vadd.f32 %v569, %v709
  %v718 = vadd.f32 %v570, %v710
  %v719 = vadd.f32 %v571, %v711
  %v720 = vadd.f32 %v572, %v712
  %v721 = vld [vmem:[%s2] sm:$0x1]
  %v722 = vperm.slane %v721, 0
  %v723 = vadd.f32 %v425, %v722
  %v724 = vadd.f32 %v713, %v722
  %v725 = vadd.f32 %v426, %v722
  %v726 = vadd.f32 %v714, %v722
  %v727 = vadd.f32 %v427, %v722
  %v728 = vadd.f32 %v715, %v722
  %v729 = vadd.f32 %v428, %v722
  %v730 = vadd.f32 %v716, %v722
  %v731 = vadd.f32 %v429, %v722
  %v732 = vadd.f32 %v717, %v722
  %v733 = vadd.f32 %v430, %v722
  %v734 = vadd.f32 %v718, %v722
  %v735 = vadd.f32 %v431, %v722
  %v736 = vadd.f32 %v719, %v722
  %v737 = vadd.f32 %v432, %v722
  %v738 = vadd.f32 %v720, %v722
  %v739 = vmax.f32 %v723, 0.0
  %v740 = vmax.f32 %v724, 0.0
  %v741 = vmax.f32 %v725, 0.0
  %v742 = vmax.f32 %v726, 0.0
  %v743 = vmax.f32 %v727, 0.0
  %v744 = vmax.f32 %v728, 0.0
  %v745 = vmax.f32 %v729, 0.0
  %v746 = vmax.f32 %v730, 0.0
  %v747 = vmax.f32 %v731, 0.0
  %v748 = vmax.f32 %v732, 0.0
  %v749 = vmax.f32 %v733, 0.0
  %v750 = vmax.f32 %v734, 0.0
  %v751 = vmax.f32 %v735, 0.0
  %v752 = vmax.f32 %v736, 0.0
  %v753 = vmax.f32 %v737, 0.0
  %v754 = vmax.f32 %v738, 0.0
  %v755 = vld [vmem:[%s2 + $0x1] sm:$0x1]
  %v756 = vld [vmem:[%s2 + $0x2] sm:$0x1]
  %vm757 = vcmask 64512
  %v758 = vsel %vm757, %v739, 0.0
  %v759 = vsel %vm757, %v740, 0.0
  %v760 = vadd.f32 %v758, %v759
  %v761 = vsel %vm757, %v741, 0.0
  %v762 = vadd.f32 %v760, %v761
  %v763 = vsel %vm757, %v742, 0.0
  %v764 = vadd.f32 %v762, %v763
  %v765 = vsel %vm757, %v743, 0.0
  %v766 = vadd.f32 %v764, %v765
  %v767 = vsel %vm757, %v744, 0.0
  %v768 = vadd.f32 %v766, %v767
  %v769 = vsel %vm757, %v745, 0.0
  %v770 = vadd.f32 %v768, %v769
  %v771 = vsel %vm757, %v746, 0.0
  %v772 = vadd.f32 %v770, %v771
  %v773 = vsel %vm757, %v747, 0.0
  %v774 = vadd.f32 %v772, %v773
  %v775 = vsel %vm757, %v748, 0.0
  %v776 = vadd.f32 %v774, %v775
  %v777 = vsel %vm757, %v749, 0.0
  %v778 = vadd.f32 %v776, %v777
  %v779 = vsel %vm757, %v750, 0.0
  %v780 = vadd.f32 %v778, %v779
  %v781 = vsel %vm757, %v751, 0.0
  %v782 = vadd.f32 %v780, %v781
  %v783 = vsel %vm757, %v752, 0.0
  %v784 = vadd.f32 %v782, %v783
  %v785 = vsel %vm757, %v753, 0.0
  %v786 = vadd.f32 %v784, %v785
  %v787 = vsel %vm757, %v754, 0.0
  %v788 = vadd.f32 %v786, %v787
  %v789 = vrot.slane %v788, 4
  %v790 = vadd.f32 %v788, %v789
  %v791 = vrot.slane %v790, 2
  %v792 = vadd.f32 %v790, %v791
  %v793 = vrot.slane %v792, 1
  %v794 = vadd.f32 %v792, %v793
  %v795 = vrcp.pop 128.0
  %v796 = vmul.f32 128.0, %v795
  %v797 = vsub.f32 1.0, %v796
  %v798 = vmul.f32 %v795, %v797
  %v799 = vadd.f32 %v795, %v798
  %vm800 = vweird.f32 %v795
  %v801 = vsel %vm800, %v795, %v799
  %v802 = vmul.f32 %v794, %v801
  %v803 = vsub.f32 %v739, %v802
  %v804 = vsub.f32 %v740, %v802
  %v805 = vsub.f32 %v741, %v802
  %v806 = vsub.f32 %v742, %v802
  %v807 = vsub.f32 %v743, %v802
  %v808 = vsub.f32 %v744, %v802
  %v809 = vsub.f32 %v745, %v802
  %v810 = vsub.f32 %v746, %v802
  %v811 = vsub.f32 %v747, %v802
  %v812 = vsub.f32 %v748, %v802
  %v813 = vsub.f32 %v749, %v802
  %v814 = vsub.f32 %v750, %v802
  %v815 = vsub.f32 %v751, %v802
  %v816 = vsub.f32 %v752, %v802
  %v817 = vsub.f32 %v753, %v802
  %v818 = vsub.f32 %v754, %v802
  %v819 = vmul.f32 %v803, %v803
  %v820 = vmul.f32 %v804, %v804
  %v821 = vmul.f32 %v805, %v805
  %v822 = vmul.f32 %v806, %v806
  %v823 = vmul.f32 %v807, %v807
  %v824 = vmul.f32 %v808, %v808
  %v825 = vmul.f32 %v809, %v809
  %v826 = vmul.f32 %v810, %v810
  %v827 = vmul.f32 %v811, %v811
  %v828 = vmul.f32 %v812, %v812
  %v829 = vmul.f32 %v813, %v813
  %v830 = vmul.f32 %v814, %v814
  %v831 = vmul.f32 %v815, %v815
  %v832 = vmul.f32 %v816, %v816
  %v833 = vmul.f32 %v817, %v817
  %v834 = vmul.f32 %v818, %v818
  %v835 = vsel %vm757, %v819, 0.0
  %v836 = vsel %vm757, %v820, 0.0
  %v837 = vadd.f32 %v835, %v836
  %v838 = vsel %vm757, %v821, 0.0
  %v839 = vadd.f32 %v837, %v838
  %v840 = vsel %vm757, %v822, 0.0
  %v841 = vadd.f32 %v839, %v840
  %v842 = vsel %vm757, %v823, 0.0
  %v843 = vadd.f32 %v841, %v842
  %v844 = vsel %vm757, %v824, 0.0
  %v845 = vadd.f32 %v843, %v844
  %v846 = vsel %vm757, %v825, 0.0
  %v847 = vadd.f32 %v845, %v846
  %v848 = vsel %vm757, %v826, 0.0
  %v849 = vadd.f32 %v847, %v848
  %v850 = vsel %vm757, %v827, 0.0
  %v851 = vadd.f32 %v849, %v850
  %v852 = vsel %vm757, %v828, 0.0
  %v853 = vadd.f32 %v851, %v852
  %v854 = vsel %vm757, %v829, 0.0
  %v855 = vadd.f32 %v853, %v854
  %v856 = vsel %vm757, %v830, 0.0
  %v857 = vadd.f32 %v855, %v856
  %v858 = vsel %vm757, %v831, 0.0
  %v859 = vadd.f32 %v857, %v858
  %v860 = vsel %vm757, %v832, 0.0
  %v861 = vadd.f32 %v859, %v860
  %v862 = vsel %vm757, %v833, 0.0
  %v863 = vadd.f32 %v861, %v862
  %v864 = vsel %vm757, %v834, 0.0
  %v865 = vadd.f32 %v863, %v864
  %v866 = vrot.slane %v865, 4
  %v867 = vadd.f32 %v865, %v866
  %v868 = vrot.slane %v867, 2
  %v869 = vadd.f32 %v867, %v868
  %v870 = vrot.slane %v869, 1
  %v871 = vadd.f32 %v869, %v870
  %v872 = vmul.f32 %v871, %v801
  %v873 = vadd.f32 %v872, 1e-05
  %v874 = vrsqrt.pop %v873
  %v875 = vmul.f32 %v874, %v873
  %v876 = vmul.f32 %v875, %v874
  %v877 = vmul.f32 0.5, %v876
  %v878 = vsub.f32 1.5, %v877
  %v879 = vmul.f32 %v874, %v878
  %vm880 = vweird.f32 %v873
  %vm881 = vweird.f32 %v874
  %vm882 = vmor %vm880, %vm881
  %v883 = vsel %vm882, %v874, %v879
  %v884 = vmul.f32 %v803, %v883
  %v885 = vmul.f32 %v804, %v883
  %v886 = vmul.f32 %v805, %v883
  %v887 = vmul.f32 %v806, %v883
  %v888 = vmul.f32 %v807, %v883
  %v889 = vmul.f32 %v808, %v883
  %v890 = vmul.f32 %v809, %v883
  %v891 = vmul.f32 %v810, %v883
  %v892 = vmul.f32 %v811, %v883
  %v893 = vmul.f32 %v812, %v883
  %v894 = vmul.f32 %v813, %v883
  %v895 = vmul.f32 %v814, %v883
  %v896 = vmul.f32 %v815, %v883
  %v897 = vmul.f32 %v816, %v883
  %v898 = vmul.f32 %v817, %v883
  %v899 = vmul.f32 %v818, %v883
  %v900 = vperm.slane %v755, 0
  %v901 = vmul.f32 %v884, %v900
  %v902 = vmul.f32 %v885, %v900
  %v903 = vmul.f32 %v886, %v900
  %v904 = vmul.f32 %v887, %v900
  %v905 = vmul.f32 %v888, %v900
  %v906 = vmul.f32 %v889, %v900
  %v907 = vmul.f32 %v890, %v900
  %v908 = vmul.f32 %v891, %v900
  %v909 = vmul.f32 %v892, %v900
  %v910 = vmul.f32 %v893, %v900
  %v911 = vmul.f32 %v894, %v900
  %v912 = vmul.f32 %v895, %v900
  %v913 = vmul.f32 %v896, %v900
  %v914 = vmul.f32 %v897, %v900
  %v915 = vmul.f32 %v898, %v900
  %v916 = vmul.f32 %v899, %v900
  %v917 = vperm.slane %v756, 0
  %v918 = vadd.f32 %v901, %v917
  %v919 = vadd.f32 %v902, %v917
  %v920 = vadd.f32 %v903, %v917
  %v921 = vadd.f32 %v904, %v917
  %v922 = vadd.f32 %v905, %v917
  %v923 = vadd.f32 %v906, %v917
  %v924 = vadd.f32 %v907, %v917
  %v925 = vadd.f32 %v908, %v917
  %v926 = vadd.f32 %v909, %v917
  %v927 = vadd.f32 %v910, %v917
  %v928 = vadd.f32 %v911, %v917
  %v929 = vadd.f32 %v912, %v917
  %v930 = vadd.f32 %v913, %v917
  %v931 = vadd.f32 %v914, %v917
  %v932 = vadd.f32 %v915, %v917
  %v933 = vadd.f32 %v916, %v917
  %v934 = vld [vmem:[%s3] sm:$0xff]
  %v935 = vld [vmem:[%s3 + $0x8] sm:$0xff]
  %v936 = vld [vmem:[%s3 + $0x10] sm:$0xff]
  %v937 = vld [vmem:[%s3 + $0x18] sm:$0xff]
  %v938 = vld [vmem:[%s3 + $0x20] sm:$0xff]
  %v939 = vld [vmem:[%s3 + $0x28] sm:$0xff]
  %v940 = vld [vmem:[%s3 + $0x30] sm:$0xff]
  %v941 = vld [vmem:[%s3 + $0x38] sm:$0xff]
  %v942 = vld [vmem:[%s3 + $0x40] sm:$0xff]
  %v943 = vld [vmem:[%s3 + $0x48] sm:$0xff]
  %v944 = vld [vmem:[%s3 + $0x50] sm:$0xff]
  %v945 = vld [vmem:[%s3 + $0x58] sm:$0xff]
  %v960 = vrot.slane %v918, 7
  %v961 = vsel %vm49, %v50, %v960
  %v962 = vrot.slane %v919, 7
  %v963 = vsel %vm49, %v50, %v962
  %v964 = vrot.slane %v920, 7
  %v965 = vsel %vm49, %v50, %v964
  %v966 = vrot.slane %v921, 7
  %v967 = vsel %vm49, %v50, %v966
  %v968 = vrot.slane %v922, 7
  %v969 = vsel %vm49, %v50, %v968
  %v970 = vrot.slane %v923, 7
  %v971 = vsel %vm49, %v50, %v970
  %v972 = vrot.slane %v924, 7
  %v973 = vsel %vm49, %v50, %v972
  %v974 = vrot.slane %v926, 7
  %v975 = vsel %vm49, %v50, %v974
  %v976 = vrot.slane %v927, 7
  %v977 = vsel %vm49, %v50, %v976
  %v978 = vrot.slane %v928, 7
  %v979 = vsel %vm49, %v50, %v978
  %v980 = vrot.slane %v929, 7
  %v981 = vsel %vm49, %v50, %v980
  %v982 = vrot.slane %v930, 7
  %v983 = vsel %vm49, %v50, %v982
  %v984 = vrot.slane %v931, 7
  %v985 = vsel %vm49, %v50, %v984
  %v986 = vrot.slane %v932, 7
  %v987 = vsel %vm49, %v50, %v986
  %v988 = vsel %vm757, 0.0, 0
  %v990 = vsel %vm757, %v918, 0
  %v992 = vsel %vm757, %v919, 0
  %v994 = vsel %vm757, %v920, 0
  %v996 = vsel %vm757, %v921, 0
  %v998 = vsel %vm757, %v922, 0
  %v1000 = vsel %vm757, %v923, 0
  %v1002 = vsel %vm757, %v924, 0
  %v1004 = vsel %vm757, %v926, 0
  %v1006 = vsel %vm757, %v927, 0
  %v1008 = vsel %vm757, %v928, 0
  %v1010 = vsel %vm757, %v929, 0
  %v1012 = vsel %vm757, %v930, 0
  %v1014 = vsel %vm757, %v931, 0
  %v1016 = vsel %vm757, %v932, 0
  %1018 = vmatpush.msra.mxu0 0.0
  %1019 = vmatpush.msra.mxu0 0.0
  %1020 = vmatpush.msra.mxu0 0.0
  %1021 = vmatpush.msra.mxu0 0.0
  %1022 = vmatpush.msra.mxu0 0.0
  %1023 = vmatpush.msra.mxu0 0.0
  %1024 = vmatpush.msra.mxu0 0.0
  %1025 = vmatpush.msra.mxu0 0.0
  %1026 = vmatpush.msra.mxu0 0.0
  %1027 = vmatpush.msra.mxu0 0.0
  %1028 = vmatpush.msra.mxu0 0.0
  %1029 = vmatpush.msra.mxu0 0.0
  %1030 = vmatpush.msra.mxu0 0.0
  %1031 = vmatpush.msra.mxu0 0.0
  %1032 = vmatpush.msra.mxu0 0.0
  %1033 = vmatpush.msra.mxu0 %v935
  %1034 = vmatmul.f32.gmra.mxu0 %v988
  %v1035 = vpop.f32.mrf.mxu0
  %v1036 = vadd.f32 0.0, %v1035
  %1037 = vmatmul.f32.gmra.mxu0 %v990
  %v1038 = vpop.f32.mrf.mxu0
  %v1039 = vadd.f32 0.0, %v1038
  %1040 = vmatmul.f32.gmra.mxu0 %v992
  %v1041 = vpop.f32.mrf.mxu0
  %v1042 = vadd.f32 0.0, %v1041
  %1043 = vmatmul.f32.gmra.mxu0 %v994
  %v1044 = vpop.f32.mrf.mxu0
  %v1045 = vadd.f32 0.0, %v1044
  %1046 = vmatmul.f32.gmra.mxu0 %v996
  %v1047 = vpop.f32.mrf.mxu0
  %v1048 = vadd.f32 0.0, %v1047
  %1049 = vmatmul.f32.gmra.mxu0 %v998
  %v1050 = vpop.f32.mrf.mxu0
  %v1051 = vadd.f32 0.0, %v1050
  %1052 = vmatmul.f32.gmra.mxu0 %v1000
  %v1053 = vpop.f32.mrf.mxu0
  %v1054 = vadd.f32 0.0, %v1053
  %1055 = vmatmul.f32.gmra.mxu0 %v1002
  %v1056 = vpop.f32.mrf.mxu0
  %v1057 = vadd.f32 0.0, %v1056
  %1058 = vmatmul.f32.gmra.mxu0 %v988
  %v1059 = vpop.f32.mrf.mxu0
  %v1060 = vadd.f32 0.0, %v1059
  %1061 = vmatmul.f32.gmra.mxu0 %v1004
  %v1062 = vpop.f32.mrf.mxu0
  %v1063 = vadd.f32 0.0, %v1062
  %1064 = vmatmul.f32.gmra.mxu0 %v1006
  %v1065 = vpop.f32.mrf.mxu0
  %v1066 = vadd.f32 0.0, %v1065
  %1067 = vmatmul.f32.gmra.mxu0 %v1008
  %v1068 = vpop.f32.mrf.mxu0
  %v1069 = vadd.f32 0.0, %v1068
  %1070 = vmatmul.f32.gmra.mxu0 %v1010
  %v1071 = vpop.f32.mrf.mxu0
  %v1072 = vadd.f32 0.0, %v1071
  %1073 = vmatmul.f32.gmra.mxu0 %v1012
  %v1074 = vpop.f32.mrf.mxu0
  %v1075 = vadd.f32 0.0, %v1074
  %1076 = vmatmul.f32.gmra.mxu0 %v1014
  %v1077 = vpop.f32.mrf.mxu0
  %v1078 = vadd.f32 0.0, %v1077
  %1079 = vmatmul.f32.gmra.mxu0 %v1016
  %v1080 = vpop.f32.mrf.mxu0
  %v1081 = vadd.f32 0.0, %v1080
  %1082 = vdwg.mxu0
  %v1083 = vsel %vm757, %v51, 0
  %v1085 = vsel %vm757, %v961, 0
  %v1087 = vsel %vm757, %v963, 0
  %v1089 = vsel %vm757, %v965, 0
  %v1091 = vsel %vm757, %v967, 0
  %v1093 = vsel %vm757, %v969, 0
  %v1095 = vsel %vm757, %v971, 0
  %v1097 = vsel %vm757, %v973, 0
  %v1099 = vsel %vm757, %v975, 0
  %v1101 = vsel %vm757, %v977, 0
  %v1103 = vsel %vm757, %v979, 0
  %v1105 = vsel %vm757, %v981, 0
  %v1107 = vsel %vm757, %v983, 0
  %v1109 = vsel %vm757, %v985, 0
  %v1111 = vsel %vm757, %v987, 0
  %1113 = vmatpush.msra.mxu0 0.0
  %1114 = vmatpush.msra.mxu0 0.0
  %1115 = vmatpush.msra.mxu0 0.0
  %1116 = vmatpush.msra.mxu0 0.0
  %1117 = vmatpush.msra.mxu0 0.0
  %1118 = vmatpush.msra.mxu0 0.0
  %1119 = vmatpush.msra.mxu0 0.0
  %1120 = vmatpush.msra.mxu0 0.0
  %1121 = vmatpush.msra.mxu0 0.0
  %1122 = vmatpush.msra.mxu0 0.0
  %1123 = vmatpush.msra.mxu0 0.0
  %1124 = vmatpush.msra.mxu0 0.0
  %1125 = vmatpush.msra.mxu0 0.0
  %1126 = vmatpush.msra.mxu0 0.0
  %1127 = vmatpush.msra.mxu0 0.0
  %1128 = vmatpush.msra.mxu0 %v934
  %1129 = vmatmul.f32.gmra.mxu0 %v1083
  %v1130 = vpop.f32.mrf.mxu0
  %v1131 = vadd.f32 %v1036, %v1130
  %1132 = vmatmul.f32.gmra.mxu0 %v1085
  %v1133 = vpop.f32.mrf.mxu0
  %v1134 = vadd.f32 %v1039, %v1133
  %1135 = vmatmul.f32.gmra.mxu0 %v1087
  %v1136 = vpop.f32.mrf.mxu0
  %v1137 = vadd.f32 %v1042, %v1136
  %1138 = vmatmul.f32.gmra.mxu0 %v1089
  %v1139 = vpop.f32.mrf.mxu0
  %v1140 = vadd.f32 %v1045, %v1139
  %1141 = vmatmul.f32.gmra.mxu0 %v1091
  %v1142 = vpop.f32.mrf.mxu0
  %v1143 = vadd.f32 %v1048, %v1142
  %1144 = vmatmul.f32.gmra.mxu0 %v1093
  %v1145 = vpop.f32.mrf.mxu0
  %v1146 = vadd.f32 %v1051, %v1145
  %1147 = vmatmul.f32.gmra.mxu0 %v1095
  %v1148 = vpop.f32.mrf.mxu0
  %v1149 = vadd.f32 %v1054, %v1148
  %1150 = vmatmul.f32.gmra.mxu0 %v1097
  %v1151 = vpop.f32.mrf.mxu0
  %v1152 = vadd.f32 %v1057, %v1151
  %1153 = vmatmul.f32.gmra.mxu0 %v1083
  %v1154 = vpop.f32.mrf.mxu0
  %v1155 = vadd.f32 %v1060, %v1154
  %1156 = vmatmul.f32.gmra.mxu0 %v1099
  %v1157 = vpop.f32.mrf.mxu0
  %v1158 = vadd.f32 %v1063, %v1157
  %1159 = vmatmul.f32.gmra.mxu0 %v1101
  %v1160 = vpop.f32.mrf.mxu0
  %v1161 = vadd.f32 %v1066, %v1160
  %1162 = vmatmul.f32.gmra.mxu0 %v1103
  %v1163 = vpop.f32.mrf.mxu0
  %v1164 = vadd.f32 %v1069, %v1163
  %1165 = vmatmul.f32.gmra.mxu0 %v1105
  %v1166 = vpop.f32.mrf.mxu0
  %v1167 = vadd.f32 %v1072, %v1166
  %1168 = vmatmul.f32.gmra.mxu0 %v1107
  %v1169 = vpop.f32.mrf.mxu0
  %v1170 = vadd.f32 %v1075, %v1169
  %1171 = vmatmul.f32.gmra.mxu0 %v1109
  %v1172 = vpop.f32.mrf.mxu0
  %v1173 = vadd.f32 %v1078, %v1172
  %1174 = vmatmul.f32.gmra.mxu0 %v1111
  %v1175 = vpop.f32.mrf.mxu0
  %v1176 = vadd.f32 %v1081, %v1175
  %1177 = vdwg.mxu0
  %v1178 = vrot.slane %v918, 1
  %v1179 = vsel %vm182, %v1178, %v183
  %v1180 = vrot.slane %v919, 1
  %v1181 = vsel %vm182, %v1180, %v183
  %v1182 = vrot.slane %v920, 1
  %v1183 = vsel %vm182, %v1182, %v183
  %v1184 = vrot.slane %v921, 1
  %v1185 = vsel %vm182, %v1184, %v183
  %v1186 = vrot.slane %v922, 1
  %v1187 = vsel %vm182, %v1186, %v183
  %v1188 = vrot.slane %v923, 1
  %v1189 = vsel %vm182, %v1188, %v183
  %v1190 = vrot.slane %v924, 1
  %v1191 = vsel %vm182, %v1190, %v183
  %v1192 = vrot.slane %v926, 1
  %v1193 = vsel %vm182, %v1192, %v183
  %v1194 = vrot.slane %v927, 1
  %v1195 = vsel %vm182, %v1194, %v183
  %v1196 = vrot.slane %v928, 1
  %v1197 = vsel %vm182, %v1196, %v183
  %v1198 = vrot.slane %v929, 1
  %v1199 = vsel %vm182, %v1198, %v183
  %v1200 = vrot.slane %v930, 1
  %v1201 = vsel %vm182, %v1200, %v183
  %v1202 = vrot.slane %v931, 1
  %v1203 = vsel %vm182, %v1202, %v183
  %v1204 = vrot.slane %v932, 1
  %v1205 = vsel %vm182, %v1204, %v183
  %v1206 = vsel %vm757, %v184, 0
  %v1208 = vsel %vm757, %v1179, 0
  %v1210 = vsel %vm757, %v1181, 0
  %v1212 = vsel %vm757, %v1183, 0
  %v1214 = vsel %vm757, %v1185, 0
  %v1216 = vsel %vm757, %v1187, 0
  %v1218 = vsel %vm757, %v1189, 0
  %v1220 = vsel %vm757, %v1191, 0
  %v1222 = vsel %vm757, %v1193, 0
  %v1224 = vsel %vm757, %v1195, 0
  %v1226 = vsel %vm757, %v1197, 0
  %v1228 = vsel %vm757, %v1199, 0
  %v1230 = vsel %vm757, %v1201, 0
  %v1232 = vsel %vm757, %v1203, 0
  %v1234 = vsel %vm757, %v1205, 0
  %1236 = vmatpush.msra.mxu0 0.0
  %1237 = vmatpush.msra.mxu0 0.0
  %1238 = vmatpush.msra.mxu0 0.0
  %1239 = vmatpush.msra.mxu0 0.0
  %1240 = vmatpush.msra.mxu0 0.0
  %1241 = vmatpush.msra.mxu0 0.0
  %1242 = vmatpush.msra.mxu0 0.0
  %1243 = vmatpush.msra.mxu0 0.0
  %1244 = vmatpush.msra.mxu0 0.0
  %1245 = vmatpush.msra.mxu0 0.0
  %1246 = vmatpush.msra.mxu0 0.0
  %1247 = vmatpush.msra.mxu0 0.0
  %1248 = vmatpush.msra.mxu0 0.0
  %1249 = vmatpush.msra.mxu0 0.0
  %1250 = vmatpush.msra.mxu0 0.0
  %1251 = vmatpush.msra.mxu0 %v936
  %1252 = vmatmul.f32.gmra.mxu0 %v1206
  %v1253 = vpop.f32.mrf.mxu0
  %v1254 = vadd.f32 0.0, %v1253
  %1255 = vmatmul.f32.gmra.mxu0 %v1208
  %v1256 = vpop.f32.mrf.mxu0
  %v1257 = vadd.f32 0.0, %v1256
  %1258 = vmatmul.f32.gmra.mxu0 %v1210
  %v1259 = vpop.f32.mrf.mxu0
  %v1260 = vadd.f32 0.0, %v1259
  %1261 = vmatmul.f32.gmra.mxu0 %v1212
  %v1262 = vpop.f32.mrf.mxu0
  %v1263 = vadd.f32 0.0, %v1262
  %1264 = vmatmul.f32.gmra.mxu0 %v1214
  %v1265 = vpop.f32.mrf.mxu0
  %v1266 = vadd.f32 0.0, %v1265
  %1267 = vmatmul.f32.gmra.mxu0 %v1216
  %v1268 = vpop.f32.mrf.mxu0
  %v1269 = vadd.f32 0.0, %v1268
  %1270 = vmatmul.f32.gmra.mxu0 %v1218
  %v1271 = vpop.f32.mrf.mxu0
  %v1272 = vadd.f32 0.0, %v1271
  %1273 = vmatmul.f32.gmra.mxu0 %v1220
  %v1274 = vpop.f32.mrf.mxu0
  %v1275 = vadd.f32 0.0, %v1274
  %1276 = vmatmul.f32.gmra.mxu0 %v1206
  %v1277 = vpop.f32.mrf.mxu0
  %v1278 = vadd.f32 0.0, %v1277
  %1279 = vmatmul.f32.gmra.mxu0 %v1222
  %v1280 = vpop.f32.mrf.mxu0
  %v1281 = vadd.f32 0.0, %v1280
  %1282 = vmatmul.f32.gmra.mxu0 %v1224
  %v1283 = vpop.f32.mrf.mxu0
  %v1284 = vadd.f32 0.0, %v1283
  %1285 = vmatmul.f32.gmra.mxu0 %v1226
  %v1286 = vpop.f32.mrf.mxu0
  %v1287 = vadd.f32 0.0, %v1286
  %1288 = vmatmul.f32.gmra.mxu0 %v1228
  %v1289 = vpop.f32.mrf.mxu0
  %v1290 = vadd.f32 0.0, %v1289
  %1291 = vmatmul.f32.gmra.mxu0 %v1230
  %v1292 = vpop.f32.mrf.mxu0
  %v1293 = vadd.f32 0.0, %v1292
  %1294 = vmatmul.f32.gmra.mxu0 %v1232
  %v1295 = vpop.f32.mrf.mxu0
  %v1296 = vadd.f32 0.0, %v1295
  %1297 = vmatmul.f32.gmra.mxu0 %v1234
  %v1298 = vpop.f32.mrf.mxu0
  %v1299 = vadd.f32 0.0, %v1298
  %1300 = vdwg.mxu0
  %v1301 = vadd.f32 %v1131, %v1254
  %v1302 = vadd.f32 %v1134, %v1257
  %v1303 = vadd.f32 %v1137, %v1260
  %v1304 = vadd.f32 %v1140, %v1263
  %v1305 = vadd.f32 %v1143, %v1266
  %v1306 = vadd.f32 %v1146, %v1269
  %v1307 = vadd.f32 %v1149, %v1272
  %v1308 = vadd.f32 %v1152, %v1275
  %v1309 = vadd.f32 %v1155, %v1278
  %v1310 = vadd.f32 %v1158, %v1281
  %v1311 = vadd.f32 %v1161, %v1284
  %v1312 = vadd.f32 %v1164, %v1287
  %v1313 = vadd.f32 %v1167, %v1290
  %v1314 = vadd.f32 %v1170, %v1293
  %v1315 = vadd.f32 %v1173, %v1296
  %v1316 = vadd.f32 %v1176, %v1299
  %v1319 = vrot.slane %v925, 7
  %v1320 = vsel %vm49, %v50, %v1319
  %v1321 = vrot.slane %v933, 7
  %v1322 = vsel %vm49, %v50, %v1321
  %v1323 = vsel %vm757, %v925, 0
  %v1325 = vsel %vm757, %v933, 0
  %1327 = vmatpush.msra.mxu0 0.0
  %1328 = vmatpush.msra.mxu0 0.0
  %1329 = vmatpush.msra.mxu0 0.0
  %1330 = vmatpush.msra.mxu0 0.0
  %1331 = vmatpush.msra.mxu0 0.0
  %1332 = vmatpush.msra.mxu0 0.0
  %1333 = vmatpush.msra.mxu0 0.0
  %1334 = vmatpush.msra.mxu0 0.0
  %1335 = vmatpush.msra.mxu0 0.0
  %1336 = vmatpush.msra.mxu0 0.0
  %1337 = vmatpush.msra.mxu0 0.0
  %1338 = vmatpush.msra.mxu0 0.0
  %1339 = vmatpush.msra.mxu0 0.0
  %1340 = vmatpush.msra.mxu0 0.0
  %1341 = vmatpush.msra.mxu0 0.0
  %1342 = vmatpush.msra.mxu0 %v941
  %1343 = vmatmul.f32.gmra.mxu0 %v990
  %v1344 = vpop.f32.mrf.mxu0
  %v1345 = vadd.f32 0.0, %v1344
  %1346 = vmatmul.f32.gmra.mxu0 %v992
  %v1347 = vpop.f32.mrf.mxu0
  %v1348 = vadd.f32 0.0, %v1347
  %1349 = vmatmul.f32.gmra.mxu0 %v994
  %v1350 = vpop.f32.mrf.mxu0
  %v1351 = vadd.f32 0.0, %v1350
  %1352 = vmatmul.f32.gmra.mxu0 %v996
  %v1353 = vpop.f32.mrf.mxu0
  %v1354 = vadd.f32 0.0, %v1353
  %1355 = vmatmul.f32.gmra.mxu0 %v998
  %v1356 = vpop.f32.mrf.mxu0
  %v1357 = vadd.f32 0.0, %v1356
  %1358 = vmatmul.f32.gmra.mxu0 %v1000
  %v1359 = vpop.f32.mrf.mxu0
  %v1360 = vadd.f32 0.0, %v1359
  %1361 = vmatmul.f32.gmra.mxu0 %v1002
  %v1362 = vpop.f32.mrf.mxu0
  %v1363 = vadd.f32 0.0, %v1362
  %1364 = vmatmul.f32.gmra.mxu0 %v1323
  %v1365 = vpop.f32.mrf.mxu0
  %v1366 = vadd.f32 0.0, %v1365
  %1367 = vmatmul.f32.gmra.mxu0 %v1004
  %v1368 = vpop.f32.mrf.mxu0
  %v1369 = vadd.f32 0.0, %v1368
  %1370 = vmatmul.f32.gmra.mxu0 %v1006
  %v1371 = vpop.f32.mrf.mxu0
  %v1372 = vadd.f32 0.0, %v1371
  %1373 = vmatmul.f32.gmra.mxu0 %v1008
  %v1374 = vpop.f32.mrf.mxu0
  %v1375 = vadd.f32 0.0, %v1374
  %1376 = vmatmul.f32.gmra.mxu0 %v1010
  %v1377 = vpop.f32.mrf.mxu0
  %v1378 = vadd.f32 0.0, %v1377
  %1379 = vmatmul.f32.gmra.mxu0 %v1012
  %v1380 = vpop.f32.mrf.mxu0
  %v1381 = vadd.f32 0.0, %v1380
  %1382 = vmatmul.f32.gmra.mxu0 %v1014
  %v1383 = vpop.f32.mrf.mxu0
  %v1384 = vadd.f32 0.0, %v1383
  %1385 = vmatmul.f32.gmra.mxu0 %v1016
  %v1386 = vpop.f32.mrf.mxu0
  %v1387 = vadd.f32 0.0, %v1386
  %1388 = vmatmul.f32.gmra.mxu0 %v1325
  %v1389 = vpop.f32.mrf.mxu0
  %v1390 = vadd.f32 0.0, %v1389
  %1391 = vdwg.mxu0
  %v1392 = vsel %vm757, %v1320, 0
  %v1394 = vsel %vm757, %v1322, 0
  %1396 = vmatpush.msra.mxu0 0.0
  %1397 = vmatpush.msra.mxu0 0.0
  %1398 = vmatpush.msra.mxu0 0.0
  %1399 = vmatpush.msra.mxu0 0.0
  %1400 = vmatpush.msra.mxu0 0.0
  %1401 = vmatpush.msra.mxu0 0.0
  %1402 = vmatpush.msra.mxu0 0.0
  %1403 = vmatpush.msra.mxu0 0.0
  %1404 = vmatpush.msra.mxu0 0.0
  %1405 = vmatpush.msra.mxu0 0.0
  %1406 = vmatpush.msra.mxu0 0.0
  %1407 = vmatpush.msra.mxu0 0.0
  %1408 = vmatpush.msra.mxu0 0.0
  %1409 = vmatpush.msra.mxu0 0.0
  %1410 = vmatpush.msra.mxu0 0.0
  %1411 = vmatpush.msra.mxu0 %v940
  %1412 = vmatmul.f32.gmra.mxu0 %v1085
  %v1413 = vpop.f32.mrf.mxu0
  %v1414 = vadd.f32 %v1345, %v1413
  %1415 = vmatmul.f32.gmra.mxu0 %v1087
  %v1416 = vpop.f32.mrf.mxu0
  %v1417 = vadd.f32 %v1348, %v1416
  %1418 = vmatmul.f32.gmra.mxu0 %v1089
  %v1419 = vpop.f32.mrf.mxu0
  %v1420 = vadd.f32 %v1351, %v1419
  %1421 = vmatmul.f32.gmra.mxu0 %v1091
  %v1422 = vpop.f32.mrf.mxu0
  %v1423 = vadd.f32 %v1354, %v1422
  %1424 = vmatmul.f32.gmra.mxu0 %v1093
  %v1425 = vpop.f32.mrf.mxu0
  %v1426 = vadd.f32 %v1357, %v1425
  %1427 = vmatmul.f32.gmra.mxu0 %v1095
  %v1428 = vpop.f32.mrf.mxu0
  %v1429 = vadd.f32 %v1360, %v1428
  %1430 = vmatmul.f32.gmra.mxu0 %v1097
  %v1431 = vpop.f32.mrf.mxu0
  %v1432 = vadd.f32 %v1363, %v1431
  %1433 = vmatmul.f32.gmra.mxu0 %v1392
  %v1434 = vpop.f32.mrf.mxu0
  %v1435 = vadd.f32 %v1366, %v1434
  %1436 = vmatmul.f32.gmra.mxu0 %v1099
  %v1437 = vpop.f32.mrf.mxu0
  %v1438 = vadd.f32 %v1369, %v1437
  %1439 = vmatmul.f32.gmra.mxu0 %v1101
  %v1440 = vpop.f32.mrf.mxu0
  %v1441 = vadd.f32 %v1372, %v1440
  %1442 = vmatmul.f32.gmra.mxu0 %v1103
  %v1443 = vpop.f32.mrf.mxu0
  %v1444 = vadd.f32 %v1375, %v1443
  %1445 = vmatmul.f32.gmra.mxu0 %v1105
  %v1446 = vpop.f32.mrf.mxu0
  %v1447 = vadd.f32 %v1378, %v1446
  %1448 = vmatmul.f32.gmra.mxu0 %v1107
  %v1449 = vpop.f32.mrf.mxu0
  %v1450 = vadd.f32 %v1381, %v1449
  %1451 = vmatmul.f32.gmra.mxu0 %v1109
  %v1452 = vpop.f32.mrf.mxu0
  %v1453 = vadd.f32 %v1384, %v1452
  %1454 = vmatmul.f32.gmra.mxu0 %v1111
  %v1455 = vpop.f32.mrf.mxu0
  %v1456 = vadd.f32 %v1387, %v1455
  %1457 = vmatmul.f32.gmra.mxu0 %v1394
  %v1458 = vpop.f32.mrf.mxu0
  %v1459 = vadd.f32 %v1390, %v1458
  %1460 = vdwg.mxu0
  %v1461 = vrot.slane %v925, 1
  %v1462 = vsel %vm182, %v1461, %v183
  %v1463 = vrot.slane %v933, 1
  %v1464 = vsel %vm182, %v1463, %v183
  %v1465 = vsel %vm757, %v1462, 0
  %v1467 = vsel %vm757, %v1464, 0
  %1469 = vmatpush.msra.mxu0 0.0
  %1470 = vmatpush.msra.mxu0 0.0
  %1471 = vmatpush.msra.mxu0 0.0
  %1472 = vmatpush.msra.mxu0 0.0
  %1473 = vmatpush.msra.mxu0 0.0
  %1474 = vmatpush.msra.mxu0 0.0
  %1475 = vmatpush.msra.mxu0 0.0
  %1476 = vmatpush.msra.mxu0 0.0
  %1477 = vmatpush.msra.mxu0 0.0
  %1478 = vmatpush.msra.mxu0 0.0
  %1479 = vmatpush.msra.mxu0 0.0
  %1480 = vmatpush.msra.mxu0 0.0
  %1481 = vmatpush.msra.mxu0 0.0
  %1482 = vmatpush.msra.mxu0 0.0
  %1483 = vmatpush.msra.mxu0 0.0
  %1484 = vmatpush.msra.mxu0 %v942
  %1485 = vmatmul.f32.gmra.mxu0 %v1208
  %v1486 = vpop.f32.mrf.mxu0
  %v1487 = vadd.f32 0.0, %v1486
  %1488 = vmatmul.f32.gmra.mxu0 %v1210
  %v1489 = vpop.f32.mrf.mxu0
  %v1490 = vadd.f32 0.0, %v1489
  %1491 = vmatmul.f32.gmra.mxu0 %v1212
  %v1492 = vpop.f32.mrf.mxu0
  %v1493 = vadd.f32 0.0, %v1492
  %1494 = vmatmul.f32.gmra.mxu0 %v1214
  %v1495 = vpop.f32.mrf.mxu0
  %v1496 = vadd.f32 0.0, %v1495
  %1497 = vmatmul.f32.gmra.mxu0 %v1216
  %v1498 = vpop.f32.mrf.mxu0
  %v1499 = vadd.f32 0.0, %v1498
  %1500 = vmatmul.f32.gmra.mxu0 %v1218
  %v1501 = vpop.f32.mrf.mxu0
  %v1502 = vadd.f32 0.0, %v1501
  %1503 = vmatmul.f32.gmra.mxu0 %v1220
  %v1504 = vpop.f32.mrf.mxu0
  %v1505 = vadd.f32 0.0, %v1504
  %1506 = vmatmul.f32.gmra.mxu0 %v1465
  %v1507 = vpop.f32.mrf.mxu0
  %v1508 = vadd.f32 0.0, %v1507
  %1509 = vmatmul.f32.gmra.mxu0 %v1222
  %v1510 = vpop.f32.mrf.mxu0
  %v1511 = vadd.f32 0.0, %v1510
  %1512 = vmatmul.f32.gmra.mxu0 %v1224
  %v1513 = vpop.f32.mrf.mxu0
  %v1514 = vadd.f32 0.0, %v1513
  %1515 = vmatmul.f32.gmra.mxu0 %v1226
  %v1516 = vpop.f32.mrf.mxu0
  %v1517 = vadd.f32 0.0, %v1516
  %1518 = vmatmul.f32.gmra.mxu0 %v1228
  %v1519 = vpop.f32.mrf.mxu0
  %v1520 = vadd.f32 0.0, %v1519
  %1521 = vmatmul.f32.gmra.mxu0 %v1230
  %v1522 = vpop.f32.mrf.mxu0
  %v1523 = vadd.f32 0.0, %v1522
  %1524 = vmatmul.f32.gmra.mxu0 %v1232
  %v1525 = vpop.f32.mrf.mxu0
  %v1526 = vadd.f32 0.0, %v1525
  %1527 = vmatmul.f32.gmra.mxu0 %v1234
  %v1528 = vpop.f32.mrf.mxu0
  %v1529 = vadd.f32 0.0, %v1528
  %1530 = vmatmul.f32.gmra.mxu0 %v1467
  %v1531 = vpop.f32.mrf.mxu0
  %v1532 = vadd.f32 0.0, %v1531
  %1533 = vdwg.mxu0
  %v1534 = vadd.f32 %v1414, %v1487
  %v1535 = vadd.f32 %v1417, %v1490
  %v1536 = vadd.f32 %v1420, %v1493
  %v1537 = vadd.f32 %v1423, %v1496
  %v1538 = vadd.f32 %v1426, %v1499
  %v1539 = vadd.f32 %v1429, %v1502
  %v1540 = vadd.f32 %v1432, %v1505
  %v1541 = vadd.f32 %v1435, %v1508
  %v1542 = vadd.f32 %v1438, %v1511
  %v1543 = vadd.f32 %v1441, %v1514
  %v1544 = vadd.f32 %v1444, %v1517
  %v1545 = vadd.f32 %v1447, %v1520
  %v1546 = vadd.f32 %v1450, %v1523
  %v1547 = vadd.f32 %v1453, %v1526
  %v1548 = vadd.f32 %v1456, %v1529
  %v1549 = vadd.f32 %v1459, %v1532
  %v1550 = vadd.f32 %v1301, %v1534
  %v1551 = vadd.f32 %v1302, %v1535
  %v1552 = vadd.f32 %v1303, %v1536
  %v1553 = vadd.f32 %v1304, %v1537
  %v1554 = vadd.f32 %v1305, %v1538
  %v1555 = vadd.f32 %v1306, %v1539
  %v1556 = vadd.f32 %v1307, %v1540
  %v1557 = vadd.f32 %v1308, %v1541
  %v1558 = vadd.f32 %v1309, %v1542
  %v1559 = vadd.f32 %v1310, %v1543
  %v1560 = vadd.f32 %v1311, %v1544
  %v1561 = vadd.f32 %v1312, %v1545
  %v1562 = vadd.f32 %v1313, %v1546
  %v1563 = vadd.f32 %v1314, %v1547
  %v1564 = vadd.f32 %v1315, %v1548
  %v1565 = vadd.f32 %v1316, %v1549
  %1566 = vmatpush.msra.mxu0 0.0
  %1567 = vmatpush.msra.mxu0 0.0
  %1568 = vmatpush.msra.mxu0 0.0
  %1569 = vmatpush.msra.mxu0 0.0
  %1570 = vmatpush.msra.mxu0 0.0
  %1571 = vmatpush.msra.mxu0 0.0
  %1572 = vmatpush.msra.mxu0 0.0
  %1573 = vmatpush.msra.mxu0 0.0
  %1574 = vmatpush.msra.mxu0 0.0
  %1575 = vmatpush.msra.mxu0 0.0
  %1576 = vmatpush.msra.mxu0 0.0
  %1577 = vmatpush.msra.mxu0 0.0
  %1578 = vmatpush.msra.mxu0 0.0
  %1579 = vmatpush.msra.mxu0 0.0
  %1580 = vmatpush.msra.mxu0 0.0
  %1581 = vmatpush.msra.mxu0 %v938
  %1582 = vmatmul.f32.gmra.mxu0 %v990
  %v1583 = vpop.f32.mrf.mxu0
  %v1584 = vadd.f32 0.0, %v1583
  %1585 = vmatmul.f32.gmra.mxu0 %v992
  %v1586 = vpop.f32.mrf.mxu0
  %v1587 = vadd.f32 0.0, %v1586
  %1588 = vmatmul.f32.gmra.mxu0 %v994
  %v1589 = vpop.f32.mrf.mxu0
  %v1590 = vadd.f32 0.0, %v1589
  %1591 = vmatmul.f32.gmra.mxu0 %v996
  %v1592 = vpop.f32.mrf.mxu0
  %v1593 = vadd.f32 0.0, %v1592
  %1594 = vmatmul.f32.gmra.mxu0 %v998
  %v1595 = vpop.f32.mrf.mxu0
  %v1596 = vadd.f32 0.0, %v1595
  %1597 = vmatmul.f32.gmra.mxu0 %v1000
  %v1598 = vpop.f32.mrf.mxu0
  %v1599 = vadd.f32 0.0, %v1598
  %1600 = vmatmul.f32.gmra.mxu0 %v1002
  %v1601 = vpop.f32.mrf.mxu0
  %v1602 = vadd.f32 0.0, %v1601
  %1603 = vmatmul.f32.gmra.mxu0 %v1323
  %v1604 = vpop.f32.mrf.mxu0
  %v1605 = vadd.f32 0.0, %v1604
  %1606 = vmatmul.f32.gmra.mxu0 %v1004
  %v1607 = vpop.f32.mrf.mxu0
  %v1608 = vadd.f32 0.0, %v1607
  %1609 = vmatmul.f32.gmra.mxu0 %v1006
  %v1610 = vpop.f32.mrf.mxu0
  %v1611 = vadd.f32 0.0, %v1610
  %1612 = vmatmul.f32.gmra.mxu0 %v1008
  %v1613 = vpop.f32.mrf.mxu0
  %v1614 = vadd.f32 0.0, %v1613
  %1615 = vmatmul.f32.gmra.mxu0 %v1010
  %v1616 = vpop.f32.mrf.mxu0
  %v1617 = vadd.f32 0.0, %v1616
  %1618 = vmatmul.f32.gmra.mxu0 %v1012
  %v1619 = vpop.f32.mrf.mxu0
  %v1620 = vadd.f32 0.0, %v1619
  %1621 = vmatmul.f32.gmra.mxu0 %v1014
  %v1622 = vpop.f32.mrf.mxu0
  %v1623 = vadd.f32 0.0, %v1622
  %1624 = vmatmul.f32.gmra.mxu0 %v1016
  %v1625 = vpop.f32.mrf.mxu0
  %v1626 = vadd.f32 0.0, %v1625
  %1627 = vmatmul.f32.gmra.mxu0 %v1325
  %v1628 = vpop.f32.mrf.mxu0
  %v1629 = vadd.f32 0.0, %v1628
  %1630 = vdwg.mxu0
  %1631 = vmatpush.msra.mxu0 0.0
  %1632 = vmatpush.msra.mxu0 0.0
  %1633 = vmatpush.msra.mxu0 0.0
  %1634 = vmatpush.msra.mxu0 0.0
  %1635 = vmatpush.msra.mxu0 0.0
  %1636 = vmatpush.msra.mxu0 0.0
  %1637 = vmatpush.msra.mxu0 0.0
  %1638 = vmatpush.msra.mxu0 0.0
  %1639 = vmatpush.msra.mxu0 0.0
  %1640 = vmatpush.msra.mxu0 0.0
  %1641 = vmatpush.msra.mxu0 0.0
  %1642 = vmatpush.msra.mxu0 0.0
  %1643 = vmatpush.msra.mxu0 0.0
  %1644 = vmatpush.msra.mxu0 0.0
  %1645 = vmatpush.msra.mxu0 0.0
  %1646 = vmatpush.msra.mxu0 %v937
  %1647 = vmatmul.f32.gmra.mxu0 %v1085
  %v1648 = vpop.f32.mrf.mxu0
  %v1649 = vadd.f32 %v1584, %v1648
  %1650 = vmatmul.f32.gmra.mxu0 %v1087
  %v1651 = vpop.f32.mrf.mxu0
  %v1652 = vadd.f32 %v1587, %v1651
  %1653 = vmatmul.f32.gmra.mxu0 %v1089
  %v1654 = vpop.f32.mrf.mxu0
  %v1655 = vadd.f32 %v1590, %v1654
  %1656 = vmatmul.f32.gmra.mxu0 %v1091
  %v1657 = vpop.f32.mrf.mxu0
  %v1658 = vadd.f32 %v1593, %v1657
  %1659 = vmatmul.f32.gmra.mxu0 %v1093
  %v1660 = vpop.f32.mrf.mxu0
  %v1661 = vadd.f32 %v1596, %v1660
  %1662 = vmatmul.f32.gmra.mxu0 %v1095
  %v1663 = vpop.f32.mrf.mxu0
  %v1664 = vadd.f32 %v1599, %v1663
  %1665 = vmatmul.f32.gmra.mxu0 %v1097
  %v1666 = vpop.f32.mrf.mxu0
  %v1667 = vadd.f32 %v1602, %v1666
  %1668 = vmatmul.f32.gmra.mxu0 %v1392
  %v1669 = vpop.f32.mrf.mxu0
  %v1670 = vadd.f32 %v1605, %v1669
  %1671 = vmatmul.f32.gmra.mxu0 %v1099
  %v1672 = vpop.f32.mrf.mxu0
  %v1673 = vadd.f32 %v1608, %v1672
  %1674 = vmatmul.f32.gmra.mxu0 %v1101
  %v1675 = vpop.f32.mrf.mxu0
  %v1676 = vadd.f32 %v1611, %v1675
  %1677 = vmatmul.f32.gmra.mxu0 %v1103
  %v1678 = vpop.f32.mrf.mxu0
  %v1679 = vadd.f32 %v1614, %v1678
  %1680 = vmatmul.f32.gmra.mxu0 %v1105
  %v1681 = vpop.f32.mrf.mxu0
  %v1682 = vadd.f32 %v1617, %v1681
  %1683 = vmatmul.f32.gmra.mxu0 %v1107
  %v1684 = vpop.f32.mrf.mxu0
  %v1685 = vadd.f32 %v1620, %v1684
  %1686 = vmatmul.f32.gmra.mxu0 %v1109
  %v1687 = vpop.f32.mrf.mxu0
  %v1688 = vadd.f32 %v1623, %v1687
  %1689 = vmatmul.f32.gmra.mxu0 %v1111
  %v1690 = vpop.f32.mrf.mxu0
  %v1691 = vadd.f32 %v1626, %v1690
  %1692 = vmatmul.f32.gmra.mxu0 %v1394
  %v1693 = vpop.f32.mrf.mxu0
  %v1694 = vadd.f32 %v1629, %v1693
  %1695 = vdwg.mxu0
  %1696 = vmatpush.msra.mxu0 0.0
  %1697 = vmatpush.msra.mxu0 0.0
  %1698 = vmatpush.msra.mxu0 0.0
  %1699 = vmatpush.msra.mxu0 0.0
  %1700 = vmatpush.msra.mxu0 0.0
  %1701 = vmatpush.msra.mxu0 0.0
  %1702 = vmatpush.msra.mxu0 0.0
  %1703 = vmatpush.msra.mxu0 0.0
  %1704 = vmatpush.msra.mxu0 0.0
  %1705 = vmatpush.msra.mxu0 0.0
  %1706 = vmatpush.msra.mxu0 0.0
  %1707 = vmatpush.msra.mxu0 0.0
  %1708 = vmatpush.msra.mxu0 0.0
  %1709 = vmatpush.msra.mxu0 0.0
  %1710 = vmatpush.msra.mxu0 0.0
  %1711 = vmatpush.msra.mxu0 %v939
  %1712 = vmatmul.f32.gmra.mxu0 %v1208
  %v1713 = vpop.f32.mrf.mxu0
  %v1714 = vadd.f32 0.0, %v1713
  %1715 = vmatmul.f32.gmra.mxu0 %v1210
  %v1716 = vpop.f32.mrf.mxu0
  %v1717 = vadd.f32 0.0, %v1716
  %1718 = vmatmul.f32.gmra.mxu0 %v1212
  %v1719 = vpop.f32.mrf.mxu0
  %v1720 = vadd.f32 0.0, %v1719
  %1721 = vmatmul.f32.gmra.mxu0 %v1214
  %v1722 = vpop.f32.mrf.mxu0
  %v1723 = vadd.f32 0.0, %v1722
  %1724 = vmatmul.f32.gmra.mxu0 %v1216
  %v1725 = vpop.f32.mrf.mxu0
  %v1726 = vadd.f32 0.0, %v1725
  %1727 = vmatmul.f32.gmra.mxu0 %v1218
  %v1728 = vpop.f32.mrf.mxu0
  %v1729 = vadd.f32 0.0, %v1728
  %1730 = vmatmul.f32.gmra.mxu0 %v1220
  %v1731 = vpop.f32.mrf.mxu0
  %v1732 = vadd.f32 0.0, %v1731
  %1733 = vmatmul.f32.gmra.mxu0 %v1465
  %v1734 = vpop.f32.mrf.mxu0
  %v1735 = vadd.f32 0.0, %v1734
  %1736 = vmatmul.f32.gmra.mxu0 %v1222
  %v1737 = vpop.f32.mrf.mxu0
  %v1738 = vadd.f32 0.0, %v1737
  %1739 = vmatmul.f32.gmra.mxu0 %v1224
  %v1740 = vpop.f32.mrf.mxu0
  %v1741 = vadd.f32 0.0, %v1740
  %1742 = vmatmul.f32.gmra.mxu0 %v1226
  %v1743 = vpop.f32.mrf.mxu0
  %v1744 = vadd.f32 0.0, %v1743
  %1745 = vmatmul.f32.gmra.mxu0 %v1228
  %v1746 = vpop.f32.mrf.mxu0
  %v1747 = vadd.f32 0.0, %v1746
  %1748 = vmatmul.f32.gmra.mxu0 %v1230
  %v1749 = vpop.f32.mrf.mxu0
  %v1750 = vadd.f32 0.0, %v1749
  %1751 = vmatmul.f32.gmra.mxu0 %v1232
  %v1752 = vpop.f32.mrf.mxu0
  %v1753 = vadd.f32 0.0, %v1752
  %1754 = vmatmul.f32.gmra.mxu0 %v1234
  %v1755 = vpop.f32.mrf.mxu0
  %v1756 = vadd.f32 0.0, %v1755
  %1757 = vmatmul.f32.gmra.mxu0 %v1467
  %v1758 = vpop.f32.mrf.mxu0
  %v1759 = vadd.f32 0.0, %v1758
  %1760 = vdwg.mxu0
  %v1761 = vadd.f32 %v1649, %v1714
  %v1762 = vadd.f32 %v1652, %v1717
  %v1763 = vadd.f32 %v1655, %v1720
  %v1764 = vadd.f32 %v1658, %v1723
  %v1765 = vadd.f32 %v1661, %v1726
  %v1766 = vadd.f32 %v1664, %v1729
  %v1767 = vadd.f32 %v1667, %v1732
  %v1768 = vadd.f32 %v1670, %v1735
  %v1769 = vadd.f32 %v1673, %v1738
  %v1770 = vadd.f32 %v1676, %v1741
  %v1771 = vadd.f32 %v1679, %v1744
  %v1772 = vadd.f32 %v1682, %v1747
  %v1773 = vadd.f32 %v1685, %v1750
  %v1774 = vadd.f32 %v1688, %v1753
  %v1775 = vadd.f32 %v1691, %v1756
  %v1776 = vadd.f32 %v1694, %v1759
  %1777 = vmatpush.msra.mxu0 0.0
  %1778 = vmatpush.msra.mxu0 0.0
  %1779 = vmatpush.msra.mxu0 0.0
  %1780 = vmatpush.msra.mxu0 0.0
  %1781 = vmatpush.msra.mxu0 0.0
  %1782 = vmatpush.msra.mxu0 0.0
  %1783 = vmatpush.msra.mxu0 0.0
  %1784 = vmatpush.msra.mxu0 0.0
  %1785 = vmatpush.msra.mxu0 0.0
  %1786 = vmatpush.msra.mxu0 0.0
  %1787 = vmatpush.msra.mxu0 0.0
  %1788 = vmatpush.msra.mxu0 0.0
  %1789 = vmatpush.msra.mxu0 0.0
  %1790 = vmatpush.msra.mxu0 0.0
  %1791 = vmatpush.msra.mxu0 0.0
  %1792 = vmatpush.msra.mxu0 %v944
  %1793 = vmatmul.f32.gmra.mxu0 %v992
  %v1794 = vpop.f32.mrf.mxu0
  %v1795 = vadd.f32 0.0, %v1794
  %1796 = vmatmul.f32.gmra.mxu0 %v994
  %v1797 = vpop.f32.mrf.mxu0
  %v1798 = vadd.f32 0.0, %v1797
  %1799 = vmatmul.f32.gmra.mxu0 %v996
  %v1800 = vpop.f32.mrf.mxu0
  %v1801 = vadd.f32 0.0, %v1800
  %1802 = vmatmul.f32.gmra.mxu0 %v998
  %v1803 = vpop.f32.mrf.mxu0
  %v1804 = vadd.f32 0.0, %v1803
  %1805 = vmatmul.f32.gmra.mxu0 %v1000
  %v1806 = vpop.f32.mrf.mxu0
  %v1807 = vadd.f32 0.0, %v1806
  %1808 = vmatmul.f32.gmra.mxu0 %v1002
  %v1809 = vpop.f32.mrf.mxu0
  %v1810 = vadd.f32 0.0, %v1809
  %1811 = vmatmul.f32.gmra.mxu0 %v1323
  %v1812 = vpop.f32.mrf.mxu0
  %v1813 = vadd.f32 0.0, %v1812
  %1814 = vmatmul.f32.gmra.mxu0 %v988
  %v1815 = vpop.f32.mrf.mxu0
  %v1816 = vadd.f32 0.0, %v1815
  %1817 = vmatmul.f32.gmra.mxu0 %v1006
  %v1818 = vpop.f32.mrf.mxu0
  %v1819 = vadd.f32 0.0, %v1818
  %1820 = vmatmul.f32.gmra.mxu0 %v1008
  %v1821 = vpop.f32.mrf.mxu0
  %v1822 = vadd.f32 0.0, %v1821
  %1823 = vmatmul.f32.gmra.mxu0 %v1010
  %v1824 = vpop.f32.mrf.mxu0
  %v1825 = vadd.f32 0.0, %v1824
  %1826 = vmatmul.f32.gmra.mxu0 %v1012
  %v1827 = vpop.f32.mrf.mxu0
  %v1828 = vadd.f32 0.0, %v1827
  %1829 = vmatmul.f32.gmra.mxu0 %v1014
  %v1830 = vpop.f32.mrf.mxu0
  %v1831 = vadd.f32 0.0, %v1830
  %1832 = vmatmul.f32.gmra.mxu0 %v1016
  %v1833 = vpop.f32.mrf.mxu0
  %v1834 = vadd.f32 0.0, %v1833
  %1835 = vmatmul.f32.gmra.mxu0 %v1325
  %v1836 = vpop.f32.mrf.mxu0
  %v1837 = vadd.f32 0.0, %v1836
  %1838 = vmatmul.f32.gmra.mxu0 %v988
  %v1839 = vpop.f32.mrf.mxu0
  %v1840 = vadd.f32 0.0, %v1839
  %1841 = vdwg.mxu0
  %1842 = vmatpush.msra.mxu0 0.0
  %1843 = vmatpush.msra.mxu0 0.0
  %1844 = vmatpush.msra.mxu0 0.0
  %1845 = vmatpush.msra.mxu0 0.0
  %1846 = vmatpush.msra.mxu0 0.0
  %1847 = vmatpush.msra.mxu0 0.0
  %1848 = vmatpush.msra.mxu0 0.0
  %1849 = vmatpush.msra.mxu0 0.0
  %1850 = vmatpush.msra.mxu0 0.0
  %1851 = vmatpush.msra.mxu0 0.0
  %1852 = vmatpush.msra.mxu0 0.0
  %1853 = vmatpush.msra.mxu0 0.0
  %1854 = vmatpush.msra.mxu0 0.0
  %1855 = vmatpush.msra.mxu0 0.0
  %1856 = vmatpush.msra.mxu0 0.0
  %1857 = vmatpush.msra.mxu0 %v943
  %1858 = vmatmul.f32.gmra.mxu0 %v1087
  %v1859 = vpop.f32.mrf.mxu0
  %v1860 = vadd.f32 %v1795, %v1859
  %1861 = vmatmul.f32.gmra.mxu0 %v1089
  %v1862 = vpop.f32.mrf.mxu0
  %v1863 = vadd.f32 %v1798, %v1862
  %1864 = vmatmul.f32.gmra.mxu0 %v1091
  %v1865 = vpop.f32.mrf.mxu0
  %v1866 = vadd.f32 %v1801, %v1865
  %1867 = vmatmul.f32.gmra.mxu0 %v1093
  %v1868 = vpop.f32.mrf.mxu0
  %v1869 = vadd.f32 %v1804, %v1868
  %1870 = vmatmul.f32.gmra.mxu0 %v1095
  %v1871 = vpop.f32.mrf.mxu0
  %v1872 = vadd.f32 %v1807, %v1871
  %1873 = vmatmul.f32.gmra.mxu0 %v1097
  %v1874 = vpop.f32.mrf.mxu0
  %v1875 = vadd.f32 %v1810, %v1874
  %1876 = vmatmul.f32.gmra.mxu0 %v1392
  %v1877 = vpop.f32.mrf.mxu0
  %v1878 = vadd.f32 %v1813, %v1877
  %1879 = vmatmul.f32.gmra.mxu0 %v1083
  %v1880 = vpop.f32.mrf.mxu0
  %v1881 = vadd.f32 %v1816, %v1880
  %1882 = vmatmul.f32.gmra.mxu0 %v1101
  %v1883 = vpop.f32.mrf.mxu0
  %v1884 = vadd.f32 %v1819, %v1883
  %1885 = vmatmul.f32.gmra.mxu0 %v1103
  %v1886 = vpop.f32.mrf.mxu0
  %v1887 = vadd.f32 %v1822, %v1886
  %1888 = vmatmul.f32.gmra.mxu0 %v1105
  %v1889 = vpop.f32.mrf.mxu0
  %v1890 = vadd.f32 %v1825, %v1889
  %1891 = vmatmul.f32.gmra.mxu0 %v1107
  %v1892 = vpop.f32.mrf.mxu0
  %v1893 = vadd.f32 %v1828, %v1892
  %1894 = vmatmul.f32.gmra.mxu0 %v1109
  %v1895 = vpop.f32.mrf.mxu0
  %v1896 = vadd.f32 %v1831, %v1895
  %1897 = vmatmul.f32.gmra.mxu0 %v1111
  %v1898 = vpop.f32.mrf.mxu0
  %v1899 = vadd.f32 %v1834, %v1898
  %1900 = vmatmul.f32.gmra.mxu0 %v1394
  %v1901 = vpop.f32.mrf.mxu0
  %v1902 = vadd.f32 %v1837, %v1901
  %1903 = vmatmul.f32.gmra.mxu0 %v1083
  %v1904 = vpop.f32.mrf.mxu0
  %v1905 = vadd.f32 %v1840, %v1904
  %1906 = vdwg.mxu0
  %1907 = vmatpush.msra.mxu0 0.0
  %1908 = vmatpush.msra.mxu0 0.0
  %1909 = vmatpush.msra.mxu0 0.0
  %1910 = vmatpush.msra.mxu0 0.0
  %1911 = vmatpush.msra.mxu0 0.0
  %1912 = vmatpush.msra.mxu0 0.0
  %1913 = vmatpush.msra.mxu0 0.0
  %1914 = vmatpush.msra.mxu0 0.0
  %1915 = vmatpush.msra.mxu0 0.0
  %1916 = vmatpush.msra.mxu0 0.0
  %1917 = vmatpush.msra.mxu0 0.0
  %1918 = vmatpush.msra.mxu0 0.0
  %1919 = vmatpush.msra.mxu0 0.0
  %1920 = vmatpush.msra.mxu0 0.0
  %1921 = vmatpush.msra.mxu0 0.0
  %1922 = vmatpush.msra.mxu0 %v945
  %1923 = vmatmul.f32.gmra.mxu0 %v1210
  %v1924 = vpop.f32.mrf.mxu0
  %v1925 = vadd.f32 0.0, %v1924
  %1926 = vmatmul.f32.gmra.mxu0 %v1212
  %v1927 = vpop.f32.mrf.mxu0
  %v1928 = vadd.f32 0.0, %v1927
  %1929 = vmatmul.f32.gmra.mxu0 %v1214
  %v1930 = vpop.f32.mrf.mxu0
  %v1931 = vadd.f32 0.0, %v1930
  %1932 = vmatmul.f32.gmra.mxu0 %v1216
  %v1933 = vpop.f32.mrf.mxu0
  %v1934 = vadd.f32 0.0, %v1933
  %1935 = vmatmul.f32.gmra.mxu0 %v1218
  %v1936 = vpop.f32.mrf.mxu0
  %v1937 = vadd.f32 0.0, %v1936
  %1938 = vmatmul.f32.gmra.mxu0 %v1220
  %v1939 = vpop.f32.mrf.mxu0
  %v1940 = vadd.f32 0.0, %v1939
  %1941 = vmatmul.f32.gmra.mxu0 %v1465
  %v1942 = vpop.f32.mrf.mxu0
  %v1943 = vadd.f32 0.0, %v1942
  %1944 = vmatmul.f32.gmra.mxu0 %v1206
  %v1945 = vpop.f32.mrf.mxu0
  %v1946 = vadd.f32 0.0, %v1945
  %1947 = vmatmul.f32.gmra.mxu0 %v1224
  %v1948 = vpop.f32.mrf.mxu0
  %v1949 = vadd.f32 0.0, %v1948
  %1950 = vmatmul.f32.gmra.mxu0 %v1226
  %v1951 = vpop.f32.mrf.mxu0
  %v1952 = vadd.f32 0.0, %v1951
  %1953 = vmatmul.f32.gmra.mxu0 %v1228
  %v1954 = vpop.f32.mrf.mxu0
  %v1955 = vadd.f32 0.0, %v1954
  %1956 = vmatmul.f32.gmra.mxu0 %v1230
  %v1957 = vpop.f32.mrf.mxu0
  %v1958 = vadd.f32 0.0, %v1957
  %1959 = vmatmul.f32.gmra.mxu0 %v1232
  %v1960 = vpop.f32.mrf.mxu0
  %v1961 = vadd.f32 0.0, %v1960
  %1962 = vmatmul.f32.gmra.mxu0 %v1234
  %v1963 = vpop.f32.mrf.mxu0
  %v1964 = vadd.f32 0.0, %v1963
  %1965 = vmatmul.f32.gmra.mxu0 %v1467
  %v1966 = vpop.f32.mrf.mxu0
  %v1967 = vadd.f32 0.0, %v1966
  %1968 = vmatmul.f32.gmra.mxu0 %v1206
  %v1969 = vpop.f32.mrf.mxu0
  %v1970 = vadd.f32 0.0, %v1969
  %1971 = vdwg.mxu0
  %v1972 = vadd.f32 %v1860, %v1925
  %v1973 = vadd.f32 %v1863, %v1928
  %v1974 = vadd.f32 %v1866, %v1931
  %v1975 = vadd.f32 %v1869, %v1934
  %v1976 = vadd.f32 %v1872, %v1937
  %v1977 = vadd.f32 %v1875, %v1940
  %v1978 = vadd.f32 %v1878, %v1943
  %v1979 = vadd.f32 %v1881, %v1946
  %v1980 = vadd.f32 %v1884, %v1949
  %v1981 = vadd.f32 %v1887, %v1952
  %v1982 = vadd.f32 %v1890, %v1955
  %v1983 = vadd.f32 %v1893, %v1958
  %v1984 = vadd.f32 %v1896, %v1961
  %v1985 = vadd.f32 %v1899, %v1964
  %v1986 = vadd.f32 %v1902, %v1967
  %v1987 = vadd.f32 %v1905, %v1970
  %v1988 = vadd.f32 %v1761, %v1972
  %v1989 = vadd.f32 %v1762, %v1973
  %v1990 = vadd.f32 %v1763, %v1974
  %v1991 = vadd.f32 %v1764, %v1975
  %v1992 = vadd.f32 %v1765, %v1976
  %v1993 = vadd.f32 %v1766, %v1977
  %v1994 = vadd.f32 %v1767, %v1978
  %v1995 = vadd.f32 %v1768, %v1979
  %v1996 = vadd.f32 %v1769, %v1980
  %v1997 = vadd.f32 %v1770, %v1981
  %v1998 = vadd.f32 %v1771, %v1982
  %v1999 = vadd.f32 %v1772, %v1983
  %v2000 = vadd.f32 %v1773, %v1984
  %v2001 = vadd.f32 %v1774, %v1985
  %v2002 = vadd.f32 %v1775, %v1986
  %v2003 = vadd.f32 %v1776, %v1987
  %v2004 = vld [vmem:[#allocation2] sm:$0x1]
  %v2006 = vperm.slane %v2004, 0
  %v2008 = vadd.f32 %v1550, %v2006
  %v2009 = vadd.f32 %v1988, %v2006
  %v2010 = vadd.f32 %v1551, %v2006
  %v2011 = vadd.f32 %v1989, %v2006
  %v2012 = vadd.f32 %v1552, %v2006
  %v2013 = vadd.f32 %v1990, %v2006
  %v2014 = vadd.f32 %v1553, %v2006
  %v2015 = vadd.f32 %v1991, %v2006
  %v2016 = vadd.f32 %v1554, %v2006
  %v2017 = vadd.f32 %v1992, %v2006
  %v2018 = vadd.f32 %v1555, %v2006
  %v2019 = vadd.f32 %v1993, %v2006
  %v2020 = vadd.f32 %v1556, %v2006
  %v2021 = vadd.f32 %v1994, %v2006
  %v2022 = vadd.f32 %v1557, %v2006
  %v2023 = vadd.f32 %v1995, %v2006
  %v2024 = vadd.f32 %v1558, %v2006
  %v2025 = vadd.f32 %v1996, %v2006
  %v2026 = vadd.f32 %v1559, %v2006
  %v2027 = vadd.f32 %v1997, %v2006
  %v2028 = vadd.f32 %v1560, %v2006
  %v2029 = vadd.f32 %v1998, %v2006
  %v2030 = vadd.f32 %v1561, %v2006
  %v2031 = vadd.f32 %v1999, %v2006
  %v2032 = vadd.f32 %v1562, %v2006
  %v2033 = vadd.f32 %v2000, %v2006
  %v2034 = vadd.f32 %v1563, %v2006
  %v2035 = vadd.f32 %v2001, %v2006
  %v2036 = vadd.f32 %v1564, %v2006
  %v2037 = vadd.f32 %v2002, %v2006
  %v2038 = vadd.f32 %v1565, %v2006
  %v2039 = vadd.f32 %v2003, %v2006
  %vm2040 = vcmask 7168
  %2041 = vst.msk [vmem:[%s5] sm:$0xff] %vm2040, %v2008
  %2042 = vst.msk [vmem:[%s5 + $0x8] sm:$0xff] %vm2040, %v2009
  %2043 = vst.msk [vmem:[%s5 + $0x10] sm:$0xff] %vm2040, %v2010
  %2044 = vst.msk [vmem:[%s5 + $0x18] sm:$0xff] %vm2040, %v2011
  %2045 = vst.msk [vmem:[%s5 + $0x20] sm:$0xff] %vm2040, %v2012
  %2046 = vst.msk [vmem:[%s5 + $0x28] sm:$0xff] %vm2040, %v2013
  %2047 = vst.msk [vmem:[%s5 + $0x30] sm:$0xff] %vm2040, %v2014
  %2048 = vst.msk [vmem:[%s5 + $0x38] sm:$0xff] %vm2040, %v2015
  %2049 = vst.msk [vmem:[%s5 + $0x40] sm:$0xff] %vm2040, %v2016
  %2050 = vst.msk [vmem:[%s5 + $0x48] sm:$0xff] %vm2040, %v2017
  %2051 = vst.msk [vmem:[%s5 + $0x50] sm:$0xff] %vm2040, %v2018
  %2052 = vst.msk [vmem:[%s5 + $0x58] sm:$0xff] %vm2040, %v2019
  %2053 = vst.msk [vmem:[%s5 + $0x60] sm:$0xff] %vm2040, %v2020
  %2054 = vst.msk [vmem:[%s5 + $0x68] sm:$0xff] %vm2040, %v2021
  %2055 = vst.msk [vmem:[%s5 + $0x70] sm:$0xff] %vm2040, %v2022
  %2056 = vst.msk [vmem:[%s5 + $0x78] sm:$0xff] %vm2040, %v2023
  %2057 = vst.msk [vmem:[%s5 + $0x80] sm:$0xff] %vm2040, %v2024
  %2058 = vst.msk [vmem:[%s5 + $0x88] sm:$0xff] %vm2040, %v2025
  %2059 = vst.msk [vmem:[%s5 + $0x90] sm:$0xff] %vm2040, %v2026
  %2060 = vst.msk [vmem:[%s5 + $0x98] sm:$0xff] %vm2040, %v2027
  %2061 = vst.msk [vmem:[%s5 + $0xa0] sm:$0xff] %vm2040, %v2028
  %2062 = vst.msk [vmem:[%s5 + $0xa8] sm:$0xff] %vm2040, %v2029
  %2063 = vst.msk [vmem:[%s5 + $0xb0] sm:$0xff] %vm2040, %v2030
  %2064 = vst.msk [vmem:[%s5 + $0xb8] sm:$0xff] %vm2040, %v2031
  %2065 = vst.msk [vmem:[%s5 + $0xc0] sm:$0xff] %vm2040, %v2032
  %2066 = vst.msk [vmem:[%s5 + $0xc8] sm:$0xff] %vm2040, %v2033
  %2067 = vst.msk [vmem:[%s5 + $0xd0] sm:$0xff] %vm2040, %v2034
  %2068 = vst.msk [vmem:[%s5 + $0xd8] sm:$0xff] %vm2040, %v2035
  %2069 = vst.msk [vmem:[%s5 + $0xe0] sm:$0xff] %vm2040, %v2036
  %2070 = vst.msk [vmem:[%s5 + $0xe8] sm:$0xff] %vm2040, %v2037
  %2071 = vst.msk [vmem:[%s5 + $0xf0] sm:$0xff] %vm2040, %v2038
  %2072 = vst.msk [vmem:[%s5 + $0xf8] sm:$0xff] %vm2040, %v2039
  // Predicated region
  $region22: #{_lambda_.3} parent=0 // pred_check
    _
  $region23: #{_lambda_.3} parent=0 // pred_check_branch
    %2074 = sbr.rel (0) target = $region25
  $region24: #{_lambda_.3} parent=0 // pred_region
    _
  $region25: #{_lambda_.3} parent=0 // pred_fallthru
    _
  // Predicated region
  $region26: #{_lambda_.3} parent=0 // pred_check
    _
  $region27: #{_lambda_.3} parent=0 // pred_check_branch
    %2076 = sbr.rel (0) target = $region29
  $region28: #{_lambda_.3} parent=0 // pred_region
    _
  $region29: #{_lambda_.3} parent=0 // pred_fallthru
    _

// kernel: _lambda_.2
$region0: #{_lambda_.2}
  #allocation0 [shape = 'u32[]', space=smem, size = 0x4, offset = 0x4, fixed_abs, tag = 'smem constant byte address 0x4 - core index']
  #allocation1 [shape = 'u32[72,128]{1,0:T(1,128)}', space=vmem, size = 0x9000, scoped, tag = 'internal scratch']
  %s0 = inlined_call_operand.vmem [shape: f32[2,16,8,1], index: 0, kind: input, shape index: {}]
  %s1 = inlined_call_operand.vmem [shape: f32[9,1,4], index: 1, kind: input, shape index: {}]
  %s2 = inlined_call_operand.vmem [shape: f32[3,4], index: 2, kind: input, shape index: {}]
  %s3 = inlined_call_operand.vmem [shape: f32[9,4,8], index: 3, kind: input, shape index: {}]
  %s4 = inlined_call_operand.vmem [shape: f32[3,8], index: 4, kind: input, shape index: {}]
  %s5 = inlined_call_operand.hbm [shape: f32[200,256], index: 5, kind: input, shape index: {}]
  %s6 = inlined_call_operand.hbm [shape: f32[200,1], index: 6, kind: input, shape index: {}]
  %s7 = inlined_call_operand.vmem [shape: f32[100,200], index: 7, kind: input, shape index: {}]
  %s8 = inlined_call_operand.hbm [shape: f32[100,1], index: 8, kind: input, shape index: {}]
  %s9 = inlined_call_operand.hbm [shape: f32[32,100], index: 9, kind: input, shape index: {}]
  %s10 = inlined_call_operand.hbm [shape: f32[32,1], index: 10, kind: input, shape index: {}]
  %s11 = inlined_call_operand.hbm [shape: f32[128,16], index: 11, kind: input, shape index: {}]
  %s12 = inlined_call_operand.hbm [shape: f32[128,1], index: 12, kind: input, shape index: {}]
  %s13 = inlined_call_operand.vmem [shape: f32[16,2], index: 13, kind: input, shape index: {}]
  %s14 = inlined_call_operand.vmem [shape: f32[16,2], index: 14, kind: output, shape index: {0}]
  %s15 = inlined_call_operand.vmem [shape: f32[16,2], index: 15, kind: output, shape index: {1}]
  %s16 = inlined_call_operand.vmem [shape: f32[128,2], index: 16, kind: output, shape index: {2}]
  %17 = xla_tuple %s14, %s15, %s16
  %s18 = sld [smem:[#allocation0]]
  $region110: #{_lambda_.2} parent=0
    _
  %s20 = ssub.s32 1, %s18
  %s21 = scalar_select 0, %s20, %s18
  $region1: #{_lambda_.2} parent=0
    #allocation2 [shape = 'u8[204800]{0}', space=vmem, size = 0x32000, scoped, tag = 'input window, operand 5, single buffered']
    #allocation3 [shape = 's32[1]{0}', space=sflag, size = 0x4, scoped, tag = 'scoped memory for _lambda_.2']
    #allocation4 [shape = 'u8[102400]{0}', space=vmem, size = 0x19000, scoped, tag = 'input window, operand 6, single buffered']
    #allocation5 [shape = 's32[1]{0}', space=sflag, size = 0x4, scoped, tag = 'scoped memory for _lambda_.2']
    #allocation6 [shape = 'u8[53248]{0}', space=vmem, size = 0xd000, scoped, tag = 'input window, operand 8, single buffered']
    #allocation7 [shape = 'u8[16384]{0}', space=vmem, size = 0x4000, scoped, tag = 'input window, operand 9, single buffered']
    #allocation8 [shape = 's32[1]{0}', space=sflag, size = 0x4, scoped, tag = 'scoped memory for _lambda_.2']
    #allocation9 [shape = 'u8[16384]{0}', space=vmem, size = 0x4000, scoped, tag = 'input window, operand 10, single buffered']
    #allocation10 [shape = 'u8[65536]{0}', space=vmem, size = 0x10000, scoped, tag = 'input window, operand 11, single buffered']
    #allocation11 [shape = 's32[1]{0}', space=sflag, size = 0x4, scoped, tag = 'scoped memory for _lambda_.2']
    #allocation12 [shape = 'u8[65536]{0}', space=vmem, size = 0x10000, scoped, tag = 'input window, operand 12, single buffered']
    %22 = vsyncpa [#allocation3], 0
    %23 = vsyncpa [#allocation5], 0
    %24 = vsyncpa [#allocation8], 0
    %25 = vsyncpa [#allocation11], 0
    // Predicated region
    $region2: #{_lambda_.2} parent=1 // pred_check
      _
    $region3: #{_lambda_.2} parent=1 // pred_check_branch
      %27 = sbr.rel (0) target = $region5
    $region4: #{_lambda_.2} parent=1 // pred_region
      _
    $region5: #{_lambda_.2} parent=1 // pred_fallthru
      _
    // Predicated region
    $region6: #{_lambda_.2} parent=1 // pred_check
      _
    $region7: #{_lambda_.2} parent=1 // pred_check_branch
      %29 = sbr.rel (0) target = $region9
    $region8: #{_lambda_.2} parent=1 // pred_region
      _
    $region9: #{_lambda_.2} parent=1 // pred_fallthru
      _
    // Predicated region
    $region10: #{_lambda_.2} parent=1 // pred_check
      _
    $region11: #{_lambda_.2} parent=1 // pred_check_branch
      %31 = sbr.rel (0) target = $region13
    $region12: #{_lambda_.2} parent=1 // pred_region
      _
    $region13: #{_lambda_.2} parent=1 // pred_fallthru
      _
    // Predicated region
    $region14: #{_lambda_.2} parent=1 // pred_check
      _
    $region15: #{_lambda_.2} parent=1 // pred_check_branch
      %33 = sbr.rel (0) target = $region17
    $region16: #{_lambda_.2} parent=1 // pred_region
      _
    $region17: #{_lambda_.2} parent=1 // pred_fallthru
      _
    // Predicated region
    $region18: #{_lambda_.2} parent=1 // pred_check
      _
    $region19: #{_lambda_.2} parent=1 // pred_check_branch
      %35 = sbr.rel (0) target = $region21
    $region20: #{_lambda_.2} parent=1 // pred_region
      _
    $region21: #{_lambda_.2} parent=1 // pred_fallthru
      _
    // Predicated region
    $region22: #{_lambda_.2} parent=1 // pred_check
      _
    $region23: #{_lambda_.2} parent=1 // pred_check_branch
      %37 = sbr.rel (0) target = $region25
    $region24: #{_lambda_.2} parent=1 // pred_region
      %39 = vsyncadd [#allocation3], 0
      %s40 = sshll.u32 %s5, 4
      %s41 = int_to_ptr.hbm [resolvable:$true] %s40
      %s42 = sshll.u32 [#allocation2], 4
      %s43 = int_to_ptr.vmem [resolvable:$true] %s42
      %48 = dma.hbm_to_vmem [thread:$0]  %s41, 6400, %s43, [#allocation3], 256, 256, 16
    $region25: #{_lambda_.2} parent=1 // pred_fallthru
      _
    // Predicated region
    $region26: #{_lambda_.2} parent=1 // pred_check
      _
    $region27: #{_lambda_.2} parent=1 // pred_check_branch
      %50 = sbr.rel (0) target = $region29
    $region28: #{_lambda_.2} parent=1 // pred_region
      %52 = vsyncadd [#allocation5], 0
      %s53 = sshll.u32 %s6, 4
      %s54 = int_to_ptr.hbm [resolvable:$true] %s53
      %s55 = sshll.u32 [#allocation4], 4
      %s56 = int_to_ptr.vmem [resolvable:$true] %s55
      %61 = dma.hbm_to_vmem [thread:$0]  %s54, 3200, %s56, [#allocation5], 128, 128, 8
    $region29: #{_lambda_.2} parent=1 // pred_fallthru
      _
    // Predicated region
    $region30: #{_lambda_.2} parent=1 // pred_check
      _
    $region31: #{_lambda_.2} parent=1 // pred_check_branch
      %63 = sbr.rel (0) target = $region33
    $region32: #{_lambda_.2} parent=1 // pred_region
      _
    $region33: #{_lambda_.2} parent=1 // pred_fallthru
      _
    // Predicated region
    $region34: #{_lambda_.2} parent=1 // pred_check
      _
    $region35: #{_lambda_.2} parent=1 // pred_check_branch
      %65 = sbr.rel (0) target = $region37
    $region36: #{_lambda_.2} parent=1 // pred_region
      %67 = vsyncadd [#allocation5], 0
      %s68 = sshll.u32 %s8, 4
      %s69 = int_to_ptr.hbm [resolvable:$true] %s68
      %s70 = sshll.u32 [#allocation6], 4
      %s71 = int_to_ptr.vmem [resolvable:$true] %s70
      %76 = dma.hbm_to_vmem [thread:$0]  %s69, 1664, %s71, [#allocation5], 128, 128, 8
    $region37: #{_lambda_.2} parent=1 // pred_fallthru
      _
    // Predicated region
    $region38: #{_lambda_.2} parent=1 // pred_check
      _
    $region39: #{_lambda_.2} parent=1 // pred_check_branch
      %78 = sbr.rel (0) target = $region41
    $region40: #{_lambda_.2} parent=1 // pred_region
      %80 = vsyncadd [#allocation8], 0
      %s81 = sshll.u32 %s9, 4
      %s82 = int_to_ptr.hbm [resolvable:$true] %s81
      %s83 = sshll.u32 [#allocation7], 4
      %s84 = int_to_ptr.vmem [resolvable:$true] %s83
      %89 = dma.hbm_to_vmem [thread:$0]  %s82, 512, %s84, [#allocation8], 128, 128, 8
    $region41: #{_lambda_.2} parent=1 // pred_fallthru
      _
    // Predicated region
    $region42: #{_lambda_.2} parent=1 // pred_check
      _
    $region43: #{_lambda_.2} parent=1 // pred_check_branch
      %91 = sbr.rel (0) target = $region45
    $region44: #{_lambda_.2} parent=1 // pred_region
      %93 = vsyncadd [#allocation8], 0
      %s94 = sshll.u32 %s10, 4
      %s95 = int_to_ptr.hbm [resolvable:$true] %s94
      %s96 = sshll.u32 [#allocation9], 4
      %s97 = int_to_ptr.vmem [resolvable:$true] %s96
      %102 = dma.hbm_to_vmem [thread:$0]  %s95, 512, %s97, [#allocation8], 128, 128, 8
    $region45: #{_lambda_.2} parent=1 // pred_fallthru
      _
    // Predicated region
    $region46: #{_lambda_.2} parent=1 // pred_check
      _
    $region47: #{_lambda_.2} parent=1 // pred_check_branch
      %104 = sbr.rel (0) target = $region49
    $region48: #{_lambda_.2} parent=1 // pred_region
      %106 = vsyncadd [#allocation11], 0
      %s107 = sshll.u32 %s11, 4
      %s108 = int_to_ptr.hbm [resolvable:$true] %s107
      %s109 = sshll.u32 [#allocation10], 4
      %s110 = int_to_ptr.vmem [resolvable:$true] %s109
      %115 = dma.hbm_to_vmem [thread:$0]  %s108, 2048, %s110, [#allocation11], 128, 128, 8
    $region49: #{_lambda_.2} parent=1 // pred_fallthru
      _
    // Predicated region
    $region50: #{_lambda_.2} parent=1 // pred_check
      _
    $region51: #{_lambda_.2} parent=1 // pred_check_branch
      %117 = sbr.rel (0) target = $region53
    $region52: #{_lambda_.2} parent=1 // pred_region
      %119 = vsyncadd [#allocation11], 0
      %s120 = sshll.u32 %s12, 4
      %s121 = int_to_ptr.hbm [resolvable:$true] %s120
      %s122 = sshll.u32 [#allocation12], 4
      %s123 = int_to_ptr.vmem [resolvable:$true] %s122
      %128 = dma.hbm_to_vmem [thread:$0]  %s121, 2048, %s123, [#allocation11], 128, 128, 8
    $region53: #{_lambda_.2} parent=1 // pred_fallthru
      _
    // Predicated region
    $region54: #{_lambda_.2} parent=1 // pred_check
      _
    $region55: #{_lambda_.2} parent=1 // pred_check_branch
      %130 = sbr.rel (0) target = $region57
    $region56: #{_lambda_.2} parent=1 // pred_region
      _
    $region57: #{_lambda_.2} parent=1 // pred_fallthru
      _
    // Predicated region
    $region58: #{_lambda_.2} parent=1 // pred_check
      _
    $region59: #{_lambda_.2} parent=1 // pred_check_branch
      %132 = sbr.rel (0) target = $region61
    $region60: #{_lambda_.2} parent=1 // pred_region
      %134 = dma.done [#allocation3], 6400
    $region61: #{_lambda_.2} parent=1 // pred_fallthru
      _
    // Predicated region
    $region62: #{_lambda_.2} parent=1 // pred_check
      _
    $region63: #{_lambda_.2} parent=1 // pred_check_branch
      %136 = sbr.rel (0) target = $region65
    $region64: #{_lambda_.2} parent=1 // pred_region
      %138 = dma.done [#allocation5], 3200
    $region65: #{_lambda_.2} parent=1 // pred_fallthru
      _
    // Predicated region
    $region66: #{_lambda_.2} parent=1 // pred_check
      _
    $region67: #{_lambda_.2} parent=1 // pred_check_branch
      %140 = sbr.rel (0) target = $region69
    $region68: #{_lambda_.2} parent=1 // pred_region
      %142 = dma.done [#allocation5], 1664
    $region69: #{_lambda_.2} parent=1 // pred_fallthru
      _
    // Predicated region
    $region70: #{_lambda_.2} parent=1 // pred_check
      _
    $region71: #{_lambda_.2} parent=1 // pred_check_branch
      %144 = sbr.rel (0) target = $region73
    $region72: #{_lambda_.2} parent=1 // pred_region
      %146 = dma.done [#allocation8], 512
    $region73: #{_lambda_.2} parent=1 // pred_fallthru
      _
    // Predicated region
    $region74: #{_lambda_.2} parent=1 // pred_check
      _
    $region75: #{_lambda_.2} parent=1 // pred_check_branch
      %148 = sbr.rel (0) target = $region77
    $region76: #{_lambda_.2} parent=1 // pred_region
      %150 = dma.done [#allocation8], 512
    $region77: #{_lambda_.2} parent=1 // pred_fallthru
      _
    // Predicated region
    $region78: #{_lambda_.2} parent=1 // pred_check
      _
    $region79: #{_lambda_.2} parent=1 // pred_check_branch
      %152 = sbr.rel (0) target = $region81
    $region80: #{_lambda_.2} parent=1 // pred_region
      %154 = dma.done [#allocation11], 2048
    $region81: #{_lambda_.2} parent=1 // pred_fallthru
      _
    // Predicated region
    $region82: #{_lambda_.2} parent=1 // pred_check
      _
    $region83: #{_lambda_.2} parent=1 // pred_check_branch
      %156 = sbr.rel (0) target = $region85
    $region84: #{_lambda_.2} parent=1 // pred_region
      %158 = dma.done [#allocation11], 2048
    $region85: #{_lambda_.2} parent=1 // pred_fallthru
      _
    %v159 = vld [vmem:[%s0] sm:$0xff]
    %v160 = vld [vmem:[%s0 + $0x8] sm:$0xff]
    %v161 = vld [vmem:[%s0 + $0x10] sm:$0xff]
    %v162 = vld [vmem:[%s0 + $0x18] sm:$0xff]
    %v163 = vld [vmem:[%s0 + $0x20] sm:$0xff]
    %v164 = vld [vmem:[%s0 + $0x28] sm:$0xff]
    %v165 = vld [vmem:[%s0 + $0x30] sm:$0xff]
    %v166 = vld [vmem:[%s0 + $0x38] sm:$0xff]
    %v167 = vld [vmem:[%s0 + $0x40] sm:$0xff]
    %v168 = vld [vmem:[%s0 + $0x48] sm:$0xff]
    %v169 = vld [vmem:[%s0 + $0x50] sm:$0xff]
    %v170 = vld [vmem:[%s0 + $0x58] sm:$0xff]
    %v171 = vld [vmem:[%s0 + $0x60] sm:$0xff]
    %v172 = vld [vmem:[%s0 + $0x68] sm:$0xff]
    %v173 = vld [vmem:[%s0 + $0x70] sm:$0xff]
    %v174 = vld [vmem:[%s0 + $0x78] sm:$0xff]
    %v175 = vld [vmem:[%s0 + $0x80] sm:$0xff]
    %v176 = vld [vmem:[%s0 + $0x88] sm:$0xff]
    %v177 = vld [vmem:[%s0 + $0x90] sm:$0xff]
    %v178 = vld [vmem:[%s0 + $0x98] sm:$0xff]
    %v179 = vld [vmem:[%s0 + $0xa0] sm:$0xff]
    %v180 = vld [vmem:[%s0 + $0xa8] sm:$0xff]
    %v181 = vld [vmem:[%s0 + $0xb0] sm:$0xff]
    %v182 = vld [vmem:[%s0 + $0xb8] sm:$0xff]
    %v183 = vld [vmem:[%s0 + $0xc0] sm:$0xff]
    %v184 = vld [vmem:[%s0 + $0xc8] sm:$0xff]
    %v185 = vld [vmem:[%s0 + $0xd0] sm:$0xff]
    %v186 = vld [vmem:[%s0 + $0xd8] sm:$0xff]
    %v187 = vld [vmem:[%s0 + $0xe0] sm:$0xff]
    %v188 = vld [vmem:[%s0 + $0xe8] sm:$0xff]
    %v189 = vld [vmem:[%s0 + $0xf0] sm:$0xff]
    %v190 = vld [vmem:[%s0 + $0xf8] sm:$0xff]
    %v191 = vld [vmem:[%s1] sm:$0x1]
    %v192 = vld [vmem:[%s1 + $0x1] sm:$0x1]
    %v193 = vld [vmem:[%s1 + $0x2] sm:$0x1]
    %v194 = vld [vmem:[%s1 + $0x3] sm:$0x1]
    %v195 = vld [vmem:[%s1 + $0x4] sm:$0x1]
    %v196 = vld [vmem:[%s1 + $0x5] sm:$0x1]
    %v197 = vld [vmem:[%s1 + $0x6] sm:$0x1]
    %v198 = vld [vmem:[%s1 + $0x7] sm:$0x1]
    %v199 = vld [vmem:[%s1 + $0x8] sm:$0x1]
    %v200 = vld [vmem:[%s2] sm:$0x7]
    %vm233 = vcmask 1040384
    %v234 = vrot.slane %v174, 7
    %v235 = vsel %vm233, %v234, %v234
    %v236 = vrot.slane %v159, 7
    %v237 = vsel %vm233, %v236, %v236
    %v238 = vrot.slane %v160, 7
    %v239 = vsel %vm233, %v238, %v238
    %v240 = vrot.slane %v161, 7
    %v241 = vsel %vm233, %v240, %v240
    %v242 = vrot.slane %v162, 7
    %v243 = vsel %vm233, %v242, %v242
    %v244 = vrot.slane %v163, 7
    %v245 = vsel %vm233, %v244, %v244
    %v246 = vrot.slane %v164, 7
    %v247 = vsel %vm233, %v246, %v246
    %v248 = vrot.slane %v165, 7
    %v249 = vsel %vm233, %v248, %v248
    %v250 = vrot.slane %v166, 7
    %v251 = vsel %vm233, %v250, %v250
    %v252 = vrot.slane %v167, 7
    %v253 = vsel %vm233, %v252, %v252
    %v254 = vrot.slane %v168, 7
    %v255 = vsel %vm233, %v254, %v254
    %v256 = vrot.slane %v169, 7
    %v257 = vsel %vm233, %v256, %v256
    %v258 = vrot.slane %v170, 7
    %v259 = vsel %vm233, %v258, %v258
    %v260 = vrot.slane %v171, 7
    %v261 = vsel %vm233, %v260, %v260
    %v262 = vrot.slane %v172, 7
    %v263 = vsel %vm233, %v262, %v262
    %v264 = vrot.slane %v173, 7
    %v265 = vsel %vm233, %v264, %v264
    %v266 = vrot.slane %v190, 7
    %v267 = vsel %vm233, %v266, %v266
    %v268 = vrot.slane %v175, 7
    %v269 = vsel %vm233, %v268, %v268
    %v270 = vrot.slane %v176, 7
    %v271 = vsel %vm233, %v270, %v270
    %v272 = vrot.slane %v177, 7
    %v273 = vsel %vm233, %v272, %v272
    %v274 = vrot.slane %v178, 7
    %v275 = vsel %vm233, %v274, %v274
    %v276 = vrot.slane %v179, 7
    %v277 = vsel %vm233, %v276, %v276
    %v278 = vrot.slane %v180, 7
    %v279 = vsel %vm233, %v278, %v278
    %v280 = vrot.slane %v181, 7
    %v281 = vsel %vm233, %v280, %v280
    %v282 = vrot.slane %v182, 7
    %v283 = vsel %vm233, %v282, %v282
    %v284 = vrot.slane %v183, 7
    %v285 = vsel %vm233, %v284, %v284
    %v286 = vrot.slane %v184, 7
    %v287 = vsel %vm233, %v286, %v286
    %v288 = vrot.slane %v185, 7
    %v289 = vsel %vm233, %v288, %v288
    %v290 = vrot.slane %v186, 7
    %v291 = vsel %vm233, %v290, %v290
    %v292 = vrot.slane %v187, 7
    %v293 = vsel %vm233, %v292, %v292
    %v294 = vrot.slane %v188, 7
    %v295 = vsel %vm233, %v294, %v294
    %v296 = vrot.slane %v189, 7
    %v297 = vsel %vm233, %v296, %v296
    %298 = vset.pattern.permute.xlu0 0
    %299 = vperm.xlu0 %298, %v235
    %v300 = vpop.permute.xlu0 %299
    %302 = vset.pattern.permute.xlu0 0
    %303 = vperm.xlu0 %302, %v237
    %v304 = vpop.permute.xlu0 %303
    %306 = vset.pattern.permute.xlu0 0
    %307 = vperm.xlu0 %306, %v239
    %v308 = vpop.permute.xlu0 %307
    %310 = vset.pattern.permute.xlu0 0
    %311 = vperm.xlu0 %310, %v241
    %v312 = vpop.permute.xlu0 %311
    %314 = vset.pattern.permute.xlu0 0
    %315 = vperm.xlu0 %314, %v243
    %v316 = vpop.permute.xlu0 %315
    %318 = vset.pattern.permute.xlu0 0
    %319 = vperm.xlu0 %318, %v245
    %v320 = vpop.permute.xlu0 %319
    %322 = vset.pattern.permute.xlu0 0
    %323 = vperm.xlu0 %322, %v247
    %v324 = vpop.permute.xlu0 %323
    %326 = vset.pattern.permute.xlu0 0
    %327 = vperm.xlu0 %326, %v249
    %v328 = vpop.permute.xlu0 %327
    %330 = vset.pattern.permute.xlu0 0
    %331 = vperm.xlu0 %330, %v251
    %v332 = vpop.permute.xlu0 %331
    %334 = vset.pattern.permute.xlu0 0
    %335 = vperm.xlu0 %334, %v253
    %v336 = vpop.permute.xlu0 %335
    %338 = vset.pattern.permute.xlu0 0
    %339 = vperm.xlu0 %338, %v255
    %v340 = vpop.permute.xlu0 %339
    %342 = vset.pattern.permute.xlu0 0
    %343 = vperm.xlu0 %342, %v257
    %v344 = vpop.permute.xlu0 %343
    %346 = vset.pattern.permute.xlu0 0
    %347 = vperm.xlu0 %346, %v259
    %v348 = vpop.permute.xlu0 %347
    %350 = vset.pattern.permute.xlu0 0
    %351 = vperm.xlu0 %350, %v261
    %v352 = vpop.permute.xlu0 %351
    %354 = vset.pattern.permute.xlu0 0
    %355 = vperm.xlu0 %354, %v263
    %v356 = vpop.permute.xlu0 %355
    %358 = vset.pattern.permute.xlu0 0
    %359 = vperm.xlu0 %358, %v265
    %v360 = vpop.permute.xlu0 %359
    %362 = vset.pattern.permute.xlu0 0
    %363 = vperm.xlu0 %362, %v267
    %v364 = vpop.permute.xlu0 %363
    %366 = vset.pattern.permute.xlu0 0
    %367 = vperm.xlu0 %366, %v269
    %v368 = vpop.permute.xlu0 %367
    %370 = vset.pattern.permute.xlu0 0
    %371 = vperm.xlu0 %370, %v271
    %v372 = vpop.permute.xlu0 %371
    %374 = vset.pattern.permute.xlu0 0
    %375 = vperm.xlu0 %374, %v273
    %v376 = vpop.permute.xlu0 %375
    %378 = vset.pattern.permute.xlu0 0
    %379 = vperm.xlu0 %378, %v275
    %v380 = vpop.permute.xlu0 %379
    %382 = vset.pattern.permute.xlu0 0
    %383 = vperm.xlu0 %382, %v277
    %v384 = vpop.permute.xlu0 %383
    %386 = vset.pattern.permute.xlu0 0
    %387 = vperm.xlu0 %386, %v279
    %v388 = vpop.permute.xlu0 %387
    %390 = vset.pattern.permute.xlu0 0
    %391 = vperm.xlu0 %390, %v281
    %v392 = vpop.permute.xlu0 %391
    %394 = vset.pattern.permute.xlu0 0
    %395 = vperm.xlu0 %394, %v283
    %v396 = vpop.permute.xlu0 %395
    %398 = vset.pattern.permute.xlu0 0
    %399 = vperm.xlu0 %398, %v285
    %v400 = vpop.permute.xlu0 %399
    %402 = vset.pattern.permute.xlu0 0
    %403 = vperm.xlu0 %402, %v287
    %v404 = vpop.permute.xlu0 %403
    %406 = vset.pattern.permute.xlu0 0
    %407 = vperm.xlu0 %406, %v289
    %v408 = vpop.permute.xlu0 %407
    %410 = vset.pattern.permute.xlu0 0
    %411 = vperm.xlu0 %410, %v291
    %v412 = vpop.permute.xlu0 %411
    %414 = vset.pattern.permute.xlu0 0
    %415 = vperm.xlu0 %414, %v293
    %v416 = vpop.permute.xlu0 %415
    %418 = vset.pattern.permute.xlu0 0
    %419 = vperm.xlu0 %418, %v295
    %v420 = vpop.permute.xlu0 %419
    %422 = vset.pattern.permute.xlu0 0
    %423 = vperm.xlu0 %422, %v297
    %v424 = vpop.permute.xlu0 %423
    %v427 = vperm.slane %v191, 0
    %v429 = vmul.f32 %v300, %v427
    %v430 = vmul.f32 %v304, %v427
    %v431 = vmul.f32 %v308, %v427
    %v432 = vmul.f32 %v312, %v427
    %v433 = vmul.f32 %v316, %v427
    %v434 = vmul.f32 %v320, %v427
    %v435 = vmul.f32 %v324, %v427
    %v436 = vmul.f32 %v328, %v427
    %v437 = vmul.f32 %v332, %v427
    %v438 = vmul.f32 %v336, %v427
    %v439 = vmul.f32 %v340, %v427
    %v440 = vmul.f32 %v344, %v427
    %v441 = vmul.f32 %v348, %v427
    %v442 = vmul.f32 %v352, %v427
    %v443 = vmul.f32 %v356, %v427
    %v444 = vmul.f32 %v360, %v427
    %v445 = vmul.f32 %v364, %v427
    %v446 = vmul.f32 %v368, %v427
    %v447 = vmul.f32 %v372, %v427
    %v448 = vmul.f32 %v376, %v427
    %v449 = vmul.f32 %v380, %v427
    %v450 = vmul.f32 %v384, %v427
    %v451 = vmul.f32 %v388, %v427
    %v452 = vmul.f32 %v392, %v427
    %v453 = vmul.f32 %v396, %v427
    %v454 = vmul.f32 %v400, %v427
    %v455 = vmul.f32 %v404, %v427
    %v456 = vmul.f32 %v408, %v427
    %v457 = vmul.f32 %v412, %v427
    %v458 = vmul.f32 %v416, %v427
    %v459 = vmul.f32 %v420, %v427
    %v460 = vmul.f32 %v424, %v427
    %461 = vset.pattern.permute.xlu0 0
    %462 = vperm.xlu0 %461, %v174
    %v463 = vpop.permute.xlu0 %462
    %465 = vset.pattern.permute.xlu0 0
    %466 = vperm.xlu0 %465, %v159
    %v467 = vpop.permute.xlu0 %466
    %469 = vset.pattern.permute.xlu0 0
    %470 = vperm.xlu0 %469, %v160
    %v471 = vpop.permute.xlu0 %470
    %473 = vset.pattern.permute.xlu0 0
    %474 = vperm.xlu0 %473, %v161
    %v475 = vpop.permute.xlu0 %474
    %477 = vset.pattern.permute.xlu0 0
    %478 = vperm.xlu0 %477, %v162
    %v479 = vpop.permute.xlu0 %478
    %481 = vset.pattern.permute.xlu0 0
    %482 = vperm.xlu0 %481, %v163
    %v483 = vpop.permute.xlu0 %482
    %485 = vset.pattern.permute.xlu0 0
    %486 = vperm.xlu0 %485, %v164
    %v487 = vpop.permute.xlu0 %486
    %489 = vset.pattern.permute.xlu0 0
    %490 = vperm.xlu0 %489, %v165
    %v491 = vpop.permute.xlu0 %490
    %493 = vset.pattern.permute.xlu0 0
    %494 = vperm.xlu0 %493, %v166
    %v495 = vpop.permute.xlu0 %494
    %497 = vset.pattern.permute.xlu0 0
    %498 = vperm.xlu0 %497, %v167
    %v499 = vpop.permute.xlu0 %498
    %501 = vset.pattern.permute.xlu0 0
    %502 = vperm.xlu0 %501, %v168
    %v503 = vpop.permute.xlu0 %502
    %505 = vset.pattern.permute.xlu0 0
    %506 = vperm.xlu0 %505, %v169
    %v507 = vpop.permute.xlu0 %506
    %509 = vset.pattern.permute.xlu0 0
    %510 = vperm.xlu0 %509, %v170
    %v511 = vpop.permute.xlu0 %510
    %513 = vset.pattern.permute.xlu0 0
    %514 = vperm.xlu0 %513, %v171
    %v515 = vpop.permute.xlu0 %514
    %517 = vset.pattern.permute.xlu0 0
    %518 = vperm.xlu0 %517, %v172
    %v519 = vpop.permute.xlu0 %518
    %521 = vset.pattern.permute.xlu0 0
    %522 = vperm.xlu0 %521, %v173
    %v523 = vpop.permute.xlu0 %522
    %525 = vset.pattern.permute.xlu0 0
    %526 = vperm.xlu0 %525, %v190
    %v527 = vpop.permute.xlu0 %526
    %529 = vset.pattern.permute.xlu0 0
    %530 = vperm.xlu0 %529, %v175
    %v531 = vpop.permute.xlu0 %530
    %533 = vset.pattern.permute.xlu0 0
    %534 = vperm.xlu0 %533, %v176
    %v535 = vpop.permute.xlu0 %534
    %537 = vset.pattern.permute.xlu0 0
    %538 = vperm.xlu0 %537, %v177
    %v539 = vpop.permute.xlu0 %538
    %541 = vset.pattern.permute.xlu0 0
    %542 = vperm.xlu0 %541, %v178
    %v543 = vpop.permute.xlu0 %542
    %545 = vset.pattern.permute.xlu0 0
    %546 = vperm.xlu0 %545, %v179
    %v547 = vpop.permute.xlu0 %546
    %549 = vset.pattern.permute.xlu0 0
    %550 = vperm.xlu0 %549, %v180
    %v551 = vpop.permute.xlu0 %550
    %553 = vset.pattern.permute.xlu0 0
    %554 = vperm.xlu0 %553, %v181
    %v555 = vpop.permute.xlu0 %554
    %557 = vset.pattern.permute.xlu0 0
    %558 = vperm.xlu0 %557, %v182
    %v559 = vpop.permute.xlu0 %558
    %561 = vset.pattern.permute.xlu0 0
    %562 = vperm.xlu0 %561, %v183
    %v563 = vpop.permute.xlu0 %562
    %565 = vset.pattern.permute.xlu0 0
    %566 = vperm.xlu0 %565, %v184
    %v567 = vpop.permute.xlu0 %566
    %569 = vset.pattern.permute.xlu0 0
    %570 = vperm.xlu0 %569, %v185
    %v571 = vpop.permute.xlu0 %570
    %573 = vset.pattern.permute.xlu0 0
    %574 = vperm.xlu0 %573, %v186
    %v575 = vpop.permute.xlu0 %574
    %577 = vset.pattern.permute.xlu0 0
    %578 = vperm.xlu0 %577, %v187
    %v579 = vpop.permute.xlu0 %578
    %581 = vset.pattern.permute.xlu0 0
    %582 = vperm.xlu0 %581, %v188
    %v583 = vpop.permute.xlu0 %582
    %585 = vset.pattern.permute.xlu0 0
    %586 = vperm.xlu0 %585, %v189
    %v587 = vpop.permute.xlu0 %586
    %v590 = vperm.slane %v192, 0
    %v592 = vmul.f32 %v463, %v590
    %v593 = vmul.f32 %v467, %v590
    %v594 = vmul.f32 %v471, %v590
    %v595 = vmul.f32 %v475, %v590
    %v596 = vmul.f32 %v479, %v590
    %v597 = vmul.f32 %v483, %v590
    %v598 = vmul.f32 %v487, %v590
    %v599 = vmul.f32 %v491, %v590
    %v600 = vmul.f32 %v495, %v590
    %v601 = vmul.f32 %v499, %v590
    %v602 = vmul.f32 %v503, %v590
    %v603 = vmul.f32 %v507, %v590
    %v604 = vmul.f32 %v511, %v590
    %v605 = vmul.f32 %v515, %v590
    %v606 = vmul.f32 %v519, %v590
    %v607 = vmul.f32 %v523, %v590
    %v608 = vmul.f32 %v527, %v590
    %v609 = vmul.f32 %v531, %v590
    %v610 = vmul.f32 %v535, %v590
    %v611 = vmul.f32 %v539, %v590
    %v612 = vmul.f32 %v543, %v590
    %v613 = vmul.f32 %v547, %v590
    %v614 = vmul.f32 %v551, %v590
    %v615 = vmul.f32 %v555, %v590
    %v616 = vmul.f32 %v559, %v590
    %v617 = vmul.f32 %v563, %v590
    %v618 = vmul.f32 %v567, %v590
    %v619 = vmul.f32 %v571, %v590
    %v620 = vmul.f32 %v575, %v590
    %v621 = vmul.f32 %v579, %v590
    %v622 = vmul.f32 %v583, %v590
    %v623 = vmul.f32 %v587, %v590
    %v624 = vadd.f32 %v429, %v592
    %v625 = vadd.f32 %v430, %v593
    %v626 = vadd.f32 %v431, %v594
    %v627 = vadd.f32 %v432, %v595
    %v628 = vadd.f32 %v433, %v596
    %v629 = vadd.f32 %v434, %v597
    %v630 = vadd.f32 %v435, %v598
    %v631 = vadd.f32 %v436, %v599
    %v632 = vadd.f32 %v437, %v600
    %v633 = vadd.f32 %v438, %v601
    %v634 = vadd.f32 %v439, %v602
    %v635 = vadd.f32 %v440, %v603
    %v636 = vadd.f32 %v441, %v604
    %v637 = vadd.f32 %v442, %v605
    %v638 = vadd.f32 %v443, %v606
    %v639 = vadd.f32 %v444, %v607
    %v640 = vadd.f32 %v445, %v608
    %v641 = vadd.f32 %v446, %v609
    %v642 = vadd.f32 %v447, %v610
    %v643 = vadd.f32 %v448, %v611
    %v644 = vadd.f32 %v449, %v612
    %v645 = vadd.f32 %v450, %v613
    %v646 = vadd.f32 %v451, %v614
    %v647 = vadd.f32 %v452, %v615
    %v648 = vadd.f32 %v453, %v616
    %v649 = vadd.f32 %v454, %v617
    %v650 = vadd.f32 %v455, %v618
    %v651 = vadd.f32 %v456, %v619
    %v652 = vadd.f32 %v457, %v620
    %v653 = vadd.f32 %v458, %v621
    %v654 = vadd.f32 %v459, %v622
    %v655 = vadd.f32 %v460, %v623
    %vm656 = vcmask 1046528
    %v657 = vrot.slane %v174, 1
    %v658 = vsel %vm656, %v657, %v657
    %v659 = vrot.slane %v159, 1
    %v660 = vsel %vm656, %v659, %v659
    %v661 = vrot.slane %v160, 1
    %v662 = vsel %vm656, %v661, %v661
    %v663 = vrot.slane %v161, 1
    %v664 = vsel %vm656, %v663, %v663
    %v665 = vrot.slane %v162, 1
    %v666 = vsel %vm656, %v665, %v665
    %v667 = vrot.slane %v163, 1
    %v668 = vsel %vm656, %v667, %v667
    %v669 = vrot.slane %v164, 1
    %v670 = vsel %vm656, %v669, %v669
    %v671 = vrot.slane %v165, 1
    %v672 = vsel %vm656, %v671, %v671
    %v673 = vrot.slane %v166, 1
    %v674 = vsel %vm656, %v673, %v673
    %v675 = vrot.slane %v167, 1
    %v676 = vsel %vm656, %v675, %v675
    %v677 = vrot.slane %v168, 1
    %v678 = vsel %vm656, %v677, %v677
    %v679 = vrot.slane %v169, 1
    %v680 = vsel %vm656, %v679, %v679
    %v681 = vrot.slane %v170, 1
    %v682 = vsel %vm656, %v681, %v681
    %v683 = vrot.slane %v171, 1
    %v684 = vsel %vm656, %v683, %v683
    %v685 = vrot.slane %v172, 1
    %v686 = vsel %vm656, %v685, %v685
    %v687 = vrot.slane %v173, 1
    %v688 = vsel %vm656, %v687, %v687
    %v689 = vrot.slane %v190, 1
    %v690 = vsel %vm656, %v689, %v689
    %v691 = vrot.slane %v175, 1
    %v692 = vsel %vm656, %v691, %v691
    %v693 = vrot.slane %v176, 1
    %v694 = vsel %vm656, %v693, %v693
    %v695 = vrot.slane %v177, 1
    %v696 = vsel %vm656, %v695, %v695
    %v697 = vrot.slane %v178, 1
    %v698 = vsel %vm656, %v697, %v697
    %v699 = vrot.slane %v179, 1
    %v700 = vsel %vm656, %v699, %v699
    %v701 = vrot.slane %v180, 1
    %v702 = vsel %vm656, %v701, %v701
    %v703 = vrot.slane %v181, 1
    %v704 = vsel %vm656, %v703, %v703
    %v705 = vrot.slane %v182, 1
    %v706 = vsel %vm656, %v705, %v705
    %v707 = vrot.slane %v183, 1
    %v708 = vsel %vm656, %v707, %v707
    %v709 = vrot.slane %v184, 1
    %v710 = vsel %vm656, %v709, %v709
    %v711 = vrot.slane %v185, 1
    %v712 = vsel %vm656, %v711, %v711
    %v713 = vrot.slane %v186, 1
    %v714 = vsel %vm656, %v713, %v713
    %v715 = vrot.slane %v187, 1
    %v716 = vsel %vm656, %v715, %v715
    %v717 = vrot.slane %v188, 1
    %v718 = vsel %vm656, %v717, %v717
    %v719 = vrot.slane %v189, 1
    %v720 = vsel %vm656, %v719, %v719
    %721 = vset.pattern.permute.xlu0 0
    %722 = vperm.xlu0 %721, %v658
    %v723 = vpop.permute.xlu0 %722
    %725 = vset.pattern.permute.xlu0 0
    %726 = vperm.xlu0 %725, %v660
    %v727 = vpop.permute.xlu0 %726
    %729 = vset.pattern.permute.xlu0 0
    %730 = vperm.xlu0 %729, %v662
    %v731 = vpop.permute.xlu0 %730
    %733 = vset.pattern.permute.xlu0 0
    %734 = vperm.xlu0 %733, %v664
    %v735 = vpop.permute.xlu0 %734
    %737 = vset.pattern.permute.xlu0 0
    %738 = vperm.xlu0 %737, %v666
    %v739 = vpop.permute.xlu0 %738
    %741 = vset.pattern.permute.xlu0 0
    %742 = vperm.xlu0 %741, %v668
    %v743 = vpop.permute.xlu0 %742
    %745 = vset.pattern.permute.xlu0 0
    %746 = vperm.xlu0 %745, %v670
    %v747 = vpop.permute.xlu0 %746
    %749 = vset.pattern.permute.xlu0 0
    %750 = vperm.xlu0 %749, %v672
    %v751 = vpop.permute.xlu0 %750
    %753 = vset.pattern.permute.xlu0 0
    %754 = vperm.xlu0 %753, %v674
    %v755 = vpop.permute.xlu0 %754
    %757 = vset.pattern.permute.xlu0 0
    %758 = vperm.xlu0 %757, %v676
    %v759 = vpop.permute.xlu0 %758
    %761 = vset.pattern.permute.xlu0 0
    %762 = vperm.xlu0 %761, %v678
    %v763 = vpop.permute.xlu0 %762
    %765 = vset.pattern.permute.xlu0 0
    %766 = vperm.xlu0 %765, %v680
    %v767 = vpop.permute.xlu0 %766
    %769 = vset.pattern.permute.xlu0 0
    %770 = vperm.xlu0 %769, %v682
    %v771 = vpop.permute.xlu0 %770
    %773 = vset.pattern.permute.xlu0 0
    %774 = vperm.xlu0 %773, %v684
    %v775 = vpop.permute.xlu0 %774
    %777 = vset.pattern.permute.xlu0 0
    %778 = vperm.xlu0 %777, %v686
    %v779 = vpop.permute.xlu0 %778
    %781 = vset.pattern.permute.xlu0 0
    %782 = vperm.xlu0 %781, %v688
    %v783 = vpop.permute.xlu0 %782
    %785 = vset.pattern.permute.xlu0 0
    %786 = vperm.xlu0 %785, %v690
    %v787 = vpop.permute.xlu0 %786
    %789 = vset.pattern.permute.xlu0 0
    %790 = vperm.xlu0 %789, %v692
    %v791 = vpop.permute.xlu0 %790
    %793 = vset.pattern.permute.xlu0 0
    %794 = vperm.xlu0 %793, %v694
    %v795 = vpop.permute.xlu0 %794
    %797 = vset.pattern.permute.xlu0 0
    %798 = vperm.xlu0 %797, %v696
    %v799 = vpop.permute.xlu0 %798
    %801 = vset.pattern.permute.xlu0 0
    %802 = vperm.xlu0 %801, %v698
    %v803 = vpop.permute.xlu0 %802
    %805 = vset.pattern.permute.xlu0 0
    %806 = vperm.xlu0 %805, %v700
    %v807 = vpop.permute.xlu0 %806
    %809 = vset.pattern.permute.xlu0 0
    %810 = vperm.xlu0 %809, %v702
    %v811 = vpop.permute.xlu0 %810
    %813 = vset.pattern.permute.xlu0 0
    %814 = vperm.xlu0 %813, %v704
    %v815 = vpop.permute.xlu0 %814
    %817 = vset.pattern.permute.xlu0 0
    %818 = vperm.xlu0 %817, %v706
    %v819 = vpop.permute.xlu0 %818
    %821 = vset.pattern.permute.xlu0 0
    %822 = vperm.xlu0 %821, %v708
    %v823 = vpop.permute.xlu0 %822
    %825 = vset.pattern.permute.xlu0 0
    %826 = vperm.xlu0 %825, %v710
    %v827 = vpop.permute.xlu0 %826
    %829 = vset.pattern.permute.xlu0 0
    %830 = vperm.xlu0 %829, %v712
    %v831 = vpop.permute.xlu0 %830
    %833 = vset.pattern.permute.xlu0 0
    %834 = vperm.xlu0 %833, %v714
    %v835 = vpop.permute.xlu0 %834
    %837 = vset.pattern.permute.xlu0 0
    %838 = vperm.xlu0 %837, %v716
    %v839 = vpop.permute.xlu0 %838
    %841 = vset.pattern.permute.xlu0 0
    %842 = vperm.xlu0 %841, %v718
    %v843 = vpop.permute.xlu0 %842
    %845 = vset.pattern.permute.xlu0 0
    %846 = vperm.xlu0 %845, %v720
    %v847 = vpop.permute.xlu0 %846
    %v850 = vperm.slane %v193, 0
    %v852 = vmul.f32 %v723, %v850
    %v853 = vmul.f32 %v727, %v850
    %v854 = vmul.f32 %v731, %v850
    %v855 = vmul.f32 %v735, %v850
    %v856 = vmul.f32 %v739, %v850
    %v857 = vmul.f32 %v743, %v850
    %v858 = vmul.f32 %v747, %v850
    %v859 = vmul.f32 %v751, %v850
    %v860 = vmul.f32 %v755, %v850
    %v861 = vmul.f32 %v759, %v850
    %v862 = vmul.f32 %v763, %v850
    %v863 = vmul.f32 %v767, %v850
    %v864 = vmul.f32 %v771, %v850
    %v865 = vmul.f32 %v775, %v850
    %v866 = vmul.f32 %v779, %v850
    %v867 = vmul.f32 %v783, %v850
    %v868 = vmul.f32 %v787, %v850
    %v869 = vmul.f32 %v791, %v850
    %v870 = vmul.f32 %v795, %v850
    %v871 = vmul.f32 %v799, %v850
    %v872 = vmul.f32 %v803, %v850
    %v873 = vmul.f32 %v807, %v850
    %v874 = vmul.f32 %v811, %v850
    %v875 = vmul.f32 %v815, %v850
    %v876 = vmul.f32 %v819, %v850
    %v877 = vmul.f32 %v823, %v850
    %v878 = vmul.f32 %v827, %v850
    %v879 = vmul.f32 %v831, %v850
    %v880 = vmul.f32 %v835, %v850
    %v881 = vmul.f32 %v839, %v850
    %v882 = vmul.f32 %v843, %v850
    %v883 = vmul.f32 %v847, %v850
    %v884 = vadd.f32 %v624, %v852
    %v885 = vadd.f32 %v625, %v853
    %v886 = vadd.f32 %v626, %v854
    %v887 = vadd.f32 %v627, %v855
    %v888 = vadd.f32 %v628, %v856
    %v889 = vadd.f32 %v629, %v857
    %v890 = vadd.f32 %v630, %v858
    %v891 = vadd.f32 %v631, %v859
    %v892 = vadd.f32 %v632, %v860
    %v893 = vadd.f32 %v633, %v861
    %v894 = vadd.f32 %v634, %v862
    %v895 = vadd.f32 %v635, %v863
    %v896 = vadd.f32 %v636, %v864
    %v897 = vadd.f32 %v637, %v865
    %v898 = vadd.f32 %v638, %v866
    %v899 = vadd.f32 %v639, %v867
    %v900 = vadd.f32 %v640, %v868
    %v901 = vadd.f32 %v641, %v869
    %v902 = vadd.f32 %v642, %v870
    %v903 = vadd.f32 %v643, %v871
    %v904 = vadd.f32 %v644, %v872
    %v905 = vadd.f32 %v645, %v873
    %v906 = vadd.f32 %v646, %v874
    %v907 = vadd.f32 %v647, %v875
    %v908 = vadd.f32 %v648, %v876
    %v909 = vadd.f32 %v649, %v877
    %v910 = vadd.f32 %v650, %v878
    %v911 = vadd.f32 %v651, %v879
    %v912 = vadd.f32 %v652, %v880
    %v913 = vadd.f32 %v653, %v881
    %v914 = vadd.f32 %v654, %v882
    %v915 = vadd.f32 %v655, %v883
    %v917 = vperm.slane %v194, 0
    %v919 = vmul.f32 %v304, %v917
    %v920 = vmul.f32 %v308, %v917
    %v921 = vmul.f32 %v312, %v917
    %v922 = vmul.f32 %v316, %v917
    %v923 = vmul.f32 %v320, %v917
    %v924 = vmul.f32 %v324, %v917
    %v925 = vmul.f32 %v328, %v917
    %v926 = vmul.f32 %v332, %v917
    %v927 = vmul.f32 %v336, %v917
    %v928 = vmul.f32 %v340, %v917
    %v929 = vmul.f32 %v344, %v917
    %v930 = vmul.f32 %v348, %v917
    %v931 = vmul.f32 %v352, %v917
    %v932 = vmul.f32 %v356, %v917
    %v933 = vmul.f32 %v360, %v917
    %v934 = vmul.f32 %v300, %v917
    %v935 = vmul.f32 %v368, %v917
    %v936 = vmul.f32 %v372, %v917
    %v937 = vmul.f32 %v376, %v917
    %v938 = vmul.f32 %v380, %v917
    %v939 = vmul.f32 %v384, %v917
    %v940 = vmul.f32 %v388, %v917
    %v941 = vmul.f32 %v392, %v917
    %v942 = vmul.f32 %v396, %v917
    %v943 = vmul.f32 %v400, %v917
    %v944 = vmul.f32 %v404, %v917
    %v945 = vmul.f32 %v408, %v917
    %v946 = vmul.f32 %v412, %v917
    %v947 = vmul.f32 %v416, %v917
    %v948 = vmul.f32 %v420, %v917
    %v949 = vmul.f32 %v424, %v917
    %v950 = vmul.f32 %v364, %v917
    %v951 = vadd.f32 %v884, %v919
    %v952 = vadd.f32 %v885, %v920
    %v953 = vadd.f32 %v886, %v921
    %v954 = vadd.f32 %v887, %v922
    %v955 = vadd.f32 %v888, %v923
    %v956 = vadd.f32 %v889, %v924
    %v957 = vadd.f32 %v890, %v925
    %v958 = vadd.f32 %v891, %v926
    %v959 = vadd.f32 %v892, %v927
    %v960 = vadd.f32 %v893, %v928
    %v961 = vadd.f32 %v894, %v929
    %v962 = vadd.f32 %v895, %v930
    %v963 = vadd.f32 %v896, %v931
    %v964 = vadd.f32 %v897, %v932
    %v965 = vadd.f32 %v898, %v933
    %v966 = vadd.f32 %v899, %v934
    %v967 = vadd.f32 %v900, %v935
    %v968 = vadd.f32 %v901, %v936
    %v969 = vadd.f32 %v902, %v937
    %v970 = vadd.f32 %v903, %v938
    %v971 = vadd.f32 %v904, %v939
    %v972 = vadd.f32 %v905, %v940
    %v973 = vadd.f32 %v906, %v941
    %v974 = vadd.f32 %v907, %v942
    %v975 = vadd.f32 %v908, %v943
    %v976 = vadd.f32 %v909, %v944
    %v977 = vadd.f32 %v910, %v945
    %v978 = vadd.f32 %v911, %v946
    %v979 = vadd.f32 %v912, %v947
    %v980 = vadd.f32 %v913, %v948
    %v981 = vadd.f32 %v914, %v949
    %v982 = vadd.f32 %v915, %v950
    %v984 = vperm.slane %v195, 0
    %v986 = vmul.f32 %v467, %v984
    %v987 = vmul.f32 %v471, %v984
    %v988 = vmul.f32 %v475, %v984
    %v989 = vmul.f32 %v479, %v984
    %v990 = vmul.f32 %v483, %v984
    %v991 = vmul.f32 %v487, %v984
    %v992 = vmul.f32 %v491, %v984
    %v993 = vmul.f32 %v495, %v984
    %v994 = vmul.f32 %v499, %v984
    %v995 = vmul.f32 %v503, %v984
    %v996 = vmul.f32 %v507, %v984
    %v997 = vmul.f32 %v511, %v984
    %v998 = vmul.f32 %v515, %v984
    %v999 = vmul.f32 %v519, %v984
    %v1000 = vmul.f32 %v523, %v984
    %v1001 = vmul.f32 %v463, %v984
    %v1002 = vmul.f32 %v531, %v984
    %v1003 = vmul.f32 %v535, %v984
    %v1004 = vmul.f32 %v539, %v984
    %v1005 = vmul.f32 %v543, %v984
    %v1006 = vmul.f32 %v547, %v984
    %v1007 = vmul.f32 %v551, %v984
    %v1008 = vmul.f32 %v555, %v984
    %v1009 = vmul.f32 %v559, %v984
    %v1010 = vmul.f32 %v563, %v984
    %v1011 = vmul.f32 %v567, %v984
    %v1012 = vmul.f32 %v571, %v984
    %v1013 = vmul.f32 %v575, %v984
    %v1014 = vmul.f32 %v579, %v984
    %v1015 = vmul.f32 %v583, %v984
    %v1016 = vmul.f32 %v587, %v984
    %v1017 = vmul.f32 %v527, %v984
    %v1018 = vadd.f32 %v951, %v986
    %v1019 = vadd.f32 %v952, %v987
    %v1020 = vadd.f32 %v953, %v988
    %v1021 = vadd.f32 %v954, %v989
    %v1022 = vadd.f32 %v955, %v990
    %v1023 = vadd.f32 %v956, %v991
    %v1024 = vadd.f32 %v957, %v992
    %v1025 = vadd.f32 %v958, %v993
    %v1026 = vadd.f32 %v959, %v994
    %v1027 = vadd.f32 %v960, %v995
    %v1028 = vadd.f32 %v961, %v996
    %v1029 = vadd.f32 %v962, %v997
    %v1030 = vadd.f32 %v963, %v998
    %v1031 = vadd.f32 %v964, %v999
    %v1032 = vadd.f32 %v965, %v1000
    %v1033 = vadd.f32 %v966, %v1001
    %v1034 = vadd.f32 %v967, %v1002
    %v1035 = vadd.f32 %v968, %v1003
    %v1036 = vadd.f32 %v969, %v1004
    %v1037 = vadd.f32 %v970, %v1005
    %v1038 = vadd.f32 %v971, %v1006
    %v1039 = vadd.f32 %v972, %v1007
    %v1040 = vadd.f32 %v973, %v1008
    %v1041 = vadd.f32 %v974, %v1009
    %v1042 = vadd.f32 %v975, %v1010
    %v1043 = vadd.f32 %v976, %v1011
    %v1044 = vadd.f32 %v977, %v1012
    %v1045 = vadd.f32 %v978, %v1013
    %v1046 = vadd.f32 %v979, %v1014
    %v1047 = vadd.f32 %v980, %v1015
    %v1048 = vadd.f32 %v981, %v1016
    %v1049 = vadd.f32 %v982, %v1017
    %v1051 = vperm.slane %v196, 0
    %v1053 = vmul.f32 %v727, %v1051
    %v1054 = vmul.f32 %v731, %v1051
    %v1055 = vmul.f32 %v735, %v1051
    %v1056 = vmul.f32 %v739, %v1051
    %v1057 = vmul.f32 %v743, %v1051
    %v1058 = vmul.f32 %v747, %v1051
    %v1059 = vmul.f32 %v751, %v1051
    %v1060 = vmul.f32 %v755, %v1051
    %v1061 = vmul.f32 %v759, %v1051
    %v1062 = vmul.f32 %v763, %v1051
    %v1063 = vmul.f32 %v767, %v1051
    %v1064 = vmul.f32 %v771, %v1051
    %v1065 = vmul.f32 %v775, %v1051
    %v1066 = vmul.f32 %v779, %v1051
    %v1067 = vmul.f32 %v783, %v1051
    %v1068 = vmul.f32 %v723, %v1051
    %v1069 = vmul.f32 %v791, %v1051
    %v1070 = vmul.f32 %v795, %v1051
    %v1071 = vmul.f32 %v799, %v1051
    %v1072 = vmul.f32 %v803, %v1051
    %v1073 = vmul.f32 %v807, %v1051
    %v1074 = vmul.f32 %v811, %v1051
    %v1075 = vmul.f32 %v815, %v1051
    %v1076 = vmul.f32 %v819, %v1051
    %v1077 = vmul.f32 %v823, %v1051
    %v1078 = vmul.f32 %v827, %v1051
    %v1079 = vmul.f32 %v831, %v1051
    %v1080 = vmul.f32 %v835, %v1051
    %v1081 = vmul.f32 %v839, %v1051
    %v1082 = vmul.f32 %v843, %v1051
    %v1083 = vmul.f32 %v847, %v1051
    %v1084 = vmul.f32 %v787, %v1051
    %v1085 = vadd.f32 %v1018, %v1053
    %v1086 = vadd.f32 %v1019, %v1054
    %v1087 = vadd.f32 %v1020, %v1055
    %v1088 = vadd.f32 %v1021, %v1056
    %v1089 = vadd.f32 %v1022, %v1057
    %v1090 = vadd.f32 %v1023, %v1058
    %v1091 = vadd.f32 %v1024, %v1059
    %v1092 = vadd.f32 %v1025, %v1060
    %v1093 = vadd.f32 %v1026, %v1061
    %v1094 = vadd.f32 %v1027, %v1062
    %v1095 = vadd.f32 %v1028, %v1063
    %v1096 = vadd.f32 %v1029, %v1064
    %v1097 = vadd.f32 %v1030, %v1065
    %v1098 = vadd.f32 %v1031, %v1066
    %v1099 = vadd.f32 %v1032, %v1067
    %v1100 = vadd.f32 %v1033, %v1068
    %v1101 = vadd.f32 %v1034, %v1069
    %v1102 = vadd.f32 %v1035, %v1070
    %v1103 = vadd.f32 %v1036, %v1071
    %v1104 = vadd.f32 %v1037, %v1072
    %v1105 = vadd.f32 %v1038, %v1073
    %v1106 = vadd.f32 %v1039, %v1074
    %v1107 = vadd.f32 %v1040, %v1075
    %v1108 = vadd.f32 %v1041, %v1076
    %v1109 = vadd.f32 %v1042, %v1077
    %v1110 = vadd.f32 %v1043, %v1078
    %v1111 = vadd.f32 %v1044, %v1079
    %v1112 = vadd.f32 %v1045, %v1080
    %v1113 = vadd.f32 %v1046, %v1081
    %v1114 = vadd.f32 %v1047, %v1082
    %v1115 = vadd.f32 %v1048, %v1083
    %v1116 = vadd.f32 %v1049, %v1084
    %v1118 = vperm.slane %v197, 0
    %v1120 = vmul.f32 %v308, %v1118
    %v1121 = vmul.f32 %v312, %v1118
    %v1122 = vmul.f32 %v316, %v1118
    %v1123 = vmul.f32 %v320, %v1118
    %v1124 = vmul.f32 %v324, %v1118
    %v1125 = vmul.f32 %v328, %v1118
    %v1126 = vmul.f32 %v332, %v1118
    %v1127 = vmul.f32 %v336, %v1118
    %v1128 = vmul.f32 %v340, %v1118
    %v1129 = vmul.f32 %v344, %v1118
    %v1130 = vmul.f32 %v348, %v1118
    %v1131 = vmul.f32 %v352, %v1118
    %v1132 = vmul.f32 %v356, %v1118
    %v1133 = vmul.f32 %v360, %v1118
    %v1134 = vmul.f32 %v300, %v1118
    %v1135 = vmul.f32 %v304, %v1118
    %v1136 = vmul.f32 %v372, %v1118
    %v1137 = vmul.f32 %v376, %v1118
    %v1138 = vmul.f32 %v380, %v1118
    %v1139 = vmul.f32 %v384, %v1118
    %v1140 = vmul.f32 %v388, %v1118
    %v1141 = vmul.f32 %v392, %v1118
    %v1142 = vmul.f32 %v396, %v1118
    %v1143 = vmul.f32 %v400, %v1118
    %v1144 = vmul.f32 %v404, %v1118
    %v1145 = vmul.f32 %v408, %v1118
    %v1146 = vmul.f32 %v412, %v1118
    %v1147 = vmul.f32 %v416, %v1118
    %v1148 = vmul.f32 %v420, %v1118
    %v1149 = vmul.f32 %v424, %v1118
    %v1150 = vmul.f32 %v364, %v1118
    %v1151 = vmul.f32 %v368, %v1118
    %v1152 = vadd.f32 %v1085, %v1120
    %v1153 = vadd.f32 %v1086, %v1121
    %v1154 = vadd.f32 %v1087, %v1122
    %v1155 = vadd.f32 %v1088, %v1123
    %v1156 = vadd.f32 %v1089, %v1124
    %v1157 = vadd.f32 %v1090, %v1125
    %v1158 = vadd.f32 %v1091, %v1126
    %v1159 = vadd.f32 %v1092, %v1127
    %v1160 = vadd.f32 %v1093, %v1128
    %v1161 = vadd.f32 %v1094, %v1129
    %v1162 = vadd.f32 %v1095, %v1130
    %v1163 = vadd.f32 %v1096, %v1131
    %v1164 = vadd.f32 %v1097, %v1132
    %v1165 = vadd.f32 %v1098, %v1133
    %v1166 = vadd.f32 %v1099, %v1134
    %v1167 = vadd.f32 %v1100, %v1135
    %v1168 = vadd.f32 %v1101, %v1136
    %v1169 = vadd.f32 %v1102, %v1137
    %v1170 = vadd.f32 %v1103, %v1138
    %v1171 = vadd.f32 %v1104, %v1139
    %v1172 = vadd.f32 %v1105, %v1140
    %v1173 = vadd.f32 %v1106, %v1141
    %v1174 = vadd.f32 %v1107, %v1142
    %v1175 = vadd.f32 %v1108, %v1143
    %v1176 = vadd.f32 %v1109, %v1144
    %v1177 = vadd.f32 %v1110, %v1145
    %v1178 = vadd.f32 %v1111, %v1146
    %v1179 = vadd.f32 %v1112, %v1147
    %v1180 = vadd.f32 %v1113, %v1148
    %v1181 = vadd.f32 %v1114, %v1149
    %v1182 = vadd.f32 %v1115, %v1150
    %v1183 = vadd.f32 %v1116, %v1151
    %v1185 = vperm.slane %v198, 0
    %v1187 = vmul.f32 %v471, %v1185
    %v1188 = vmul.f32 %v475, %v1185
    %v1189 = vmul.f32 %v479, %v1185
    %v1190 = vmul.f32 %v483, %v1185
    %v1191 = vmul.f32 %v487, %v1185
    %v1192 = vmul.f32 %v491, %v1185
    %v1193 = vmul.f32 %v495, %v1185
    %v1194 = vmul.f32 %v499, %v1185
    %v1195 = vmul.f32 %v503, %v1185
    %v1196 = vmul.f32 %v507, %v1185
    %v1197 = vmul.f32 %v511, %v1185
    %v1198 = vmul.f32 %v515, %v1185
    %v1199 = vmul.f32 %v519, %v1185
    %v1200 = vmul.f32 %v523, %v1185
    %v1201 = vmul.f32 %v463, %v1185
    %v1202 = vmul.f32 %v467, %v1185
    %v1203 = vmul.f32 %v535, %v1185
    %v1204 = vmul.f32 %v539, %v1185
    %v1205 = vmul.f32 %v543, %v1185
    %v1206 = vmul.f32 %v547, %v1185
    %v1207 = vmul.f32 %v551, %v1185
    %v1208 = vmul.f32 %v555, %v1185
    %v1209 = vmul.f32 %v559, %v1185
    %v1210 = vmul.f32 %v563, %v1185
    %v1211 = vmul.f32 %v567, %v1185
    %v1212 = vmul.f32 %v571, %v1185
    %v1213 = vmul.f32 %v575, %v1185
    %v1214 = vmul.f32 %v579, %v1185
    %v1215 = vmul.f32 %v583, %v1185
    %v1216 = vmul.f32 %v587, %v1185
    %v1217 = vmul.f32 %v527, %v1185
    %v1218 = vmul.f32 %v531, %v1185
    %v1219 = vadd.f32 %v1152, %v1187
    %v1220 = vadd.f32 %v1153, %v1188
    %v1221 = vadd.f32 %v1154, %v1189
    %v1222 = vadd.f32 %v1155, %v1190
    %v1223 = vadd.f32 %v1156, %v1191
    %v1224 = vadd.f32 %v1157, %v1192
    %v1225 = vadd.f32 %v1158, %v1193
    %v1226 = vadd.f32 %v1159, %v1194
    %v1227 = vadd.f32 %v1160, %v1195
    %v1228 = vadd.f32 %v1161, %v1196
    %v1229 = vadd.f32 %v1162, %v1197
    %v1230 = vadd.f32 %v1163, %v1198
    %v1231 = vadd.f32 %v1164, %v1199
    %v1232 = vadd.f32 %v1165, %v1200
    %v1233 = vadd.f32 %v1166, %v1201
    %v1234 = vadd.f32 %v1167, %v1202
    %v1235 = vadd.f32 %v1168, %v1203
    %v1236 = vadd.f32 %v1169, %v1204
    %v1237 = vadd.f32 %v1170, %v1205
    %v1238 = vadd.f32 %v1171, %v1206
    %v1239 = vadd.f32 %v1172, %v1207
    %v1240 = vadd.f32 %v1173, %v1208
    %v1241 = vadd.f32 %v1174, %v1209
    %v1242 = vadd.f32 %v1175, %v1210
    %v1243 = vadd.f32 %v1176, %v1211
    %v1244 = vadd.f32 %v1177, %v1212
    %v1245 = vadd.f32 %v1178, %v1213
    %v1246 = vadd.f32 %v1179, %v1214
    %v1247 = vadd.f32 %v1180, %v1215
    %v1248 = vadd.f32 %v1181, %v1216
    %v1249 = vadd.f32 %v1182, %v1217
    %v1250 = vadd.f32 %v1183, %v1218
    %v1252 = vperm.slane %v199, 0
    %v1254 = vmul.f32 %v731, %v1252
    %v1255 = vmul.f32 %v735, %v1252
    %v1256 = vmul.f32 %v739, %v1252
    %v1257 = vmul.f32 %v743, %v1252
    %v1258 = vmul.f32 %v747, %v1252
    %v1259 = vmul.f32 %v751, %v1252
    %v1260 = vmul.f32 %v755, %v1252
    %v1261 = vmul.f32 %v759, %v1252
    %v1262 = vmul.f32 %v763, %v1252
    %v1263 = vmul.f32 %v767, %v1252
    %v1264 = vmul.f32 %v771, %v1252
    %v1265 = vmul.f32 %v775, %v1252
    %v1266 = vmul.f32 %v779, %v1252
    %v1267 = vmul.f32 %v783, %v1252
    %v1268 = vmul.f32 %v723, %v1252
    %v1269 = vmul.f32 %v727, %v1252
    %v1270 = vmul.f32 %v795, %v1252
    %v1271 = vmul.f32 %v799, %v1252
    %v1272 = vmul.f32 %v803, %v1252
    %v1273 = vmul.f32 %v807, %v1252
    %v1274 = vmul.f32 %v811, %v1252
    %v1275 = vmul.f32 %v815, %v1252
    %v1276 = vmul.f32 %v819, %v1252
    %v1277 = vmul.f32 %v823, %v1252
    %v1278 = vmul.f32 %v827, %v1252
    %v1279 = vmul.f32 %v831, %v1252
    %v1280 = vmul.f32 %v835, %v1252
    %v1281 = vmul.f32 %v839, %v1252
    %v1282 = vmul.f32 %v843, %v1252
    %v1283 = vmul.f32 %v847, %v1252
    %v1284 = vmul.f32 %v787, %v1252
    %v1285 = vmul.f32 %v791, %v1252
    %v1286 = vadd.f32 %v1219, %v1254
    %v1287 = vadd.f32 %v1220, %v1255
    %v1288 = vadd.f32 %v1221, %v1256
    %v1289 = vadd.f32 %v1222, %v1257
    %v1290 = vadd.f32 %v1223, %v1258
    %v1291 = vadd.f32 %v1224, %v1259
    %v1292 = vadd.f32 %v1225, %v1260
    %v1293 = vadd.f32 %v1226, %v1261
    %v1294 = vadd.f32 %v1227, %v1262
    %v1295 = vadd.f32 %v1228, %v1263
    %v1296 = vadd.f32 %v1229, %v1264
    %v1297 = vadd.f32 %v1230, %v1265
    %v1298 = vadd.f32 %v1231, %v1266
    %v1299 = vadd.f32 %v1232, %v1267
    %v1300 = vadd.f32 %v1233, %v1268
    %v1301 = vadd.f32 %v1234, %v1269
    %v1302 = vadd.f32 %v1235, %v1270
    %v1303 = vadd.f32 %v1236, %v1271
    %v1304 = vadd.f32 %v1237, %v1272
    %v1305 = vadd.f32 %v1238, %v1273
    %v1306 = vadd.f32 %v1239, %v1274
    %v1307 = vadd.f32 %v1240, %v1275
    %v1308 = vadd.f32 %v1241, %v1276
    %v1309 = vadd.f32 %v1242, %v1277
    %v1310 = vadd.f32 %v1243, %v1278
    %v1311 = vadd.f32 %v1244, %v1279
    %v1312 = vadd.f32 %v1245, %v1280
    %v1313 = vadd.f32 %v1246, %v1281
    %v1314 = vadd.f32 %v1247, %v1282
    %v1315 = vadd.f32 %v1248, %v1283
    %v1316 = vadd.f32 %v1249, %v1284
    %v1317 = vadd.f32 %v1250, %v1285
    %v1318 = vperm.slane %v200, 0
    %v1319 = vadd.f32 %v1286, %v1318
    %v1320 = vadd.f32 %v1287, %v1318
    %v1321 = vadd.f32 %v1288, %v1318
    %v1322 = vadd.f32 %v1289, %v1318
    %v1323 = vadd.f32 %v1290, %v1318
    %v1324 = vadd.f32 %v1291, %v1318
    %v1325 = vadd.f32 %v1292, %v1318
    %v1326 = vadd.f32 %v1293, %v1318
    %v1327 = vadd.f32 %v1294, %v1318
    %v1328 = vadd.f32 %v1295, %v1318
    %v1329 = vadd.f32 %v1296, %v1318
    %v1330 = vadd.f32 %v1297, %v1318
    %v1331 = vadd.f32 %v1298, %v1318
    %v1332 = vadd.f32 %v1299, %v1318
    %v1333 = vadd.f32 %v1300, %v1318
    %v1334 = vadd.f32 %v1301, %v1318
    %v1335 = vadd.f32 %v1302, %v1318
    %v1336 = vadd.f32 %v1303, %v1318
    %v1337 = vadd.f32 %v1304, %v1318
    %v1338 = vadd.f32 %v1305, %v1318
    %v1339 = vadd.f32 %v1306, %v1318
    %v1340 = vadd.f32 %v1307, %v1318
    %v1341 = vadd.f32 %v1308, %v1318
    %v1342 = vadd.f32 %v1309, %v1318
    %v1343 = vadd.f32 %v1310, %v1318
    %v1344 = vadd.f32 %v1311, %v1318
    %v1345 = vadd.f32 %v1312, %v1318
    %v1346 = vadd.f32 %v1313, %v1318
    %v1347 = vadd.f32 %v1314, %v1318
    %v1348 = vadd.f32 %v1315, %v1318
    %v1349 = vadd.f32 %v1316, %v1318
    %v1350 = vadd.f32 %v1317, %v1318
    %v1351 = vmax.f32 %v1319, 0.0
    %v1352 = vmax.f32 %v1320, 0.0
    %v1353 = vmax.f32 %v1321, 0.0
    %v1354 = vmax.f32 %v1322, 0.0
    %v1355 = vmax.f32 %v1323, 0.0
    %v1356 = vmax.f32 %v1324, 0.0
    %v1357 = vmax.f32 %v1325, 0.0
    %v1358 = vmax.f32 %v1326, 0.0
    %v1359 = vmax.f32 %v1327, 0.0
    %v1360 = vmax.f32 %v1328, 0.0
    %v1361 = vmax.f32 %v1329, 0.0
    %v1362 = vmax.f32 %v1330, 0.0
    %v1363 = vmax.f32 %v1331, 0.0
    %v1364 = vmax.f32 %v1332, 0.0
    %v1365 = vmax.f32 %v1333, 0.0
    %v1366 = vmax.f32 %v1334, 0.0
    %v1367 = vmax.f32 %v1335, 0.0
    %v1368 = vmax.f32 %v1336, 0.0
    %v1369 = vmax.f32 %v1337, 0.0
    %v1370 = vmax.f32 %v1338, 0.0
    %v1371 = vmax.f32 %v1339, 0.0
    %v1372 = vmax.f32 %v1340, 0.0
    %v1373 = vmax.f32 %v1341, 0.0
    %v1374 = vmax.f32 %v1342, 0.0
    %v1375 = vmax.f32 %v1343, 0.0
    %v1376 = vmax.f32 %v1344, 0.0
    %v1377 = vmax.f32 %v1345, 0.0
    %v1378 = vmax.f32 %v1346, 0.0
    %v1379 = vmax.f32 %v1347, 0.0
    %v1380 = vmax.f32 %v1348, 0.0
    %v1381 = vmax.f32 %v1349, 0.0
    %v1382 = vmax.f32 %v1350, 0.0
    %v1383 = vadd.f32 %v1351, %v1352
    %v1384 = vadd.f32 %v1353, %v1354
    %v1385 = vadd.f32 %v1355, %v1356
    %v1386 = vadd.f32 %v1357, %v1358
    %v1387 = vadd.f32 %v1359, %v1360
    %v1388 = vadd.f32 %v1361, %v1362
    %v1389 = vadd.f32 %v1363, %v1364
    %v1390 = vadd.f32 %v1365, %v1366
    %v1391 = vadd.f32 %v1367, %v1368
    %v1392 = vadd.f32 %v1369, %v1370
    %v1393 = vadd.f32 %v1371, %v1372
    %v1394 = vadd.f32 %v1373, %v1374
    %v1395 = vadd.f32 %v1375, %v1376
    %v1396 = vadd.f32 %v1377, %v1378
    %v1397 = vadd.f32 %v1379, %v1380
    %v1398 = vadd.f32 %v1381, %v1382
    %v1399 = vmul.f32 %v1383, 0.5
    %v1400 = vmul.f32 %v1384, 0.5
    %v1401 = vmul.f32 %v1385, 0.5
    %v1402 = vmul.f32 %v1386, 0.5
    %v1403 = vmul.f32 %v1387, 0.5
    %v1404 = vmul.f32 %v1388, 0.5
    %v1405 = vmul.f32 %v1389, 0.5
    %v1406 = vmul.f32 %v1390, 0.5
    %v1407 = vmul.f32 %v1391, 0.5
    %v1408 = vmul.f32 %v1392, 0.5
    %v1409 = vmul.f32 %v1393, 0.5
    %v1410 = vmul.f32 %v1394, 0.5
    %v1411 = vmul.f32 %v1395, 0.5
    %v1412 = vmul.f32 %v1396, 0.5
    %v1413 = vmul.f32 %v1397, 0.5
    %v1414 = vmul.f32 %v1398, 0.5
    %vm1415 = vcmask 31744
    %v1416 = vsel %vm1415, %v1399, 0.0
    %v1417 = vsel %vm1415, %v1400, 0.0
    %v1418 = vadd.f32 %v1416, %v1417
    %v1419 = vsel %vm1415, %v1401, 0.0
    %v1420 = vadd.f32 %v1418, %v1419
    %v1421 = vsel %vm1415, %v1402, 0.0
    %v1422 = vadd.f32 %v1420, %v1421
    %v1423 = vsel %vm1415, %v1403, 0.0
    %v1424 = vadd.f32 %v1422, %v1423
    %v1425 = vsel %vm1415, %v1404, 0.0
    %v1426 = vadd.f32 %v1424, %v1425
    %v1427 = vsel %vm1415, %v1405, 0.0
    %v1428 = vadd.f32 %v1426, %v1427
    %v1429 = vsel %vm1415, %v1406, 0.0
    %v1430 = vadd.f32 %v1428, %v1429
    %v1431 = vsel %vm1415, %v1407, 0.0
    %v1432 = vadd.f32 %v1430, %v1431
    %v1433 = vsel %vm1415, %v1408, 0.0
    %v1434 = vadd.f32 %v1432, %v1433
    %v1435 = vsel %vm1415, %v1409, 0.0
    %v1436 = vadd.f32 %v1434, %v1435
    %v1437 = vsel %vm1415, %v1410, 0.0
    %v1438 = vadd.f32 %v1436, %v1437
    %v1439 = vsel %vm1415, %v1411, 0.0
    %v1440 = vadd.f32 %v1438, %v1439
    %v1441 = vsel %vm1415, %v1412, 0.0
    %v1442 = vadd.f32 %v1440, %v1441
    %v1443 = vsel %vm1415, %v1413, 0.0
    %v1444 = vadd.f32 %v1442, %v1443
    %v1445 = vsel %vm1415, %v1414, 0.0
    %v1446 = vadd.f32 %v1444, %v1445
    %v1447 = vrot.slane %v1446, 4
    %v1448 = vadd.f32 %v1446, %v1447
    %v1449 = vrot.slane %v1448, 2
    %v1450 = vadd.f32 %v1448, %v1449
    %v1451 = vrot.slane %v1450, 1
    %v1452 = vadd.f32 %v1450, %v1451
    %v1453 = vrcp.pop 128.0
    %v1454 = vmul.f32 128.0, %v1453
    %v1455 = vsub.f32 1.0, %v1454
    %v1456 = vmul.f32 %v1453, %v1455
    %v1457 = vadd.f32 %v1453, %v1456
    %vm1458 = vweird.f32 %v1453
    %v1459 = vsel %vm1458, %v1453, %v1457
    %v1460 = vmul.f32 %v1452, %v1459
    %v1461 = vsub.f32 %v1399, %v1460
    %v1462 = vsub.f32 %v1400, %v1460
    %v1463 = vsub.f32 %v1401, %v1460
    %v1464 = vsub.f32 %v1402, %v1460
    %v1465 = vsub.f32 %v1403, %v1460
    %v1466 = vsub.f32 %v1404, %v1460
    %v1467 = vsub.f32 %v1405, %v1460
    %v1468 = vsub.f32 %v1406, %v1460
    %v1469 = vsub.f32 %v1407, %v1460
    %v1470 = vsub.f32 %v1408, %v1460
    %v1471 = vsub.f32 %v1409, %v1460
    %v1472 = vsub.f32 %v1410, %v1460
    %v1473 = vsub.f32 %v1411, %v1460
    %v1474 = vsub.f32 %v1412, %v1460
    %v1475 = vsub.f32 %v1413, %v1460
    %v1476 = vsub.f32 %v1414, %v1460
    %v1477 = vmul.f32 %v1461, %v1461
    %v1478 = vmul.f32 %v1462, %v1462
    %v1479 = vmul.f32 %v1463, %v1463
    %v1480 = vmul.f32 %v1464, %v1464
    %v1481 = vmul.f32 %v1465, %v1465
    %v1482 = vmul.f32 %v1466, %v1466
    %v1483 = vmul.f32 %v1467, %v1467
    %v1484 = vmul.f32 %v1468, %v1468
    %v1485 = vmul.f32 %v1469, %v1469
    %v1486 = vmul.f32 %v1470, %v1470
    %v1487 = vmul.f32 %v1471, %v1471
    %v1488 = vmul.f32 %v1472, %v1472
    %v1489 = vmul.f32 %v1473, %v1473
    %v1490 = vmul.f32 %v1474, %v1474
    %v1491 = vmul.f32 %v1475, %v1475
    %v1492 = vmul.f32 %v1476, %v1476
    %v1493 = vsel %vm1415, %v1477, 0.0
    %v1494 = vsel %vm1415, %v1478, 0.0
    %v1495 = vadd.f32 %v1493, %v1494
    %v1496 = vsel %vm1415, %v1479, 0.0
    %v1497 = vadd.f32 %v1495, %v1496
    %v1498 = vsel %vm1415, %v1480, 0.0
    %v1499 = vadd.f32 %v1497, %v1498
    %v1500 = vsel %vm1415, %v1481, 0.0
    %v1501 = vadd.f32 %v1499, %v1500
    %v1502 = vsel %vm1415, %v1482, 0.0
    %v1503 = vadd.f32 %v1501, %v1502
    %v1504 = vsel %vm1415, %v1483, 0.0
    %v1505 = vadd.f32 %v1503, %v1504
    %v1506 = vsel %vm1415, %v1484, 0.0
    %v1507 = vadd.f32 %v1505, %v1506
    %v1508 = vsel %vm1415, %v1485, 0.0
    %v1509 = vadd.f32 %v1507, %v1508
    %v1510 = vsel %vm1415, %v1486, 0.0
    %v1511 = vadd.f32 %v1509, %v1510
    %v1512 = vsel %vm1415, %v1487, 0.0
    %v1513 = vadd.f32 %v1511, %v1512
    %v1514 = vsel %vm1415, %v1488, 0.0
    %v1515 = vadd.f32 %v1513, %v1514
    %v1516 = vsel %vm1415, %v1489, 0.0
    %v1517 = vadd.f32 %v1515, %v1516
    %v1518 = vsel %vm1415, %v1490, 0.0
    %v1519 = vadd.f32 %v1517, %v1518
    %v1520 = vsel %vm1415, %v1491, 0.0
    %v1521 = vadd.f32 %v1519, %v1520
    %v1522 = vsel %vm1415, %v1492, 0.0
    %v1523 = vadd.f32 %v1521, %v1522
    %v1524 = vrot.slane %v1523, 4
    %v1525 = vadd.f32 %v1523, %v1524
    %v1526 = vrot.slane %v1525, 2
    %v1527 = vadd.f32 %v1525, %v1526
    %v1528 = vrot.slane %v1527, 1
    %v1529 = vadd.f32 %v1527, %v1528
    %v1530 = vmul.f32 %v1529, %v1459
    %v1531 = vadd.f32 %v1530, 1e-05
    %v1532 = vrsqrt.pop %v1531
    %v1533 = vmul.f32 %v1532, %v1531
    %v1534 = vmul.f32 %v1533, %v1532
    %v1535 = vmul.f32 0.5, %v1534
    %v1536 = vsub.f32 1.5, %v1535
    %v1537 = vmul.f32 %v1532, %v1536
    %vm1538 = vweird.f32 %v1531
    %vm1539 = vweird.f32 %v1532
    %vm1540 = vmor %vm1538, %vm1539
    %v1541 = vsel %vm1540, %v1532, %v1537
    %v1542 = vmul.f32 %v1461, %v1541
    %v1543 = vmul.f32 %v1462, %v1541
    %v1544 = vmul.f32 %v1463, %v1541
    %v1545 = vmul.f32 %v1464, %v1541
    %v1546 = vmul.f32 %v1465, %v1541
    %v1547 = vmul.f32 %v1466, %v1541
    %v1548 = vmul.f32 %v1467, %v1541
    %v1549 = vmul.f32 %v1468, %v1541
    %v1550 = vmul.f32 %v1469, %v1541
    %v1551 = vmul.f32 %v1470, %v1541
    %v1552 = vmul.f32 %v1471, %v1541
    %v1553 = vmul.f32 %v1472, %v1541
    %v1554 = vmul.f32 %v1473, %v1541
    %v1555 = vmul.f32 %v1474, %v1541
    %v1556 = vmul.f32 %v1475, %v1541
    %v1557 = vmul.f32 %v1476, %v1541
    %v1558 = vperm.slane %v200, 1
    %v1559 = vmul.f32 %v1542, %v1558
    %v1560 = vmul.f32 %v1543, %v1558
    %v1561 = vmul.f32 %v1544, %v1558
    %v1562 = vmul.f32 %v1545, %v1558
    %v1563 = vmul.f32 %v1546, %v1558
    %v1564 = vmul.f32 %v1547, %v1558
    %v1565 = vmul.f32 %v1548, %v1558
    %v1566 = vmul.f32 %v1549, %v1558
    %v1567 = vmul.f32 %v1550, %v1558
    %v1568 = vmul.f32 %v1551, %v1558
    %v1569 = vmul.f32 %v1552, %v1558
    %v1570 = vmul.f32 %v1553, %v1558
    %v1571 = vmul.f32 %v1554, %v1558
    %v1572 = vmul.f32 %v1555, %v1558
    %v1573 = vmul.f32 %v1556, %v1558
    %v1574 = vmul.f32 %v1557, %v1558
    %v1575 = vperm.slane %v200, 2
    %v1576 = vadd.f32 %v1559, %v1575
    %v1577 = vadd.f32 %v1560, %v1575
    %v1578 = vadd.f32 %v1561, %v1575
    %v1579 = vadd.f32 %v1562, %v1575
    %v1580 = vadd.f32 %v1563, %v1575
    %v1581 = vadd.f32 %v1564, %v1575
    %v1582 = vadd.f32 %v1565, %v1575
    %v1583 = vadd.f32 %v1566, %v1575
    %v1584 = vadd.f32 %v1567, %v1575
    %v1585 = vadd.f32 %v1568, %v1575
    %v1586 = vadd.f32 %v1569, %v1575
    %v1587 = vadd.f32 %v1570, %v1575
    %v1588 = vadd.f32 %v1571, %v1575
    %v1589 = vadd.f32 %v1572, %v1575
    %v1590 = vadd.f32 %v1573, %v1575
    %v1591 = vadd.f32 %v1574, %v1575
    %v1592 = vld [vmem:[%s3] sm:$0xf]
    %v1593 = vld [vmem:[%s3 + $0x4] sm:$0xf]
    %v1594 = vld [vmem:[%s3 + $0x8] sm:$0xf]
    %v1595 = vld [vmem:[%s3 + $0xc] sm:$0xf]
    %v1596 = vld [vmem:[%s3 + $0x10] sm:$0xf]
    %v1597 = vld [vmem:[%s3 + $0x14] sm:$0xf]
    %v1598 = vld [vmem:[%s3 + $0x18] sm:$0xf]
    %v1599 = vld [vmem:[%s3 + $0x1c] sm:$0xf]
    %v1600 = vld [vmem:[%s3 + $0x20] sm:$0xf]
    %v1601 = vld [vmem:[%s4] sm:$0x7]
    %v1618 = vrot.slane %v1583, 7
    %v1619 = vsel %vm233, %v1618, %v1618
    %v1620 = vrot.slane %v1576, 7
    %v1621 = vsel %vm233, %v1620, %v1620
    %v1622 = vrot.slane %v1577, 7
    %v1623 = vsel %vm233, %v1622, %v1622
    %v1624 = vrot.slane %v1578, 7
    %v1625 = vsel %vm233, %v1624, %v1624
    %v1626 = vrot.slane %v1579, 7
    %v1627 = vsel %vm233, %v1626, %v1626
    %v1628 = vrot.slane %v1580, 7
    %v1629 = vsel %vm233, %v1628, %v1628
    %v1630 = vrot.slane %v1581, 7
    %v1631 = vsel %vm233, %v1630, %v1630
    %v1632 = vrot.slane %v1582, 7
    %v1633 = vsel %vm233, %v1632, %v1632
    %v1634 = vrot.slane %v1591, 7
    %v1635 = vsel %vm233, %v1634, %v1634
    %v1636 = vrot.slane %v1584, 7
    %v1637 = vsel %vm233, %v1636, %v1636
    %v1638 = vrot.slane %v1585, 7
    %v1639 = vsel %vm233, %v1638, %v1638
    %v1640 = vrot.slane %v1586, 7
    %v1641 = vsel %vm233, %v1640, %v1640
    %v1642 = vrot.slane %v1587, 7
    %v1643 = vsel %vm233, %v1642, %v1642
    %v1644 = vrot.slane %v1588, 7
    %v1645 = vsel %vm233, %v1644, %v1644
    %v1646 = vrot.slane %v1589, 7
    %v1647 = vsel %vm233, %v1646, %v1646
    %v1648 = vrot.slane %v1590, 7
    %v1649 = vsel %vm233, %v1648, %v1648
    %v1650 = vsel %vm1415, %v1583, 0
    %v1652 = vsel %vm1415, %v1576, 0
    %v1654 = vsel %vm1415, %v1577, 0
    %v1656 = vsel %vm1415, %v1578, 0
    %v1658 = vsel %vm1415, %v1579, 0
    %v1660 = vsel %vm1415, %v1580, 0
    %v1662 = vsel %vm1415, %v1581, 0
    %v1664 = vsel %vm1415, %v1582, 0
    %v1666 = vsel %vm1415, %v1591, 0
    %v1668 = vsel %vm1415, %v1584, 0
    %v1670 = vsel %vm1415, %v1585, 0
    %v1672 = vsel %vm1415, %v1586, 0
    %v1674 = vsel %vm1415, %v1587, 0
    %v1676 = vsel %vm1415, %v1588, 0
    %v1678 = vsel %vm1415, %v1589, 0
    %v1680 = vsel %vm1415, %v1590, 0
    %vm1682 = vcmask 1043456
    %v1684 = vsel %vm1682, %v1593, 0
    %1686 = vmatpush.msra.mxu0 0.0
    %1687 = vmatpush.msra.mxu0 0.0
    %1688 = vmatpush.msra.mxu0 0.0
    %1689 = vmatpush.msra.mxu0 0.0
    %1690 = vmatpush.msra.mxu0 0.0
    %1691 = vmatpush.msra.mxu0 0.0
    %1692 = vmatpush.msra.mxu0 0.0
    %1693 = vmatpush.msra.mxu0 0.0
    %1694 = vmatpush.msra.mxu0 0.0
    %1695 = vmatpush.msra.mxu0 0.0
    %1696 = vmatpush.msra.mxu0 0.0
    %1697 = vmatpush.msra.mxu0 0.0
    %1698 = vmatpush.msra.mxu0 0.0
    %1699 = vmatpush.msra.mxu0 0.0
    %1700 = vmatpush.msra.mxu0 0.0
    %1701 = vmatpush.msra.mxu0 %v1684
    %1702 = vmatmul.f32.gmra.mxu0 %v1650
    %v1703 = vpop.f32.mrf.mxu0
    %v1704 = vadd.f32 0.0, %v1703
    %1705 = vmatmul.f32.gmra.mxu0 %v1652
    %v1706 = vpop.f32.mrf.mxu0
    %v1707 = vadd.f32 0.0, %v1706
    %1708 = vmatmul.f32.gmra.mxu0 %v1654
    %v1709 = vpop.f32.mrf.mxu0
    %v1710 = vadd.f32 0.0, %v1709
    %1711 = vmatmul.f32.gmra.mxu0 %v1656
    %v1712 = vpop.f32.mrf.mxu0
    %v1713 = vadd.f32 0.0, %v1712
    %1714 = vmatmul.f32.gmra.mxu0 %v1658
    %v1715 = vpop.f32.mrf.mxu0
    %v1716 = vadd.f32 0.0, %v1715
    %1717 = vmatmul.f32.gmra.mxu0 %v1660
    %v1718 = vpop.f32.mrf.mxu0
    %v1719 = vadd.f32 0.0, %v1718
    %1720 = vmatmul.f32.gmra.mxu0 %v1662
    %v1721 = vpop.f32.mrf.mxu0
    %v1722 = vadd.f32 0.0, %v1721
    %1723 = vmatmul.f32.gmra.mxu0 %v1664
    %v1724 = vpop.f32.mrf.mxu0
    %v1725 = vadd.f32 0.0, %v1724
    %1726 = vmatmul.f32.gmra.mxu0 %v1666
    %v1727 = vpop.f32.mrf.mxu0
    %v1728 = vadd.f32 0.0, %v1727
    %1729 = vmatmul.f32.gmra.mxu0 %v1668
    %v1730 = vpop.f32.mrf.mxu0
    %v1731 = vadd.f32 0.0, %v1730
    %1732 = vmatmul.f32.gmra.mxu0 %v1670
    %v1733 = vpop.f32.mrf.mxu0
    %v1734 = vadd.f32 0.0, %v1733
    %1735 = vmatmul.f32.gmra.mxu0 %v1672
    %v1736 = vpop.f32.mrf.mxu0
    %v1737 = vadd.f32 0.0, %v1736
    %1738 = vmatmul.f32.gmra.mxu0 %v1674
    %v1739 = vpop.f32.mrf.mxu0
    %v1740 = vadd.f32 0.0, %v1739
    %1741 = vmatmul.f32.gmra.mxu0 %v1676
    %v1742 = vpop.f32.mrf.mxu0
    %v1743 = vadd.f32 0.0, %v1742
    %1744 = vmatmul.f32.gmra.mxu0 %v1678
    %v1745 = vpop.f32.mrf.mxu0
    %v1746 = vadd.f32 0.0, %v1745
    %1747 = vmatmul.f32.gmra.mxu0 %v1680
    %v1748 = vpop.f32.mrf.mxu0
    %v1749 = vadd.f32 0.0, %v1748
    %1750 = vdwg.mxu0
    %v1751 = vsel %vm1415, %v1619, 0
    %v1753 = vsel %vm1415, %v1621, 0
    %v1755 = vsel %vm1415, %v1623, 0
    %v1757 = vsel %vm1415, %v1625, 0
    %v1759 = vsel %vm1415, %v1627, 0
    %v1761 = vsel %vm1415, %v1629, 0
    %v1763 = vsel %vm1415, %v1631, 0
    %v1765 = vsel %vm1415, %v1633, 0
    %v1767 = vsel %vm1415, %v1635, 0
    %v1769 = vsel %vm1415, %v1637, 0
    %v1771 = vsel %vm1415, %v1639, 0
    %v1773 = vsel %vm1415, %v1641, 0
    %v1775 = vsel %vm1415, %v1643, 0
    %v1777 = vsel %vm1415, %v1645, 0
    %v1779 = vsel %vm1415, %v1647, 0
    %v1781 = vsel %vm1415, %v1649, 0
    %v1784 = vsel %vm1682, %v1592, 0
    %1786 = vmatpush.msra.mxu0 0.0
    %1787 = vmatpush.msra.mxu0 0.0
    %1788 = vmatpush.msra.mxu0 0.0
    %1789 = vmatpush.msra.mxu0 0.0
    %1790 = vmatpush.msra.mxu0 0.0
    %1791 = vmatpush.msra.mxu0 0.0
    %1792 = vmatpush.msra.mxu0 0.0
    %1793 = vmatpush.msra.mxu0 0.0
    %1794 = vmatpush.msra.mxu0 0.0
    %1795 = vmatpush.msra.mxu0 0.0
    %1796 = vmatpush.msra.mxu0 0.0
    %1797 = vmatpush.msra.mxu0 0.0
    %1798 = vmatpush.msra.mxu0 0.0
    %1799 = vmatpush.msra.mxu0 0.0
    %1800 = vmatpush.msra.mxu0 0.0
    %1801 = vmatpush.msra.mxu0 %v1784
    %1802 = vmatmul.f32.gmra.mxu0 %v1751
    %v1803 = vpop.f32.mrf.mxu0
    %v1804 = vadd.f32 %v1704, %v1803
    %1805 = vmatmul.f32.gmra.mxu0 %v1753
    %v1806 = vpop.f32.mrf.mxu0
    %v1807 = vadd.f32 %v1707, %v1806
    %1808 = vmatmul.f32.gmra.mxu0 %v1755
    %v1809 = vpop.f32.mrf.mxu0
    %v1810 = vadd.f32 %v1710, %v1809
    %1811 = vmatmul.f32.gmra.mxu0 %v1757
    %v1812 = vpop.f32.mrf.mxu0
    %v1813 = vadd.f32 %v1713, %v1812
    %1814 = vmatmul.f32.gmra.mxu0 %v1759
    %v1815 = vpop.f32.mrf.mxu0
    %v1816 = vadd.f32 %v1716, %v1815
    %1817 = vmatmul.f32.gmra.mxu0 %v1761
    %v1818 = vpop.f32.mrf.mxu0
    %v1819 = vadd.f32 %v1719, %v1818
    %1820 = vmatmul.f32.gmra.mxu0 %v1763
    %v1821 = vpop.f32.mrf.mxu0
    %v1822 = vadd.f32 %v1722, %v1821
    %1823 = vmatmul.f32.gmra.mxu0 %v1765
    %v1824 = vpop.f32.mrf.mxu0
    %v1825 = vadd.f32 %v1725, %v1824
    %1826 = vmatmul.f32.gmra.mxu0 %v1767
    %v1827 = vpop.f32.mrf.mxu0
    %v1828 = vadd.f32 %v1728, %v1827
    %1829 = vmatmul.f32.gmra.mxu0 %v1769
    %v1830 = vpop.f32.mrf.mxu0
    %v1831 = vadd.f32 %v1731, %v1830
    %1832 = vmatmul.f32.gmra.mxu0 %v1771
    %v1833 = vpop.f32.mrf.mxu0
    %v1834 = vadd.f32 %v1734, %v1833
    %1835 = vmatmul.f32.gmra.mxu0 %v1773
    %v1836 = vpop.f32.mrf.mxu0
    %v1837 = vadd.f32 %v1737, %v1836
    %1838 = vmatmul.f32.gmra.mxu0 %v1775
    %v1839 = vpop.f32.mrf.mxu0
    %v1840 = vadd.f32 %v1740, %v1839
    %1841 = vmatmul.f32.gmra.mxu0 %v1777
    %v1842 = vpop.f32.mrf.mxu0
    %v1843 = vadd.f32 %v1743, %v1842
    %1844 = vmatmul.f32.gmra.mxu0 %v1779
    %v1845 = vpop.f32.mrf.mxu0
    %v1846 = vadd.f32 %v1746, %v1845
    %1847 = vmatmul.f32.gmra.mxu0 %v1781
    %v1848 = vpop.f32.mrf.mxu0
    %v1849 = vadd.f32 %v1749, %v1848
    %1850 = vdwg.mxu0
    %v1851 = vrot.slane %v1583, 1
    %v1852 = vsel %vm656, %v1851, %v1851
    %v1853 = vrot.slane %v1576, 1
    %v1854 = vsel %vm656, %v1853, %v1853
    %v1855 = vrot.slane %v1577, 1
    %v1856 = vsel %vm656, %v1855, %v1855
    %v1857 = vrot.slane %v1578, 1
    %v1858 = vsel %vm656, %v1857, %v1857
    %v1859 = vrot.slane %v1579, 1
    %v1860 = vsel %vm656, %v1859, %v1859
    %v1861 = vrot.slane %v1580, 1
    %v1862 = vsel %vm656, %v1861, %v1861
    %v1863 = vrot.slane %v1581, 1
    %v1864 = vsel %vm656, %v1863, %v1863
    %v1865 = vrot.slane %v1582, 1
    %v1866 = vsel %vm656, %v1865, %v1865
    %v1867 = vrot.slane %v1591, 1
    %v1868 = vsel %vm656, %v1867, %v1867
    %v1869 = vrot.slane %v1584, 1
    %v1870 = vsel %vm656, %v1869, %v1869
    %v1871 = vrot.slane %v1585, 1
    %v1872 = vsel %vm656, %v1871, %v1871
    %v1873 = vrot.slane %v1586, 1
    %v1874 = vsel %vm656, %v1873, %v1873
    %v1875 = vrot.slane %v1587, 1
    %v1876 = vsel %vm656, %v1875, %v1875
    %v1877 = vrot.slane %v1588, 1
    %v1878 = vsel %vm656, %v1877, %v1877
    %v1879 = vrot.slane %v1589, 1
    %v1880 = vsel %vm656, %v1879, %v1879
    %v1881 = vrot.slane %v1590, 1
    %v1882 = vsel %vm656, %v1881, %v1881
    %v1883 = vsel %vm1415, %v1852, 0
    %v1885 = vsel %vm1415, %v1854, 0
    %v1887 = vsel %vm1415, %v1856, 0
    %v1889 = vsel %vm1415, %v1858, 0
    %v1891 = vsel %vm1415, %v1860, 0
    %v1893 = vsel %vm1415, %v1862, 0
    %v1895 = vsel %vm1415, %v1864, 0
    %v1897 = vsel %vm1415, %v1866, 0
    %v1899 = vsel %vm1415, %v1868, 0
    %v1901 = vsel %vm1415, %v1870, 0
    %v1903 = vsel %vm1415, %v1872, 0
    %v1905 = vsel %vm1415, %v1874, 0
    %v1907 = vsel %vm1415, %v1876, 0
    %v1909 = vsel %vm1415, %v1878, 0
    %v1911 = vsel %vm1415, %v1880, 0
    %v1913 = vsel %vm1415, %v1882, 0
    %v1916 = vsel %vm1682, %v1594, 0
    %1918 = vmatpush.msra.mxu0 0.0
    %1919 = vmatpush.msra.mxu0 0.0
    %1920 = vmatpush.msra.mxu0 0.0
    %1921 = vmatpush.msra.mxu0 0.0
    %1922 = vmatpush.msra.mxu0 0.0
    %1923 = vmatpush.msra.mxu0 0.0
    %1924 = vmatpush.msra.mxu0 0.0
    %1925 = vmatpush.msra.mxu0 0.0
    %1926 = vmatpush.msra.mxu0 0.0
    %1927 = vmatpush.msra.mxu0 0.0
    %1928 = vmatpush.msra.mxu0 0.0
    %1929 = vmatpush.msra.mxu0 0.0
    %1930 = vmatpush.msra.mxu0 0.0
    %1931 = vmatpush.msra.mxu0 0.0
    %1932 = vmatpush.msra.mxu0 0.0
    %1933 = vmatpush.msra.mxu0 %v1916
    %1934 = vmatmul.f32.gmra.mxu0 %v1883
    %v1935 = vpop.f32.mrf.mxu0
    %v1936 = vadd.f32 0.0, %v1935
    %1937 = vmatmul.f32.gmra.mxu0 %v1885
    %v1938 = vpop.f32.mrf.mxu0
    %v1939 = vadd.f32 0.0, %v1938
    %1940 = vmatmul.f32.gmra.mxu0 %v1887
    %v1941 = vpop.f32.mrf.mxu0
    %v1942 = vadd.f32 0.0, %v1941
    %1943 = vmatmul.f32.gmra.mxu0 %v1889
    %v1944 = vpop.f32.mrf.mxu0
    %v1945 = vadd.f32 0.0, %v1944
    %1946 = vmatmul.f32.gmra.mxu0 %v1891
    %v1947 = vpop.f32.mrf.mxu0
    %v1948 = vadd.f32 0.0, %v1947
    %1949 = vmatmul.f32.gmra.mxu0 %v1893
    %v1950 = vpop.f32.mrf.mxu0
    %v1951 = vadd.f32 0.0, %v1950
    %1952 = vmatmul.f32.gmra.mxu0 %v1895
    %v1953 = vpop.f32.mrf.mxu0
    %v1954 = vadd.f32 0.0, %v1953
    %1955 = vmatmul.f32.gmra.mxu0 %v1897
    %v1956 = vpop.f32.mrf.mxu0
    %v1957 = vadd.f32 0.0, %v1956
    %1958 = vmatmul.f32.gmra.mxu0 %v1899
    %v1959 = vpop.f32.mrf.mxu0
    %v1960 = vadd.f32 0.0, %v1959
    %1961 = vmatmul.f32.gmra.mxu0 %v1901
    %v1962 = vpop.f32.mrf.mxu0
    %v1963 = vadd.f32 0.0, %v1962
    %1964 = vmatmul.f32.gmra.mxu0 %v1903
    %v1965 = vpop.f32.mrf.mxu0
    %v1966 = vadd.f32 0.0, %v1965
    %1967 = vmatmul.f32.gmra.mxu0 %v1905
    %v1968 = vpop.f32.mrf.mxu0
    %v1969 = vadd.f32 0.0, %v1968
    %1970 = vmatmul.f32.gmra.mxu0 %v1907
    %v1971 = vpop.f32.mrf.mxu0
    %v1972 = vadd.f32 0.0, %v1971
    %1973 = vmatmul.f32.gmra.mxu0 %v1909
    %v1974 = vpop.f32.mrf.mxu0
    %v1975 = vadd.f32 0.0, %v1974
    %1976 = vmatmul.f32.gmra.mxu0 %v1911
    %v1977 = vpop.f32.mrf.mxu0
    %v1978 = vadd.f32 0.0, %v1977
    %1979 = vmatmul.f32.gmra.mxu0 %v1913
    %v1980 = vpop.f32.mrf.mxu0
    %v1981 = vadd.f32 0.0, %v1980
    %1982 = vdwg.mxu0
    %v1983 = vadd.f32 %v1804, %v1936
    %v1984 = vadd.f32 %v1807, %v1939
    %v1985 = vadd.f32 %v1810, %v1942
    %v1986 = vadd.f32 %v1813, %v1945
    %v1987 = vadd.f32 %v1816, %v1948
    %v1988 = vadd.f32 %v1819, %v1951
    %v1989 = vadd.f32 %v1822, %v1954
    %v1990 = vadd.f32 %v1825, %v1957
    %v1991 = vadd.f32 %v1828, %v1960
    %v1992 = vadd.f32 %v1831, %v1963
    %v1993 = vadd.f32 %v1834, %v1966
    %v1994 = vadd.f32 %v1837, %v1969
    %v1995 = vadd.f32 %v1840, %v1972
    %v1996 = vadd.f32 %v1843, %v1975
    %v1997 = vadd.f32 %v1846, %v1978
    %v1998 = vadd.f32 %v1849, %v1981
    %v2000 = vsel %vm1682, %v1595, 0
    %2002 = vmatpush.msra.mxu0 0.0
    %2003 = vmatpush.msra.mxu0 0.0
    %2004 = vmatpush.msra.mxu0 0.0
    %2005 = vmatpush.msra.mxu0 0.0
    %2006 = vmatpush.msra.mxu0 0.0
    %2007 = vmatpush.msra.mxu0 0.0
    %2008 = vmatpush.msra.mxu0 0.0
    %2009 = vmatpush.msra.mxu0 0.0
    %2010 = vmatpush.msra.mxu0 0.0
    %2011 = vmatpush.msra.mxu0 0.0
    %2012 = vmatpush.msra.mxu0 0.0
    %2013 = vmatpush.msra.mxu0 0.0
    %2014 = vmatpush.msra.mxu0 0.0
    %2015 = vmatpush.msra.mxu0 0.0
    %2016 = vmatpush.msra.mxu0 0.0
    %2017 = vmatpush.msra.mxu0 %v2000
    %2018 = vmatmul.f32.gmra.mxu0 %v1753
    %v2019 = vpop.f32.mrf.mxu0
    %v2020 = vadd.f32 0.0, %v2019
    %2021 = vmatmul.f32.gmra.mxu0 %v1755
    %v2022 = vpop.f32.mrf.mxu0
    %v2023 = vadd.f32 0.0, %v2022
    %2024 = vmatmul.f32.gmra.mxu0 %v1757
    %v2025 = vpop.f32.mrf.mxu0
    %v2026 = vadd.f32 0.0, %v2025
    %2027 = vmatmul.f32.gmra.mxu0 %v1759
    %v2028 = vpop.f32.mrf.mxu0
    %v2029 = vadd.f32 0.0, %v2028
    %2030 = vmatmul.f32.gmra.mxu0 %v1761
    %v2031 = vpop.f32.mrf.mxu0
    %v2032 = vadd.f32 0.0, %v2031
    %2033 = vmatmul.f32.gmra.mxu0 %v1763
    %v2034 = vpop.f32.mrf.mxu0
    %v2035 = vadd.f32 0.0, %v2034
    %2036 = vmatmul.f32.gmra.mxu0 %v1765
    %v2037 = vpop.f32.mrf.mxu0
    %v2038 = vadd.f32 0.0, %v2037
    %2039 = vmatmul.f32.gmra.mxu0 %v1751
    %v2040 = vpop.f32.mrf.mxu0
    %v2041 = vadd.f32 0.0, %v2040
    %2042 = vmatmul.f32.gmra.mxu0 %v1769
    %v2043 = vpop.f32.mrf.mxu0
    %v2044 = vadd.f32 0.0, %v2043
    %2045 = vmatmul.f32.gmra.mxu0 %v1771
    %v2046 = vpop.f32.mrf.mxu0
    %v2047 = vadd.f32 0.0, %v2046
    %2048 = vmatmul.f32.gmra.mxu0 %v1773
    %v2049 = vpop.f32.mrf.mxu0
    %v2050 = vadd.f32 0.0, %v2049
    %2051 = vmatmul.f32.gmra.mxu0 %v1775
    %v2052 = vpop.f32.mrf.mxu0
    %v2053 = vadd.f32 0.0, %v2052
    %2054 = vmatmul.f32.gmra.mxu0 %v1777
    %v2055 = vpop.f32.mrf.mxu0
    %v2056 = vadd.f32 0.0, %v2055
    %2057 = vmatmul.f32.gmra.mxu0 %v1779
    %v2058 = vpop.f32.mrf.mxu0
    %v2059 = vadd.f32 0.0, %v2058
    %2060 = vmatmul.f32.gmra.mxu0 %v1781
    %v2061 = vpop.f32.mrf.mxu0
    %v2062 = vadd.f32 0.0, %v2061
    %2063 = vmatmul.f32.gmra.mxu0 %v1767
    %v2064 = vpop.f32.mrf.mxu0
    %v2065 = vadd.f32 0.0, %v2064
    %2066 = vdwg.mxu0
    %v2067 = vadd.f32 %v1983, %v2020
    %v2068 = vadd.f32 %v1984, %v2023
    %v2069 = vadd.f32 %v1985, %v2026
    %v2070 = vadd.f32 %v1986, %v2029
    %v2071 = vadd.f32 %v1987, %v2032
    %v2072 = vadd.f32 %v1988, %v2035
    %v2073 = vadd.f32 %v1989, %v2038
    %v2074 = vadd.f32 %v1990, %v2041
    %v2075 = vadd.f32 %v1991, %v2044
    %v2076 = vadd.f32 %v1992, %v2047
    %v2077 = vadd.f32 %v1993, %v2050
    %v2078 = vadd.f32 %v1994, %v2053
    %v2079 = vadd.f32 %v1995, %v2056
    %v2080 = vadd.f32 %v1996, %v2059
    %v2081 = vadd.f32 %v1997, %v2062
    %v2082 = vadd.f32 %v1998, %v2065
    %v2084 = vsel %vm1682, %v1596, 0
    %2086 = vmatpush.msra.mxu0 0.0
    %2087 = vmatpush.msra.mxu0 0.0
    %2088 = vmatpush.msra.mxu0 0.0
    %2089 = vmatpush.msra.mxu0 0.0
    %2090 = vmatpush.msra.mxu0 0.0
    %2091 = vmatpush.msra.mxu0 0.0
    %2092 = vmatpush.msra.mxu0 0.0
    %2093 = vmatpush.msra.mxu0 0.0
    %2094 = vmatpush.msra.mxu0 0.0
    %2095 = vmatpush.msra.mxu0 0.0
    %2096 = vmatpush.msra.mxu0 0.0
    %2097 = vmatpush.msra.mxu0 0.0
    %2098 = vmatpush.msra.mxu0 0.0
    %2099 = vmatpush.msra.mxu0 0.0
    %2100 = vmatpush.msra.mxu0 0.0
    %2101 = vmatpush.msra.mxu0 %v2084
    %2102 = vmatmul.f32.gmra.mxu0 %v1652
    %v2103 = vpop.f32.mrf.mxu0
    %v2104 = vadd.f32 0.0, %v2103
    %2105 = vmatmul.f32.gmra.mxu0 %v1654
    %v2106 = vpop.f32.mrf.mxu0
    %v2107 = vadd.f32 0.0, %v2106
    %2108 = vmatmul.f32.gmra.mxu0 %v1656
    %v2109 = vpop.f32.mrf.mxu0
    %v2110 = vadd.f32 0.0, %v2109
    %2111 = vmatmul.f32.gmra.mxu0 %v1658
    %v2112 = vpop.f32.mrf.mxu0
    %v2113 = vadd.f32 0.0, %v2112
    %2114 = vmatmul.f32.gmra.mxu0 %v1660
    %v2115 = vpop.f32.mrf.mxu0
    %v2116 = vadd.f32 0.0, %v2115
    %2117 = vmatmul.f32.gmra.mxu0 %v1662
    %v2118 = vpop.f32.mrf.mxu0
    %v2119 = vadd.f32 0.0, %v2118
    %2120 = vmatmul.f32.gmra.mxu0 %v1664
    %v2121 = vpop.f32.mrf.mxu0
    %v2122 = vadd.f32 0.0, %v2121
    %2123 = vmatmul.f32.gmra.mxu0 %v1650
    %v2124 = vpop.f32.mrf.mxu0
    %v2125 = vadd.f32 0.0, %v2124
    %2126 = vmatmul.f32.gmra.mxu0 %v1668
    %v2127 = vpop.f32.mrf.mxu0
    %v2128 = vadd.f32 0.0, %v2127
    %2129 = vmatmul.f32.gmra.mxu0 %v1670
    %v2130 = vpop.f32.mrf.mxu0
    %v2131 = vadd.f32 0.0, %v2130
    %2132 = vmatmul.f32.gmra.mxu0 %v1672
    %v2133 = vpop.f32.mrf.mxu0
    %v2134 = vadd.f32 0.0, %v2133
    %2135 = vmatmul.f32.gmra.mxu0 %v1674
    %v2136 = vpop.f32.mrf.mxu0
    %v2137 = vadd.f32 0.0, %v2136
    %2138 = vmatmul.f32.gmra.mxu0 %v1676
    %v2139 = vpop.f32.mrf.mxu0
    %v2140 = vadd.f32 0.0, %v2139
    %2141 = vmatmul.f32.gmra.mxu0 %v1678
    %v2142 = vpop.f32.mrf.mxu0
    %v2143 = vadd.f32 0.0, %v2142
    %2144 = vmatmul.f32.gmra.mxu0 %v1680
    %v2145 = vpop.f32.mrf.mxu0
    %v2146 = vadd.f32 0.0, %v2145
    %2147 = vmatmul.f32.gmra.mxu0 %v1666
    %v2148 = vpop.f32.mrf.mxu0
    %v2149 = vadd.f32 0.0, %v2148
    %2150 = vdwg.mxu0
    %v2151 = vadd.f32 %v2067, %v2104
    %v2152 = vadd.f32 %v2068, %v2107
    %v2153 = vadd.f32 %v2069, %v2110
    %v2154 = vadd.f32 %v2070, %v2113
    %v2155 = vadd.f32 %v2071, %v2116
    %v2156 = vadd.f32 %v2072, %v2119
    %v2157 = vadd.f32 %v2073, %v2122
    %v2158 = vadd.f32 %v2074, %v2125
    %v2159 = vadd.f32 %v2075, %v2128
    %v2160 = vadd.f32 %v2076, %v2131
    %v2161 = vadd.f32 %v2077, %v2134
    %v2162 = vadd.f32 %v2078, %v2137
    %v2163 = vadd.f32 %v2079, %v2140
    %v2164 = vadd.f32 %v2080, %v2143
    %v2165 = vadd.f32 %v2081, %v2146
    %v2166 = vadd.f32 %v2082, %v2149
    %v2168 = vsel %vm1682, %v1597, 0
    %2170 = vmatpush.msra.mxu0 0.0
    %2171 = vmatpush.msra.mxu0 0.0
    %2172 = vmatpush.msra.mxu0 0.0
    %2173 = vmatpush.msra.mxu0 0.0
    %2174 = vmatpush.msra.mxu0 0.0
    %2175 = vmatpush.msra.mxu0 0.0
    %2176 = vmatpush.msra.mxu0 0.0
    %2177 = vmatpush.msra.mxu0 0.0
    %2178 = vmatpush.msra.mxu0 0.0
    %2179 = vmatpush.msra.mxu0 0.0
    %2180 = vmatpush.msra.mxu0 0.0
    %2181 = vmatpush.msra.mxu0 0.0
    %2182 = vmatpush.msra.mxu0 0.0
    %2183 = vmatpush.msra.mxu0 0.0
    %2184 = vmatpush.msra.mxu0 0.0
    %2185 = vmatpush.msra.mxu0 %v2168
    %2186 = vmatmul.f32.gmra.mxu0 %v1885
    %v2187 = vpop.f32.mrf.mxu0
    %v2188 = vadd.f32 0.0, %v2187
    %2189 = vmatmul.f32.gmra.mxu0 %v1887
    %v2190 = vpop.f32.mrf.mxu0
    %v2191 = vadd.f32 0.0, %v2190
    %2192 = vmatmul.f32.gmra.mxu0 %v1889
    %v2193 = vpop.f32.mrf.mxu0
    %v2194 = vadd.f32 0.0, %v2193
    %2195 = vmatmul.f32.gmra.mxu0 %v1891
    %v2196 = vpop.f32.mrf.mxu0
    %v2197 = vadd.f32 0.0, %v2196
    %2198 = vmatmul.f32.gmra.mxu0 %v1893
    %v2199 = vpop.f32.mrf.mxu0
    %v2200 = vadd.f32 0.0, %v2199
    %2201 = vmatmul.f32.gmra.mxu0 %v1895
    %v2202 = vpop.f32.mrf.mxu0
    %v2203 = vadd.f32 0.0, %v2202
    %2204 = vmatmul.f32.gmra.mxu0 %v1897
    %v2205 = vpop.f32.mrf.mxu0
    %v2206 = vadd.f32 0.0, %v2205
    %2207 = vmatmul.f32.gmra.mxu0 %v1883
    %v2208 = vpop.f32.mrf.mxu0
    %v2209 = vadd.f32 0.0, %v2208
    %2210 = vmatmul.f32.gmra.mxu0 %v1901
    %v2211 = vpop.f32.mrf.mxu0
    %v2212 = vadd.f32 0.0, %v2211
    %2213 = vmatmul.f32.gmra.mxu0 %v1903
    %v2214 = vpop.f32.mrf.mxu0
    %v2215 = vadd.f32 0.0, %v2214
    %2216 = vmatmul.f32.gmra.mxu0 %v1905
    %v2217 = vpop.f32.mrf.mxu0
    %v2218 = vadd.f32 0.0, %v2217
    %2219 = vmatmul.f32.gmra.mxu0 %v1907
    %v2220 = vpop.f32.mrf.mxu0
    %v2221 = vadd.f32 0.0, %v2220
    %2222 = vmatmul.f32.gmra.mxu0 %v1909
    %v2223 = vpop.f32.mrf.mxu0
    %v2224 = vadd.f32 0.0, %v2223
    %2225 = vmatmul.f32.gmra.mxu0 %v1911
    %v2226 = vpop.f32.mrf.mxu0
    %v2227 = vadd.f32 0.0, %v2226
    %2228 = vmatmul.f32.gmra.mxu0 %v1913
    %v2229 = vpop.f32.mrf.mxu0
    %v2230 = vadd.f32 0.0, %v2229
    %2231 = vmatmul.f32.gmra.mxu0 %v1899
    %v2232 = vpop.f32.mrf.mxu0
    %v2233 = vadd.f32 0.0, %v2232
    %2234 = vdwg.mxu0
    %v2235 = vadd.f32 %v2151, %v2188
    %v2236 = vadd.f32 %v2152, %v2191
    %v2237 = vadd.f32 %v2153, %v2194
    %v2238 = vadd.f32 %v2154, %v2197
    %v2239 = vadd.f32 %v2155, %v2200
    %v2240 = vadd.f32 %v2156, %v2203
    %v2241 = vadd.f32 %v2157, %v2206
    %v2242 = vadd.f32 %v2158, %v2209
    %v2243 = vadd.f32 %v2159, %v2212
    %v2244 = vadd.f32 %v2160, %v2215
    %v2245 = vadd.f32 %v2161, %v2218
    %v2246 = vadd.f32 %v2162, %v2221
    %v2247 = vadd.f32 %v2163, %v2224
    %v2248 = vadd.f32 %v2164, %v2227
    %v2249 = vadd.f32 %v2165, %v2230
    %v2250 = vadd.f32 %v2166, %v2233
    %v2252 = vsel %vm1682, %v1598, 0
    %2254 = vmatpush.msra.mxu0 0.0
    %2255 = vmatpush.msra.mxu0 0.0
    %2256 = vmatpush.msra.mxu0 0.0
    %2257 = vmatpush.msra.mxu0 0.0
    %2258 = vmatpush.msra.mxu0 0.0
    %2259 = vmatpush.msra.mxu0 0.0
    %2260 = vmatpush.msra.mxu0 0.0
    %2261 = vmatpush.msra.mxu0 0.0
    %2262 = vmatpush.msra.mxu0 0.0
    %2263 = vmatpush.msra.mxu0 0.0
    %2264 = vmatpush.msra.mxu0 0.0
    %2265 = vmatpush.msra.mxu0 0.0
    %2266 = vmatpush.msra.mxu0 0.0
    %2267 = vmatpush.msra.mxu0 0.0
    %2268 = vmatpush.msra.mxu0 0.0
    %2269 = vmatpush.msra.mxu0 %v2252
    %2270 = vmatmul.f32.gmra.mxu0 %v1755
    %v2271 = vpop.f32.mrf.mxu0
    %v2272 = vadd.f32 0.0, %v2271
    %2273 = vmatmul.f32.gmra.mxu0 %v1757
    %v2274 = vpop.f32.mrf.mxu0
    %v2275 = vadd.f32 0.0, %v2274
    %2276 = vmatmul.f32.gmra.mxu0 %v1759
    %v2277 = vpop.f32.mrf.mxu0
    %v2278 = vadd.f32 0.0, %v2277
    %2279 = vmatmul.f32.gmra.mxu0 %v1761
    %v2280 = vpop.f32.mrf.mxu0
    %v2281 = vadd.f32 0.0, %v2280
    %2282 = vmatmul.f32.gmra.mxu0 %v1763
    %v2283 = vpop.f32.mrf.mxu0
    %v2284 = vadd.f32 0.0, %v2283
    %2285 = vmatmul.f32.gmra.mxu0 %v1765
    %v2286 = vpop.f32.mrf.mxu0
    %v2287 = vadd.f32 0.0, %v2286
    %2288 = vmatmul.f32.gmra.mxu0 %v1751
    %v2289 = vpop.f32.mrf.mxu0
    %v2290 = vadd.f32 0.0, %v2289
    %2291 = vmatmul.f32.gmra.mxu0 %v1753
    %v2292 = vpop.f32.mrf.mxu0
    %v2293 = vadd.f32 0.0, %v2292
    %2294 = vmatmul.f32.gmra.mxu0 %v1771
    %v2295 = vpop.f32.mrf.mxu0
    %v2296 = vadd.f32 0.0, %v2295
    %2297 = vmatmul.f32.gmra.mxu0 %v1773
    %v2298 = vpop.f32.mrf.mxu0
    %v2299 = vadd.f32 0.0, %v2298
    %2300 = vmatmul.f32.gmra.mxu0 %v1775
    %v2301 = vpop.f32.mrf.mxu0
    %v2302 = vadd.f32 0.0, %v2301
    %2303 = vmatmul.f32.gmra.mxu0 %v1777
    %v2304 = vpop.f32.mrf.mxu0
    %v2305 = vadd.f32 0.0, %v2304
    %2306 = vmatmul.f32.gmra.mxu0 %v1779
    %v2307 = vpop.f32.mrf.mxu0
    %v2308 = vadd.f32 0.0, %v2307
    %2309 = vmatmul.f32.gmra.mxu0 %v1781
    %v2310 = vpop.f32.mrf.mxu0
    %v2311 = vadd.f32 0.0, %v2310
    %2312 = vmatmul.f32.gmra.mxu0 %v1767
    %v2313 = vpop.f32.mrf.mxu0
    %v2314 = vadd.f32 0.0, %v2313
    %2315 = vmatmul.f32.gmra.mxu0 %v1769
    %v2316 = vpop.f32.mrf.mxu0
    %v2317 = vadd.f32 0.0, %v2316
    %2318 = vdwg.mxu0
    %v2319 = vadd.f32 %v2235, %v2272
    %v2320 = vadd.f32 %v2236, %v2275
    %v2321 = vadd.f32 %v2237, %v2278
    %v2322 = vadd.f32 %v2238, %v2281
    %v2323 = vadd.f32 %v2239, %v2284
    %v2324 = vadd.f32 %v2240, %v2287
    %v2325 = vadd.f32 %v2241, %v2290
    %v2326 = vadd.f32 %v2242, %v2293
    %v2327 = vadd.f32 %v2243, %v2296
    %v2328 = vadd.f32 %v2244, %v2299
    %v2329 = vadd.f32 %v2245, %v2302
    %v2330 = vadd.f32 %v2246, %v2305
    %v2331 = vadd.f32 %v2247, %v2308
    %v2332 = vadd.f32 %v2248, %v2311
    %v2333 = vadd.f32 %v2249, %v2314
    %v2334 = vadd.f32 %v2250, %v2317
    %v2336 = vsel %vm1682, %v1599, 0
    %2338 = vmatpush.msra.mxu0 0.0
    %2339 = vmatpush.msra.mxu0 0.0
    %2340 = vmatpush.msra.mxu0 0.0
    %2341 = vmatpush.msra.mxu0 0.0
    %2342 = vmatpush.msra.mxu0 0.0
    %2343 = vmatpush.msra.mxu0 0.0
    %2344 = vmatpush.msra.mxu0 0.0
    %2345 = vmatpush.msra.mxu0 0.0
    %2346 = vmatpush.msra.mxu0 0.0
    %2347 = vmatpush.msra.mxu0 0.0
    %2348 = vmatpush.msra.mxu0 0.0
    %2349 = vmatpush.msra.mxu0 0.0
    %2350 = vmatpush.msra.mxu0 0.0
    %2351 = vmatpush.msra.mxu0 0.0
    %2352 = vmatpush.msra.mxu0 0.0
    %2353 = vmatpush.msra.mxu0 %v2336
    %2354 = vmatmul.f32.gmra.mxu0 %v1654
    %v2355 = vpop.f32.mrf.mxu0
    %v2356 = vadd.f32 0.0, %v2355
    %2357 = vmatmul.f32.gmra.mxu0 %v1656
    %v2358 = vpop.f32.mrf.mxu0
    %v2359 = vadd.f32 0.0, %v2358
    %2360 = vmatmul.f32.gmra.mxu0 %v1658
    %v2361 = vpop.f32.mrf.mxu0
    %v2362 = vadd.f32 0.0, %v2361
    %2363 = vmatmul.f32.gmra.mxu0 %v1660
    %v2364 = vpop.f32.mrf.mxu0
    %v2365 = vadd.f32 0.0, %v2364
    %2366 = vmatmul.f32.gmra.mxu0 %v1662
    %v2367 = vpop.f32.mrf.mxu0
    %v2368 = vadd.f32 0.0, %v2367
    %2369 = vmatmul.f32.gmra.mxu0 %v1664
    %v2370 = vpop.f32.mrf.mxu0
    %v2371 = vadd.f32 0.0, %v2370
    %2372 = vmatmul.f32.gmra.mxu0 %v1650
    %v2373 = vpop.f32.mrf.mxu0
    %v2374 = vadd.f32 0.0, %v2373
    %2375 = vmatmul.f32.gmra.mxu0 %v1652
    %v2376 = vpop.f32.mrf.mxu0
    %v2377 = vadd.f32 0.0, %v2376
    %2378 = vmatmul.f32.gmra.mxu0 %v1670
    %v2379 = vpop.f32.mrf.mxu0
    %v2380 = vadd.f32 0.0, %v2379
    %2381 = vmatmul.f32.gmra.mxu0 %v1672
    %v2382 = vpop.f32.mrf.mxu0
    %v2383 = vadd.f32 0.0, %v2382
    %2384 = vmatmul.f32.gmra.mxu0 %v1674
    %v2385 = vpop.f32.mrf.mxu0
    %v2386 = vadd.f32 0.0, %v2385
    %2387 = vmatmul.f32.gmra.mxu0 %v1676
    %v2388 = vpop.f32.mrf.mxu0
    %v2389 = vadd.f32 0.0, %v2388
    %2390 = vmatmul.f32.gmra.mxu0 %v1678
    %v2391 = vpop.f32.mrf.mxu0
    %v2392 = vadd.f32 0.0, %v2391
    %2393 = vmatmul.f32.gmra.mxu0 %v1680
    %v2394 = vpop.f32.mrf.mxu0
    %v2395 = vadd.f32 0.0, %v2394
    %2396 = vmatmul.f32.gmra.mxu0 %v1666
    %v2397 = vpop.f32.mrf.mxu0
    %v2398 = vadd.f32 0.0, %v2397
    %2399 = vmatmul.f32.gmra.mxu0 %v1668
    %v2400 = vpop.f32.mrf.mxu0
    %v2401 = vadd.f32 0.0, %v2400
    %2402 = vdwg.mxu0
    %v2403 = vadd.f32 %v2319, %v2356
    %v2404 = vadd.f32 %v2320, %v2359
    %v2405 = vadd.f32 %v2321, %v2362
    %v2406 = vadd.f32 %v2322, %v2365
    %v2407 = vadd.f32 %v2323, %v2368
    %v2408 = vadd.f32 %v2324, %v2371
    %v2409 = vadd.f32 %v2325, %v2374
    %v2410 = vadd.f32 %v2326, %v2377
    %v2411 = vadd.f32 %v2327, %v2380
    %v2412 = vadd.f32 %v2328, %v2383
    %v2413 = vadd.f32 %v2329, %v2386
    %v2414 = vadd.f32 %v2330, %v2389
    %v2415 = vadd.f32 %v2331, %v2392
    %v2416 = vadd.f32 %v2332, %v2395
    %v2417 = vadd.f32 %v2333, %v2398
    %v2418 = vadd.f32 %v2334, %v2401
    %v2420 = vsel %vm1682, %v1600, 0
    %2422 = vmatpush.msra.mxu0 0.0
    %2423 = vmatpush.msra.mxu0 0.0
    %2424 = vmatpush.msra.mxu0 0.0
    %2425 = vmatpush.msra.mxu0 0.0
    %2426 = vmatpush.msra.mxu0 0.0
    %2427 = vmatpush.msra.mxu0 0.0
    %2428 = vmatpush.msra.mxu0 0.0
    %2429 = vmatpush.msra.mxu0 0.0
    %2430 = vmatpush.msra.mxu0 0.0
    %2431 = vmatpush.msra.mxu0 0.0
    %2432 = vmatpush.msra.mxu0 0.0
    %2433 = vmatpush.msra.mxu0 0.0
    %2434 = vmatpush.msra.mxu0 0.0
    %2435 = vmatpush.msra.mxu0 0.0
    %2436 = vmatpush.msra.mxu0 0.0
    %2437 = vmatpush.msra.mxu0 %v2420
    %2438 = vmatmul.f32.gmra.mxu0 %v1887
    %v2439 = vpop.f32.mrf.mxu0
    %v2440 = vadd.f32 0.0, %v2439
    %2441 = vmatmul.f32.gmra.mxu0 %v1889
    %v2442 = vpop.f32.mrf.mxu0
    %v2443 = vadd.f32 0.0, %v2442
    %2444 = vmatmul.f32.gmra.mxu0 %v1891
    %v2445 = vpop.f32.mrf.mxu0
    %v2446 = vadd.f32 0.0, %v2445
    %2447 = vmatmul.f32.gmra.mxu0 %v1893
    %v2448 = vpop.f32.mrf.mxu0
    %v2449 = vadd.f32 0.0, %v2448
    %2450 = vmatmul.f32.gmra.mxu0 %v1895
    %v2451 = vpop.f32.mrf.mxu0
    %v2452 = vadd.f32 0.0, %v2451
    %2453 = vmatmul.f32.gmra.mxu0 %v1897
    %v2454 = vpop.f32.mrf.mxu0
    %v2455 = vadd.f32 0.0, %v2454
    %2456 = vmatmul.f32.gmra.mxu0 %v1883
    %v2457 = vpop.f32.mrf.mxu0
    %v2458 = vadd.f32 0.0, %v2457
    %2459 = vmatmul.f32.gmra.mxu0 %v1885
    %v2460 = vpop.f32.mrf.mxu0
    %v2461 = vadd.f32 0.0, %v2460
    %2462 = vmatmul.f32.gmra.mxu0 %v1903
    %v2463 = vpop.f32.mrf.mxu0
    %v2464 = vadd.f32 0.0, %v2463
    %2465 = vmatmul.f32.gmra.mxu0 %v1905
    %v2466 = vpop.f32.mrf.mxu0
    %v2467 = vadd.f32 0.0, %v2466
    %2468 = vmatmul.f32.gmra.mxu0 %v1907
    %v2469 = vpop.f32.mrf.mxu0
    %v2470 = vadd.f32 0.0, %v2469
    %2471 = vmatmul.f32.gmra.mxu0 %v1909
    %v2472 = vpop.f32.mrf.mxu0
    %v2473 = vadd.f32 0.0, %v2472
    %2474 = vmatmul.f32.gmra.mxu0 %v1911
    %v2475 = vpop.f32.mrf.mxu0
    %v2476 = vadd.f32 0.0, %v2475
    %2477 = vmatmul.f32.gmra.mxu0 %v1913
    %v2478 = vpop.f32.mrf.mxu0
    %v2479 = vadd.f32 0.0, %v2478
    %2480 = vmatmul.f32.gmra.mxu0 %v1899
    %v2481 = vpop.f32.mrf.mxu0
    %v2482 = vadd.f32 0.0, %v2481
    %2483 = vmatmul.f32.gmra.mxu0 %v1901
    %v2484 = vpop.f32.mrf.mxu0
    %v2485 = vadd.f32 0.0, %v2484
    %2486 = vdwg.mxu0
    %v2487 = vadd.f32 %v2403, %v2440
    %v2488 = vadd.f32 %v2404, %v2443
    %v2489 = vadd.f32 %v2405, %v2446
    %v2490 = vadd.f32 %v2406, %v2449
    %v2491 = vadd.f32 %v2407, %v2452
    %v2492 = vadd.f32 %v2408, %v2455
    %v2493 = vadd.f32 %v2409, %v2458
    %v2494 = vadd.f32 %v2410, %v2461
    %v2495 = vadd.f32 %v2411, %v2464
    %v2496 = vadd.f32 %v2412, %v2467
    %v2497 = vadd.f32 %v2413, %v2470
    %v2498 = vadd.f32 %v2414, %v2473
    %v2499 = vadd.f32 %v2415, %v2476
    %v2500 = vadd.f32 %v2416, %v2479
    %v2501 = vadd.f32 %v2417, %v2482
    %v2502 = vadd.f32 %v2418, %v2485
    %v2503 = vperm.slane %v1601, 0
    %v2504 = vadd.f32 %v2487, %v2503
    %v2505 = vadd.f32 %v2488, %v2503
    %v2506 = vadd.f32 %v2489, %v2503
    %v2507 = vadd.f32 %v2490, %v2503
    %v2508 = vadd.f32 %v2491, %v2503
    %v2509 = vadd.f32 %v2492, %v2503
    %v2510 = vadd.f32 %v2493, %v2503
    %v2511 = vadd.f32 %v2494, %v2503
    %v2512 = vadd.f32 %v2495, %v2503
    %v2513 = vadd.f32 %v2496, %v2503
    %v2514 = vadd.f32 %v2497, %v2503
    %v2515 = vadd.f32 %v2498, %v2503
    %v2516 = vadd.f32 %v2499, %v2503
    %v2517 = vadd.f32 %v2500, %v2503
    %v2518 = vadd.f32 %v2501, %v2503
    %v2519 = vadd.f32 %v2502, %v2503
    %v2520 = vmax.f32 %v2504, 0.0
    %v2521 = vmax.f32 %v2505, 0.0
    %v2522 = vmax.f32 %v2506, 0.0
    %v2523 = vmax.f32 %v2507, 0.0
    %v2524 = vmax.f32 %v2508, 0.0
    %v2525 = vmax.f32 %v2509, 0.0
    %v2526 = vmax.f32 %v2510, 0.0
    %v2527 = vmax.f32 %v2511, 0.0
    %v2528 = vmax.f32 %v2512, 0.0
    %v2529 = vmax.f32 %v2513, 0.0
    %v2530 = vmax.f32 %v2514, 0.0
    %v2531 = vmax.f32 %v2515, 0.0
    %v2532 = vmax.f32 %v2516, 0.0
    %v2533 = vmax.f32 %v2517, 0.0
    %v2534 = vmax.f32 %v2518, 0.0
    %v2535 = vmax.f32 %v2519, 0.0
    %v2536 = vadd.f32 %v2520, %v2521
    %v2537 = vadd.f32 %v2522, %v2523
    %v2538 = vadd.f32 %v2524, %v2525
    %v2539 = vadd.f32 %v2526, %v2527
    %v2540 = vadd.f32 %v2528, %v2529
    %v2541 = vadd.f32 %v2530, %v2531
    %v2542 = vadd.f32 %v2532, %v2533
    %v2543 = vadd.f32 %v2534, %v2535
    %v2544 = vmul.f32 %v2536, 0.5
    %v2545 = vmul.f32 %v2537, 0.5
    %v2546 = vmul.f32 %v2538, 0.5
    %v2547 = vmul.f32 %v2539, 0.5
    %v2548 = vmul.f32 %v2540, 0.5
    %v2549 = vmul.f32 %v2541, 0.5
    %v2550 = vmul.f32 %v2542, 0.5
    %v2551 = vmul.f32 %v2543, 0.5
    %vm2552 = vcmask 64512
    %v2553 = vsel %vm2552, %v2544, 0.0
    %v2554 = vsel %vm2552, %v2545, 0.0
    %v2555 = vadd.f32 %v2553, %v2554
    %v2556 = vsel %vm2552, %v2546, 0.0
    %v2557 = vadd.f32 %v2555, %v2556
    %v2558 = vsel %vm2552, %v2547, 0.0
    %v2559 = vadd.f32 %v2557, %v2558
    %v2560 = vsel %vm2552, %v2548, 0.0
    %v2561 = vadd.f32 %v2559, %v2560
    %v2562 = vsel %vm2552, %v2549, 0.0
    %v2563 = vadd.f32 %v2561, %v2562
    %v2564 = vsel %vm2552, %v2550, 0.0
    %v2565 = vadd.f32 %v2563, %v2564
    %v2566 = vsel %vm2552, %v2551, 0.0
    %v2567 = vadd.f32 %v2565, %v2566
    %v2568 = vrot.slane %v2567, 4
    %v2569 = vadd.f32 %v2567, %v2568
    %v2570 = vrot.slane %v2569, 2
    %v2571 = vadd.f32 %v2569, %v2570
    %v2572 = vrot.slane %v2571, 1
    %v2573 = vadd.f32 %v2571, %v2572
    %v2574 = vrcp.pop 64.0
    %v2575 = vmul.f32 64.0, %v2574
    %v2576 = vsub.f32 1.0, %v2575
    %v2577 = vmul.f32 %v2574, %v2576
    %v2578 = vadd.f32 %v2574, %v2577
    %vm2579 = vweird.f32 %v2574
    %v2580 = vsel %vm2579, %v2574, %v2578
    %v2581 = vmul.f32 %v2573, %v2580
    %v2582 = vsub.f32 %v2544, %v2581
    %v2583 = vsub.f32 %v2545, %v2581
    %v2584 = vsub.f32 %v2546, %v2581
    %v2585 = vsub.f32 %v2547, %v2581
    %v2586 = vsub.f32 %v2548, %v2581
    %v2587 = vsub.f32 %v2549, %v2581
    %v2588 = vsub.f32 %v2550, %v2581
    %v2589 = vsub.f32 %v2551, %v2581
    %v2590 = vmul.f32 %v2582, %v2582
    %v2591 = vmul.f32 %v2583, %v2583
    %v2592 = vmul.f32 %v2584, %v2584
    %v2593 = vmul.f32 %v2585, %v2585
    %v2594 = vmul.f32 %v2586, %v2586
    %v2595 = vmul.f32 %v2587, %v2587
    %v2596 = vmul.f32 %v2588, %v2588
    %v2597 = vmul.f32 %v2589, %v2589
    %v2598 = vsel %vm2552, %v2590, 0.0
    %v2599 = vsel %vm2552, %v2591, 0.0
    %v2600 = vadd.f32 %v2598, %v2599
    %v2601 = vsel %vm2552, %v2592, 0.0
    %v2602 = vadd.f32 %v2600, %v2601
    %v2603 = vsel %vm2552, %v2593, 0.0
    %v2604 = vadd.f32 %v2602, %v2603
    %v2605 = vsel %vm2552, %v2594, 0.0
    %v2606 = vadd.f32 %v2604, %v2605
    %v2607 = vsel %vm2552, %v2595, 0.0
    %v2608 = vadd.f32 %v2606, %v2607
    %v2609 = vsel %vm2552, %v2596, 0.0
    %v2610 = vadd.f32 %v2608, %v2609
    %v2611 = vsel %vm2552, %v2597, 0.0
    %v2612 = vadd.f32 %v2610, %v2611
    %v2613 = vrot.slane %v2612, 4
    %v2614 = vadd.f32 %v2612, %v2613
    %v2615 = vrot.slane %v2614, 2
    %v2616 = vadd.f32 %v2614, %v2615
    %v2617 = vrot.slane %v2616, 1
    %v2618 = vadd.f32 %v2616, %v2617
    %v2619 = vmul.f32 %v2618, %v2580
    %v2620 = vadd.f32 %v2619, 1e-05
    %v2621 = vrsqrt.pop %v2620
    %v2622 = vmul.f32 %v2621, %v2620
    %v2623 = vmul.f32 %v2622, %v2621
    %v2624 = vmul.f32 0.5, %v2623
    %v2625 = vsub.f32 1.5, %v2624
    %v2626 = vmul.f32 %v2621, %v2625
    %vm2627 = vweird.f32 %v2620
    %vm2628 = vweird.f32 %v2621
    %vm2629 = vmor %vm2627, %vm2628
    %v2630 = vsel %vm2629, %v2621, %v2626
    %v2631 = vmul.f32 %v2582, %v2630
    %v2632 = vmul.f32 %v2583, %v2630
    %v2633 = vmul.f32 %v2584, %v2630
    %v2634 = vmul.f32 %v2585, %v2630
    %v2635 = vmul.f32 %v2586, %v2630
    %v2636 = vmul.f32 %v2587, %v2630
    %v2637 = vmul.f32 %v2588, %v2630
    %v2638 = vmul.f32 %v2589, %v2630
    %v2639 = vperm.slane %v1601, 1
    %v2640 = vmul.f32 %v2631, %v2639
    %v2641 = vmul.f32 %v2632, %v2639
    %v2642 = vmul.f32 %v2633, %v2639
    %v2643 = vmul.f32 %v2634, %v2639
    %v2644 = vmul.f32 %v2635, %v2639
    %v2645 = vmul.f32 %v2636, %v2639
    %v2646 = vmul.f32 %v2637, %v2639
    %v2647 = vmul.f32 %v2638, %v2639
    %v2648 = vperm.slane %v1601, 2
    %v2649 = vadd.f32 %v2640, %v2648
    %v2650 = vadd.f32 %v2641, %v2648
    %v2651 = vadd.f32 %v2642, %v2648
    %v2652 = vadd.f32 %v2643, %v2648
    %v2653 = vadd.f32 %v2644, %v2648
    %v2654 = vadd.f32 %v2645, %v2648
    %v2655 = vadd.f32 %v2646, %v2648
    %v2656 = vadd.f32 %v2647, %v2648
    %v2657 = vlaneseq
    %v2658 = vand.u32 %v2657, 127
    %vm2659 = vcmp.eq.s32.totalorder %v2658, 0
    %v2660 = vsel %vm2659, 1, 0
    %v2661 = vcvt.s32.f32 %v2660
    %vm2662 = vcmp.eq.s32.totalorder %v2658, 1
    %v2663 = vsel %vm2662, 1, 0
    %v2664 = vcvt.s32.f32 %v2663
    %2666 = vset.pattern.permute.xlu0 0
    %2667 = vperm.xlu0 %2666, %v2649
    %v2668 = vpop.permute.xlu0 %2667
    %2671 = vset.pattern.permute.xlu0 0
    %2672 = vperm.xlu0 %2671, %v2650
    %v2673 = vpop.permute.xlu0 %2672
    %2676 = vset.pattern.permute.xlu0 0
    %2677 = vperm.xlu0 %2676, %v2651
    %v2678 = vpop.permute.xlu0 %2677
    %2681 = vset.pattern.permute.xlu0 0
    %2682 = vperm.xlu0 %2681, %v2652
    %v2683 = vpop.permute.xlu0 %2682
    %v2685 = vmul.f32 %v2668, %v2661
    %v2686 = vmul.f32 %v2673, %v2661
    %v2687 = vmul.f32 %v2678, %v2661
    %v2688 = vmul.f32 %v2683, %v2661
    %2690 = vset.pattern.permute.xlu0 0
    %2691 = vperm.xlu0 %2690, %v2653
    %v2692 = vpop.permute.xlu0 %2691
    %2695 = vset.pattern.permute.xlu0 0
    %2696 = vperm.xlu0 %2695, %v2654
    %v2697 = vpop.permute.xlu0 %2696
    %2700 = vset.pattern.permute.xlu0 0
    %2701 = vperm.xlu0 %2700, %v2655
    %v2702 = vpop.permute.xlu0 %2701
    %2705 = vset.pattern.permute.xlu0 0
    %2706 = vperm.xlu0 %2705, %v2656
    %v2707 = vpop.permute.xlu0 %2706
    %v2709 = vmul.f32 %v2692, %v2664
    %v2710 = vmul.f32 %v2697, %v2664
    %v2711 = vmul.f32 %v2702, %v2664
    %v2712 = vmul.f32 %v2707, %v2664
    %v2713 = vadd.f32 %v2685, %v2709
    %v2714 = vadd.f32 %v2686, %v2710
    %v2715 = vadd.f32 %v2687, %v2711
    %v2716 = vadd.f32 %v2688, %v2712
    %2717 = vset.pattern.permute.xlu0 1
    %2718 = vperm.xlu0 %2717, %v2649
    %v2719 = vpop.permute.xlu0 %2718
    %2721 = vset.pattern.permute.xlu0 1
    %2722 = vperm.xlu0 %2721, %v2650
    %v2723 = vpop.permute.xlu0 %2722
    %2725 = vset.pattern.permute.xlu0 1
    %2726 = vperm.xlu0 %2725, %v2651
    %v2727 = vpop.permute.xlu0 %2726
    %2729 = vset.pattern.permute.xlu0 1
    %2730 = vperm.xlu0 %2729, %v2652
    %v2731 = vpop.permute.xlu0 %2730
    %v2733 = vmul.f32 %v2719, %v2661
    %v2734 = vmul.f32 %v2723, %v2661
    %v2735 = vmul.f32 %v2727, %v2661
    %v2736 = vmul.f32 %v2731, %v2661
    %2737 = vset.pattern.permute.xlu0 1
    %2738 = vperm.xlu0 %2737, %v2653
    %v2739 = vpop.permute.xlu0 %2738
    %2741 = vset.pattern.permute.xlu0 1
    %2742 = vperm.xlu0 %2741, %v2654
    %v2743 = vpop.permute.xlu0 %2742
    %2745 = vset.pattern.permute.xlu0 1
    %2746 = vperm.xlu0 %2745, %v2655
    %v2747 = vpop.permute.xlu0 %2746
    %2749 = vset.pattern.permute.xlu0 1
    %2750 = vperm.xlu0 %2749, %v2656
    %v2751 = vpop.permute.xlu0 %2750
    %v2753 = vmul.f32 %v2739, %v2664
    %v2754 = vmul.f32 %v2743, %v2664
    %v2755 = vmul.f32 %v2747, %v2664
    %v2756 = vmul.f32 %v2751, %v2664
    %v2757 = vadd.f32 %v2733, %v2753
    %v2758 = vadd.f32 %v2734, %v2754
    %v2759 = vadd.f32 %v2735, %v2755
    %v2760 = vadd.f32 %v2736, %v2756
    %2761 = vset.pattern.permute.xlu0 2
    %2762 = vperm.xlu0 %2761, %v2649
    %v2763 = vpop.permute.xlu0 %2762
    %2765 = vset.pattern.permute.xlu0 2
    %2766 = vperm.xlu0 %2765, %v2650
    %v2767 = vpop.permute.xlu0 %2766
    %2769 = vset.pattern.permute.xlu0 2
    %2770 = vperm.xlu0 %2769, %v2651
    %v2771 = vpop.permute.xlu0 %2770
    %2773 = vset.pattern.permute.xlu0 2
    %2774 = vperm.xlu0 %2773, %v2652
    %v2775 = vpop.permute.xlu0 %2774
    %v2777 = vmul.f32 %v2763, %v2661
    %v2778 = vmul.f32 %v2767, %v2661
    %v2779 = vmul.f32 %v2771, %v2661
    %v2780 = vmul.f32 %v2775, %v2661
    %2781 = vset.pattern.permute.xlu0 2
    %2782 = vperm.xlu0 %2781, %v2653
    %v2783 = vpop.permute.xlu0 %2782
    %2785 = vset.pattern.permute.xlu0 2
    %2786 = vperm.xlu0 %2785, %v2654
    %v2787 = vpop.permute.xlu0 %2786
    %2789 = vset.pattern.permute.xlu0 2
    %2790 = vperm.xlu0 %2789, %v2655
    %v2791 = vpop.permute.xlu0 %2790
    %2793 = vset.pattern.permute.xlu0 2
    %2794 = vperm.xlu0 %2793, %v2656
    %v2795 = vpop.permute.xlu0 %2794
    %v2797 = vmul.f32 %v2783, %v2664
    %v2798 = vmul.f32 %v2787, %v2664
    %v2799 = vmul.f32 %v2791, %v2664
    %v2800 = vmul.f32 %v2795, %v2664
    %v2801 = vadd.f32 %v2777, %v2797
    %v2802 = vadd.f32 %v2778, %v2798
    %v2803 = vadd.f32 %v2779, %v2799
    %v2804 = vadd.f32 %v2780, %v2800
    %2805 = vset.pattern.permute.xlu0 3
    %2806 = vperm.xlu0 %2805, %v2649
    %v2807 = vpop.permute.xlu0 %2806
    %2809 = vset.pattern.permute.xlu0 3
    %2810 = vperm.xlu0 %2809, %v2650
    %v2811 = vpop.permute.xlu0 %2810
    %2813 = vset.pattern.permute.xlu0 3
    %2814 = vperm.xlu0 %2813, %v2651
    %v2815 = vpop.permute.xlu0 %2814
    %2817 = vset.pattern.permute.xlu0 3
    %2818 = vperm.xlu0 %2817, %v2652
    %v2819 = vpop.permute.xlu0 %2818
    %v2821 = vmul.f32 %v2807, %v2661
    %v2822 = vmul.f32 %v2811, %v2661
    %v2823 = vmul.f32 %v2815, %v2661
    %v2824 = vmul.f32 %v2819, %v2661
    %2825 = vset.pattern.permute.xlu0 3
    %2826 = vperm.xlu0 %2825, %v2653
    %v2827 = vpop.permute.xlu0 %2826
    %2829 = vset.pattern.permute.xlu0 3
    %2830 = vperm.xlu0 %2829, %v2654
    %v2831 = vpop.permute.xlu0 %2830
    %2833 = vset.pattern.permute.xlu0 3
    %2834 = vperm.xlu0 %2833, %v2655
    %v2835 = vpop.permute.xlu0 %2834
    %2837 = vset.pattern.permute.xlu0 3
    %2838 = vperm.xlu0 %2837, %v2656
    %v2839 = vpop.permute.xlu0 %2838
    %v2841 = vmul.f32 %v2827, %v2664
    %v2842 = vmul.f32 %v2831, %v2664
    %v2843 = vmul.f32 %v2835, %v2664
    %v2844 = vmul.f32 %v2839, %v2664
    %v2845 = vadd.f32 %v2821, %v2841
    %v2846 = vadd.f32 %v2822, %v2842
    %v2847 = vadd.f32 %v2823, %v2843
    %v2848 = vadd.f32 %v2824, %v2844
    %2849 = vset.pattern.permute.xlu0 4
    %2850 = vperm.xlu0 %2849, %v2649
    %v2851 = vpop.permute.xlu0 %2850
    %2853 = vset.pattern.permute.xlu0 4
    %2854 = vperm.xlu0 %2853, %v2650
    %v2855 = vpop.permute.xlu0 %2854
    %2857 = vset.pattern.permute.xlu0 4
    %2858 = vperm.xlu0 %2857, %v2651
    %v2859 = vpop.permute.xlu0 %2858
    %2861 = vset.pattern.permute.xlu0 4
    %2862 = vperm.xlu0 %2861, %v2652
    %v2863 = vpop.permute.xlu0 %2862
    %v2865 = vmul.f32 %v2851, %v2661
    %v2866 = vmul.f32 %v2855, %v2661
    %v2867 = vmul.f32 %v2859, %v2661
    %v2868 = vmul.f32 %v2863, %v2661
    %2869 = vset.pattern.permute.xlu0 4
    %2870 = vperm.xlu0 %2869, %v2653
    %v2871 = vpop.permute.xlu0 %2870
    %2873 = vset.pattern.permute.xlu0 4
    %2874 = vperm.xlu0 %2873, %v2654
    %v2875 = vpop.permute.xlu0 %2874
    %2877 = vset.pattern.permute.xlu0 4
    %2878 = vperm.xlu0 %2877, %v2655
    %v2879 = vpop.permute.xlu0 %2878
    %2881 = vset.pattern.permute.xlu0 4
    %2882 = vperm.xlu0 %2881, %v2656
    %v2883 = vpop.permute.xlu0 %2882
    %v2885 = vmul.f32 %v2871, %v2664
    %v2886 = vmul.f32 %v2875, %v2664
    %v2887 = vmul.f32 %v2879, %v2664
    %v2888 = vmul.f32 %v2883, %v2664
    %v2889 = vadd.f32 %v2865, %v2885
    %v2890 = vadd.f32 %v2866, %v2886
    %v2891 = vadd.f32 %v2867, %v2887
    %v2892 = vadd.f32 %v2868, %v2888
    %2893 = vset.pattern.permute.xlu0 5
    %2894 = vperm.xlu0 %2893, %v2649
    %v2895 = vpop.permute.xlu0 %2894
    %2897 = vset.pattern.permute.xlu0 5
    %2898 = vperm.xlu0 %2897, %v2650
    %v2899 = vpop.permute.xlu0 %2898
    %2901 = vset.pattern.permute.xlu0 5
    %2902 = vperm.xlu0 %2901, %v2651
    %v2903 = vpop.permute.xlu0 %2902
    %2905 = vset.pattern.permute.xlu0 5
    %2906 = vperm.xlu0 %2905, %v2652
    %v2907 = vpop.permute.xlu0 %2906
    %v2909 = vmul.f32 %v2895, %v2661
    %v2910 = vmul.f32 %v2899, %v2661
    %v2911 = vmul.f32 %v2903, %v2661
    %v2912 = vmul.f32 %v2907, %v2661
    %2913 = vset.pattern.permute.xlu0 5
    %2914 = vperm.xlu0 %2913, %v2653
    %v2915 = vpop.permute.xlu0 %2914
    %2917 = vset.pattern.permute.xlu0 5
    %2918 = vperm.xlu0 %2917, %v2654
    %v2919 = vpop.permute.xlu0 %2918
    %2921 = vset.pattern.permute.xlu0 5
    %2922 = vperm.xlu0 %2921, %v2655
    %v2923 = vpop.permute.xlu0 %2922
    %2925 = vset.pattern.permute.xlu0 5
    %2926 = vperm.xlu0 %2925, %v2656
    %v2927 = vpop.permute.xlu0 %2926
    %v2929 = vmul.f32 %v2915, %v2664
    %v2930 = vmul.f32 %v2919, %v2664
    %v2931 = vmul.f32 %v2923, %v2664
    %v2932 = vmul.f32 %v2927, %v2664
    %v2933 = vadd.f32 %v2909, %v2929
    %v2934 = vadd.f32 %v2910, %v2930
    %v2935 = vadd.f32 %v2911, %v2931
    %v2936 = vadd.f32 %v2912, %v2932
    %2937 = vset.pattern.permute.xlu0 6
    %2938 = vperm.xlu0 %2937, %v2649
    %v2939 = vpop.permute.xlu0 %2938
    %2941 = vset.pattern.permute.xlu0 6
    %2942 = vperm.xlu0 %2941, %v2650
    %v2943 = vpop.permute.xlu0 %2942
    %2945 = vset.pattern.permute.xlu0 6
    %2946 = vperm.xlu0 %2945, %v2651
    %v2947 = vpop.permute.xlu0 %2946
    %2949 = vset.pattern.permute.xlu0 6
    %2950 = vperm.xlu0 %2949, %v2652
    %v2951 = vpop.permute.xlu0 %2950
    %v2953 = vmul.f32 %v2939, %v2661
    %v2954 = vmul.f32 %v2943, %v2661
    %v2955 = vmul.f32 %v2947, %v2661
    %v2956 = vmul.f32 %v2951, %v2661
    %2957 = vset.pattern.permute.xlu0 6
    %2958 = vperm.xlu0 %2957, %v2653
    %v2959 = vpop.permute.xlu0 %2958
    %2961 = vset.pattern.permute.xlu0 6
    %2962 = vperm.xlu0 %2961, %v2654
    %v2963 = vpop.permute.xlu0 %2962
    %2965 = vset.pattern.permute.xlu0 6
    %2966 = vperm.xlu0 %2965, %v2655
    %v2967 = vpop.permute.xlu0 %2966
    %2969 = vset.pattern.permute.xlu0 6
    %2970 = vperm.xlu0 %2969, %v2656
    %v2971 = vpop.permute.xlu0 %2970
    %v2973 = vmul.f32 %v2959, %v2664
    %v2974 = vmul.f32 %v2963, %v2664
    %v2975 = vmul.f32 %v2967, %v2664
    %v2976 = vmul.f32 %v2971, %v2664
    %v2977 = vadd.f32 %v2953, %v2973
    %v2978 = vadd.f32 %v2954, %v2974
    %v2979 = vadd.f32 %v2955, %v2975
    %v2980 = vadd.f32 %v2956, %v2976
    %2981 = vset.pattern.permute.xlu0 7
    %2982 = vperm.xlu0 %2981, %v2649
    %v2983 = vpop.permute.xlu0 %2982
    %2985 = vset.pattern.permute.xlu0 7
    %2986 = vperm.xlu0 %2985, %v2650
    %v2987 = vpop.permute.xlu0 %2986
    %2989 = vset.pattern.permute.xlu0 7
    %2990 = vperm.xlu0 %2989, %v2651
    %v2991 = vpop.permute.xlu0 %2990
    %2993 = vset.pattern.permute.xlu0 7
    %2994 = vperm.xlu0 %2993, %v2652
    %v2995 = vpop.permute.xlu0 %2994
    %v2997 = vmul.f32 %v2983, %v2661
    %v2998 = vmul.f32 %v2987, %v2661
    %v2999 = vmul.f32 %v2991, %v2661
    %v3000 = vmul.f32 %v2995, %v2661
    %3001 = vset.pattern.permute.xlu0 7
    %3002 = vperm.xlu0 %3001, %v2653
    %v3003 = vpop.permute.xlu0 %3002
    %3005 = vset.pattern.permute.xlu0 7
    %3006 = vperm.xlu0 %3005, %v2654
    %v3007 = vpop.permute.xlu0 %3006
    %3009 = vset.pattern.permute.xlu0 7
    %3010 = vperm.xlu0 %3009, %v2655
    %v3011 = vpop.permute.xlu0 %3010
    %3013 = vset.pattern.permute.xlu0 7
    %3014 = vperm.xlu0 %3013, %v2656
    %v3015 = vpop.permute.xlu0 %3014
    %v3017 = vmul.f32 %v3003, %v2664
    %v3018 = vmul.f32 %v3007, %v2664
    %v3019 = vmul.f32 %v3011, %v2664
    %v3020 = vmul.f32 %v3015, %v2664
    %v3021 = vadd.f32 %v2997, %v3017
    %v3022 = vadd.f32 %v2998, %v3018
    %v3023 = vadd.f32 %v2999, %v3019
    %v3024 = vadd.f32 %v3000, %v3020
    %v3025 = vld [vmem:[#allocation2] sm:$0xff]
    %v3026 = vld [vmem:[#allocation2 + $0x8] sm:$0xff]
    %v3027 = vld [vmem:[#allocation2 + $0x10] sm:$0xff]
    %v3028 = vld [vmem:[#allocation2 + $0x18] sm:$0xff]
    %v3029 = vld [vmem:[#allocation2 + $0x20] sm:$0xff]
    %v3030 = vld [vmem:[#allocation2 + $0x28] sm:$0xff]
    %v3031 = vld [vmem:[#allocation2 + $0x30] sm:$0xff]
    %v3032 = vld [vmem:[#allocation2 + $0x38] sm:$0xff]
    %v3033 = vld [vmem:[#allocation2 + $0x40] sm:$0xff]
    %v3034 = vld [vmem:[#allocation2 + $0x48] sm:$0xff]
    %v3035 = vld [vmem:[#allocation2 + $0x50] sm:$0xff]
    %v3036 = vld [vmem:[#allocation2 + $0x58] sm:$0xff]
    %v3037 = vld [vmem:[#allocation2 + $0x60] sm:$0xff]
    %v3038 = vld [vmem:[#allocation2 + $0x68] sm:$0xff]
    %v3039 = vld [vmem:[#allocation2 + $0x70] sm:$0xff]
    %v3040 = vld [vmem:[#allocation2 + $0x78] sm:$0xff]
    %v3041 = vld [vmem:[#allocation2 + $0x80] sm:$0xff]
    %v3042 = vld [vmem:[#allocation2 + $0x88] sm:$0xff]
    %v3043 = vld [vmem:[#allocation2 + $0x90] sm:$0xff]
    %v3044 = vld [vmem:[#allocation2 + $0x98] sm:$0xff]
    %v3045 = vld [vmem:[#allocation2 + $0xa0] sm:$0xff]
    %v3046 = vld [vmem:[#allocation2 + $0xa8] sm:$0xff]
    %v3047 = vld [vmem:[#allocation2 + $0xb0] sm:$0xff]
    %v3048 = vld [vmem:[#allocation2 + $0xb8] sm:$0xff]
    %v3049 = vld [vmem:[#allocation2 + $0xc0] sm:$0xff]
    %v3050 = vld [vmem:[#allocation2 + $0xc8] sm:$0xff]
    %v3051 = vld [vmem:[#allocation2 + $0xd0] sm:$0xff]
    %v3052 = vld [vmem:[#allocation2 + $0xd8] sm:$0xff]
    %v3053 = vld [vmem:[#allocation2 + $0xe0] sm:$0xff]
    %v3054 = vld [vmem:[#allocation2 + $0xe8] sm:$0xff]
    %v3055 = vld [vmem:[#allocation2 + $0xf0] sm:$0xff]
    %v3056 = vld [vmem:[#allocation2 + $0xf8] sm:$0xff]
    %v3057 = vld [vmem:[#allocation2 + $0x100] sm:$0xff]
    %v3058 = vld [vmem:[#allocation2 + $0x108] sm:$0xff]
    %v3059 = vld [vmem:[#allocation2 + $0x110] sm:$0xff]
    %v3060 = vld [vmem:[#allocation2 + $0x118] sm:$0xff]
    %v3061 = vld [vmem:[#allocation2 + $0x120] sm:$0xff]
    %v3062 = vld [vmem:[#allocation2 + $0x128] sm:$0xff]
    %v3063 = vld [vmem:[#allocation2 + $0x130] sm:$0xff]
    %v3064 = vld [vmem:[#allocation2 + $0x138] sm:$0xff]
    %v3065 = vld [vmem:[#allocation2 + $0x140] sm:$0xff]
    %v3066 = vld [vmem:[#allocation2 + $0x148] sm:$0xff]
    %v3067 = vld [vmem:[#allocation2 + $0x150] sm:$0xff]
    %v3068 = vld [vmem:[#allocation2 + $0x158] sm:$0xff]
    %v3069 = vld [vmem:[#allocation2 + $0x160] sm:$0xff]
    %v3070 = vld [vmem:[#allocation2 + $0x168] sm:$0xff]
    %v3071 = vld [vmem:[#allocation2 + $0x170] sm:$0xff]
    %v3072 = vld [vmem:[#allocation2 + $0x178] sm:$0xff]
    %v3073 = vld [vmem:[#allocation2 + $0x180] sm:$0xff]
    %v3074 = vld [vmem:[#allocation2 + $0x188] sm:$0xff]
    %v3075 = vld [vmem:[#allocation4] sm:$0xff]
    %v3076 = vld [vmem:[#allocation4 + $0x8] sm:$0xff]
    %v3077 = vld [vmem:[#allocation4 + $0x10] sm:$0xff]
    %v3078 = vld [vmem:[#allocation4 + $0x18] sm:$0xff]
    %v3079 = vld [vmem:[#allocation4 + $0x20] sm:$0xff]
    %v3080 = vld [vmem:[#allocation4 + $0x28] sm:$0xff]
    %v3081 = vld [vmem:[#allocation4 + $0x30] sm:$0xff]
    %v3082 = vld [vmem:[#allocation4 + $0x38] sm:$0xff]
    %v3083 = vld [vmem:[#allocation4 + $0x40] sm:$0xff]
    %v3084 = vld [vmem:[#allocation4 + $0x48] sm:$0xff]
    %v3085 = vld [vmem:[#allocation4 + $0x50] sm:$0xff]
    %v3086 = vld [vmem:[#allocation4 + $0x58] sm:$0xff]
    %v3087 = vld [vmem:[#allocation4 + $0x60] sm:$0xff]
    %v3088 = vld [vmem:[#allocation4 + $0x68] sm:$0xff]
    %v3089 = vld [vmem:[#allocation4 + $0x70] sm:$0xff]
    %v3090 = vld [vmem:[#allocation4 + $0x78] sm:$0xff]
    %v3091 = vld [vmem:[#allocation4 + $0x80] sm:$0xff]
    %v3092 = vld [vmem:[#allocation4 + $0x88] sm:$0xff]
    %v3093 = vld [vmem:[#allocation4 + $0x90] sm:$0xff]
    %v3094 = vld [vmem:[#allocation4 + $0x98] sm:$0xff]
    %v3095 = vld [vmem:[#allocation4 + $0xa0] sm:$0xff]
    %v3096 = vld [vmem:[#allocation4 + $0xa8] sm:$0xff]
    %v3097 = vld [vmem:[#allocation4 + $0xb0] sm:$0xff]
    %v3098 = vld [vmem:[#allocation4 + $0xb8] sm:$0xff]
    %v3099 = vld [vmem:[#allocation4 + $0xc0] sm:$0xff]
    %3101 = vset.pattern.permute.xlu0 0
    %3102 = vperm.xlu0 %3101, %v3075
    %v3103 = vpop.permute.xlu0 %3102
    %3106 = vset.pattern.permute.xlu0 0
    %3107 = vperm.xlu0 %3106, %v3076
    %v3108 = vpop.permute.xlu0 %3107
    %3111 = vset.pattern.permute.xlu0 0
    %3112 = vperm.xlu0 %3111, %v3077
    %v3113 = vpop.permute.xlu0 %3112
    %3116 = vset.pattern.permute.xlu0 0
    %3117 = vperm.xlu0 %3116, %v3078
    %v3118 = vpop.permute.xlu0 %3117
    %3121 = vset.pattern.permute.xlu0 0
    %3122 = vperm.xlu0 %3121, %v3079
    %v3123 = vpop.permute.xlu0 %3122
    %3126 = vset.pattern.permute.xlu0 0
    %3127 = vperm.xlu0 %3126, %v3080
    %v3128 = vpop.permute.xlu0 %3127
    %3131 = vset.pattern.permute.xlu0 0
    %3132 = vperm.xlu0 %3131, %v3081
    %v3133 = vpop.permute.xlu0 %3132
    %3136 = vset.pattern.permute.xlu0 0
    %3137 = vperm.xlu0 %3136, %v3082
    %v3138 = vpop.permute.xlu0 %3137
    %3141 = vset.pattern.permute.xlu0 0
    %3142 = vperm.xlu0 %3141, %v3083
    %v3143 = vpop.permute.xlu0 %3142
    %3146 = vset.pattern.permute.xlu0 0
    %3147 = vperm.xlu0 %3146, %v3084
    %v3148 = vpop.permute.xlu0 %3147
    %3151 = vset.pattern.permute.xlu0 0
    %3152 = vperm.xlu0 %3151, %v3085
    %v3153 = vpop.permute.xlu0 %3152
    %3156 = vset.pattern.permute.xlu0 0
    %3157 = vperm.xlu0 %3156, %v3086
    %v3158 = vpop.permute.xlu0 %3157
    %3161 = vset.pattern.permute.xlu0 0
    %3162 = vperm.xlu0 %3161, %v3087
    %v3163 = vpop.permute.xlu0 %3162
    %3166 = vset.pattern.permute.xlu0 0
    %3167 = vperm.xlu0 %3166, %v3088
    %v3168 = vpop.permute.xlu0 %3167
    %3171 = vset.pattern.permute.xlu0 0
    %3172 = vperm.xlu0 %3171, %v3089
    %v3173 = vpop.permute.xlu0 %3172
    %3176 = vset.pattern.permute.xlu0 0
    %3177 = vperm.xlu0 %3176, %v3090
    %v3178 = vpop.permute.xlu0 %3177
    %3181 = vset.pattern.permute.xlu0 0
    %3182 = vperm.xlu0 %3181, %v3091
    %v3183 = vpop.permute.xlu0 %3182
    %3186 = vset.pattern.permute.xlu0 0
    %3187 = vperm.xlu0 %3186, %v3092
    %v3188 = vpop.permute.xlu0 %3187
    %3191 = vset.pattern.permute.xlu0 0
    %3192 = vperm.xlu0 %3191, %v3093
    %v3193 = vpop.permute.xlu0 %3192
    %3196 = vset.pattern.permute.xlu0 0
    %3197 = vperm.xlu0 %3196, %v3094
    %v3198 = vpop.permute.xlu0 %3197
    %3201 = vset.pattern.permute.xlu0 0
    %3202 = vperm.xlu0 %3201, %v3095
    %v3203 = vpop.permute.xlu0 %3202
    %3206 = vset.pattern.permute.xlu0 0
    %3207 = vperm.xlu0 %3206, %v3096
    %v3208 = vpop.permute.xlu0 %3207
    %3211 = vset.pattern.permute.xlu0 0
    %3212 = vperm.xlu0 %3211, %v3097
    %v3213 = vpop.permute.xlu0 %3212
    %3216 = vset.pattern.permute.xlu0 0
    %3217 = vperm.xlu0 %3216, %v3098
    %v3218 = vpop.permute.xlu0 %3217
    %3221 = vset.pattern.permute.xlu0 0
    %3222 = vperm.xlu0 %3221, %v3099
    %v3223 = vpop.permute.xlu0 %3222
    %3225 = vmatpush.msra.mxu0 %v2848
    %3226 = vmatpush.msra.mxu0 %v2847
    %3227 = vmatpush.msra.mxu0 %v2846
    %3228 = vmatpush.msra.mxu0 %v2845
    %3229 = vmatpush.msra.mxu0 %v2804
    %3230 = vmatpush.msra.mxu0 %v2803
    %3231 = vmatpush.msra.mxu0 %v2802
    %3232 = vmatpush.msra.mxu0 %v2801
    %3233 = vmatpush.msra.mxu0 %v2760
    %3234 = vmatpush.msra.mxu0 %v2759
    %3235 = vmatpush.msra.mxu0 %v2758
    %3236 = vmatpush.msra.mxu0 %v2757
    %3237 = vmatpush.msra.mxu0 %v2716
    %3238 = vmatpush.msra.mxu0 %v2715
    %3239 = vmatpush.msra.mxu0 %v2714
    %3240 = vmatpush.msra.mxu0 %v2713
    %3241 = vmatmul.f32.gmra.mxu0 %v3025
    %v3242 = vpop.f32.mrf.mxu0
    %v3243 = vadd.f32 %v3103, %v3242
    %3244 = vmatmul.f32.gmra.mxu0 %v3027
    %v3245 = vpop.f32.mrf.mxu0
    %v3246 = vadd.f32 %v3108, %v3245
    %3247 = vmatmul.f32.gmra.mxu0 %v3029
    %v3248 = vpop.f32.mrf.mxu0
    %v3249 = vadd.f32 %v3113, %v3248
    %3250 = vmatmul.f32.gmra.mxu0 %v3031
    %v3251 = vpop.f32.mrf.mxu0
    %v3252 = vadd.f32 %v3118, %v3251
    %3253 = vmatmul.f32.gmra.mxu0 %v3033
    %v3254 = vpop.f32.mrf.mxu0
    %v3255 = vadd.f32 %v3123, %v3254
    %3256 = vmatmul.f32.gmra.mxu0 %v3035
    %v3257 = vpop.f32.mrf.mxu0
    %v3258 = vadd.f32 %v3128, %v3257
    %3259 = vmatmul.f32.gmra.mxu0 %v3037
    %v3260 = vpop.f32.mrf.mxu0
    %v3261 = vadd.f32 %v3133, %v3260
    %3262 = vmatmul.f32.gmra.mxu0 %v3039
    %v3263 = vpop.f32.mrf.mxu0
    %v3264 = vadd.f32 %v3138, %v3263
    %3265 = vmatmul.f32.gmra.mxu0 %v3041
    %v3266 = vpop.f32.mrf.mxu0
    %v3267 = vadd.f32 %v3143, %v3266
    %3268 = vmatmul.f32.gmra.mxu0 %v3043
    %v3269 = vpop.f32.mrf.mxu0
    %v3270 = vadd.f32 %v3148, %v3269
    %3271 = vmatmul.f32.gmra.mxu0 %v3045
    %v3272 = vpop.f32.mrf.mxu0
    %v3273 = vadd.f32 %v3153, %v3272
    %3274 = vmatmul.f32.gmra.mxu0 %v3047
    %v3275 = vpop.f32.mrf.mxu0
    %v3276 = vadd.f32 %v3158, %v3275
    %3277 = vmatmul.f32.gmra.mxu0 %v3049
    %v3278 = vpop.f32.mrf.mxu0
    %v3279 = vadd.f32 %v3163, %v3278
    %3280 = vmatmul.f32.gmra.mxu0 %v3051
    %v3281 = vpop.f32.mrf.mxu0
    %v3282 = vadd.f32 %v3168, %v3281
    %3283 = vmatmul.f32.gmra.mxu0 %v3053
    %v3284 = vpop.f32.mrf.mxu0
    %v3285 = vadd.f32 %v3173, %v3284
    %3286 = vmatmul.f32.gmra.mxu0 %v3055
    %v3287 = vpop.f32.mrf.mxu0
    %v3288 = vadd.f32 %v3178, %v3287
    %3289 = vmatmul.f32.gmra.mxu0 %v3057
    %v3290 = vpop.f32.mrf.mxu0
    %v3291 = vadd.f32 %v3183, %v3290
    %3292 = vmatmul.f32.gmra.mxu0 %v3059
    %v3293 = vpop.f32.mrf.mxu0
    %v3294 = vadd.f32 %v3188, %v3293
    %3295 = vmatmul.f32.gmra.mxu0 %v3061
    %v3296 = vpop.f32.mrf.mxu0
    %v3297 = vadd.f32 %v3193, %v3296
    %3298 = vmatmul.f32.gmra.mxu0 %v3063
    %v3299 = vpop.f32.mrf.mxu0
    %v3300 = vadd.f32 %v3198, %v3299
    %3301 = vmatmul.f32.gmra.mxu0 %v3065
    %v3302 = vpop.f32.mrf.mxu0
    %v3303 = vadd.f32 %v3203, %v3302
    %3304 = vmatmul.f32.gmra.mxu0 %v3067
    %v3305 = vpop.f32.mrf.mxu0
    %v3306 = vadd.f32 %v3208, %v3305
    %3307 = vmatmul.f32.gmra.mxu0 %v3069
    %v3308 = vpop.f32.mrf.mxu0
    %v3309 = vadd.f32 %v3213, %v3308
    %3310 = vmatmul.f32.gmra.mxu0 %v3071
    %v3311 = vpop.f32.mrf.mxu0
    %v3312 = vadd.f32 %v3218, %v3311
    %3313 = vmatmul.f32.gmra.mxu0 %v3073
    %v3314 = vpop.f32.mrf.mxu0
    %v3315 = vadd.f32 %v3223, %v3314
    %3316 = vdwg.mxu0
    %3317 = vmatpush.msra.mxu0 %v3024
    %3318 = vmatpush.msra.mxu0 %v3023
    %3319 = vmatpush.msra.mxu0 %v3022
    %3320 = vmatpush.msra.mxu0 %v3021
    %3321 = vmatpush.msra.mxu0 %v2980
    %3322 = vmatpush.msra.mxu0 %v2979
    %3323 = vmatpush.msra.mxu0 %v2978
    %3324 = vmatpush.msra.mxu0 %v2977
    %3325 = vmatpush.msra.mxu0 %v2936
    %3326 = vmatpush.msra.mxu0 %v2935
    %3327 = vmatpush.msra.mxu0 %v2934
    %3328 = vmatpush.msra.mxu0 %v2933
    %3329 = vmatpush.msra.mxu0 %v2892
    %3330 = vmatpush.msra.mxu0 %v2891
    %3331 = vmatpush.msra.mxu0 %v2890
    %3332 = vmatpush.msra.mxu0 %v2889
    %3333 = vmatmul.f32.gmra.mxu0 %v3026
    %v3334 = vpop.f32.mrf.mxu0
    %v3335 = vadd.f32 %v3243, %v3334
    %3336 = vmatmul.f32.gmra.mxu0 %v3028
    %v3337 = vpop.f32.mrf.mxu0
    %v3338 = vadd.f32 %v3246, %v3337
    %3339 = vmatmul.f32.gmra.mxu0 %v3030
    %v3340 = vpop.f32.mrf.mxu0
    %v3341 = vadd.f32 %v3249, %v3340
    %3342 = vmatmul.f32.gmra.mxu0 %v3032
    %v3343 = vpop.f32.mrf.mxu0
    %v3344 = vadd.f32 %v3252, %v3343
    %3345 = vmatmul.f32.gmra.mxu0 %v3034
    %v3346 = vpop.f32.mrf.mxu0
    %v3347 = vadd.f32 %v3255, %v3346
    %3348 = vmatmul.f32.gmra.mxu0 %v3036
    %v3349 = vpop.f32.mrf.mxu0
    %v3350 = vadd.f32 %v3258, %v3349
    %3351 = vmatmul.f32.gmra.mxu0 %v3038
    %v3352 = vpop.f32.mrf.mxu0
    %v3353 = vadd.f32 %v3261, %v3352
    %3354 = vmatmul.f32.gmra.mxu0 %v3040
    %v3355 = vpop.f32.mrf.mxu0
    %v3356 = vadd.f32 %v3264, %v3355
    %3357 = vmatmul.f32.gmra.mxu0 %v3042
    %v3358 = vpop.f32.mrf.mxu0
    %v3359 = vadd.f32 %v3267, %v3358
    %3360 = vmatmul.f32.gmra.mxu0 %v3044
    %v3361 = vpop.f32.mrf.mxu0
    %v3362 = vadd.f32 %v3270, %v3361
    %3363 = vmatmul.f32.gmra.mxu0 %v3046
    %v3364 = vpop.f32.mrf.mxu0
    %v3365 = vadd.f32 %v3273, %v3364
    %3366 = vmatmul.f32.gmra.mxu0 %v3048
    %v3367 = vpop.f32.mrf.mxu0
    %v3368 = vadd.f32 %v3276, %v3367
    %3369 = vmatmul.f32.gmra.mxu0 %v3050
    %v3370 = vpop.f32.mrf.mxu0
    %v3371 = vadd.f32 %v3279, %v3370
    %3372 = vmatmul.f32.gmra.mxu0 %v3052
    %v3373 = vpop.f32.mrf.mxu0
    %v3374 = vadd.f32 %v3282, %v3373
    %3375 = vmatmul.f32.gmra.mxu0 %v3054
    %v3376 = vpop.f32.mrf.mxu0
    %v3377 = vadd.f32 %v3285, %v3376
    %3378 = vmatmul.f32.gmra.mxu0 %v3056
    %v3379 = vpop.f32.mrf.mxu0
    %v3380 = vadd.f32 %v3288, %v3379
    %3381 = vmatmul.f32.gmra.mxu0 %v3058
    %v3382 = vpop.f32.mrf.mxu0
    %v3383 = vadd.f32 %v3291, %v3382
    %3384 = vmatmul.f32.gmra.mxu0 %v3060
    %v3385 = vpop.f32.mrf.mxu0
    %v3386 = vadd.f32 %v3294, %v3385
    %3387 = vmatmul.f32.gmra.mxu0 %v3062
    %v3388 = vpop.f32.mrf.mxu0
    %v3389 = vadd.f32 %v3297, %v3388
    %3390 = vmatmul.f32.gmra.mxu0 %v3064
    %v3391 = vpop.f32.mrf.mxu0
    %v3392 = vadd.f32 %v3300, %v3391
    %3393 = vmatmul.f32.gmra.mxu0 %v3066
    %v3394 = vpop.f32.mrf.mxu0
    %v3395 = vadd.f32 %v3303, %v3394
    %3396 = vmatmul.f32.gmra.mxu0 %v3068
    %v3397 = vpop.f32.mrf.mxu0
    %v3398 = vadd.f32 %v3306, %v3397
    %3399 = vmatmul.f32.gmra.mxu0 %v3070
    %v3400 = vpop.f32.mrf.mxu0
    %v3401 = vadd.f32 %v3309, %v3400
    %3402 = vmatmul.f32.gmra.mxu0 %v3072
    %v3403 = vpop.f32.mrf.mxu0
    %v3404 = vadd.f32 %v3312, %v3403
    %3405 = vmatmul.f32.gmra.mxu0 %v3074
    %v3406 = vpop.f32.mrf.mxu0
    %v3407 = vadd.f32 %v3315, %v3406
    %3408 = vdwg.mxu0
    %v3409 = vmax.f32 %v3335, 0.0
    %v3410 = vmax.f32 %v3338, 0.0
    %v3411 = vmax.f32 %v3341, 0.0
    %v3412 = vmax.f32 %v3344, 0.0
    %v3413 = vmax.f32 %v3347, 0.0
    %v3414 = vmax.f32 %v3350, 0.0
    %v3415 = vmax.f32 %v3353, 0.0
    %v3416 = vmax.f32 %v3356, 0.0
    %v3417 = vmax.f32 %v3359, 0.0
    %v3418 = vmax.f32 %v3362, 0.0
    %v3419 = vmax.f32 %v3365, 0.0
    %v3420 = vmax.f32 %v3368, 0.0
    %v3421 = vmax.f32 %v3371, 0.0
    %v3422 = vmax.f32 %v3374, 0.0
    %v3423 = vmax.f32 %v3377, 0.0
    %v3424 = vmax.f32 %v3380, 0.0
    %v3425 = vmax.f32 %v3383, 0.0
    %v3426 = vmax.f32 %v3386, 0.0
    %v3427 = vmax.f32 %v3389, 0.0
    %v3428 = vmax.f32 %v3392, 0.0
    %v3429 = vmax.f32 %v3395, 0.0
    %v3430 = vmax.f32 %v3398, 0.0
    %v3431 = vmax.f32 %v3401, 0.0
    %v3432 = vmax.f32 %v3404, 0.0
    %v3433 = vmax.f32 %v3407, 0.0
    %v3434 = vld [vmem:[%s7] sm:$0xff]
    %v3435 = vld [vmem:[%s7 + $0x8] sm:$0xff]
    %v3436 = vld [vmem:[%s7 + $0x10] sm:$0xff]
    %v3437 = vld [vmem:[%s7 + $0x18] sm:$0xff]
    %v3438 = vld [vmem:[%s7 + $0x20] sm:$0xff]
    %v3439 = vld [vmem:[%s7 + $0x28] sm:$0xff]
    %v3440 = vld [vmem:[%s7 + $0x30] sm:$0xff]
    %v3441 = vld [vmem:[%s7 + $0x38] sm:$0xff]
    %v3442 = vld [vmem:[%s7 + $0x40] sm:$0xff]
    %v3443 = vld [vmem:[%s7 + $0x48] sm:$0xff]
    %v3444 = vld [vmem:[%s7 + $0x50] sm:$0xff]
    %v3445 = vld [vmem:[%s7 + $0x58] sm:$0xff]
    %v3446 = vld [vmem:[%s7 + $0x60] sm:$0xff]
    %v3447 = vld [vmem:[%s7 + $0x68] sm:$0xff]
    %v3448 = vld [vmem:[%s7 + $0x70] sm:$0xff]
    %v3449 = vld [vmem:[%s7 + $0x78] sm:$0xff]
    %v3450 = vld [vmem:[%s7 + $0x80] sm:$0xff]
    %v3451 = vld [vmem:[%s7 + $0x88] sm:$0xff]
    %v3452 = vld [vmem:[%s7 + $0x90] sm:$0xff]
    %v3453 = vld [vmem:[%s7 + $0x98] sm:$0xff]
    %v3454 = vld [vmem:[%s7 + $0xa0] sm:$0xff]
    %v3455 = vld [vmem:[%s7 + $0xa8] sm:$0xff]
    %v3456 = vld [vmem:[%s7 + $0xb0] sm:$0xff]
    %v3457 = vld [vmem:[%s7 + $0xb8] sm:$0xff]
    %v3458 = vld [vmem:[%s7 + $0xc0] sm:$0xf]
    %v3459 = vld [vmem:[%s7 + $0xc8] sm:$0xf]
    %v3460 = vld [vmem:[#allocation6] sm:$0xff]
    %v3461 = vld [vmem:[#allocation6 + $0x8] sm:$0xff]
    %v3462 = vld [vmem:[#allocation6 + $0x10] sm:$0xff]
    %v3463 = vld [vmem:[#allocation6 + $0x18] sm:$0xff]
    %v3464 = vld [vmem:[#allocation6 + $0x20] sm:$0xff]
    %v3465 = vld [vmem:[#allocation6 + $0x28] sm:$0xff]
    %v3466 = vld [vmem:[#allocation6 + $0x30] sm:$0xff]
    %v3467 = vld [vmem:[#allocation6 + $0x38] sm:$0xff]
    %v3468 = vld [vmem:[#allocation6 + $0x40] sm:$0xff]
    %v3469 = vld [vmem:[#allocation6 + $0x48] sm:$0xff]
    %v3470 = vld [vmem:[#allocation6 + $0x50] sm:$0xff]
    %v3471 = vld [vmem:[#allocation6 + $0x58] sm:$0xff]
    %v3472 = vld [vmem:[#allocation6 + $0x60] sm:$0xf]
    %3474 = vset.pattern.permute.xlu0 0
    %3475 = vperm.xlu0 %3474, %v3460
    %v3476 = vpop.permute.xlu0 %3475
    %3479 = vset.pattern.permute.xlu0 0
    %3480 = vperm.xlu0 %3479, %v3461
    %v3481 = vpop.permute.xlu0 %3480
    %3484 = vset.pattern.permute.xlu0 0
    %3485 = vperm.xlu0 %3484, %v3462
    %v3486 = vpop.permute.xlu0 %3485
    %3489 = vset.pattern.permute.xlu0 0
    %3490 = vperm.xlu0 %3489, %v3463
    %v3491 = vpop.permute.xlu0 %3490
    %3494 = vset.pattern.permute.xlu0 0
    %3495 = vperm.xlu0 %3494, %v3464
    %v3496 = vpop.permute.xlu0 %3495
    %3499 = vset.pattern.permute.xlu0 0
    %3500 = vperm.xlu0 %3499, %v3465
    %v3501 = vpop.permute.xlu0 %3500
    %3504 = vset.pattern.permute.xlu0 0
    %3505 = vperm.xlu0 %3504, %v3466
    %v3506 = vpop.permute.xlu0 %3505
    %3509 = vset.pattern.permute.xlu0 0
    %3510 = vperm.xlu0 %3509, %v3467
    %v3511 = vpop.permute.xlu0 %3510
    %3514 = vset.pattern.permute.xlu0 0
    %3515 = vperm.xlu0 %3514, %v3468
    %v3516 = vpop.permute.xlu0 %3515
    %3519 = vset.pattern.permute.xlu0 0
    %3520 = vperm.xlu0 %3519, %v3469
    %v3521 = vpop.permute.xlu0 %3520
    %3524 = vset.pattern.permute.xlu0 0
    %3525 = vperm.xlu0 %3524, %v3470
    %v3526 = vpop.permute.xlu0 %3525
    %3529 = vset.pattern.permute.xlu0 0
    %3530 = vperm.xlu0 %3529, %v3471
    %v3531 = vpop.permute.xlu0 %3530
    %3534 = vset.pattern.permute.xlu0 0
    %3535 = vperm.xlu0 %3534, %v3472
    %v3536 = vpop.permute.xlu0 %3535
    %vm3538 = vcmask 588800
    %v3540 = vsel %vm3538, %v3435, 0
    %v3543 = vsel %vm3538, %v3437, 0
    %v3546 = vsel %vm3538, %v3439, 0
    %v3549 = vsel %vm3538, %v3441, 0
    %v3552 = vsel %vm3538, %v3443, 0
    %v3555 = vsel %vm3538, %v3445, 0
    %v3558 = vsel %vm3538, %v3447, 0
    %v3561 = vsel %vm3538, %v3449, 0
    %v3564 = vsel %vm3538, %v3451, 0
    %v3567 = vsel %vm3538, %v3453, 0
    %v3570 = vsel %vm3538, %v3455, 0
    %v3573 = vsel %vm3538, %v3457, 0
    %v3576 = vsel %vm3538, %v3459, 0
    %3578 = vmatpush.msra.mxu0 %v3424
    %3579 = vmatpush.msra.mxu0 %v3423
    %3580 = vmatpush.msra.mxu0 %v3422
    %3581 = vmatpush.msra.mxu0 %v3421
    %3582 = vmatpush.msra.mxu0 %v3420
    %3583 = vmatpush.msra.mxu0 %v3419
    %3584 = vmatpush.msra.mxu0 %v3418
    %3585 = vmatpush.msra.mxu0 %v3417
    %3586 = vmatpush.msra.mxu0 %v3416
    %3587 = vmatpush.msra.mxu0 %v3415
    %3588 = vmatpush.msra.mxu0 %v3414
    %3589 = vmatpush.msra.mxu0 %v3413
    %3590 = vmatpush.msra.mxu0 %v3412
    %3591 = vmatpush.msra.mxu0 %v3411
    %3592 = vmatpush.msra.mxu0 %v3410
    %3593 = vmatpush.msra.mxu0 %v3409
    %3594 = vmatmul.f32.gmra.mxu0 %v3434
    %v3595 = vpop.f32.mrf.mxu0
    %v3596 = vadd.f32 %v3476, %v3595
    %3597 = vmatmul.f32.gmra.mxu0 %v3436
    %v3598 = vpop.f32.mrf.mxu0
    %v3599 = vadd.f32 %v3481, %v3598
    %3600 = vmatmul.f32.gmra.mxu0 %v3438
    %v3601 = vpop.f32.mrf.mxu0
    %v3602 = vadd.f32 %v3486, %v3601
    %3603 = vmatmul.f32.gmra.mxu0 %v3440
    %v3604 = vpop.f32.mrf.mxu0
    %v3605 = vadd.f32 %v3491, %v3604
    %3606 = vmatmul.f32.gmra.mxu0 %v3442
    %v3607 = vpop.f32.mrf.mxu0
    %v3608 = vadd.f32 %v3496, %v3607
    %3609 = vmatmul.f32.gmra.mxu0 %v3444
    %v3610 = vpop.f32.mrf.mxu0
    %v3611 = vadd.f32 %v3501, %v3610
    %3612 = vmatmul.f32.gmra.mxu0 %v3446
    %v3613 = vpop.f32.mrf.mxu0
    %v3614 = vadd.f32 %v3506, %v3613
    %3615 = vmatmul.f32.gmra.mxu0 %v3448
    %v3616 = vpop.f32.mrf.mxu0
    %v3617 = vadd.f32 %v3511, %v3616
    %3618 = vmatmul.f32.gmra.mxu0 %v3450
    %v3619 = vpop.f32.mrf.mxu0
    %v3620 = vadd.f32 %v3516, %v3619
    %3621 = vmatmul.f32.gmra.mxu0 %v3452
    %v3622 = vpop.f32.mrf.mxu0
    %v3623 = vadd.f32 %v3521, %v3622
    %3624 = vmatmul.f32.gmra.mxu0 %v3454
    %v3625 = vpop.f32.mrf.mxu0
    %v3626 = vadd.f32 %v3526, %v3625
    %3627 = vmatmul.f32.gmra.mxu0 %v3456
    %v3628 = vpop.f32.mrf.mxu0
    %v3629 = vadd.f32 %v3531, %v3628
    %3630 = vmatmul.f32.gmra.mxu0 %v3458
    %v3631 = vpop.f32.mrf.mxu0
    %v3632 = vadd.f32 %v3536, %v3631
    %3633 = vdwg.mxu0
    %3634 = vmatpush.msra.mxu0 0.0
    %3635 = vmatpush.msra.mxu0 0.0
    %3636 = vmatpush.msra.mxu0 0.0
    %3637 = vmatpush.msra.mxu0 0.0
    %3638 = vmatpush.msra.mxu0 0.0
    %3639 = vmatpush.msra.mxu0 0.0
    %3640 = vmatpush.msra.mxu0 0.0
    %3641 = vmatpush.msra.mxu0 %v3433
    %3642 = vmatpush.msra.mxu0 %v3432
    %3643 = vmatpush.msra.mxu0 %v3431
    %3644 = vmatpush.msra.mxu0 %v3430
    %3645 = vmatpush.msra.mxu0 %v3429
    %3646 = vmatpush.msra.mxu0 %v3428
    %3647 = vmatpush.msra.mxu0 %v3427
    %3648 = vmatpush.msra.mxu0 %v3426
    %3649 = vmatpush.msra.mxu0 %v3425
    %3650 = vmatmul.f32.gmra.mxu0 %v3540
    %v3651 = vpop.f32.mrf.mxu0
    %v3652 = vadd.f32 %v3596, %v3651
    %3653 = vmatmul.f32.gmra.mxu0 %v3543
    %v3654 = vpop.f32.mrf.mxu0
    %v3655 = vadd.f32 %v3599, %v3654
    %3656 = vmatmul.f32.gmra.mxu0 %v3546
    %v3657 = vpop.f32.mrf.mxu0
    %v3658 = vadd.f32 %v3602, %v3657
    %3659 = vmatmul.f32.gmra.mxu0 %v3549
    %v3660 = vpop.f32.mrf.mxu0
    %v3661 = vadd.f32 %v3605, %v3660
    %3662 = vmatmul.f32.gmra.mxu0 %v3552
    %v3663 = vpop.f32.mrf.mxu0
    %v3664 = vadd.f32 %v3608, %v3663
    %3665 = vmatmul.f32.gmra.mxu0 %v3555
    %v3666 = vpop.f32.mrf.mxu0
    %v3667 = vadd.f32 %v3611, %v3666
    %3668 = vmatmul.f32.gmra.mxu0 %v3558
    %v3669 = vpop.f32.mrf.mxu0
    %v3670 = vadd.f32 %v3614, %v3669
    %3671 = vmatmul.f32.gmra.mxu0 %v3561
    %v3672 = vpop.f32.mrf.mxu0
    %v3673 = vadd.f32 %v3617, %v3672
    %3674 = vmatmul.f32.gmra.mxu0 %v3564
    %v3675 = vpop.f32.mrf.mxu0
    %v3676 = vadd.f32 %v3620, %v3675
    %3677 = vmatmul.f32.gmra.mxu0 %v3567
    %v3678 = vpop.f32.mrf.mxu0
    %v3679 = vadd.f32 %v3623, %v3678
    %3680 = vmatmul.f32.gmra.mxu0 %v3570
    %v3681 = vpop.f32.mrf.mxu0
    %v3682 = vadd.f32 %v3626, %v3681
    %3683 = vmatmul.f32.gmra.mxu0 %v3573
    %v3684 = vpop.f32.mrf.mxu0
    %v3685 = vadd.f32 %v3629, %v3684
    %3686 = vmatmul.f32.gmra.mxu0 %v3576
    %v3687 = vpop.f32.mrf.mxu0
    %v3688 = vadd.f32 %v3632, %v3687
    %3689 = vdwg.mxu0
    %v3690 = vmax.f32 %v3652, 0.0
    %v3691 = vmax.f32 %v3655, 0.0
    %v3692 = vmax.f32 %v3658, 0.0
    %v3693 = vmax.f32 %v3661, 0.0
    %v3694 = vmax.f32 %v3664, 0.0
    %v3695 = vmax.f32 %v3667, 0.0
    %v3696 = vmax.f32 %v3670, 0.0
    %v3697 = vmax.f32 %v3673, 0.0
    %v3698 = vmax.f32 %v3676, 0.0
    %v3699 = vmax.f32 %v3679, 0.0
    %v3700 = vmax.f32 %v3682, 0.0
    %v3701 = vmax.f32 %v3685, 0.0
    %v3702 = vmax.f32 %v3688, 0.0
    %v3703 = vld [vmem:[#allocation7] sm:$0xff]
    %v3704 = vld [vmem:[#allocation7 + $0x8] sm:$0xff]
    %v3705 = vld [vmem:[#allocation7 + $0x10] sm:$0xff]
    %v3706 = vld [vmem:[#allocation7 + $0x18] sm:$0xff]
    %v3707 = vld [vmem:[#allocation9] sm:$0xff]
    %v3708 = vld [vmem:[#allocation9 + $0x8] sm:$0xff]
    %v3709 = vld [vmem:[#allocation9 + $0x10] sm:$0xff]
    %v3710 = vld [vmem:[#allocation9 + $0x18] sm:$0xff]
    %3712 = vset.pattern.permute.xlu0 0
    %3713 = vperm.xlu0 %3712, %v3707
    %v3714 = vpop.permute.xlu0 %3713
    %3717 = vset.pattern.permute.xlu0 0
    %3718 = vperm.xlu0 %3717, %v3708
    %v3719 = vpop.permute.xlu0 %3718
    %3722 = vset.pattern.permute.xlu0 0
    %3723 = vperm.xlu0 %3722, %v3709
    %v3724 = vpop.permute.xlu0 %3723
    %3727 = vset.pattern.permute.xlu0 0
    %3728 = vperm.xlu0 %3727, %v3710
    %v3729 = vpop.permute.xlu0 %3728
    %vm3731 = vcmask 818176
    %v3733 = vsel %vm3731, %v3703, 0
    %v3736 = vsel %vm3731, %v3704, 0
    %v3739 = vsel %vm3731, %v3705, 0
    %v3742 = vsel %vm3731, %v3706, 0
    %v3745 = vsel %vm1682, %v3702, 0
    %3747 = vmatpush.msra.mxu0 0.0
    %3748 = vmatpush.msra.mxu0 0.0
    %3749 = vmatpush.msra.mxu0 0.0
    %3750 = vmatpush.msra.mxu0 %v3745
    %3751 = vmatpush.msra.mxu0 %v3701
    %3752 = vmatpush.msra.mxu0 %v3700
    %3753 = vmatpush.msra.mxu0 %v3699
    %3754 = vmatpush.msra.mxu0 %v3698
    %3755 = vmatpush.msra.mxu0 %v3697
    %3756 = vmatpush.msra.mxu0 %v3696
    %3757 = vmatpush.msra.mxu0 %v3695
    %3758 = vmatpush.msra.mxu0 %v3694
    %3759 = vmatpush.msra.mxu0 %v3693
    %3760 = vmatpush.msra.mxu0 %v3692
    %3761 = vmatpush.msra.mxu0 %v3691
    %3762 = vmatpush.msra.mxu0 %v3690
    %3763 = vmatmul.f32.gmra.mxu0 %v3733
    %v3764 = vpop.f32.mrf.mxu0
    %v3765 = vadd.f32 %v3714, %v3764
    %3766 = vmatmul.f32.gmra.mxu0 %v3736
    %v3767 = vpop.f32.mrf.mxu0
    %v3768 = vadd.f32 %v3719, %v3767
    %3769 = vmatmul.f32.gmra.mxu0 %v3739
    %v3770 = vpop.f32.mrf.mxu0
    %v3771 = vadd.f32 %v3724, %v3770
    %3772 = vmatmul.f32.gmra.mxu0 %v3742
    %v3773 = vpop.f32.mrf.mxu0
    %v3774 = vadd.f32 %v3729, %v3773
    %3775 = vdwg.mxu0
    %v3776 = vmul.f32 %v3771, 0.5
    %v3777 = vmul.f32 %v3774, 0.5
    %v3778 = vmul.f32 %v3776, 1.442695
    %v3779 = vpow.pop %v3778
    %v3780 = vmul.f32 %v3777, 1.442695
    %v3781 = vpow.pop %v3780
    %v3782 = vld [vmem:[%s13] sm:$0xff]
    %v3783 = vld [vmem:[%s13 + $0x8] sm:$0xff]
    %v3784 = vmul.f32 %v3779, %v3782
    %v3785 = vmul.f32 %v3781, %v3783
    %v3786 = vadd.f32 %v3765, %v3784
    %v3787 = vadd.f32 %v3768, %v3785
    %v3788 = vld [vmem:[#allocation10] sm:$0xff]
    %v3789 = vld [vmem:[#allocation10 + $0x8] sm:$0xff]
    %v3790 = vld [vmem:[#allocation10 + $0x10] sm:$0xff]
    %v3791 = vld [vmem:[#allocation10 + $0x18] sm:$0xff]
    %v3792 = vld [vmem:[#allocation10 + $0x20] sm:$0xff]
    %v3793 = vld [vmem:[#allocation10 + $0x28] sm:$0xff]
    %v3794 = vld [vmem:[#allocation10 + $0x30] sm:$0xff]
    %v3795 = vld [vmem:[#allocation10 + $0x38] sm:$0xff]
    %v3796 = vld [vmem:[#allocation10 + $0x40] sm:$0xff]
    %v3797 = vld [vmem:[#allocation10 + $0x48] sm:$0xff]
    %v3798 = vld [vmem:[#allocation10 + $0x50] sm:$0xff]
    %v3799 = vld [vmem:[#allocation10 + $0x58] sm:$0xff]
    %v3800 = vld [vmem:[#allocation10 + $0x60] sm:$0xff]
    %v3801 = vld [vmem:[#allocation10 + $0x68] sm:$0xff]
    %v3802 = vld [vmem:[#allocation10 + $0x70] sm:$0xff]
    %v3803 = vld [vmem:[#allocation10 + $0x78] sm:$0xff]
    %v3804 = vld [vmem:[#allocation12] sm:$0xff]
    %v3805 = vld [vmem:[#allocation12 + $0x8] sm:$0xff]
    %v3806 = vld [vmem:[#allocation12 + $0x10] sm:$0xff]
    %v3807 = vld [vmem:[#allocation12 + $0x18] sm:$0xff]
    %v3808 = vld [vmem:[#allocation12 + $0x20] sm:$0xff]
    %v3809 = vld [vmem:[#allocation12 + $0x28] sm:$0xff]
    %v3810 = vld [vmem:[#allocation12 + $0x30] sm:$0xff]
    %v3811 = vld [vmem:[#allocation12 + $0x38] sm:$0xff]
    %v3812 = vld [vmem:[#allocation12 + $0x40] sm:$0xff]
    %v3813 = vld [vmem:[#allocation12 + $0x48] sm:$0xff]
    %v3814 = vld [vmem:[#allocation12 + $0x50] sm:$0xff]
    %v3815 = vld [vmem:[#allocation12 + $0x58] sm:$0xff]
    %v3816 = vld [vmem:[#allocation12 + $0x60] sm:$0xff]
    %v3817 = vld [vmem:[#allocation12 + $0x68] sm:$0xff]
    %v3818 = vld [vmem:[#allocation12 + $0x70] sm:$0xff]
    %v3819 = vld [vmem:[#allocation12 + $0x78] sm:$0xff]
    %3821 = vset.pattern.permute.xlu0 0
    %3822 = vperm.xlu0 %3821, %v3804
    %v3823 = vpop.permute.xlu0 %3822
    %3826 = vset.pattern.permute.xlu0 0
    %3827 = vperm.xlu0 %3826, %v3805
    %v3828 = vpop.permute.xlu0 %3827
    %3831 = vset.pattern.permute.xlu0 0
    %3832 = vperm.xlu0 %3831, %v3806
    %v3833 = vpop.permute.xlu0 %3832
    %3836 = vset.pattern.permute.xlu0 0
    %3837 = vperm.xlu0 %3836, %v3807
    %v3838 = vpop.permute.xlu0 %3837
    %3841 = vset.pattern.permute.xlu0 0
    %3842 = vperm.xlu0 %3841, %v3808
    %v3843 = vpop.permute.xlu0 %3842
    %3846 = vset.pattern.permute.xlu0 0
    %3847 = vperm.xlu0 %3846, %v3809
    %v3848 = vpop.permute.xlu0 %3847
    %3851 = vset.pattern.permute.xlu0 0
    %3852 = vperm.xlu0 %3851, %v3810
    %v3853 = vpop.permute.xlu0 %3852
    %3856 = vset.pattern.permute.xlu0 0
    %3857 = vperm.xlu0 %3856, %v3811
    %v3858 = vpop.permute.xlu0 %3857
    %3861 = vset.pattern.permute.xlu0 0
    %3862 = vperm.xlu0 %3861, %v3812
    %v3863 = vpop.permute.xlu0 %3862
    %3866 = vset.pattern.permute.xlu0 0
    %3867 = vperm.xlu0 %3866, %v3813
    %v3868 = vpop.permute.xlu0 %3867
    %3871 = vset.pattern.permute.xlu0 0
    %3872 = vperm.xlu0 %3871, %v3814
    %v3873 = vpop.permute.xlu0 %3872
    %3876 = vset.pattern.permute.xlu0 0
    %3877 = vperm.xlu0 %3876, %v3815
    %v3878 = vpop.permute.xlu0 %3877
    %3881 = vset.pattern.permute.xlu0 0
    %3882 = vperm.xlu0 %3881, %v3816
    %v3883 = vpop.permute.xlu0 %3882
    %3886 = vset.pattern.permute.xlu0 0
    %3887 = vperm.xlu0 %3886, %v3817
    %v3888 = vpop.permute.xlu0 %3887
    %3891 = vset.pattern.permute.xlu0 0
    %3892 = vperm.xlu0 %3891, %v3818
    %v3893 = vpop.permute.xlu0 %3892
    %3896 = vset.pattern.permute.xlu0 0
    %3897 = vperm.xlu0 %3896, %v3819
    %v3898 = vpop.permute.xlu0 %3897
    %vm3900 = vcmask 130048
    %v3902 = vsel %vm3900, %v3788, 0
    %v3905 = vsel %vm3900, %v3789, 0
    %v3908 = vsel %vm3900, %v3790, 0
    %v3911 = vsel %vm3900, %v3791, 0
    %v3914 = vsel %vm3900, %v3792, 0
    %v3917 = vsel %vm3900, %v3793, 0
    %v3920 = vsel %vm3900, %v3794, 0
    %v3923 = vsel %vm3900, %v3795, 0
    %v3926 = vsel %vm3900, %v3796, 0
    %v3929 = vsel %vm3900, %v3797, 0
    %v3932 = vsel %vm3900, %v3798, 0
    %v3935 = vsel %vm3900, %v3799, 0
    %v3938 = vsel %vm3900, %v3800, 0
    %v3941 = vsel %vm3900, %v3801, 0
    %v3944 = vsel %vm3900, %v3802, 0
    %v3947 = vsel %vm3900, %v3803, 0
    %3949 = vmatpush.msra.mxu0 0.0
    %3950 = vmatpush.msra.mxu0 0.0
    %3951 = vmatpush.msra.mxu0 0.0
    %3952 = vmatpush.msra.mxu0 0.0
    %3953 = vmatpush.msra.mxu0 0.0
    %3954 = vmatpush.msra.mxu0 0.0
    %3955 = vmatpush.msra.mxu0 0.0
    %3956 = vmatpush.msra.mxu0 0.0
    %3957 = vmatpush.msra.mxu0 0.0
    %3958 = vmatpush.msra.mxu0 0.0
    %3959 = vmatpush.msra.mxu0 0.0
    %3960 = vmatpush.msra.mxu0 0.0
    %3961 = vmatpush.msra.mxu0 0.0
    %3962 = vmatpush.msra.mxu0 0.0
    %3963 = vmatpush.msra.mxu0 %v3787
    %3964 = vmatpush.msra.mxu0 %v3786
    %3965 = vmatmul.f32.gmra.mxu0 %v3902
    %v3966 = vpop.f32.mrf.mxu0
    %v3967 = vadd.f32 %v3823, %v3966
    %3968 = vmatmul.f32.gmra.mxu0 %v3905
    %v3969 = vpop.f32.mrf.mxu0
    %v3970 = vadd.f32 %v3828, %v3969
    %3971 = vmatmul.f32.gmra.mxu0 %v3908
    %v3972 = vpop.f32.mrf.mxu0
    %v3973 = vadd.f32 %v3833, %v3972
    %3974 = vmatmul.f32.gmra.mxu0 %v3911
    %v3975 = vpop.f32.mrf.mxu0
    %v3976 = vadd.f32 %v3838, %v3975
    %3977 = vmatmul.f32.gmra.mxu0 %v3914
    %v3978 = vpop.f32.mrf.mxu0
    %v3979 = vadd.f32 %v3843, %v3978
    %3980 = vmatmul.f32.gmra.mxu0 %v3917
    %v3981 = vpop.f32.mrf.mxu0
    %v3982 = vadd.f32 %v3848, %v3981
    %3983 = vmatmul.f32.gmra.mxu0 %v3920
    %v3984 = vpop.f32.mrf.mxu0
    %v3985 = vadd.f32 %v3853, %v3984
    %3986 = vmatmul.f32.gmra.mxu0 %v3923
    %v3987 = vpop.f32.mrf.mxu0
    %v3988 = vadd.f32 %v3858, %v3987
    %3989 = vmatmul.f32.gmra.mxu0 %v3926
    %v3990 = vpop.f32.mrf.mxu0
    %v3991 = vadd.f32 %v3863, %v3990
    %3992 = vmatmul.f32.gmra.mxu0 %v3929
    %v3993 = vpop.f32.mrf.mxu0
    %v3994 = vadd.f32 %v3868, %v3993
    %3995 = vmatmul.f32.gmra.mxu0 %v3932
    %v3996 = vpop.f32.mrf.mxu0
    %v3997 = vadd.f32 %v3873, %v3996
    %3998 = vmatmul.f32.gmra.mxu0 %v3935
    %v3999 = vpop.f32.mrf.mxu0
    %v4000 = vadd.f32 %v3878, %v3999
    %4001 = vmatmul.f32.gmra.mxu0 %v3938
    %v4002 = vpop.f32.mrf.mxu0
    %v4003 = vadd.f32 %v3883, %v4002
    %4004 = vmatmul.f32.gmra.mxu0 %v3941
    %v4005 = vpop.f32.mrf.mxu0
    %v4006 = vadd.f32 %v3888, %v4005
    %4007 = vmatmul.f32.gmra.mxu0 %v3944
    %v4008 = vpop.f32.mrf.mxu0
    %v4009 = vadd.f32 %v3893, %v4008
    %4010 = vmatmul.f32.gmra.mxu0 %v3947
    %v4011 = vpop.f32.mrf.mxu0
    %v4012 = vadd.f32 %v3898, %v4011
    %4013 = vdwg.mxu0
    %vm4014 = vcmask 15360
    %4015 = vst.msk [vmem:[%s14] sm:$0xff] %vm4014, %v3765
    %4016 = vst.msk [vmem:[%s14 + $0x8] sm:$0xff] %vm4014, %v3768
    %4017 = vst.msk [vmem:[%s15] sm:$0xff] %vm4014, %v3771
    %4018 = vst.msk [vmem:[%s15 + $0x8] sm:$0xff] %vm4014, %v3774
    %4019 = vst.msk [vmem:[%s16] sm:$0xff] %vm4014, %v3967
    %4020 = vst.msk [vmem:[%s16 + $0x8] sm:$0xff] %vm4014, %v3970
    %4021 = vst.msk [vmem:[%s16 + $0x10] sm:$0xff] %vm4014, %v3973
    %4022 = vst.msk [vmem:[%s16 + $0x18] sm:$0xff] %vm4014, %v3976
    %4023 = vst.msk [vmem:[%s16 + $0x20] sm:$0xff] %vm4014, %v3979
    %4024 = vst.msk [vmem:[%s16 + $0x28] sm:$0xff] %vm4014, %v3982
    %4025 = vst.msk [vmem:[%s16 + $0x30] sm:$0xff] %vm4014, %v3985
    %4026 = vst.msk [vmem:[%s16 + $0x38] sm:$0xff] %vm4014, %v3988
    %4027 = vst.msk [vmem:[%s16 + $0x40] sm:$0xff] %vm4014, %v3991
    %4028 = vst.msk [vmem:[%s16 + $0x48] sm:$0xff] %vm4014, %v3994
    %4029 = vst.msk [vmem:[%s16 + $0x50] sm:$0xff] %vm4014, %v3997
    %4030 = vst.msk [vmem:[%s16 + $0x58] sm:$0xff] %vm4014, %v4000
    %4031 = vst.msk [vmem:[%s16 + $0x60] sm:$0xff] %vm4014, %v4003
    %4032 = vst.msk [vmem:[%s16 + $0x68] sm:$0xff] %vm4014, %v4006
    %4033 = vst.msk [vmem:[%s16 + $0x70] sm:$0xff] %vm4014, %v4009
    %4034 = vst.msk [vmem:[%s16 + $0x78] sm:$0xff] %vm4014, %v4012
    // Predicated region
    $region86: #{_lambda_.2} parent=1 // pred_check
      _
    $region87: #{_lambda_.2} parent=1 // pred_check_branch
      %4036 = sbr.rel (0) target = $region89
    $region88: #{_lambda_.2} parent=1 // pred_region
      _
    $region89: #{_lambda_.2} parent=1 // pred_fallthru
      _
    // Predicated region
    $region90: #{_lambda_.2} parent=1 // pred_check
      _
    $region91: #{_lambda_.2} parent=1 // pred_check_branch
      %4038 = sbr.rel (0) target = $region93
    $region92: #{_lambda_.2} parent=1 // pred_region
      _
    $region93: #{_lambda_.2} parent=1 // pred_fallthru
      _
    // Predicated region
    $region94: #{_lambda_.2} parent=1 // pred_check
      _
    $region95: #{_lambda_.2} parent=1 // pred_check_branch
      %4040 = sbr.rel (0) target = $region97
    $region96: #{_lambda_.2} parent=1 // pred_region
      _
    $region97: #{_lambda_.2} parent=1 // pred_fallthru
      _
    // Predicated region
    $region98: #{_lambda_.2} parent=1 // pred_check
      _
    $region99: #{_lambda_.2} parent=1 // pred_check_branch
      %4042 = sbr.rel (0) target = $region101
    $region100: #{_lambda_.2} parent=1 // pred_region
      _
    $region101: #{_lambda_.2} parent=1 // pred_fallthru
      _
    // Predicated region
    $region102: #{_lambda_.2} parent=1 // pred_check
      _
    $region103: #{_lambda_.2} parent=1 // pred_check_branch
      %4044 = sbr.rel (0) target = $region105
    $region104: #{_lambda_.2} parent=1 // pred_region
      _
    $region105: #{_lambda_.2} parent=1 // pred_fallthru
      _
    // Predicated region
    $region106: #{_lambda_.2} parent=1 // pred_check
      _
    $region107: #{_lambda_.2} parent=1 // pred_check_branch
      %4046 = sbr.rel (0) target = $region109
    $region108: #{_lambda_.2} parent=1 // pred_region
      _
    $region109: #{_lambda_.2} parent=1 // pred_fallthru
      _
    %4047 = vsyncpa [#allocation3], 1
    %4048 = vsyncpa [#allocation5], 1
    %4049 = vsyncpa [#allocation8], 1
    %4050 = vsyncpa [#allocation11], 1

</llo_original>
